<compile_context>
chip_gen: v5e
topology: v5e:2x2
jax: 0.10.0
libtpu: 0.0.40
codegen_flags: <defaults>
</compile_context>

<pallas_src>
import functools

import jax
import jax.numpy as jnp
from jax.experimental import pallas as pl
from jax.experimental.pallas import tpu as pltpu

_VMEM_LIMIT = 32 * 1024 * 1024  # safe on v5e/v6e (128 MiB) and v7x (64 MiB physical)


# -----------------------------------------------------------------------------
# Fully fused network kernel (one batch block of `tb` images per grid step)
# -----------------------------------------------------------------------------
def _fused_cnn_kernel(
    p1_ref, w1_ref, b1_ref, w2_ref, b2_ref, w3_ref, b3_ref,
    wfc1_ref, bfc1_ref, wfc2_ref, bfc2_ref,
    o_ref,
    xp2_ref, p2_ref, xp3_ref, p3_ref,
    hp1_ref, hp2_ref, hp3_ref, c3p_ref, a3f_ref,
    *, tb):
    f32 = jnp.float32
    bf16 = jnp.bfloat16

    # ---------------- Stage 1: conv1 (3->32, fused K=27) + ReLU + 2x2 pool ----
    lhs1 = p1_ref[...].reshape(tb * 1024, 27)                # bf16, rows (b,h,w)
    a1 = jnp.dot(lhs1, w1_ref[...], preferred_element_type=f32)  # (tb*1024, 32)
    a1 = jnp.maximum(a1 + b1_ref[...], 0.0)
    a1 = a1.reshape(tb, 16, 2, 32, 32)                       # (b, ho, hi, w, c)
    hp1_ref[...] = jnp.maximum(a1[:, :, 0], a1[:, :, 1]).reshape(tb * 512, 32)
    pool1 = jnp.maximum(hp1_ref[pl.ds(0, tb * 256, stride=2), :],
                        hp1_ref[pl.ds(1, tb * 256, stride=2), :])  # rows (b,ho,wo)

    # Stage-2 padded input: zero the 1-px halo (every step -> megacore-safe),
    # write the pooled activations into the interior.  No HBM traffic.
    xp2_ref[:, 0:1, :, :] = jnp.zeros((tb, 1, 18, 32), f32)
    xp2_ref[:, 17:18, :, :] = jnp.zeros((tb, 1, 18, 32), f32)
    xp2_ref[:, :, 0:1, :] = jnp.zeros((tb, 18, 1, 32), f32)
    xp2_ref[:, :, 17:18, :] = jnp.zeros((tb, 18, 1, 32), f32)
    xp2_ref[:, 1:17, 1:17, :] = pool1.reshape(tb, 16, 16, 32)

    # ---------------- Stage 2: conv2 (32->64, fused K=288) + ReLU + pool ------
    for kh in range(3):
        for kw in range(3):
            t = kh * 3 + kw
            patch = xp2_ref[:, kh:kh + 16, kw:kw + 16, :]     # (tb,16,16,32)
            p2_ref[:, t * 32:(t + 1) * 32] = patch.reshape(tb * 256, 32).astype(bf16)
    a2 = jnp.dot(p2_ref[...], w2_ref[...], preferred_element_type=f32)  # (tb*256,64)
    a2 = jnp.maximum(a2 + b2_ref[...], 0.0)
    a2 = a2.reshape(tb, 8, 2, 16, 64)
    hp2_ref[...] = jnp.maximum(a2[:, :, 0], a2[:, :, 1]).reshape(tb * 128, 64)
    pool2 = jnp.maximum(hp2_ref[pl.ds(0, tb * 64, stride=2), :],
                        hp2_ref[pl.ds(1, tb * 64, stride=2), :])        # (tb*64,64)

    xp3_ref[:, 0:1, :, :] = jnp.zeros((tb, 1, 10, 64), f32)
    xp3_ref[:, 9:10, :, :] = jnp.zeros((tb, 1, 10, 64), f32)
    xp3_ref[:, :, 0:1, :] = jnp.zeros((tb, 10, 1, 64), f32)
    xp3_ref[:, :, 9:10, :] = jnp.zeros((tb, 10, 1, 64), f32)
    xp3_ref[:, 1:9, 1:9, :] = pool2.reshape(tb, 8, 8, 64)

    # ---------------- Stage 3: conv3 (64->64, fused K=576) + ReLU + pool ------
    for kh in range(3):
        for kw in range(3):
            t = kh * 3 + kw
            patch = xp3_ref[:, kh:kh + 8, kw:kw + 8, :]       # (tb,8,8,64)
            p3_ref[:, t * 64:(t + 1) * 64] = patch.reshape(tb * 64, 64).astype(bf16)
    a3 = jnp.dot(p3_ref[...], w3_ref[...], preferred_element_type=f32)  # (tb*64,64)
    a3 = jnp.maximum(a3 + b3_ref[...], 0.0)
    a3 = a3.reshape(tb, 4, 2, 8, 64)
    hp3_ref[...] = jnp.maximum(a3[:, :, 0], a3[:, :, 1]).reshape(tb * 32, 64)
    c3p_ref[...] = jnp.maximum(hp3_ref[pl.ds(0, tb * 16, stride=2), :],
                               hp3_ref[pl.ds(1, tb * 16, stride=2), :])  # rows (b,ho,wo)

    # Flatten to (tb, 1024) in (h, w, c) order; fc1's weight is pre-permuted
    # in prepare_params() to consume exactly this ordering.
    for p in range(16):
        a3f_ref[:, p * 64:(p + 1) * 64] = (
            c3p_ref[pl.ds(p, tb, stride=16), :].astype(bf16))

    # ---------------- fc1 + ReLU (+ eval-mode dropout) + fc2 ------------------
    feats = jnp.dot(a3f_ref[...], wfc1_ref[...], preferred_element_type=f32)
    feats = jnp.maximum(feats + bfc1_ref[...], 0.0)
    # TODO(synk): nn.Dropout(0.5) is stochastic only in train mode; eval-mode identity here.
    logits = jnp.dot(feats.astype(bf16), wfc2_ref[...], preferred_element_type=f32)
    o_ref[...] = (logits + bfc2_ref[...]).astype(o_ref.dtype)


# -----------------------------------------------------------------------------
# Wrapper
# -----------------------------------------------------------------------------
@functools.partial(jax.jit, static_argnames=("block_b",))
def enhanced_scaling_cnn_forward(prep, x_nchw, *, block_b=8):
    """x: (B, 3, 32, 32) NCHW f32 -> logits (B, 10) f32 (external_features=None)."""
    B, C, H, W = x_nchw.shape
    assert (C, H, W) == (3, 32, 32), "EnhancedScalingCNN requires 3x32x32 inputs"
    assert block_b % 8 == 0, "block_b must be a multiple of 8"

    # One-time, tiny (12 KiB/image) repack of the network input into lane-dense
    # stage-1 im2col patches (B, 1024, 27) bf16, column order (kh, kw, cin).
    x = jnp.transpose(x_nchw, (0, 2, 3, 1)).astype(jnp.float32)        # NHWC
    xpad = jnp.pad(x, ((0, 0), (1, 1), (1, 1), (0, 0)))
    cols = [xpad[:, kh:kh + 32, kw:kw + 32, :]
            for kh in range(3) for kw in range(3)]
    p1 = jnp.concatenate(cols, axis=-1).reshape(B, 1024, 27).astype(jnp.bfloat16)

    tb = B if B <= block_b else block_b
    Bp = pl.cdiv(B, tb) * tb
    if Bp != B:
        p1 = jnp.pad(p1, ((0, Bp - B), (0, 0), (0, 0)))

    out = pl.pallas_call(
        functools.partial(_fused_cnn_kernel, tb=tb),
        out_shape=jax.ShapeDtypeStruct((Bp, 128), jnp.float32),
        grid=(Bp // tb,),
        in_specs=[
            pl.BlockSpec((tb, 1024, 27), lambda b: (b, 0, 0)),   # stage-1 patches
            pl.BlockSpec((27, 32), lambda b: (0, 0)),            # w1 (resident)
            pl.BlockSpec((1, 32), lambda b: (0, 0)),             # b1
            pl.BlockSpec((288, 64), lambda b: (0, 0)),           # w2
            pl.BlockSpec((1, 64), lambda b: (0, 0)),             # b2
            pl.BlockSpec((576, 64), lambda b: (0, 0)),           # w3
            pl.BlockSpec((1, 64), lambda b: (0, 0)),             # b3
            pl.BlockSpec((1024, 512), lambda b: (0, 0)),         # wfc1
            pl.BlockSpec((1, 512), lambda b: (0, 0)),            # bfc1
            pl.BlockSpec((512, 128), lambda b: (0, 0)),          # wfc2 (lane-padded)
            pl.BlockSpec((1, 128), lambda b: (0, 0)),            # bfc2
        ],
        out_specs=pl.BlockSpec((tb, 128), lambda b: (b, 0)),
        scratch_shapes=[
            pltpu.VMEM((tb, 18, 18, 32), jnp.float32),   # xp2: padded stage-2 input
            pltpu.VMEM((tb * 256, 288), jnp.bfloat16),   # p2:  stage-2 im2col patches
            pltpu.VMEM((tb, 10, 10, 64), jnp.float32),   # xp3: padded stage-3 input
            pltpu.VMEM((tb * 64, 576), jnp.bfloat16),    # p3:  stage-3 im2col patches
            pltpu.VMEM((tb * 512, 32), jnp.float32),     # hp1: stage-1 H-pooled
            pltpu.VMEM((tb * 128, 64), jnp.float32),     # hp2
            pltpu.VMEM((tb * 32, 64), jnp.float32),      # hp3
            pltpu.VMEM((tb * 16, 64), jnp.float32),      # c3p: stage-3 pooled
            pltpu.VMEM((tb, 1024), jnp.bfloat16),        # a3f: flattened fc1 input
        ],
        compiler_params=pltpu.CompilerParams(
            dimension_semantics=("parallel",),
            vmem_limit_bytes=_VMEM_LIMIT,
        ),
    )(p1, prep["w1"], prep["b1"], prep["w2"], prep["b2"], prep["w3"], prep["b3"],
      prep["wfc1"], prep["bfc1"], prep["wfc2"], prep["bfc2"])

    return out[:B, :10]


# -----------------------------------------------------------------------------
# Parameters (deterministic PyTorch-default-style init) + one-time layout prep
# -----------------------------------------------------------------------------
def init_params(key):
    def uniform(k, shape, fan_in):
        bound = 1.0 / jnp.sqrt(float(fan_in))
        return jax.random.uniform(k, shape, dtype=jnp.float32,
                                  minval=-bound, maxval=bound)

    ks = jax.random.split(key, 10)
    p = {}
    p["w1"] = uniform(ks[0], (32, 3, 3, 3), 3 * 9)
    p["b1"] = uniform(ks[1], (32,), 3 * 9)
    p["w2"] = uniform(ks[2], (64, 32, 3, 3), 32 * 9)
    p["b2"] = uniform(ks[3], (64,), 32 * 9)
    p["w3"] = uniform(ks[4], (64, 64, 3, 3), 64 * 9)
    p["b3"] = uniform(ks[5], (64,), 64 * 9)
    p["wfc1"] = uniform(ks[6], (512, 1024), 1024)
    p["bfc1"] = uniform(ks[7], (512,), 1024)
    p["wfc2"] = uniform(ks[8], (10, 512), 512)
    p["bfc2"] = uniform(ks[9], (10,), 512)
    return p


def prepare_params(p):
    """Hoisted one-time weight layout transforms (run once, outside the jit)."""
    def conv_w(w_oihw):
        cout, cin = w_oihw.shape[0], w_oihw.shape[1]
        # (Cout,Cin,KH,KW) -> (KH,KW,Cin,Cout) -> (9*Cin, Cout), (kh,kw,cin)-major.
        return jnp.transpose(w_oihw, (2, 3, 1, 0)).reshape(9 * cin, cout).astype(jnp.bfloat16)

    q = {}
    q["w1"], q["b1"] = conv_w(p["w1"]), p["b1"].reshape(1, -1).astype(jnp.float32)
    q["w2"], q["b2"] = conv_w(p["w2"]), p["b2"].reshape(1, -1).astype(jnp.float32)
    q["w3"], q["b3"] = conv_w(p["w3"]), p["b3"].reshape(1, -1).astype(jnp.float32)

    # fc1 consumes the (h, w, c)-flattened activations produced in-kernel:
    # permute the PyTorch (c, h, w)-ordered input dim of the weight once here.
    w = p["wfc1"].T.reshape(64, 4, 4, 512)                       # (c, h, w, out)
    q["wfc1"] = jnp.transpose(w, (1, 2, 0, 3)).reshape(1024, 512).astype(jnp.bfloat16)
    q["bfc1"] = p["bfc1"].reshape(1, 512).astype(jnp.float32)

    # fc2: (10,512) -> (512,10), pad outputs 10 -> 128 for lane-dense stores.
    q["wfc2"] = jnp.pad(p["wfc2"].T, ((0, 0), (0, 118))).astype(jnp.bfloat16)
    q["bfc2"] = jnp.pad(p["bfc2"], (0, 118)).reshape(1, 128).astype(jnp.float32)
    return q


# -----------------------------------------------------------------------------
# Pure-JAX reference (f32, uses the RAW PyTorch-layout params) for validation
# -----------------------------------------------------------------------------
def _reference_forward(p, x_nchw):
    x = x_nchw.astype(jnp.float32)

    def conv_relu_pool(x, w, b):
        y = jax.lax.conv_general_dilated(
            x, w, window_strides=(1, 1), padding=((1, 1), (1, 1)),
            dimension_numbers=("NCHW", "OIHW", "NCHW"))
        y = jnp.maximum(y + b.reshape(1, -1, 1, 1), 0.0)
        B, C, H, W = y.shape
        return y.reshape(B, C, H // 2, 2, W // 2, 2).max(axis=(3, 5))

    x = conv_relu_pool(x, p["w1"], p["b1"])
    x = conv_relu_pool(x, p["w2"], p["b2"])
    x = conv_relu_pool(x, p["w3"], p["b3"])
    flat = x.reshape(x.shape[0], -1)                    # PyTorch (c,h,w) order
    feats = jnp.maximum(flat @ p["wfc1"].T + p["bfc1"], 0.0)
    return feats @ p["wfc2"].T + p["bfc2"]


if __name__ == "__main__":
    key = jax.random.PRNGKey(0)
    k_param, k_x = jax.random.split(key)
    raw_params = init_params(k_param)
    prep = prepare_params(raw_params)
    # Spatial size must be 32x32 so three 2x2 pools give 4x4 (Linear 64*4*4).
    x = jax.random.normal(k_x, (2, 3, 32, 32), dtype=jnp.float32)

    logits = enhanced_scaling_cnn_forward(prep, x)
    logits = jax.block_until_ready(logits)
    assert logits.shape == (2, 10) and logits.dtype == jnp.float32

    # bf16 MXU operands with f32 accumulation -> loose tolerance vs f32 reference.
    ref = _reference_forward(raw_params, x)
    err = float(jnp.max(jnp.abs(logits - ref)))
    assert err < 2.5e-2, f"mismatch vs pure-JAX reference: max_abs_err={err}"
    print("KERNEL_OK")
</pallas_src>

<mosaic_0001>
module attributes {stable_mosaic.version = 11 : i64} {
  func.func @_fused_cnn_kernel(%arg0: i32, %arg1: memref<2x1024x27xbf16, #tpu.memory_space<vmem>>, %arg2: memref<27x32xbf16, #tpu.memory_space<vmem>>, %arg3: memref<1x32xf32, #tpu.memory_space<vmem>>, %arg4: memref<288x64xbf16, #tpu.memory_space<vmem>>, %arg5: memref<1x64xf32, #tpu.memory_space<vmem>>, %arg6: memref<576x64xbf16, #tpu.memory_space<vmem>>, %arg7: memref<1x64xf32, #tpu.memory_space<vmem>>, %arg8: memref<1024x512xbf16, #tpu.memory_space<vmem>>, %arg9: memref<1x512xf32, #tpu.memory_space<vmem>>, %arg10: memref<512x128xbf16, #tpu.memory_space<vmem>>, %arg11: memref<1x128xf32, #tpu.memory_space<vmem>>, %arg12: memref<2x128xf32, #tpu.memory_space<vmem>>, %arg13: memref<2x18x18x32xf32, #tpu.memory_space<vmem>>, %arg14: memref<512x288xbf16, #tpu.memory_space<vmem>>, %arg15: memref<2x10x10x64xf32, #tpu.memory_space<vmem>>, %arg16: memref<128x576xbf16, #tpu.memory_space<vmem>>, %arg17: memref<1024x32xf32, #tpu.memory_space<vmem>>, %arg18: memref<256x64xf32, #tpu.memory_space<vmem>>, %arg19: memref<64x64xf32, #tpu.memory_space<vmem>>, %arg20: memref<32x64xf32, #tpu.memory_space<vmem>>, %arg21: memref<2x1024xbf16, #tpu.memory_space<vmem>>) attributes {dimension_semantics = [#tpu.dimension_semantics<parallel>], iteration_bounds = array<i64: 1>, scalar_prefetch = 0 : i64, scratch_operands = 9 : i64, tpu.core_type = #tpu.core_type<tc>, window_params = [{transform_indices = @transform_0, window_bounds = array<i64: 2, 1024, 27>}, {pipeline_mode = #tpu.pipeline_mode<synchronous>, transform_indices = @transform_1, window_bounds = array<i64: 27, 32>}, {pipeline_mode = #tpu.pipeline_mode<synchronous>, transform_indices = @transform_2, window_bounds = array<i64: 1, 32>}, {pipeline_mode = #tpu.pipeline_mode<synchronous>, transform_indices = @transform_3, window_bounds = array<i64: 288, 64>}, {pipeline_mode = #tpu.pipeline_mode<synchronous>, transform_indices = @transform_4, window_bounds = array<i64: 1, 64>}, {pipeline_mode = #tpu.pipeline_mode<synchronous>, transform_indices = @transform_5, window_bounds = array<i64: 576, 64>}, {pipeline_mode = #tpu.pipeline_mode<synchronous>, transform_indices = @transform_6, window_bounds = array<i64: 1, 64>}, {pipeline_mode = #tpu.pipeline_mode<synchronous>, transform_indices = @transform_7, window_bounds = array<i64: 1024, 512>}, {pipeline_mode = #tpu.pipeline_mode<synchronous>, transform_indices = @transform_8, window_bounds = array<i64: 1, 512>}, {pipeline_mode = #tpu.pipeline_mode<synchronous>, transform_indices = @transform_9, window_bounds = array<i64: 512, 128>}, {pipeline_mode = #tpu.pipeline_mode<synchronous>, transform_indices = @transform_10, window_bounds = array<i64: 1, 128>}, {transform_indices = @transform_11, window_bounds = array<i64: 2, 128>}]} {
    %c0 = arith.constant 0 : index
    %c0_0 = arith.constant 0 : index
    %c0_1 = arith.constant 0 : index
    %0 = vector.load %arg1[%c0, %c0_0, %c0_1] : memref<2x1024x27xbf16, #tpu.memory_space<vmem>>, vector<2x1024x27xbf16>
    %1 = vector.shape_cast %0 : vector<2x1024x27xbf16> to vector<2048x27xbf16>
    %c0_2 = arith.constant 0 : index
    %c0_3 = arith.constant 0 : index
    %2 = vector.load %arg2[%c0_2, %c0_3] : memref<27x32xbf16, #tpu.memory_space<vmem>>, vector<27x32xbf16>
    %cst = arith.constant dense<0.000000e+00> : vector<2048x32xf32>
    %3 = tpu.matmul %1, %2, %cst {dimension_numbers = #tpu.dot_dimension_numbers<[1], [0], [0], [1], [0, 0, 1, 1], [], []>} : vector<2048x27xbf16>, vector<27x32xbf16>, vector<2048x32xf32> -> vector<2048x32xf32>
    %c0_4 = arith.constant 0 : index
    %c0_5 = arith.constant 0 : index
    %4 = vector.load %arg3[%c0_4, %c0_5] : memref<1x32xf32, #tpu.memory_space<vmem>>, vector<1x32xf32>
    %5 = vector.broadcast %4 : vector<1x32xf32> to vector<2048x32xf32>
    %6 = arith.addf %3, %5 : vector<2048x32xf32>
    %cst_6 = arith.constant 0.000000e+00 : f32
    %7 = vector.broadcast %cst_6 : f32 to vector<2048x32xf32>
    %8 = arith.maximumf %6, %7 : vector<2048x32xf32>
    %9 = vector.shape_cast %8 : vector<2048x32xf32> to vector<2x16x2x32x32xf32>
    %10 = vector.extract_strided_slice %9 {offsets = [0, 0, 0, 0, 0], sizes = [2, 16, 1, 32, 32], strides = [1, 1, 1, 1, 1]} : vector<2x16x2x32x32xf32> to vector<2x16x1x32x32xf32>
    %11 = vector.shape_cast %10 : vector<2x16x1x32x32xf32> to vector<2x16x32x32xf32>
    %12 = vector.extract_strided_slice %9 {offsets = [0, 0, 1, 0, 0], sizes = [2, 16, 1, 32, 32], strides = [1, 1, 1, 1, 1]} : vector<2x16x2x32x32xf32> to vector<2x16x1x32x32xf32>
    %13 = vector.shape_cast %12 : vector<2x16x1x32x32xf32> to vector<2x16x32x32xf32>
    %14 = arith.maximumf %11, %13 : vector<2x16x32x32xf32>
    %15 = vector.shape_cast %14 : vector<2x16x32x32xf32> to vector<1024x32xf32>
    %c0_7 = arith.constant 0 : index
    %c0_8 = arith.constant 0 : index
    %16 = vector.load %arg17[%c0_7, %c0_8] : memref<1024x32xf32, #tpu.memory_space<vmem>>, vector<1024x32xf32>
    tpu.vector_store %arg17[%c0_7, %c0_8], %15 {strides = array<i32>} : memref<1024x32xf32, #tpu.memory_space<vmem>>, vector<1024x32xf32>,
    %c0_9 = arith.constant 0 : index
    %c0_10 = arith.constant 0 : index
    %17 = tpu.strided_load %arg17[%c0_9, %c0_10] {strides = array<i32: 2, 1>} : memref<1024x32xf32, #tpu.memory_space<vmem>>, vector<512x32xf32>
    %c1 = arith.constant 1 : index
    %c0_11 = arith.constant 0 : index
    %18 = tpu.strided_load %arg17[%c1, %c0_11] {strides = array<i32: 2, 1>} : memref<1024x32xf32, #tpu.memory_space<vmem>>, vector<512x32xf32>
    %19 = arith.maximumf %17, %18 : vector<512x32xf32>
    %cst_12 = arith.constant 0.000000e+00 : f32
    %20 = vector.broadcast %cst_12 : f32 to vector<2x1x18x32xf32>
    %c0_13 = arith.constant 0 : index
    %c0_14 = arith.constant 0 : index
    %c0_15 = arith.constant 0 : index
    %c0_16 = arith.constant 0 : index
    %21 = vector.load %arg13[%c0_13, %c0_14, %c0_15, %c0_16] : memref<2x18x18x32xf32, #tpu.memory_space<vmem>>, vector<2x1x18x32xf32>
    tpu.vector_store %arg13[%c0_13, %c0_14, %c0_15, %c0_16], %20 {strides = array<i32>} : memref<2x18x18x32xf32, #tpu.memory_space<vmem>>, vector<2x1x18x32xf32>,
    %cst_17 = arith.constant 0.000000e+00 : f32
    %22 = vector.broadcast %cst_17 : f32 to vector<2x1x18x32xf32>
    %c0_18 = arith.constant 0 : index
    %c17 = arith.constant 17 : index
    %c0_19 = arith.constant 0 : index
    %c0_20 = arith.constant 0 : index
    %23 = vector.load %arg13[%c0_18, %c17, %c0_19, %c0_20] : memref<2x18x18x32xf32, #tpu.memory_space<vmem>>, vector<2x1x18x32xf32>
    tpu.vector_store %arg13[%c0_18, %c17, %c0_19, %c0_20], %22 {strides = array<i32>} : memref<2x18x18x32xf32, #tpu.memory_space<vmem>>, vector<2x1x18x32xf32>,
    %cst_21 = arith.constant 0.000000e+00 : f32
    %24 = vector.broadcast %cst_21 : f32 to vector<2x18x1x32xf32>
    %c0_22 = arith.constant 0 : index
    %c0_23 = arith.constant 0 : index
    %c0_24 = arith.constant 0 : index
    %c0_25 = arith.constant 0 : index
    %25 = vector.load %arg13[%c0_22, %c0_23, %c0_24, %c0_25] : memref<2x18x18x32xf32, #tpu.memory_space<vmem>>, vector<2x18x1x32xf32>
    tpu.vector_store %arg13[%c0_22, %c0_23, %c0_24, %c0_25], %24 {strides = array<i32>} : memref<2x18x18x32xf32, #tpu.memory_space<vmem>>, vector<2x18x1x32xf32>,
    %cst_26 = arith.constant 0.000000e+00 : f32
    %26 = vector.broadcast %cst_26 : f32 to vector<2x18x1x32xf32>
    %c0_27 = arith.constant 0 : index
    %c0_28 = arith.constant 0 : index
    %c17_29 = arith.constant 17 : index
    %c0_30 = arith.constant 0 : index
    %27 = vector.load %arg13[%c0_27, %c0_28, %c17_29, %c0_30] : memref<2x18x18x32xf32, #tpu.memory_space<vmem>>, vector<2x18x1x32xf32>
    tpu.vector_store %arg13[%c0_27, %c0_28, %c17_29, %c0_30], %26 {strides = array<i32>} : memref<2x18x18x32xf32, #tpu.memory_space<vmem>>, vector<2x18x1x32xf32>,
    %28 = vector.shape_cast %19 : vector<512x32xf32> to vector<2x16x16x32xf32>
    %c0_31 = arith.constant 0 : index
    %c1_32 = arith.constant 1 : index
    %c1_33 = arith.constant 1 : index
    %c0_34 = arith.constant 0 : index
    %29 = vector.load %arg13[%c0_31, %c1_32, %c1_33, %c0_34] : memref<2x18x18x32xf32, #tpu.memory_space<vmem>>, vector<2x16x16x32xf32>
    tpu.vector_store %arg13[%c0_31, %c1_32, %c1_33, %c0_34], %28 {strides = array<i32>} : memref<2x18x18x32xf32, #tpu.memory_space<vmem>>, vector<2x16x16x32xf32>,
    %c0_35 = arith.constant 0 : index
    %c0_36 = arith.constant 0 : index
    %c0_37 = arith.constant 0 : index
    %c0_38 = arith.constant 0 : index
    %30 = vector.load %arg13[%c0_35, %c0_36, %c0_37, %c0_38] : memref<2x18x18x32xf32, #tpu.memory_space<vmem>>, vector<2x16x16x32xf32>
    %31 = vector.shape_cast %30 : vector<2x16x16x32xf32> to vector<512x32xf32>
    %32 = arith.truncf %31 : vector<512x32xf32> to vector<512x32xbf16>
    %c0_39 = arith.constant 0 : index
    %c0_40 = arith.constant 0 : index
    %33 = vector.load %arg14[%c0_39, %c0_40] : memref<512x288xbf16, #tpu.memory_space<vmem>>, vector<512x32xbf16>
    tpu.vector_store %arg14[%c0_39, %c0_40], %32 {strides = array<i32>} : memref<512x288xbf16, #tpu.memory_space<vmem>>, vector<512x32xbf16>,
    %c0_41 = arith.constant 0 : index
    %c0_42 = arith.constant 0 : index
    %c1_43 = arith.constant 1 : index
    %c0_44 = arith.constant 0 : index
    %34 = vector.load %arg13[%c0_41, %c0_42, %c1_43, %c0_44] : memref<2x18x18x32xf32, #tpu.memory_space<vmem>>, vector<2x16x16x32xf32>
    %35 = vector.shape_cast %34 : vector<2x16x16x32xf32> to vector<512x32xf32>
    %36 = arith.truncf %35 : vector<512x32xf32> to vector<512x32xbf16>
    %c0_45 = arith.constant 0 : index
    %c32 = arith.constant 32 : index
    %37 = vector.load %arg14[%c0_45, %c32] : memref<512x288xbf16, #tpu.memory_space<vmem>>, vector<512x32xbf16>
    tpu.vector_store %arg14[%c0_45, %c32], %36 {strides = array<i32>} : memref<512x288xbf16, #tpu.memory_space<vmem>>, vector<512x32xbf16>,
    %c0_46 = arith.constant 0 : index
    %c0_47 = arith.constant 0 : index
    %c2 = arith.constant 2 : index
    %c0_48 = arith.constant 0 : index
    %38 = vector.load %arg13[%c0_46, %c0_47, %c2, %c0_48] : memref<2x18x18x32xf32, #tpu.memory_space<vmem>>, vector<2x16x16x32xf32>
    %39 = vector.shape_cast %38 : vector<2x16x16x32xf32> to vector<512x32xf32>
    %40 = arith.truncf %39 : vector<512x32xf32> to vector<512x32xbf16>
    %c0_49 = arith.constant 0 : index
    %c64 = arith.constant 64 : index
    %41 = vector.load %arg14[%c0_49, %c64] : memref<512x288xbf16, #tpu.memory_space<vmem>>, vector<512x32xbf16>
    tpu.vector_store %arg14[%c0_49, %c64], %40 {strides = array<i32>} : memref<512x288xbf16, #tpu.memory_space<vmem>>, vector<512x32xbf16>,
    %c0_50 = arith.constant 0 : index
    %c1_51 = arith.constant 1 : index
    %c0_52 = arith.constant 0 : index
    %c0_53 = arith.constant 0 : index
    %42 = vector.load %arg13[%c0_50, %c1_51, %c0_52, %c0_53] : memref<2x18x18x32xf32, #tpu.memory_space<vmem>>, vector<2x16x16x32xf32>
    %43 = vector.shape_cast %42 : vector<2x16x16x32xf32> to vector<512x32xf32>
    %44 = arith.truncf %43 : vector<512x32xf32> to vector<512x32xbf16>
    %c0_54 = arith.constant 0 : index
    %c96 = arith.constant 96 : index
    %45 = vector.load %arg14[%c0_54, %c96] : memref<512x288xbf16, #tpu.memory_space<vmem>>, vector<512x32xbf16>
    tpu.vector_store %arg14[%c0_54, %c96], %44 {strides = array<i32>} : memref<512x288xbf16, #tpu.memory_space<vmem>>, vector<512x32xbf16>,
    %c0_55 = arith.constant 0 : index
    %c1_56 = arith.constant 1 : index
    %c1_57 = arith.constant 1 : index
    %c0_58 = arith.constant 0 : index
    %46 = vector.load %arg13[%c0_55, %c1_56, %c1_57, %c0_58] : memref<2x18x18x32xf32, #tpu.memory_space<vmem>>, vector<2x16x16x32xf32>
    %47 = vector.shape_cast %46 : vector<2x16x16x32xf32> to vector<512x32xf32>
    %48 = arith.truncf %47 : vector<512x32xf32> to vector<512x32xbf16>
    %c0_59 = arith.constant 0 : index
    %c128 = arith.constant 128 : index
    %49 = vector.load %arg14[%c0_59, %c128] : memref<512x288xbf16, #tpu.memory_space<vmem>>, vector<512x32xbf16>
    tpu.vector_store %arg14[%c0_59, %c128], %48 {strides = array<i32>} : memref<512x288xbf16, #tpu.memory_space<vmem>>, vector<512x32xbf16>,
    %c0_60 = arith.constant 0 : index
    %c1_61 = arith.constant 1 : index
    %c2_62 = arith.constant 2 : index
    %c0_63 = arith.constant 0 : index
    %50 = vector.load %arg13[%c0_60, %c1_61, %c2_62, %c0_63] : memref<2x18x18x32xf32, #tpu.memory_space<vmem>>, vector<2x16x16x32xf32>
    %51 = vector.shape_cast %50 : vector<2x16x16x32xf32> to vector<512x32xf32>
    %52 = arith.truncf %51 : vector<512x32xf32> to vector<512x32xbf16>
    %c0_64 = arith.constant 0 : index
    %c160 = arith.constant 160 : index
    %53 = vector.load %arg14[%c0_64, %c160] : memref<512x288xbf16, #tpu.memory_space<vmem>>, vector<512x32xbf16>
    tpu.vector_store %arg14[%c0_64, %c160], %52 {strides = array<i32>} : memref<512x288xbf16, #tpu.memory_space<vmem>>, vector<512x32xbf16>,
    %c0_65 = arith.constant 0 : index
    %c2_66 = arith.constant 2 : index
    %c0_67 = arith.constant 0 : index
    %c0_68 = arith.constant 0 : index
    %54 = vector.load %arg13[%c0_65, %c2_66, %c0_67, %c0_68] : memref<2x18x18x32xf32, #tpu.memory_space<vmem>>, vector<2x16x16x32xf32>
    %55 = vector.shape_cast %54 : vector<2x16x16x32xf32> to vector<512x32xf32>
    %56 = arith.truncf %55 : vector<512x32xf32> to vector<512x32xbf16>
    %c0_69 = arith.constant 0 : index
    %c192 = arith.constant 192 : index
    %57 = vector.load %arg14[%c0_69, %c192] : memref<512x288xbf16, #tpu.memory_space<vmem>>, vector<512x32xbf16>
    tpu.vector_store %arg14[%c0_69, %c192], %56 {strides = array<i32>} : memref<512x288xbf16, #tpu.memory_space<vmem>>, vector<512x32xbf16>,
    %c0_70 = arith.constant 0 : index
    %c2_71 = arith.constant 2 : index
    %c1_72 = arith.constant 1 : index
    %c0_73 = arith.constant 0 : index
    %58 = vector.load %arg13[%c0_70, %c2_71, %c1_72, %c0_73] : memref<2x18x18x32xf32, #tpu.memory_space<vmem>>, vector<2x16x16x32xf32>
    %59 = vector.shape_cast %58 : vector<2x16x16x32xf32> to vector<512x32xf32>
    %60 = arith.truncf %59 : vector<512x32xf32> to vector<512x32xbf16>
    %c0_74 = arith.constant 0 : index
    %c224 = arith.constant 224 : index
    %61 = vector.load %arg14[%c0_74, %c224] : memref<512x288xbf16, #tpu.memory_space<vmem>>, vector<512x32xbf16>
    tpu.vector_store %arg14[%c0_74, %c224], %60 {strides = array<i32>} : memref<512x288xbf16, #tpu.memory_space<vmem>>, vector<512x32xbf16>,
    %c0_75 = arith.constant 0 : index
    %c2_76 = arith.constant 2 : index
    %c2_77 = arith.constant 2 : index
    %c0_78 = arith.constant 0 : index
    %62 = vector.load %arg13[%c0_75, %c2_76, %c2_77, %c0_78] : memref<2x18x18x32xf32, #tpu.memory_space<vmem>>, vector<2x16x16x32xf32>
    %63 = vector.shape_cast %62 : vector<2x16x16x32xf32> to vector<512x32xf32>
    %64 = arith.truncf %63 : vector<512x32xf32> to vector<512x32xbf16>
    %c0_79 = arith.constant 0 : index
    %c256 = arith.constant 256 : index
    %65 = vector.load %arg14[%c0_79, %c256] : memref<512x288xbf16, #tpu.memory_space<vmem>>, vector<512x32xbf16>
    tpu.vector_store %arg14[%c0_79, %c256], %64 {strides = array<i32>} : memref<512x288xbf16, #tpu.memory_space<vmem>>, vector<512x32xbf16>,
    %c0_80 = arith.constant 0 : index
    %c0_81 = arith.constant 0 : index
    %66 = vector.load %arg14[%c0_80, %c0_81] : memref<512x288xbf16, #tpu.memory_space<vmem>>, vector<512x288xbf16>
    %c0_82 = arith.constant 0 : index
    %c0_83 = arith.constant 0 : index
    %67 = vector.load %arg4[%c0_82, %c0_83] : memref<288x64xbf16, #tpu.memory_space<vmem>>, vector<288x64xbf16>
    %cst_84 = arith.constant dense<0.000000e+00> : vector<512x64xf32>
    %68 = tpu.matmul %66, %67, %cst_84 {dimension_numbers = #tpu.dot_dimension_numbers<[1], [0], [0], [1], [0, 0, 1, 1], [], []>} : vector<512x288xbf16>, vector<288x64xbf16>, vector<512x64xf32> -> vector<512x64xf32>
    %c0_85 = arith.constant 0 : index
    %c0_86 = arith.constant 0 : index
    %69 = vector.load %arg5[%c0_85, %c0_86] : memref<1x64xf32, #tpu.memory_space<vmem>>, vector<1x64xf32>
    %70 = vector.broadcast %69 : vector<1x64xf32> to vector<512x64xf32>
    %71 = arith.addf %68, %70 : vector<512x64xf32>
    %cst_87 = arith.constant 0.000000e+00 : f32
    %72 = vector.broadcast %cst_87 : f32 to vector<512x64xf32>
    %73 = arith.maximumf %71, %72 : vector<512x64xf32>
    %74 = vector.shape_cast %73 : vector<512x64xf32> to vector<2x8x2x16x64xf32>
    %75 = vector.extract_strided_slice %74 {offsets = [0, 0, 0, 0, 0], sizes = [2, 8, 1, 16, 64], strides = [1, 1, 1, 1, 1]} : vector<2x8x2x16x64xf32> to vector<2x8x1x16x64xf32>
    %76 = vector.shape_cast %75 : vector<2x8x1x16x64xf32> to vector<2x8x16x64xf32>
    %77 = vector.extract_strided_slice %74 {offsets = [0, 0, 1, 0, 0], sizes = [2, 8, 1, 16, 64], strides = [1, 1, 1, 1, 1]} : vector<2x8x2x16x64xf32> to vector<2x8x1x16x64xf32>
    %78 = vector.shape_cast %77 : vector<2x8x1x16x64xf32> to vector<2x8x16x64xf32>
    %79 = arith.maximumf %76, %78 : vector<2x8x16x64xf32>
    %80 = vector.shape_cast %79 : vector<2x8x16x64xf32> to vector<256x64xf32>
    %c0_88 = arith.constant 0 : index
    %c0_89 = arith.constant 0 : index
    %81 = vector.load %arg18[%c0_88, %c0_89] : memref<256x64xf32, #tpu.memory_space<vmem>>, vector<256x64xf32>
    tpu.vector_store %arg18[%c0_88, %c0_89], %80 {strides = array<i32>} : memref<256x64xf32, #tpu.memory_space<vmem>>, vector<256x64xf32>,
    %c0_90 = arith.constant 0 : index
    %c0_91 = arith.constant 0 : index
    %82 = tpu.strided_load %arg18[%c0_90, %c0_91] {strides = array<i32: 2, 1>} : memref<256x64xf32, #tpu.memory_space<vmem>>, vector<128x64xf32>
    %c1_92 = arith.constant 1 : index
    %c0_93 = arith.constant 0 : index
    %83 = tpu.strided_load %arg18[%c1_92, %c0_93] {strides = array<i32: 2, 1>} : memref<256x64xf32, #tpu.memory_space<vmem>>, vector<128x64xf32>
    %84 = arith.maximumf %82, %83 : vector<128x64xf32>
    %cst_94 = arith.constant 0.000000e+00 : f32
    %85 = vector.broadcast %cst_94 : f32 to vector<2x1x10x64xf32>
    %c0_95 = arith.constant 0 : index
    %c0_96 = arith.constant 0 : index
    %c0_97 = arith.constant 0 : index
    %c0_98 = arith.constant 0 : index
    %86 = vector.load %arg15[%c0_95, %c0_96, %c0_97, %c0_98] : memref<2x10x10x64xf32, #tpu.memory_space<vmem>>, vector<2x1x10x64xf32>
    tpu.vector_store %arg15[%c0_95, %c0_96, %c0_97, %c0_98], %85 {strides = array<i32>} : memref<2x10x10x64xf32, #tpu.memory_space<vmem>>, vector<2x1x10x64xf32>,
    %cst_99 = arith.constant 0.000000e+00 : f32
    %87 = vector.broadcast %cst_99 : f32 to vector<2x1x10x64xf32>
    %c0_100 = arith.constant 0 : index
    %c9 = arith.constant 9 : index
    %c0_101 = arith.constant 0 : index
    %c0_102 = arith.constant 0 : index
    %88 = vector.load %arg15[%c0_100, %c9, %c0_101, %c0_102] : memref<2x10x10x64xf32, #tpu.memory_space<vmem>>, vector<2x1x10x64xf32>
    tpu.vector_store %arg15[%c0_100, %c9, %c0_101, %c0_102], %87 {strides = array<i32>} : memref<2x10x10x64xf32, #tpu.memory_space<vmem>>, vector<2x1x10x64xf32>,
    %cst_103 = arith.constant 0.000000e+00 : f32
    %89 = vector.broadcast %cst_103 : f32 to vector<2x10x1x64xf32>
    %c0_104 = arith.constant 0 : index
    %c0_105 = arith.constant 0 : index
    %c0_106 = arith.constant 0 : index
    %c0_107 = arith.constant 0 : index
    %90 = vector.load %arg15[%c0_104, %c0_105, %c0_106, %c0_107] : memref<2x10x10x64xf32, #tpu.memory_space<vmem>>, vector<2x10x1x64xf32>
    tpu.vector_store %arg15[%c0_104, %c0_105, %c0_106, %c0_107], %89 {strides = array<i32>} : memref<2x10x10x64xf32, #tpu.memory_space<vmem>>, vector<2x10x1x64xf32>,
    %cst_108 = arith.constant 0.000000e+00 : f32
    %91 = vector.broadcast %cst_108 : f32 to vector<2x10x1x64xf32>
    %c0_109 = arith.constant 0 : index
    %c0_110 = arith.constant 0 : index
    %c9_111 = arith.constant 9 : index
    %c0_112 = arith.constant 0 : index
    %92 = vector.load %arg15[%c0_109, %c0_110, %c9_111, %c0_112] : memref<2x10x10x64xf32, #tpu.memory_space<vmem>>, vector<2x10x1x64xf32>
    tpu.vector_store %arg15[%c0_109, %c0_110, %c9_111, %c0_112], %91 {strides = array<i32>} : memref<2x10x10x64xf32, #tpu.memory_space<vmem>>, vector<2x10x1x64xf32>,
    %93 = vector.shape_cast %84 : vector<128x64xf32> to vector<2x8x8x64xf32>
    %c0_113 = arith.constant 0 : index
    %c1_114 = arith.constant 1 : index
    %c1_115 = arith.constant 1 : index
    %c0_116 = arith.constant 0 : index
    %94 = vector.load %arg15[%c0_113, %c1_114, %c1_115, %c0_116] : memref<2x10x10x64xf32, #tpu.memory_space<vmem>>, vector<2x8x8x64xf32>
    tpu.vector_store %arg15[%c0_113, %c1_114, %c1_115, %c0_116], %93 {strides = array<i32>} : memref<2x10x10x64xf32, #tpu.memory_space<vmem>>, vector<2x8x8x64xf32>,
    %c0_117 = arith.constant 0 : index
    %c0_118 = arith.constant 0 : index
    %c0_119 = arith.constant 0 : index
    %c0_120 = arith.constant 0 : index
    %95 = vector.load %arg15[%c0_117, %c0_118, %c0_119, %c0_120] : memref<2x10x10x64xf32, #tpu.memory_space<vmem>>, vector<2x8x8x64xf32>
    %96 = vector.shape_cast %95 : vector<2x8x8x64xf32> to vector<128x64xf32>
    %97 = arith.truncf %96 : vector<128x64xf32> to vector<128x64xbf16>
    %c0_121 = arith.constant 0 : index
    %c0_122 = arith.constant 0 : index
    %98 = vector.load %arg16[%c0_121, %c0_122] : memref<128x576xbf16, #tpu.memory_space<vmem>>, vector<128x64xbf16>
    tpu.vector_store %arg16[%c0_121, %c0_122], %97 {strides = array<i32>} : memref<128x576xbf16, #tpu.memory_space<vmem>>, vector<128x64xbf16>,
    %c0_123 = arith.constant 0 : index
    %c0_124 = arith.constant 0 : index
    %c1_125 = arith.constant 1 : index
    %c0_126 = arith.constant 0 : index
    %99 = vector.load %arg15[%c0_123, %c0_124, %c1_125, %c0_126] : memref<2x10x10x64xf32, #tpu.memory_space<vmem>>, vector<2x8x8x64xf32>
    %100 = vector.shape_cast %99 : vector<2x8x8x64xf32> to vector<128x64xf32>
    %101 = arith.truncf %100 : vector<128x64xf32> to vector<128x64xbf16>
    %c0_127 = arith.constant 0 : index
    %c64_128 = arith.constant 64 : index
    %102 = vector.load %arg16[%c0_127, %c64_128] : memref<128x576xbf16, #tpu.memory_space<vmem>>, vector<128x64xbf16>
    tpu.vector_store %arg16[%c0_127, %c64_128], %101 {strides = array<i32>} : memref<128x576xbf16, #tpu.memory_space<vmem>>, vector<128x64xbf16>,
    %c0_129 = arith.constant 0 : index
    %c0_130 = arith.constant 0 : index
    %c2_131 = arith.constant 2 : index
    %c0_132 = arith.constant 0 : index
    %103 = vector.load %arg15[%c0_129, %c0_130, %c2_131, %c0_132] : memref<2x10x10x64xf32, #tpu.memory_space<vmem>>, vector<2x8x8x64xf32>
    %104 = vector.shape_cast %103 : vector<2x8x8x64xf32> to vector<128x64xf32>
    %105 = arith.truncf %104 : vector<128x64xf32> to vector<128x64xbf16>
    %c0_133 = arith.constant 0 : index
    %c128_134 = arith.constant 128 : index
    %106 = vector.load %arg16[%c0_133, %c128_134] : memref<128x576xbf16, #tpu.memory_space<vmem>>, vector<128x64xbf16>
    tpu.vector_store %arg16[%c0_133, %c128_134], %105 {strides = array<i32>} : memref<128x576xbf16, #tpu.memory_space<vmem>>, vector<128x64xbf16>,
    %c0_135 = arith.constant 0 : index
    %c1_136 = arith.constant 1 : index
    %c0_137 = arith.constant 0 : index
    %c0_138 = arith.constant 0 : index
    %107 = vector.load %arg15[%c0_135, %c1_136, %c0_137, %c0_138] : memref<2x10x10x64xf32, #tpu.memory_space<vmem>>, vector<2x8x8x64xf32>
    %108 = vector.shape_cast %107 : vector<2x8x8x64xf32> to vector<128x64xf32>
    %109 = arith.truncf %108 : vector<128x64xf32> to vector<128x64xbf16>
    %c0_139 = arith.constant 0 : index
    %c192_140 = arith.constant 192 : index
    %110 = vector.load %arg16[%c0_139, %c192_140] : memref<128x576xbf16, #tpu.memory_space<vmem>>, vector<128x64xbf16>
    tpu.vector_store %arg16[%c0_139, %c192_140], %109 {strides = array<i32>} : memref<128x576xbf16, #tpu.memory_space<vmem>>, vector<128x64xbf16>,
    %c0_141 = arith.constant 0 : index
    %c1_142 = arith.constant 1 : index
    %c1_143 = arith.constant 1 : index
    %c0_144 = arith.constant 0 : index
    %111 = vector.load %arg15[%c0_141, %c1_142, %c1_143, %c0_144] : memref<2x10x10x64xf32, #tpu.memory_space<vmem>>, vector<2x8x8x64xf32>
    %112 = vector.shape_cast %111 : vector<2x8x8x64xf32> to vector<128x64xf32>
    %113 = arith.truncf %112 : vector<128x64xf32> to vector<128x64xbf16>
    %c0_145 = arith.constant 0 : index
    %c256_146 = arith.constant 256 : index
    %114 = vector.load %arg16[%c0_145, %c256_146] : memref<128x576xbf16, #tpu.memory_space<vmem>>, vector<128x64xbf16>
    tpu.vector_store %arg16[%c0_145, %c256_146], %113 {strides = array<i32>} : memref<128x576xbf16, #tpu.memory_space<vmem>>, vector<128x64xbf16>,
    %c0_147 = arith.constant 0 : index
    %c1_148 = arith.constant 1 : index
    %c2_149 = arith.constant 2 : index
    %c0_150 = arith.constant 0 : index
    %115 = vector.load %arg15[%c0_147, %c1_148, %c2_149, %c0_150] : memref<2x10x10x64xf32, #tpu.memory_space<vmem>>, vector<2x8x8x64xf32>
    %116 = vector.shape_cast %115 : vector<2x8x8x64xf32> to vector<128x64xf32>
    %117 = arith.truncf %116 : vector<128x64xf32> to vector<128x64xbf16>
    %c0_151 = arith.constant 0 : index
    %c320 = arith.constant 320 : index
    %118 = vector.load %arg16[%c0_151, %c320] : memref<128x576xbf16, #tpu.memory_space<vmem>>, vector<128x64xbf16>
    tpu.vector_store %arg16[%c0_151, %c320], %117 {strides = array<i32>} : memref<128x576xbf16, #tpu.memory_space<vmem>>, vector<128x64xbf16>,
    %c0_152 = arith.constant 0 : index
    %c2_153 = arith.constant 2 : index
    %c0_154 = arith.constant 0 : index
    %c0_155 = arith.constant 0 : index
    %119 = vector.load %arg15[%c0_152, %c2_153, %c0_154, %c0_155] : memref<2x10x10x64xf32, #tpu.memory_space<vmem>>, vector<2x8x8x64xf32>
    %120 = vector.shape_cast %119 : vector<2x8x8x64xf32> to vector<128x64xf32>
    %121 = arith.truncf %120 : vector<128x64xf32> to vector<128x64xbf16>
    %c0_156 = arith.constant 0 : index
    %c384 = arith.constant 384 : index
    %122 = vector.load %arg16[%c0_156, %c384] : memref<128x576xbf16, #tpu.memory_space<vmem>>, vector<128x64xbf16>
    tpu.vector_store %arg16[%c0_156, %c384], %121 {strides = array<i32>} : memref<128x576xbf16, #tpu.memory_space<vmem>>, vector<128x64xbf16>,
    %c0_157 = arith.constant 0 : index
    %c2_158 = arith.constant 2 : index
    %c1_159 = arith.constant 1 : index
    %c0_160 = arith.constant 0 : index
    %123 = vector.load %arg15[%c0_157, %c2_158, %c1_159, %c0_160] : memref<2x10x10x64xf32, #tpu.memory_space<vmem>>, vector<2x8x8x64xf32>
    %124 = vector.shape_cast %123 : vector<2x8x8x64xf32> to vector<128x64xf32>
    %125 = arith.truncf %124 : vector<128x64xf32> to vector<128x64xbf16>
    %c0_161 = arith.constant 0 : index
    %c448 = arith.constant 448 : index
    %126 = vector.load %arg16[%c0_161, %c448] : memref<128x576xbf16, #tpu.memory_space<vmem>>, vector<128x64xbf16>
    tpu.vector_store %arg16[%c0_161, %c448], %125 {strides = array<i32>} : memref<128x576xbf16, #tpu.memory_space<vmem>>, vector<128x64xbf16>,
    %c0_162 = arith.constant 0 : index
    %c2_163 = arith.constant 2 : index
    %c2_164 = arith.constant 2 : index
    %c0_165 = arith.constant 0 : index
    %127 = vector.load %arg15[%c0_162, %c2_163, %c2_164, %c0_165] : memref<2x10x10x64xf32, #tpu.memory_space<vmem>>, vector<2x8x8x64xf32>
    %128 = vector.shape_cast %127 : vector<2x8x8x64xf32> to vector<128x64xf32>
    %129 = arith.truncf %128 : vector<128x64xf32> to vector<128x64xbf16>
    %c0_166 = arith.constant 0 : index
    %c512 = arith.constant 512 : index
    %130 = vector.load %arg16[%c0_166, %c512] : memref<128x576xbf16, #tpu.memory_space<vmem>>, vector<128x64xbf16>
    tpu.vector_store %arg16[%c0_166, %c512], %129 {strides = array<i32>} : memref<128x576xbf16, #tpu.memory_space<vmem>>, vector<128x64xbf16>,
    %c0_167 = arith.constant 0 : index
    %c0_168 = arith.constant 0 : index
    %131 = vector.load %arg16[%c0_167, %c0_168] : memref<128x576xbf16, #tpu.memory_space<vmem>>, vector<128x576xbf16>
    %c0_169 = arith.constant 0 : index
    %c0_170 = arith.constant 0 : index
    %132 = vector.load %arg6[%c0_169, %c0_170] : memref<576x64xbf16, #tpu.memory_space<vmem>>, vector<576x64xbf16>
    %cst_171 = arith.constant dense<0.000000e+00> : vector<128x64xf32>
    %133 = tpu.matmul %131, %132, %cst_171 {dimension_numbers = #tpu.dot_dimension_numbers<[1], [0], [0], [1], [0, 0, 1, 1], [], []>} : vector<128x576xbf16>, vector<576x64xbf16>, vector<128x64xf32> -> vector<128x64xf32>
    %c0_172 = arith.constant 0 : index
    %c0_173 = arith.constant 0 : index
    %134 = vector.load %arg7[%c0_172, %c0_173] : memref<1x64xf32, #tpu.memory_space<vmem>>, vector<1x64xf32>
    %135 = vector.broadcast %134 : vector<1x64xf32> to vector<128x64xf32>
    %136 = arith.addf %133, %135 : vector<128x64xf32>
    %cst_174 = arith.constant 0.000000e+00 : f32
    %137 = vector.broadcast %cst_174 : f32 to vector<128x64xf32>
    %138 = arith.maximumf %136, %137 : vector<128x64xf32>
    %139 = vector.shape_cast %138 : vector<128x64xf32> to vector<2x4x2x8x64xf32>
    %140 = vector.extract_strided_slice %139 {offsets = [0, 0, 0, 0, 0], sizes = [2, 4, 1, 8, 64], strides = [1, 1, 1, 1, 1]} : vector<2x4x2x8x64xf32> to vector<2x4x1x8x64xf32>
    %141 = vector.shape_cast %140 : vector<2x4x1x8x64xf32> to vector<2x4x8x64xf32>
    %142 = vector.extract_strided_slice %139 {offsets = [0, 0, 1, 0, 0], sizes = [2, 4, 1, 8, 64], strides = [1, 1, 1, 1, 1]} : vector<2x4x2x8x64xf32> to vector<2x4x1x8x64xf32>
    %143 = vector.shape_cast %142 : vector<2x4x1x8x64xf32> to vector<2x4x8x64xf32>
    %144 = arith.maximumf %141, %143 : vector<2x4x8x64xf32>
    %145 = vector.shape_cast %144 : vector<2x4x8x64xf32> to vector<64x64xf32>
    %c0_175 = arith.constant 0 : index
    %c0_176 = arith.constant 0 : index
    %146 = vector.load %arg19[%c0_175, %c0_176] : memref<64x64xf32, #tpu.memory_space<vmem>>, vector<64x64xf32>
    tpu.vector_store %arg19[%c0_175, %c0_176], %145 {strides = array<i32>} : memref<64x64xf32, #tpu.memory_space<vmem>>, vector<64x64xf32>,
    %c0_177 = arith.constant 0 : index
    %c0_178 = arith.constant 0 : index
    %147 = tpu.strided_load %arg19[%c0_177, %c0_178] {strides = array<i32: 2, 1>} : memref<64x64xf32, #tpu.memory_space<vmem>>, vector<32x64xf32>
    %c1_179 = arith.constant 1 : index
    %c0_180 = arith.constant 0 : index
    %148 = tpu.strided_load %arg19[%c1_179, %c0_180] {strides = array<i32: 2, 1>} : memref<64x64xf32, #tpu.memory_space<vmem>>, vector<32x64xf32>
    %149 = arith.maximumf %147, %148 : vector<32x64xf32>
    %c0_181 = arith.constant 0 : index
    %c0_182 = arith.constant 0 : index
    %150 = vector.load %arg20[%c0_181, %c0_182] : memref<32x64xf32, #tpu.memory_space<vmem>>, vector<32x64xf32>
    tpu.vector_store %arg20[%c0_181, %c0_182], %149 {strides = array<i32>} : memref<32x64xf32, #tpu.memory_space<vmem>>, vector<32x64xf32>,
    %c0_183 = arith.constant 0 : index
    %c0_184 = arith.constant 0 : index
    %151 = tpu.strided_load %arg20[%c0_183, %c0_184] {strides = array<i32: 16, 1>} : memref<32x64xf32, #tpu.memory_space<vmem>>, vector<2x64xf32>
    %152 = arith.truncf %151 : vector<2x64xf32> to vector<2x64xbf16>
    %c0_185 = arith.constant 0 : index
    %c0_186 = arith.constant 0 : index
    %153 = vector.load %arg21[%c0_185, %c0_186] : memref<2x1024xbf16, #tpu.memory_space<vmem>>, vector<2x64xbf16>
    tpu.vector_store %arg21[%c0_185, %c0_186], %152 {strides = array<i32>} : memref<2x1024xbf16, #tpu.memory_space<vmem>>, vector<2x64xbf16>,
    %c1_187 = arith.constant 1 : index
    %c0_188 = arith.constant 0 : index
    %154 = tpu.strided_load %arg20[%c1_187, %c0_188] {strides = array<i32: 16, 1>} : memref<32x64xf32, #tpu.memory_space<vmem>>, vector<2x64xf32>
    %155 = arith.truncf %154 : vector<2x64xf32> to vector<2x64xbf16>
    %c0_189 = arith.constant 0 : index
    %c64_190 = arith.constant 64 : index
    %156 = vector.load %arg21[%c0_189, %c64_190] : memref<2x1024xbf16, #tpu.memory_space<vmem>>, vector<2x64xbf16>
    tpu.vector_store %arg21[%c0_189, %c64_190], %155 {strides = array<i32>} : memref<2x1024xbf16, #tpu.memory_space<vmem>>, vector<2x64xbf16>,
    %c2_191 = arith.constant 2 : index
    %c0_192 = arith.constant 0 : index
    %157 = tpu.strided_load %arg20[%c2_191, %c0_192] {strides = array<i32: 16, 1>} : memref<32x64xf32, #tpu.memory_space<vmem>>, vector<2x64xf32>
    %158 = arith.truncf %157 : vector<2x64xf32> to vector<2x64xbf16>
    %c0_193 = arith.constant 0 : index
    %c128_194 = arith.constant 128 : index
    %159 = vector.load %arg21[%c0_193, %c128_194] : memref<2x1024xbf16, #tpu.memory_space<vmem>>, vector<2x64xbf16>
    tpu.vector_store %arg21[%c0_193, %c128_194], %158 {strides = array<i32>} : memref<2x1024xbf16, #tpu.memory_space<vmem>>, vector<2x64xbf16>,
    %c3 = arith.constant 3 : index
    %c0_195 = arith.constant 0 : index
    %160 = tpu.strided_load %arg20[%c3, %c0_195] {strides = array<i32: 16, 1>} : memref<32x64xf32, #tpu.memory_space<vmem>>, vector<2x64xf32>
    %161 = arith.truncf %160 : vector<2x64xf32> to vector<2x64xbf16>
    %c0_196 = arith.constant 0 : index
    %c192_197 = arith.constant 192 : index
    %162 = vector.load %arg21[%c0_196, %c192_197] : memref<2x1024xbf16, #tpu.memory_space<vmem>>, vector<2x64xbf16>
    tpu.vector_store %arg21[%c0_196, %c192_197], %161 {strides = array<i32>} : memref<2x1024xbf16, #tpu.memory_space<vmem>>, vector<2x64xbf16>,
    %c4 = arith.constant 4 : index
    %c0_198 = arith.constant 0 : index
    %163 = tpu.strided_load %arg20[%c4, %c0_198] {strides = array<i32: 16, 1>} : memref<32x64xf32, #tpu.memory_space<vmem>>, vector<2x64xf32>
    %164 = arith.truncf %163 : vector<2x64xf32> to vector<2x64xbf16>
    %c0_199 = arith.constant 0 : index
    %c256_200 = arith.constant 256 : index
    %165 = vector.load %arg21[%c0_199, %c256_200] : memref<2x1024xbf16, #tpu.memory_space<vmem>>, vector<2x64xbf16>
    tpu.vector_store %arg21[%c0_199, %c256_200], %164 {strides = array<i32>} : memref<2x1024xbf16, #tpu.memory_space<vmem>>, vector<2x64xbf16>,
    %c5 = arith.constant 5 : index
    %c0_201 = arith.constant 0 : index
    %166 = tpu.strided_load %arg20[%c5, %c0_201] {strides = array<i32: 16, 1>} : memref<32x64xf32, #tpu.memory_space<vmem>>, vector<2x64xf32>
    %167 = arith.truncf %166 : vector<2x64xf32> to vector<2x64xbf16>
    %c0_202 = arith.constant 0 : index
    %c320_203 = arith.constant 320 : index
    %168 = vector.load %arg21[%c0_202, %c320_203] : memref<2x1024xbf16, #tpu.memory_space<vmem>>, vector<2x64xbf16>
    tpu.vector_store %arg21[%c0_202, %c320_203], %167 {strides = array<i32>} : memref<2x1024xbf16, #tpu.memory_space<vmem>>, vector<2x64xbf16>,
    %c6 = arith.constant 6 : index
    %c0_204 = arith.constant 0 : index
    %169 = tpu.strided_load %arg20[%c6, %c0_204] {strides = array<i32: 16, 1>} : memref<32x64xf32, #tpu.memory_space<vmem>>, vector<2x64xf32>
    %170 = arith.truncf %169 : vector<2x64xf32> to vector<2x64xbf16>
    %c0_205 = arith.constant 0 : index
    %c384_206 = arith.constant 384 : index
    %171 = vector.load %arg21[%c0_205, %c384_206] : memref<2x1024xbf16, #tpu.memory_space<vmem>>, vector<2x64xbf16>
    tpu.vector_store %arg21[%c0_205, %c384_206], %170 {strides = array<i32>} : memref<2x1024xbf16, #tpu.memory_space<vmem>>, vector<2x64xbf16>,
    %c7 = arith.constant 7 : index
    %c0_207 = arith.constant 0 : index
    %172 = tpu.strided_load %arg20[%c7, %c0_207] {strides = array<i32: 16, 1>} : memref<32x64xf32, #tpu.memory_space<vmem>>, vector<2x64xf32>
    %173 = arith.truncf %172 : vector<2x64xf32> to vector<2x64xbf16>
    %c0_208 = arith.constant 0 : index
    %c448_209 = arith.constant 448 : index
    %174 = vector.load %arg21[%c0_208, %c448_209] : memref<2x1024xbf16, #tpu.memory_space<vmem>>, vector<2x64xbf16>
    tpu.vector_store %arg21[%c0_208, %c448_209], %173 {strides = array<i32>} : memref<2x1024xbf16, #tpu.memory_space<vmem>>, vector<2x64xbf16>,
    %c8 = arith.constant 8 : index
    %c0_210 = arith.constant 0 : index
    %175 = tpu.strided_load %arg20[%c8, %c0_210] {strides = array<i32: 16, 1>} : memref<32x64xf32, #tpu.memory_space<vmem>>, vector<2x64xf32>
    %176 = arith.truncf %175 : vector<2x64xf32> to vector<2x64xbf16>
    %c0_211 = arith.constant 0 : index
    %c512_212 = arith.constant 512 : index
    %177 = vector.load %arg21[%c0_211, %c512_212] : memref<2x1024xbf16, #tpu.memory_space<vmem>>, vector<2x64xbf16>
    tpu.vector_store %arg21[%c0_211, %c512_212], %176 {strides = array<i32>} : memref<2x1024xbf16, #tpu.memory_space<vmem>>, vector<2x64xbf16>,
    %c9_213 = arith.constant 9 : index
    %c0_214 = arith.constant 0 : index
    %178 = tpu.strided_load %arg20[%c9_213, %c0_214] {strides = array<i32: 16, 1>} : memref<32x64xf32, #tpu.memory_space<vmem>>, vector<2x64xf32>
    %179 = arith.truncf %178 : vector<2x64xf32> to vector<2x64xbf16>
    %c0_215 = arith.constant 0 : index
    %c576 = arith.constant 576 : index
    %180 = vector.load %arg21[%c0_215, %c576] : memref<2x1024xbf16, #tpu.memory_space<vmem>>, vector<2x64xbf16>
    tpu.vector_store %arg21[%c0_215, %c576], %179 {strides = array<i32>} : memref<2x1024xbf16, #tpu.memory_space<vmem>>, vector<2x64xbf16>,
    %c10 = arith.constant 10 : index
    %c0_216 = arith.constant 0 : index
    %181 = tpu.strided_load %arg20[%c10, %c0_216] {strides = array<i32: 16, 1>} : memref<32x64xf32, #tpu.memory_space<vmem>>, vector<2x64xf32>
    %182 = arith.truncf %181 : vector<2x64xf32> to vector<2x64xbf16>
    %c0_217 = arith.constant 0 : index
    %c640 = arith.constant 640 : index
    %183 = vector.load %arg21[%c0_217, %c640] : memref<2x1024xbf16, #tpu.memory_space<vmem>>, vector<2x64xbf16>
    tpu.vector_store %arg21[%c0_217, %c640], %182 {strides = array<i32>} : memref<2x1024xbf16, #tpu.memory_space<vmem>>, vector<2x64xbf16>,
    %c11 = arith.constant 11 : index
    %c0_218 = arith.constant 0 : index
    %184 = tpu.strided_load %arg20[%c11, %c0_218] {strides = array<i32: 16, 1>} : memref<32x64xf32, #tpu.memory_space<vmem>>, vector<2x64xf32>
    %185 = arith.truncf %184 : vector<2x64xf32> to vector<2x64xbf16>
    %c0_219 = arith.constant 0 : index
    %c704 = arith.constant 704 : index
    %186 = vector.load %arg21[%c0_219, %c704] : memref<2x1024xbf16, #tpu.memory_space<vmem>>, vector<2x64xbf16>
    tpu.vector_store %arg21[%c0_219, %c704], %185 {strides = array<i32>} : memref<2x1024xbf16, #tpu.memory_space<vmem>>, vector<2x64xbf16>,
    %c12 = arith.constant 12 : index
    %c0_220 = arith.constant 0 : index
    %187 = tpu.strided_load %arg20[%c12, %c0_220] {strides = array<i32: 16, 1>} : memref<32x64xf32, #tpu.memory_space<vmem>>, vector<2x64xf32>
    %188 = arith.truncf %187 : vector<2x64xf32> to vector<2x64xbf16>
    %c0_221 = arith.constant 0 : index
    %c768 = arith.constant 768 : index
    %189 = vector.load %arg21[%c0_221, %c768] : memref<2x1024xbf16, #tpu.memory_space<vmem>>, vector<2x64xbf16>
    tpu.vector_store %arg21[%c0_221, %c768], %188 {strides = array<i32>} : memref<2x1024xbf16, #tpu.memory_space<vmem>>, vector<2x64xbf16>,
    %c13 = arith.constant 13 : index
    %c0_222 = arith.constant 0 : index
    %190 = tpu.strided_load %arg20[%c13, %c0_222] {strides = array<i32: 16, 1>} : memref<32x64xf32, #tpu.memory_space<vmem>>, vector<2x64xf32>
    %191 = arith.truncf %190 : vector<2x64xf32> to vector<2x64xbf16>
    %c0_223 = arith.constant 0 : index
    %c832 = arith.constant 832 : index
    %192 = vector.load %arg21[%c0_223, %c832] : memref<2x1024xbf16, #tpu.memory_space<vmem>>, vector<2x64xbf16>
    tpu.vector_store %arg21[%c0_223, %c832], %191 {strides = array<i32>} : memref<2x1024xbf16, #tpu.memory_space<vmem>>, vector<2x64xbf16>,
    %c14 = arith.constant 14 : index
    %c0_224 = arith.constant 0 : index
    %193 = tpu.strided_load %arg20[%c14, %c0_224] {strides = array<i32: 16, 1>} : memref<32x64xf32, #tpu.memory_space<vmem>>, vector<2x64xf32>
    %194 = arith.truncf %193 : vector<2x64xf32> to vector<2x64xbf16>
    %c0_225 = arith.constant 0 : index
    %c896 = arith.constant 896 : index
    %195 = vector.load %arg21[%c0_225, %c896] : memref<2x1024xbf16, #tpu.memory_space<vmem>>, vector<2x64xbf16>
    tpu.vector_store %arg21[%c0_225, %c896], %194 {strides = array<i32>} : memref<2x1024xbf16, #tpu.memory_space<vmem>>, vector<2x64xbf16>,
    %c15 = arith.constant 15 : index
    %c0_226 = arith.constant 0 : index
    %196 = tpu.strided_load %arg20[%c15, %c0_226] {strides = array<i32: 16, 1>} : memref<32x64xf32, #tpu.memory_space<vmem>>, vector<2x64xf32>
    %197 = arith.truncf %196 : vector<2x64xf32> to vector<2x64xbf16>
    %c0_227 = arith.constant 0 : index
    %c960 = arith.constant 960 : index
    %198 = vector.load %arg21[%c0_227, %c960] : memref<2x1024xbf16, #tpu.memory_space<vmem>>, vector<2x64xbf16>
    tpu.vector_store %arg21[%c0_227, %c960], %197 {strides = array<i32>} : memref<2x1024xbf16, #tpu.memory_space<vmem>>, vector<2x64xbf16>,
    %c0_228 = arith.constant 0 : index
    %c0_229 = arith.constant 0 : index
    %199 = vector.load %arg21[%c0_228, %c0_229] : memref<2x1024xbf16, #tpu.memory_space<vmem>>, vector<2x1024xbf16>
    %c0_230 = arith.constant 0 : index
    %c0_231 = arith.constant 0 : index
    %200 = vector.load %arg8[%c0_230, %c0_231] : memref<1024x512xbf16, #tpu.memory_space<vmem>>, vector<1024x512xbf16>
    %cst_232 = arith.constant dense<0.000000e+00> : vector<2x512xf32>
    %201 = tpu.matmul %199, %200, %cst_232 {dimension_numbers = #tpu.dot_dimension_numbers<[1], [0], [0], [1], [0, 0, 1, 1], [], []>} : vector<2x1024xbf16>, vector<1024x512xbf16>, vector<2x512xf32> -> vector<2x512xf32>
    %c0_233 = arith.constant 0 : index
    %c0_234 = arith.constant 0 : index
    %202 = vector.load %arg9[%c0_233, %c0_234] : memref<1x512xf32, #tpu.memory_space<vmem>>, vector<1x512xf32>
    %203 = vector.broadcast %202 : vector<1x512xf32> to vector<2x512xf32>
    %204 = arith.addf %201, %203 : vector<2x512xf32>
    %cst_235 = arith.constant 0.000000e+00 : f32
    %205 = vector.broadcast %cst_235 : f32 to vector<2x512xf32>
    %206 = arith.maximumf %204, %205 : vector<2x512xf32>
    %207 = arith.truncf %206 : vector<2x512xf32> to vector<2x512xbf16>
    %c0_236 = arith.constant 0 : index
    %c0_237 = arith.constant 0 : index
    %208 = vector.load %arg10[%c0_236, %c0_237] : memref<512x128xbf16, #tpu.memory_space<vmem>>, vector<512x128xbf16>
    %cst_238 = arith.constant dense<0.000000e+00> : vector<2x128xf32>
    %209 = tpu.matmul %207, %208, %cst_238 {dimension_numbers = #tpu.dot_dimension_numbers<[1], [0], [0], [1], [0, 0, 1, 1], [], []>} : vector<2x512xbf16>, vector<512x128xbf16>, vector<2x128xf32> -> vector<2x128xf32>
    %c0_239 = arith.constant 0 : index
    %c0_240 = arith.constant 0 : index
    %210 = vector.load %arg11[%c0_239, %c0_240] : memref<1x128xf32, #tpu.memory_space<vmem>>, vector<1x128xf32>
    %211 = vector.broadcast %210 : vector<1x128xf32> to vector<2x128xf32>
    %212 = arith.addf %209, %211 : vector<2x128xf32>
    %c0_241 = arith.constant 0 : index
    %c0_242 = arith.constant 0 : index
    %213 = vector.load %arg12[%c0_241, %c0_242] : memref<2x128xf32, #tpu.memory_space<vmem>>, vector<2x128xf32>
    tpu.vector_store %arg12[%c0_241, %c0_242], %212 {strides = array<i32>} : memref<2x128xf32, #tpu.memory_space<vmem>>, vector<2x128xf32>,
    return
  }
  func.func @transform_0(%arg0: i32) -> (i32, i32, i32) {
    %c0_i32 = arith.constant 0 : i32
    %c0_i32_0 = arith.constant 0 : i32
    %c0_i32_1 = arith.constant 0 : i32
    return %arg0, %c0_i32, %c0_i32_0 : i32, i32, i32
  }
  func.func @transform_1(%arg0: i32) -> (i32, i32) {
    %c0_i32 = arith.constant 0 : i32
    %c0_i32_0 = arith.constant 0 : i32
    %c0_i32_1 = arith.constant 0 : i32
    return %c0_i32, %c0_i32_0 : i32, i32
  }
  func.func @transform_2(%arg0: i32) -> (i32, i32) {
    %c0_i32 = arith.constant 0 : i32
    %c0_i32_0 = arith.constant 0 : i32
    %c0_i32_1 = arith.constant 0 : i32
    return %c0_i32, %c0_i32_0 : i32, i32
  }
  func.func @transform_3(%arg0: i32) -> (i32, i32) {
    %c0_i32 = arith.constant 0 : i32
    %c0_i32_0 = arith.constant 0 : i32
    %c0_i32_1 = arith.constant 0 : i32
    return %c0_i32, %c0_i32_0 : i32, i32
  }
  func.func @transform_4(%arg0: i32) -> (i32, i32) {
    %c0_i32 = arith.constant 0 : i32
    %c0_i32_0 = arith.constant 0 : i32
    %c0_i32_1 = arith.constant 0 : i32
    return %c0_i32, %c0_i32_0 : i32, i32
  }
  func.func @transform_5(%arg0: i32) -> (i32, i32) {
    %c0_i32 = arith.constant 0 : i32
    %c0_i32_0 = arith.constant 0 : i32
    %c0_i32_1 = arith.constant 0 : i32
    return %c0_i32, %c0_i32_0 : i32, i32
  }
  func.func @transform_6(%arg0: i32) -> (i32, i32) {
    %c0_i32 = arith.constant 0 : i32
    %c0_i32_0 = arith.constant 0 : i32
    %c0_i32_1 = arith.constant 0 : i32
    return %c0_i32, %c0_i32_0 : i32, i32
  }
  func.func @transform_7(%arg0: i32) -> (i32, i32) {
    %c0_i32 = arith.constant 0 : i32
    %c0_i32_0 = arith.constant 0 : i32
    %c0_i32_1 = arith.constant 0 : i32
    return %c0_i32, %c0_i32_0 : i32, i32
  }
  func.func @transform_8(%arg0: i32) -> (i32, i32) {
    %c0_i32 = arith.constant 0 : i32
    %c0_i32_0 = arith.constant 0 : i32
    %c0_i32_1 = arith.constant 0 : i32
    return %c0_i32, %c0_i32_0 : i32, i32
  }
  func.func @transform_9(%arg0: i32) -> (i32, i32) {
    %c0_i32 = arith.constant 0 : i32
    %c0_i32_0 = arith.constant 0 : i32
    %c0_i32_1 = arith.constant 0 : i32
    return %c0_i32, %c0_i32_0 : i32, i32
  }
  func.func @transform_10(%arg0: i32) -> (i32, i32) {
    %c0_i32 = arith.constant 0 : i32
    %c0_i32_0 = arith.constant 0 : i32
    %c0_i32_1 = arith.constant 0 : i32
    return %c0_i32, %c0_i32_0 : i32, i32
  }
  func.func @transform_11(%arg0: i32) -> (i32, i32) {
    %c0_i32 = arith.constant 0 : i32
    %c0_i32_0 = arith.constant 0 : i32
    return %arg0, %c0_i32 : i32, i32
  }
}

</mosaic_0001>

<llo_original>
// kernel: enhanced_scaling_cnn_forward.1
$region0: #{enhanced_scaling_cnn_forward.1}
  #allocation0 [shape = 'u32[]', space=smem, size = 0x4, offset = 0x4, fixed_abs, tag = 'smem constant byte address 0x4 - core index']
  #allocation1 [shape = 'u32[72,128]{1,0:T(1,128)}', space=vmem, size = 0x9000, scoped, tag = 'internal scratch']
  #allocation2 [shape = 'f32[2,18,18,32]{3,2,1,0:T(8,128)}', space=vmem, size = 0x6c000, scoped, tag = 'scratch operand']
  #allocation3 [shape = 'bf16[512,288]{1,0:T(8,128)(2,1)}', space=vmem, size = 0x60000, scoped, tag = 'scratch operand']
  #allocation4 [shape = 'f32[2,10,10,64]{3,2,1,0:T(8,128)}', space=vmem, size = 0x28000, scoped, tag = 'scratch operand']
  #allocation5 [shape = 'bf16[128,576]{1,0:T(8,128)(2,1)}', space=vmem, size = 0x28000, scoped, tag = 'scratch operand']
  #allocation6 [shape = 'f32[1024,32]{1,0:T(8,128)}', space=vmem, size = 0x80000, scoped, tag = 'scratch operand']
  #allocation7 [shape = 'f32[256,64]{1,0:T(8,128)}', space=vmem, size = 0x20000, scoped, tag = 'scratch operand']
  #allocation8 [shape = 'f32[64,64]{1,0:T(8,128)}', space=vmem, size = 0x8000, scoped, tag = 'scratch operand']
  #allocation9 [shape = 'f32[32,64]{1,0:T(8,128)}', space=vmem, size = 0x4000, scoped, tag = 'scratch operand']
  #allocation10 [shape = 'bf16[2,1024]{1,0:T(2,128)(2,1)}', space=vmem, size = 0x1000, scoped, tag = 'scratch operand']
  %s0 = inlined_call_operand.vmem [shape: bf16[2,1024,27], index: 0, kind: input, shape index: {}]
  %s1 = inlined_call_operand.vmem [shape: bf16[27,32], index: 1, kind: input, shape index: {}]
  %s2 = inlined_call_operand.vmem [shape: f32[1,32], index: 2, kind: input, shape index: {}]
  %s3 = inlined_call_operand.vmem [shape: bf16[288,64], index: 3, kind: input, shape index: {}]
  %s4 = inlined_call_operand.vmem [shape: f32[1,64], index: 4, kind: input, shape index: {}]
  %s5 = inlined_call_operand.vmem [shape: bf16[576,64], index: 5, kind: input, shape index: {}]
  %s6 = inlined_call_operand.vmem [shape: f32[1,64], index: 6, kind: input, shape index: {}]
  %s7 = inlined_call_operand.vmem [shape: bf16[1024,512], index: 7, kind: input, shape index: {}]
  %s8 = inlined_call_operand.vmem [shape: f32[1,512], index: 8, kind: input, shape index: {}]
  %s9 = inlined_call_operand.vmem [shape: bf16[512,128], index: 9, kind: input, shape index: {}]
  %s10 = inlined_call_operand.vmem [shape: f32[1,128], index: 10, kind: input, shape index: {}]
  %s11 = inlined_call_operand.hbm [shape: f32[2,128], index: 11, kind: output, shape index: {}]
  %s12 = sld [smem:[#allocation0]]
  $region54: #{enhanced_scaling_cnn_forward.1} parent=0
    _
  %s14 = ssub.s32 1, %s12
  %s15 = scalar_select 0, %s14, %s12
  $region1: #{enhanced_scaling_cnn_forward.1} parent=0
    #allocation11 [shape = 'u8[1024]{0}', space=vmem, size = 0x400, scoped, tag = 'output window, operand 0, single buffered']
    #allocation12 [shape = 's32[1]{0}', space=sflag, size = 0x4, scoped, tag = 'scoped memory for enhanced_scaling_cnn_forward.1']
    %16 = vsyncpa [#allocation12], 0
    // Predicated region
    $region2: #{enhanced_scaling_cnn_forward.1} parent=1 // pred_check
      _
    $region3: #{enhanced_scaling_cnn_forward.1} parent=1 // pred_check_branch
      %18 = sbr.rel (0) target = $region5
    $region4: #{enhanced_scaling_cnn_forward.1} parent=1 // pred_region
      _
    $region5: #{enhanced_scaling_cnn_forward.1} parent=1 // pred_fallthru
      _
    // Predicated region
    $region6: #{enhanced_scaling_cnn_forward.1} parent=1 // pred_check
      _
    $region7: #{enhanced_scaling_cnn_forward.1} parent=1 // pred_check_branch
      %20 = sbr.rel (0) target = $region9
    $region8: #{enhanced_scaling_cnn_forward.1} parent=1 // pred_region
      _
    $region9: #{enhanced_scaling_cnn_forward.1} parent=1 // pred_fallthru
      _
    // Predicated region
    $region10: #{enhanced_scaling_cnn_forward.1} parent=1 // pred_check
      _
    $region11: #{enhanced_scaling_cnn_forward.1} parent=1 // pred_check_branch
      %22 = sbr.rel (0) target = $region13
    $region12: #{enhanced_scaling_cnn_forward.1} parent=1 // pred_region
      _
    $region13: #{enhanced_scaling_cnn_forward.1} parent=1 // pred_fallthru
      _
    // Predicated region
    $region14: #{enhanced_scaling_cnn_forward.1} parent=1 // pred_check
      _
    $region15: #{enhanced_scaling_cnn_forward.1} parent=1 // pred_check_branch
      %24 = sbr.rel (0) target = $region17
    $region16: #{enhanced_scaling_cnn_forward.1} parent=1 // pred_region
      _
    $region17: #{enhanced_scaling_cnn_forward.1} parent=1 // pred_fallthru
      _
    // Predicated region
    $region18: #{enhanced_scaling_cnn_forward.1} parent=1 // pred_check
      _
    $region19: #{enhanced_scaling_cnn_forward.1} parent=1 // pred_check_branch
      %26 = sbr.rel (0) target = $region21
    $region20: #{enhanced_scaling_cnn_forward.1} parent=1 // pred_region
      _
    $region21: #{enhanced_scaling_cnn_forward.1} parent=1 // pred_fallthru
      _
    // Predicated region
    $region22: #{enhanced_scaling_cnn_forward.1} parent=1 // pred_check
      _
    $region23: #{enhanced_scaling_cnn_forward.1} parent=1 // pred_check_branch
      %28 = sbr.rel (0) target = $region25
    $region24: #{enhanced_scaling_cnn_forward.1} parent=1 // pred_region
      _
    $region25: #{enhanced_scaling_cnn_forward.1} parent=1 // pred_fallthru
      _
    // Predicated region
    $region26: #{enhanced_scaling_cnn_forward.1} parent=1 // pred_check
      _
    $region27: #{enhanced_scaling_cnn_forward.1} parent=1 // pred_check_branch
      %30 = sbr.rel (0) target = $region29
    $region28: #{enhanced_scaling_cnn_forward.1} parent=1 // pred_region
      _
    $region29: #{enhanced_scaling_cnn_forward.1} parent=1 // pred_fallthru
      _
    // Predicated region
    $region30: #{enhanced_scaling_cnn_forward.1} parent=1 // pred_check
      _
    $region31: #{enhanced_scaling_cnn_forward.1} parent=1 // pred_check_branch
      %32 = sbr.rel (0) target = $region33
    $region32: #{enhanced_scaling_cnn_forward.1} parent=1 // pred_region
      _
    $region33: #{enhanced_scaling_cnn_forward.1} parent=1 // pred_fallthru
      _
    // Predicated region
    $region34: #{enhanced_scaling_cnn_forward.1} parent=1 // pred_check
      _
    $region35: #{enhanced_scaling_cnn_forward.1} parent=1 // pred_check_branch
      %34 = sbr.rel (0) target = $region37
    $region36: #{enhanced_scaling_cnn_forward.1} parent=1 // pred_region
      _
    $region37: #{enhanced_scaling_cnn_forward.1} parent=1 // pred_fallthru
      _
    // Predicated region
    $region38: #{enhanced_scaling_cnn_forward.1} parent=1 // pred_check
      _
    $region39: #{enhanced_scaling_cnn_forward.1} parent=1 // pred_check_branch
      %36 = sbr.rel (0) target = $region41
    $region40: #{enhanced_scaling_cnn_forward.1} parent=1 // pred_region
      _
    $region41: #{enhanced_scaling_cnn_forward.1} parent=1 // pred_fallthru
      _
    // Predicated region
    $region42: #{enhanced_scaling_cnn_forward.1} parent=1 // pred_check
      _
    $region43: #{enhanced_scaling_cnn_forward.1} parent=1 // pred_check_branch
      %38 = sbr.rel (0) target = $region45
    $region44: #{enhanced_scaling_cnn_forward.1} parent=1 // pred_region
      _
    $region45: #{enhanced_scaling_cnn_forward.1} parent=1 // pred_fallthru
      _
    %v40 = vld [vmem:[%s0] sm:$0xf]
    %v41 = vld [vmem:[%s0 + $0x4] sm:$0xf]
    %v42 = vld [vmem:[%s0 + $0x8] sm:$0xf]
    %v43 = vld [vmem:[%s0 + $0xc] sm:$0xf]
    %v44 = vld [vmem:[%s0 + $0x10] sm:$0xf]
    %v45 = vld [vmem:[%s0 + $0x14] sm:$0xf]
    %v46 = vld [vmem:[%s0 + $0x18] sm:$0xf]
    %v47 = vld [vmem:[%s0 + $0x1c] sm:$0xf]
    %v48 = vld [vmem:[%s0 + $0x20] sm:$0xf]
    %v49 = vld [vmem:[%s0 + $0x24] sm:$0xf]
    %v50 = vld [vmem:[%s0 + $0x28] sm:$0xf]
    %v51 = vld [vmem:[%s0 + $0x2c] sm:$0xf]
    %v52 = vld [vmem:[%s0 + $0x30] sm:$0xf]
    %v53 = vld [vmem:[%s0 + $0x34] sm:$0xf]
    %v54 = vld [vmem:[%s0 + $0x38] sm:$0xf]
    %v55 = vld [vmem:[%s0 + $0x3c] sm:$0xf]
    %v56 = vld [vmem:[%s0 + $0x40] sm:$0xf]
    %v57 = vld [vmem:[%s0 + $0x44] sm:$0xf]
    %v58 = vld [vmem:[%s0 + $0x48] sm:$0xf]
    %v59 = vld [vmem:[%s0 + $0x4c] sm:$0xf]
    %v60 = vld [vmem:[%s0 + $0x50] sm:$0xf]
    %v61 = vld [vmem:[%s0 + $0x54] sm:$0xf]
    %v62 = vld [vmem:[%s0 + $0x58] sm:$0xf]
    %v63 = vld [vmem:[%s0 + $0x5c] sm:$0xf]
    %v64 = vld [vmem:[%s0 + $0x60] sm:$0xf]
    %v65 = vld [vmem:[%s0 + $0x64] sm:$0xf]
    %v66 = vld [vmem:[%s0 + $0x68] sm:$0xf]
    %v67 = vld [vmem:[%s0 + $0x6c] sm:$0xf]
    %v68 = vld [vmem:[%s0 + $0x70] sm:$0xf]
    %v69 = vld [vmem:[%s0 + $0x74] sm:$0xf]
    %v70 = vld [vmem:[%s0 + $0x78] sm:$0xf]
    %v71 = vld [vmem:[%s0 + $0x7c] sm:$0xf]
    %v72 = vld [vmem:[%s0 + $0x80] sm:$0xf]
    %v73 = vld [vmem:[%s0 + $0x84] sm:$0xf]
    %v74 = vld [vmem:[%s0 + $0x88] sm:$0xf]
    %v75 = vld [vmem:[%s0 + $0x8c] sm:$0xf]
    %v76 = vld [vmem:[%s0 + $0x90] sm:$0xf]
    %v77 = vld [vmem:[%s0 + $0x94] sm:$0xf]
    %v78 = vld [vmem:[%s0 + $0x98] sm:$0xf]
    %v79 = vld [vmem:[%s0 + $0x9c] sm:$0xf]
    %v80 = vld [vmem:[%s0 + $0xa0] sm:$0xf]
    %v81 = vld [vmem:[%s0 + $0xa4] sm:$0xf]
    %v82 = vld [vmem:[%s0 + $0xa8] sm:$0xf]
    %v83 = vld [vmem:[%s0 + $0xac] sm:$0xf]
    %v84 = vld [vmem:[%s0 + $0xb0] sm:$0xf]
    %v85 = vld [vmem:[%s0 + $0xb4] sm:$0xf]
    %v86 = vld [vmem:[%s0 + $0xb8] sm:$0xf]
    %v87 = vld [vmem:[%s0 + $0xbc] sm:$0xf]
    %v88 = vld [vmem:[%s0 + $0xc0] sm:$0xf]
    %v89 = vld [vmem:[%s0 + $0xc4] sm:$0xf]
    %v90 = vld [vmem:[%s0 + $0xc8] sm:$0xf]
    %v91 = vld [vmem:[%s0 + $0xcc] sm:$0xf]
    %v92 = vld [vmem:[%s0 + $0xd0] sm:$0xf]
    %v93 = vld [vmem:[%s0 + $0xd4] sm:$0xf]
    %v94 = vld [vmem:[%s0 + $0xd8] sm:$0xf]
    %v95 = vld [vmem:[%s0 + $0xdc] sm:$0xf]
    %v96 = vld [vmem:[%s0 + $0xe0] sm:$0xf]
    %v97 = vld [vmem:[%s0 + $0xe4] sm:$0xf]
    %v98 = vld [vmem:[%s0 + $0xe8] sm:$0xf]
    %v99 = vld [vmem:[%s0 + $0xec] sm:$0xf]
    %v100 = vld [vmem:[%s0 + $0xf0] sm:$0xf]
    %v101 = vld [vmem:[%s0 + $0xf4] sm:$0xf]
    %v102 = vld [vmem:[%s0 + $0xf8] sm:$0xf]
    %v103 = vld [vmem:[%s0 + $0xfc] sm:$0xf]
    %v104 = vld [vmem:[%s0 + $0x100] sm:$0xf]
    %v105 = vld [vmem:[%s0 + $0x104] sm:$0xf]
    %v106 = vld [vmem:[%s0 + $0x108] sm:$0xf]
    %v107 = vld [vmem:[%s0 + $0x10c] sm:$0xf]
    %v108 = vld [vmem:[%s0 + $0x110] sm:$0xf]
    %v109 = vld [vmem:[%s0 + $0x114] sm:$0xf]
    %v110 = vld [vmem:[%s0 + $0x118] sm:$0xf]
    %v111 = vld [vmem:[%s0 + $0x11c] sm:$0xf]
    %v112 = vld [vmem:[%s0 + $0x120] sm:$0xf]
    %v113 = vld [vmem:[%s0 + $0x124] sm:$0xf]
    %v114 = vld [vmem:[%s0 + $0x128] sm:$0xf]
    %v115 = vld [vmem:[%s0 + $0x12c] sm:$0xf]
    %v116 = vld [vmem:[%s0 + $0x130] sm:$0xf]
    %v117 = vld [vmem:[%s0 + $0x134] sm:$0xf]
    %v118 = vld [vmem:[%s0 + $0x138] sm:$0xf]
    %v119 = vld [vmem:[%s0 + $0x13c] sm:$0xf]
    %v120 = vld [vmem:[%s0 + $0x140] sm:$0xf]
    %v121 = vld [vmem:[%s0 + $0x144] sm:$0xf]
    %v122 = vld [vmem:[%s0 + $0x148] sm:$0xf]
    %v123 = vld [vmem:[%s0 + $0x14c] sm:$0xf]
    %v124 = vld [vmem:[%s0 + $0x150] sm:$0xf]
    %v125 = vld [vmem:[%s0 + $0x154] sm:$0xf]
    %v126 = vld [vmem:[%s0 + $0x158] sm:$0xf]
    %v127 = vld [vmem:[%s0 + $0x15c] sm:$0xf]
    %v128 = vld [vmem:[%s0 + $0x160] sm:$0xf]
    %v129 = vld [vmem:[%s0 + $0x164] sm:$0xf]
    %v130 = vld [vmem:[%s0 + $0x168] sm:$0xf]
    %v131 = vld [vmem:[%s0 + $0x16c] sm:$0xf]
    %v132 = vld [vmem:[%s0 + $0x170] sm:$0xf]
    %v133 = vld [vmem:[%s0 + $0x174] sm:$0xf]
    %v134 = vld [vmem:[%s0 + $0x178] sm:$0xf]
    %v135 = vld [vmem:[%s0 + $0x17c] sm:$0xf]
    %v136 = vld [vmem:[%s0 + $0x180] sm:$0xf]
    %v137 = vld [vmem:[%s0 + $0x184] sm:$0xf]
    %v138 = vld [vmem:[%s0 + $0x188] sm:$0xf]
    %v139 = vld [vmem:[%s0 + $0x18c] sm:$0xf]
    %v140 = vld [vmem:[%s0 + $0x190] sm:$0xf]
    %v141 = vld [vmem:[%s0 + $0x194] sm:$0xf]
    %v142 = vld [vmem:[%s0 + $0x198] sm:$0xf]
    %v143 = vld [vmem:[%s0 + $0x19c] sm:$0xf]
    %v144 = vld [vmem:[%s0 + $0x1a0] sm:$0xf]
    %v145 = vld [vmem:[%s0 + $0x1a4] sm:$0xf]
    %v146 = vld [vmem:[%s0 + $0x1a8] sm:$0xf]
    %v147 = vld [vmem:[%s0 + $0x1ac] sm:$0xf]
    %v148 = vld [vmem:[%s0 + $0x1b0] sm:$0xf]
    %v149 = vld [vmem:[%s0 + $0x1b4] sm:$0xf]
    %v150 = vld [vmem:[%s0 + $0x1b8] sm:$0xf]
    %v151 = vld [vmem:[%s0 + $0x1bc] sm:$0xf]
    %v152 = vld [vmem:[%s0 + $0x1c0] sm:$0xf]
    %v153 = vld [vmem:[%s0 + $0x1c4] sm:$0xf]
    %v154 = vld [vmem:[%s0 + $0x1c8] sm:$0xf]
    %v155 = vld [vmem:[%s0 + $0x1cc] sm:$0xf]
    %v156 = vld [vmem:[%s0 + $0x1d0] sm:$0xf]
    %v157 = vld [vmem:[%s0 + $0x1d4] sm:$0xf]
    %v158 = vld [vmem:[%s0 + $0x1d8] sm:$0xf]
    %v159 = vld [vmem:[%s0 + $0x1dc] sm:$0xf]
    %v160 = vld [vmem:[%s0 + $0x1e0] sm:$0xf]
    %v161 = vld [vmem:[%s0 + $0x1e4] sm:$0xf]
    %v162 = vld [vmem:[%s0 + $0x1e8] sm:$0xf]
    %v163 = vld [vmem:[%s0 + $0x1ec] sm:$0xf]
    %v164 = vld [vmem:[%s0 + $0x1f0] sm:$0xf]
    %v165 = vld [vmem:[%s0 + $0x1f4] sm:$0xf]
    %v166 = vld [vmem:[%s0 + $0x1f8] sm:$0xf]
    %v167 = vld [vmem:[%s0 + $0x1fc] sm:$0xf]
    %v168 = vld [vmem:[%s0 + $0x200] sm:$0xf]
    %v169 = vld [vmem:[%s0 + $0x204] sm:$0xf]
    %v170 = vld [vmem:[%s0 + $0x208] sm:$0xf]
    %v171 = vld [vmem:[%s0 + $0x20c] sm:$0xf]
    %v172 = vld [vmem:[%s0 + $0x210] sm:$0xf]
    %v173 = vld [vmem:[%s0 + $0x214] sm:$0xf]
    %v174 = vld [vmem:[%s0 + $0x218] sm:$0xf]
    %v175 = vld [vmem:[%s0 + $0x21c] sm:$0xf]
    %v176 = vld [vmem:[%s0 + $0x220] sm:$0xf]
    %v177 = vld [vmem:[%s0 + $0x224] sm:$0xf]
    %v178 = vld [vmem:[%s0 + $0x228] sm:$0xf]
    %v179 = vld [vmem:[%s0 + $0x22c] sm:$0xf]
    %v180 = vld [vmem:[%s0 + $0x230] sm:$0xf]
    %v181 = vld [vmem:[%s0 + $0x234] sm:$0xf]
    %v182 = vld [vmem:[%s0 + $0x238] sm:$0xf]
    %v183 = vld [vmem:[%s0 + $0x23c] sm:$0xf]
    %v184 = vld [vmem:[%s0 + $0x240] sm:$0xf]
    %v185 = vld [vmem:[%s0 + $0x244] sm:$0xf]
    %v186 = vld [vmem:[%s0 + $0x248] sm:$0xf]
    %v187 = vld [vmem:[%s0 + $0x24c] sm:$0xf]
    %v188 = vld [vmem:[%s0 + $0x250] sm:$0xf]
    %v189 = vld [vmem:[%s0 + $0x254] sm:$0xf]
    %v190 = vld [vmem:[%s0 + $0x258] sm:$0xf]
    %v191 = vld [vmem:[%s0 + $0x25c] sm:$0xf]
    %v192 = vld [vmem:[%s0 + $0x260] sm:$0xf]
    %v193 = vld [vmem:[%s0 + $0x264] sm:$0xf]
    %v194 = vld [vmem:[%s0 + $0x268] sm:$0xf]
    %v195 = vld [vmem:[%s0 + $0x26c] sm:$0xf]
    %v196 = vld [vmem:[%s0 + $0x270] sm:$0xf]
    %v197 = vld [vmem:[%s0 + $0x274] sm:$0xf]
    %v198 = vld [vmem:[%s0 + $0x278] sm:$0xf]
    %v199 = vld [vmem:[%s0 + $0x27c] sm:$0xf]
    %v200 = vld [vmem:[%s0 + $0x280] sm:$0xf]
    %v201 = vld [vmem:[%s0 + $0x284] sm:$0xf]
    %v202 = vld [vmem:[%s0 + $0x288] sm:$0xf]
    %v203 = vld [vmem:[%s0 + $0x28c] sm:$0xf]
    %v204 = vld [vmem:[%s0 + $0x290] sm:$0xf]
    %v205 = vld [vmem:[%s0 + $0x294] sm:$0xf]
    %v206 = vld [vmem:[%s0 + $0x298] sm:$0xf]
    %v207 = vld [vmem:[%s0 + $0x29c] sm:$0xf]
    %v208 = vld [vmem:[%s0 + $0x2a0] sm:$0xf]
    %v209 = vld [vmem:[%s0 + $0x2a4] sm:$0xf]
    %v210 = vld [vmem:[%s0 + $0x2a8] sm:$0xf]
    %v211 = vld [vmem:[%s0 + $0x2ac] sm:$0xf]
    %v212 = vld [vmem:[%s0 + $0x2b0] sm:$0xf]
    %v213 = vld [vmem:[%s0 + $0x2b4] sm:$0xf]
    %v214 = vld [vmem:[%s0 + $0x2b8] sm:$0xf]
    %v215 = vld [vmem:[%s0 + $0x2bc] sm:$0xf]
    %v216 = vld [vmem:[%s0 + $0x2c0] sm:$0xf]
    %v217 = vld [vmem:[%s0 + $0x2c4] sm:$0xf]
    %v218 = vld [vmem:[%s0 + $0x2c8] sm:$0xf]
    %v219 = vld [vmem:[%s0 + $0x2cc] sm:$0xf]
    %v220 = vld [vmem:[%s0 + $0x2d0] sm:$0xf]
    %v221 = vld [vmem:[%s0 + $0x2d4] sm:$0xf]
    %v222 = vld [vmem:[%s0 + $0x2d8] sm:$0xf]
    %v223 = vld [vmem:[%s0 + $0x2dc] sm:$0xf]
    %v224 = vld [vmem:[%s0 + $0x2e0] sm:$0xf]
    %v225 = vld [vmem:[%s0 + $0x2e4] sm:$0xf]
    %v226 = vld [vmem:[%s0 + $0x2e8] sm:$0xf]
    %v227 = vld [vmem:[%s0 + $0x2ec] sm:$0xf]
    %v228 = vld [vmem:[%s0 + $0x2f0] sm:$0xf]
    %v229 = vld [vmem:[%s0 + $0x2f4] sm:$0xf]
    %v230 = vld [vmem:[%s0 + $0x2f8] sm:$0xf]
    %v231 = vld [vmem:[%s0 + $0x2fc] sm:$0xf]
    %v232 = vld [vmem:[%s0 + $0x300] sm:$0xf]
    %v233 = vld [vmem:[%s0 + $0x304] sm:$0xf]
    %v234 = vld [vmem:[%s0 + $0x308] sm:$0xf]
    %v235 = vld [vmem:[%s0 + $0x30c] sm:$0xf]
    %v236 = vld [vmem:[%s0 + $0x310] sm:$0xf]
    %v237 = vld [vmem:[%s0 + $0x314] sm:$0xf]
    %v238 = vld [vmem:[%s0 + $0x318] sm:$0xf]
    %v239 = vld [vmem:[%s0 + $0x31c] sm:$0xf]
    %v240 = vld [vmem:[%s0 + $0x320] sm:$0xf]
    %v241 = vld [vmem:[%s0 + $0x324] sm:$0xf]
    %v242 = vld [vmem:[%s0 + $0x328] sm:$0xf]
    %v243 = vld [vmem:[%s0 + $0x32c] sm:$0xf]
    %v244 = vld [vmem:[%s0 + $0x330] sm:$0xf]
    %v245 = vld [vmem:[%s0 + $0x334] sm:$0xf]
    %v246 = vld [vmem:[%s0 + $0x338] sm:$0xf]
    %v247 = vld [vmem:[%s0 + $0x33c] sm:$0xf]
    %v248 = vld [vmem:[%s0 + $0x340] sm:$0xf]
    %v249 = vld [vmem:[%s0 + $0x344] sm:$0xf]
    %v250 = vld [vmem:[%s0 + $0x348] sm:$0xf]
    %v251 = vld [vmem:[%s0 + $0x34c] sm:$0xf]
    %v252 = vld [vmem:[%s0 + $0x350] sm:$0xf]
    %v253 = vld [vmem:[%s0 + $0x354] sm:$0xf]
    %v254 = vld [vmem:[%s0 + $0x358] sm:$0xf]
    %v255 = vld [vmem:[%s0 + $0x35c] sm:$0xf]
    %v256 = vld [vmem:[%s0 + $0x360] sm:$0xf]
    %v257 = vld [vmem:[%s0 + $0x364] sm:$0xf]
    %v258 = vld [vmem:[%s0 + $0x368] sm:$0xf]
    %v259 = vld [vmem:[%s0 + $0x36c] sm:$0xf]
    %v260 = vld [vmem:[%s0 + $0x370] sm:$0xf]
    %v261 = vld [vmem:[%s0 + $0x374] sm:$0xf]
    %v262 = vld [vmem:[%s0 + $0x378] sm:$0xf]
    %v263 = vld [vmem:[%s0 + $0x37c] sm:$0xf]
    %v264 = vld [vmem:[%s0 + $0x380] sm:$0xf]
    %v265 = vld [vmem:[%s0 + $0x384] sm:$0xf]
    %v266 = vld [vmem:[%s0 + $0x388] sm:$0xf]
    %v267 = vld [vmem:[%s0 + $0x38c] sm:$0xf]
    %v268 = vld [vmem:[%s0 + $0x390] sm:$0xf]
    %v269 = vld [vmem:[%s0 + $0x394] sm:$0xf]
    %v270 = vld [vmem:[%s0 + $0x398] sm:$0xf]
    %v271 = vld [vmem:[%s0 + $0x39c] sm:$0xf]
    %v272 = vld [vmem:[%s0 + $0x3a0] sm:$0xf]
    %v273 = vld [vmem:[%s0 + $0x3a4] sm:$0xf]
    %v274 = vld [vmem:[%s0 + $0x3a8] sm:$0xf]
    %v275 = vld [vmem:[%s0 + $0x3ac] sm:$0xf]
    %v276 = vld [vmem:[%s0 + $0x3b0] sm:$0xf]
    %v277 = vld [vmem:[%s0 + $0x3b4] sm:$0xf]
    %v278 = vld [vmem:[%s0 + $0x3b8] sm:$0xf]
    %v279 = vld [vmem:[%s0 + $0x3bc] sm:$0xf]
    %v280 = vld [vmem:[%s0 + $0x3c0] sm:$0xf]
    %v281 = vld [vmem:[%s0 + $0x3c4] sm:$0xf]
    %v282 = vld [vmem:[%s0 + $0x3c8] sm:$0xf]
    %v283 = vld [vmem:[%s0 + $0x3cc] sm:$0xf]
    %v284 = vld [vmem:[%s0 + $0x3d0] sm:$0xf]
    %v285 = vld [vmem:[%s0 + $0x3d4] sm:$0xf]
    %v286 = vld [vmem:[%s0 + $0x3d8] sm:$0xf]
    %v287 = vld [vmem:[%s0 + $0x3dc] sm:$0xf]
    %v288 = vld [vmem:[%s0 + $0x3e0] sm:$0xf]
    %v289 = vld [vmem:[%s0 + $0x3e4] sm:$0xf]
    %v290 = vld [vmem:[%s0 + $0x3e8] sm:$0xf]
    %v291 = vld [vmem:[%s0 + $0x3ec] sm:$0xf]
    %v292 = vld [vmem:[%s0 + $0x3f0] sm:$0xf]
    %v293 = vld [vmem:[%s0 + $0x3f4] sm:$0xf]
    %v294 = vld [vmem:[%s0 + $0x3f8] sm:$0xf]
    %v295 = vld [vmem:[%s0 + $0x3fc] sm:$0xf]
    %v296 = vld [vmem:[%s1] sm:$0xf]
    %v297 = vld [vmem:[%s1 + $0x4] sm:$0xf]
    %v298 = vld [vmem:[%s1 + $0x8] sm:$0xf]
    %v299 = vld [vmem:[%s1 + $0xc] sm:$0x3]
    %v300 = vld [vmem:[%s2] sm:$0x1]
    %v302 = vperm.slane %v300, 0
    %v560 = vunpack.c.l.b16 %v40
    %v561 = vunpack.c.l.b16 %v41
    %v562 = vunpack.c.l.b16 %v42
    %v563 = vunpack.c.l.b16 %v43
    %v564 = vunpack.c.l.b16 %v44
    %v565 = vunpack.c.l.b16 %v45
    %v566 = vunpack.c.l.b16 %v46
    %v567 = vunpack.c.l.b16 %v47
    %v568 = vunpack.c.l.b16 %v48
    %v569 = vunpack.c.l.b16 %v49
    %v570 = vunpack.c.l.b16 %v50
    %v571 = vunpack.c.l.b16 %v51
    %v572 = vunpack.c.l.b16 %v52
    %v573 = vunpack.c.l.b16 %v53
    %v574 = vunpack.c.l.b16 %v54
    %v575 = vunpack.c.l.b16 %v55
    %v576 = vunpack.c.l.b16 %v56
    %v577 = vunpack.c.l.b16 %v57
    %v578 = vunpack.c.l.b16 %v58
    %v579 = vunpack.c.l.b16 %v59
    %v580 = vunpack.c.l.b16 %v60
    %v581 = vunpack.c.l.b16 %v61
    %v582 = vunpack.c.l.b16 %v62
    %v583 = vunpack.c.l.b16 %v63
    %v584 = vunpack.c.l.b16 %v64
    %v585 = vunpack.c.l.b16 %v65
    %v586 = vunpack.c.l.b16 %v66
    %v587 = vunpack.c.l.b16 %v67
    %v588 = vunpack.c.l.b16 %v68
    %v589 = vunpack.c.l.b16 %v69
    %v590 = vunpack.c.l.b16 %v70
    %v591 = vunpack.c.l.b16 %v71
    %v592 = vunpack.c.l.b16 %v72
    %v593 = vunpack.c.l.b16 %v73
    %v594 = vunpack.c.l.b16 %v74
    %v595 = vunpack.c.l.b16 %v75
    %v596 = vunpack.c.l.b16 %v76
    %v597 = vunpack.c.l.b16 %v77
    %v598 = vunpack.c.l.b16 %v78
    %v599 = vunpack.c.l.b16 %v79
    %v600 = vunpack.c.l.b16 %v80
    %v601 = vunpack.c.l.b16 %v81
    %v602 = vunpack.c.l.b16 %v82
    %v603 = vunpack.c.l.b16 %v83
    %v604 = vunpack.c.l.b16 %v84
    %v605 = vunpack.c.l.b16 %v85
    %v606 = vunpack.c.l.b16 %v86
    %v607 = vunpack.c.l.b16 %v87
    %v608 = vunpack.c.l.b16 %v88
    %v609 = vunpack.c.l.b16 %v89
    %v610 = vunpack.c.l.b16 %v90
    %v611 = vunpack.c.l.b16 %v91
    %v612 = vunpack.c.l.b16 %v92
    %v613 = vunpack.c.l.b16 %v93
    %v614 = vunpack.c.l.b16 %v94
    %v615 = vunpack.c.l.b16 %v95
    %v616 = vunpack.c.l.b16 %v96
    %v617 = vunpack.c.l.b16 %v97
    %v618 = vunpack.c.l.b16 %v98
    %v619 = vunpack.c.l.b16 %v99
    %v620 = vunpack.c.l.b16 %v100
    %v621 = vunpack.c.l.b16 %v101
    %v622 = vunpack.c.l.b16 %v102
    %v623 = vunpack.c.l.b16 %v103
    %v624 = vunpack.c.l.b16 %v104
    %v625 = vunpack.c.l.b16 %v105
    %v626 = vunpack.c.l.b16 %v106
    %v627 = vunpack.c.l.b16 %v107
    %v628 = vunpack.c.l.b16 %v108
    %v629 = vunpack.c.l.b16 %v109
    %v630 = vunpack.c.l.b16 %v110
    %v631 = vunpack.c.l.b16 %v111
    %v632 = vunpack.c.l.b16 %v112
    %v633 = vunpack.c.l.b16 %v113
    %v634 = vunpack.c.l.b16 %v114
    %v635 = vunpack.c.l.b16 %v115
    %v636 = vunpack.c.l.b16 %v116
    %v637 = vunpack.c.l.b16 %v117
    %v638 = vunpack.c.l.b16 %v118
    %v639 = vunpack.c.l.b16 %v119
    %v640 = vunpack.c.l.b16 %v120
    %v641 = vunpack.c.l.b16 %v121
    %v642 = vunpack.c.l.b16 %v122
    %v643 = vunpack.c.l.b16 %v123
    %v644 = vunpack.c.l.b16 %v124
    %v645 = vunpack.c.l.b16 %v125
    %v646 = vunpack.c.l.b16 %v126
    %v647 = vunpack.c.l.b16 %v127
    %v648 = vunpack.c.l.b16 %v128
    %v649 = vunpack.c.l.b16 %v129
    %v650 = vunpack.c.l.b16 %v130
    %v651 = vunpack.c.l.b16 %v131
    %v652 = vunpack.c.l.b16 %v132
    %v653 = vunpack.c.l.b16 %v133
    %v654 = vunpack.c.l.b16 %v134
    %v655 = vunpack.c.l.b16 %v135
    %v656 = vunpack.c.l.b16 %v136
    %v657 = vunpack.c.l.b16 %v137
    %v658 = vunpack.c.l.b16 %v138
    %v659 = vunpack.c.l.b16 %v139
    %v660 = vunpack.c.l.b16 %v140
    %v661 = vunpack.c.l.b16 %v141
    %v662 = vunpack.c.l.b16 %v142
    %v663 = vunpack.c.l.b16 %v143
    %v664 = vunpack.c.l.b16 %v144
    %v665 = vunpack.c.l.b16 %v145
    %v666 = vunpack.c.l.b16 %v146
    %v667 = vunpack.c.l.b16 %v147
    %v668 = vunpack.c.l.b16 %v148
    %v669 = vunpack.c.l.b16 %v149
    %v670 = vunpack.c.l.b16 %v150
    %v671 = vunpack.c.l.b16 %v151
    %v672 = vunpack.c.l.b16 %v152
    %v673 = vunpack.c.l.b16 %v153
    %v674 = vunpack.c.l.b16 %v154
    %v675 = vunpack.c.l.b16 %v155
    %v676 = vunpack.c.l.b16 %v156
    %v677 = vunpack.c.l.b16 %v157
    %v678 = vunpack.c.l.b16 %v158
    %v679 = vunpack.c.l.b16 %v159
    %v680 = vunpack.c.l.b16 %v160
    %v681 = vunpack.c.l.b16 %v161
    %v682 = vunpack.c.l.b16 %v162
    %v683 = vunpack.c.l.b16 %v163
    %v684 = vunpack.c.l.b16 %v164
    %v685 = vunpack.c.l.b16 %v165
    %v686 = vunpack.c.l.b16 %v166
    %v687 = vunpack.c.l.b16 %v167
    %v688 = vunpack.c.l.b16 %v168
    %v689 = vunpack.c.l.b16 %v169
    %v690 = vunpack.c.l.b16 %v170
    %v691 = vunpack.c.l.b16 %v171
    %v692 = vunpack.c.l.b16 %v172
    %v693 = vunpack.c.l.b16 %v173
    %v694 = vunpack.c.l.b16 %v174
    %v695 = vunpack.c.l.b16 %v175
    %v696 = vunpack.c.l.b16 %v176
    %v697 = vunpack.c.l.b16 %v177
    %v698 = vunpack.c.l.b16 %v178
    %v699 = vunpack.c.l.b16 %v179
    %v700 = vunpack.c.l.b16 %v180
    %v701 = vunpack.c.l.b16 %v181
    %v702 = vunpack.c.l.b16 %v182
    %v703 = vunpack.c.l.b16 %v183
    %v704 = vunpack.c.l.b16 %v184
    %v705 = vunpack.c.l.b16 %v185
    %v706 = vunpack.c.l.b16 %v186
    %v707 = vunpack.c.l.b16 %v187
    %v708 = vunpack.c.l.b16 %v188
    %v709 = vunpack.c.l.b16 %v189
    %v710 = vunpack.c.l.b16 %v190
    %v711 = vunpack.c.l.b16 %v191
    %v712 = vunpack.c.l.b16 %v192
    %v713 = vunpack.c.l.b16 %v193
    %v714 = vunpack.c.l.b16 %v194
    %v715 = vunpack.c.l.b16 %v195
    %v716 = vunpack.c.l.b16 %v196
    %v717 = vunpack.c.l.b16 %v197
    %v718 = vunpack.c.l.b16 %v198
    %v719 = vunpack.c.l.b16 %v199
    %v720 = vunpack.c.l.b16 %v200
    %v721 = vunpack.c.l.b16 %v201
    %v722 = vunpack.c.l.b16 %v202
    %v723 = vunpack.c.l.b16 %v203
    %v724 = vunpack.c.l.b16 %v204
    %v725 = vunpack.c.l.b16 %v205
    %v726 = vunpack.c.l.b16 %v206
    %v727 = vunpack.c.l.b16 %v207
    %v728 = vunpack.c.l.b16 %v208
    %v729 = vunpack.c.l.b16 %v209
    %v730 = vunpack.c.l.b16 %v210
    %v731 = vunpack.c.l.b16 %v211
    %v732 = vunpack.c.l.b16 %v212
    %v733 = vunpack.c.l.b16 %v213
    %v734 = vunpack.c.l.b16 %v214
    %v735 = vunpack.c.l.b16 %v215
    %v736 = vunpack.c.l.b16 %v216
    %v737 = vunpack.c.l.b16 %v217
    %v738 = vunpack.c.l.b16 %v218
    %v739 = vunpack.c.l.b16 %v219
    %v740 = vunpack.c.l.b16 %v220
    %v741 = vunpack.c.l.b16 %v221
    %v742 = vunpack.c.l.b16 %v222
    %v743 = vunpack.c.l.b16 %v223
    %v744 = vunpack.c.l.b16 %v224
    %v745 = vunpack.c.l.b16 %v225
    %v746 = vunpack.c.l.b16 %v226
    %v747 = vunpack.c.l.b16 %v227
    %v748 = vunpack.c.l.b16 %v228
    %v749 = vunpack.c.l.b16 %v229
    %v750 = vunpack.c.l.b16 %v230
    %v751 = vunpack.c.l.b16 %v231
    %v752 = vunpack.c.l.b16 %v232
    %v753 = vunpack.c.l.b16 %v233
    %v754 = vunpack.c.l.b16 %v234
    %v755 = vunpack.c.l.b16 %v235
    %v756 = vunpack.c.l.b16 %v236
    %v757 = vunpack.c.l.b16 %v237
    %v758 = vunpack.c.l.b16 %v238
    %v759 = vunpack.c.l.b16 %v239
    %v760 = vunpack.c.l.b16 %v240
    %v761 = vunpack.c.l.b16 %v241
    %v762 = vunpack.c.l.b16 %v242
    %v763 = vunpack.c.l.b16 %v243
    %v764 = vunpack.c.l.b16 %v244
    %v765 = vunpack.c.l.b16 %v245
    %v766 = vunpack.c.l.b16 %v246
    %v767 = vunpack.c.l.b16 %v247
    %v768 = vunpack.c.l.b16 %v248
    %v769 = vunpack.c.l.b16 %v249
    %v770 = vunpack.c.l.b16 %v250
    %v771 = vunpack.c.l.b16 %v251
    %v772 = vunpack.c.l.b16 %v252
    %v773 = vunpack.c.l.b16 %v253
    %v774 = vunpack.c.l.b16 %v254
    %v775 = vunpack.c.l.b16 %v255
    %v776 = vunpack.c.l.b16 %v256
    %v777 = vunpack.c.l.b16 %v257
    %v778 = vunpack.c.l.b16 %v258
    %v779 = vunpack.c.l.b16 %v259
    %v780 = vunpack.c.l.b16 %v260
    %v781 = vunpack.c.l.b16 %v261
    %v782 = vunpack.c.l.b16 %v262
    %v783 = vunpack.c.l.b16 %v263
    %v784 = vunpack.c.l.b16 %v264
    %v785 = vunpack.c.l.b16 %v265
    %v786 = vunpack.c.l.b16 %v266
    %v787 = vunpack.c.l.b16 %v267
    %v788 = vunpack.c.l.b16 %v268
    %v789 = vunpack.c.l.b16 %v269
    %v790 = vunpack.c.l.b16 %v270
    %v791 = vunpack.c.l.b16 %v271
    %v792 = vunpack.c.l.b16 %v272
    %v793 = vunpack.c.l.b16 %v273
    %v794 = vunpack.c.l.b16 %v274
    %v795 = vunpack.c.l.b16 %v275
    %v796 = vunpack.c.l.b16 %v276
    %v797 = vunpack.c.l.b16 %v277
    %v798 = vunpack.c.l.b16 %v278
    %v799 = vunpack.c.l.b16 %v279
    %v800 = vunpack.c.l.b16 %v280
    %v801 = vunpack.c.l.b16 %v281
    %v802 = vunpack.c.l.b16 %v282
    %v803 = vunpack.c.l.b16 %v283
    %v804 = vunpack.c.l.b16 %v284
    %v805 = vunpack.c.l.b16 %v285
    %v806 = vunpack.c.l.b16 %v286
    %v807 = vunpack.c.l.b16 %v287
    %v808 = vunpack.c.l.b16 %v288
    %v809 = vunpack.c.l.b16 %v289
    %v810 = vunpack.c.l.b16 %v290
    %v811 = vunpack.c.l.b16 %v291
    %v812 = vunpack.c.l.b16 %v292
    %v813 = vunpack.c.l.b16 %v293
    %v814 = vunpack.c.l.b16 %v294
    %v815 = vunpack.c.l.b16 %v295
    %v816 = vpack.c.b16 %v561, %v560
    %v817 = vpack.c.b16 %v563, %v562
    %v818 = vpack.c.b16 %v565, %v564
    %v819 = vpack.c.b16 %v567, %v566
    %v820 = vpack.c.b16 %v569, %v568
    %v821 = vpack.c.b16 %v571, %v570
    %v822 = vpack.c.b16 %v573, %v572
    %v823 = vpack.c.b16 %v575, %v574
    %v824 = vpack.c.b16 %v577, %v576
    %v825 = vpack.c.b16 %v579, %v578
    %v826 = vpack.c.b16 %v581, %v580
    %v827 = vpack.c.b16 %v583, %v582
    %v828 = vpack.c.b16 %v585, %v584
    %v829 = vpack.c.b16 %v587, %v586
    %v830 = vpack.c.b16 %v589, %v588
    %v831 = vpack.c.b16 %v591, %v590
    %v832 = vpack.c.b16 %v593, %v592
    %v833 = vpack.c.b16 %v595, %v594
    %v834 = vpack.c.b16 %v597, %v596
    %v835 = vpack.c.b16 %v599, %v598
    %v836 = vpack.c.b16 %v601, %v600
    %v837 = vpack.c.b16 %v603, %v602
    %v838 = vpack.c.b16 %v605, %v604
    %v839 = vpack.c.b16 %v607, %v606
    %v840 = vpack.c.b16 %v609, %v608
    %v841 = vpack.c.b16 %v611, %v610
    %v842 = vpack.c.b16 %v613, %v612
    %v843 = vpack.c.b16 %v615, %v614
    %v844 = vpack.c.b16 %v617, %v616
    %v845 = vpack.c.b16 %v619, %v618
    %v846 = vpack.c.b16 %v621, %v620
    %v847 = vpack.c.b16 %v623, %v622
    %v848 = vpack.c.b16 %v625, %v624
    %v849 = vpack.c.b16 %v627, %v626
    %v850 = vpack.c.b16 %v629, %v628
    %v851 = vpack.c.b16 %v631, %v630
    %v852 = vpack.c.b16 %v633, %v632
    %v853 = vpack.c.b16 %v635, %v634
    %v854 = vpack.c.b16 %v637, %v636
    %v855 = vpack.c.b16 %v639, %v638
    %v856 = vpack.c.b16 %v641, %v640
    %v857 = vpack.c.b16 %v643, %v642
    %v858 = vpack.c.b16 %v645, %v644
    %v859 = vpack.c.b16 %v647, %v646
    %v860 = vpack.c.b16 %v649, %v648
    %v861 = vpack.c.b16 %v651, %v650
    %v862 = vpack.c.b16 %v653, %v652
    %v863 = vpack.c.b16 %v655, %v654
    %v864 = vpack.c.b16 %v657, %v656
    %v865 = vpack.c.b16 %v659, %v658
    %v866 = vpack.c.b16 %v661, %v660
    %v867 = vpack.c.b16 %v663, %v662
    %v868 = vpack.c.b16 %v665, %v664
    %v869 = vpack.c.b16 %v667, %v666
    %v870 = vpack.c.b16 %v669, %v668
    %v871 = vpack.c.b16 %v671, %v670
    %v872 = vpack.c.b16 %v673, %v672
    %v873 = vpack.c.b16 %v675, %v674
    %v874 = vpack.c.b16 %v677, %v676
    %v875 = vpack.c.b16 %v679, %v678
    %v876 = vpack.c.b16 %v681, %v680
    %v877 = vpack.c.b16 %v683, %v682
    %v878 = vpack.c.b16 %v685, %v684
    %v879 = vpack.c.b16 %v687, %v686
    %v880 = vpack.c.b16 %v689, %v688
    %v881 = vpack.c.b16 %v691, %v690
    %v882 = vpack.c.b16 %v693, %v692
    %v883 = vpack.c.b16 %v695, %v694
    %v884 = vpack.c.b16 %v697, %v696
    %v885 = vpack.c.b16 %v699, %v698
    %v886 = vpack.c.b16 %v701, %v700
    %v887 = vpack.c.b16 %v703, %v702
    %v888 = vpack.c.b16 %v705, %v704
    %v889 = vpack.c.b16 %v707, %v706
    %v890 = vpack.c.b16 %v709, %v708
    %v891 = vpack.c.b16 %v711, %v710
    %v892 = vpack.c.b16 %v713, %v712
    %v893 = vpack.c.b16 %v715, %v714
    %v894 = vpack.c.b16 %v717, %v716
    %v895 = vpack.c.b16 %v719, %v718
    %v896 = vpack.c.b16 %v721, %v720
    %v897 = vpack.c.b16 %v723, %v722
    %v898 = vpack.c.b16 %v725, %v724
    %v899 = vpack.c.b16 %v727, %v726
    %v900 = vpack.c.b16 %v729, %v728
    %v901 = vpack.c.b16 %v731, %v730
    %v902 = vpack.c.b16 %v733, %v732
    %v903 = vpack.c.b16 %v735, %v734
    %v904 = vpack.c.b16 %v737, %v736
    %v905 = vpack.c.b16 %v739, %v738
    %v906 = vpack.c.b16 %v741, %v740
    %v907 = vpack.c.b16 %v743, %v742
    %v908 = vpack.c.b16 %v745, %v744
    %v909 = vpack.c.b16 %v747, %v746
    %v910 = vpack.c.b16 %v749, %v748
    %v911 = vpack.c.b16 %v751, %v750
    %v912 = vpack.c.b16 %v753, %v752
    %v913 = vpack.c.b16 %v755, %v754
    %v914 = vpack.c.b16 %v757, %v756
    %v915 = vpack.c.b16 %v759, %v758
    %v916 = vpack.c.b16 %v761, %v760
    %v917 = vpack.c.b16 %v763, %v762
    %v918 = vpack.c.b16 %v765, %v764
    %v919 = vpack.c.b16 %v767, %v766
    %v920 = vpack.c.b16 %v769, %v768
    %v921 = vpack.c.b16 %v771, %v770
    %v922 = vpack.c.b16 %v773, %v772
    %v923 = vpack.c.b16 %v775, %v774
    %v924 = vpack.c.b16 %v777, %v776
    %v925 = vpack.c.b16 %v779, %v778
    %v926 = vpack.c.b16 %v781, %v780
    %v927 = vpack.c.b16 %v783, %v782
    %v928 = vpack.c.b16 %v785, %v784
    %v929 = vpack.c.b16 %v787, %v786
    %v930 = vpack.c.b16 %v789, %v788
    %v931 = vpack.c.b16 %v791, %v790
    %v932 = vpack.c.b16 %v793, %v792
    %v933 = vpack.c.b16 %v795, %v794
    %v934 = vpack.c.b16 %v797, %v796
    %v935 = vpack.c.b16 %v799, %v798
    %v936 = vpack.c.b16 %v801, %v800
    %v937 = vpack.c.b16 %v803, %v802
    %v938 = vpack.c.b16 %v805, %v804
    %v939 = vpack.c.b16 %v807, %v806
    %v940 = vpack.c.b16 %v809, %v808
    %v941 = vpack.c.b16 %v811, %v810
    %v942 = vpack.c.b16 %v813, %v812
    %v943 = vpack.c.b16 %v815, %v814
    %v948 = vunpack.c.l.b16 %v296
    %v949 = vunpack.c.l.b16 %v297
    %v950 = vunpack.c.l.b16 %v298
    %v951 = vunpack.c.l.b16 %v299
    %v952 = vpack.c.b16 %v949, %v948
    %v953 = vpack.c.b16 %v951, %v950
    %vm955 = vcmask 220160
    %v957 = vsel %vm955, %v816, 0
    %v960 = vsel %vm955, %v817, 0
    %v963 = vsel %vm955, %v818, 0
    %v966 = vsel %vm955, %v819, 0
    %v969 = vsel %vm955, %v820, 0
    %v972 = vsel %vm955, %v821, 0
    %v975 = vsel %vm955, %v822, 0
    %v978 = vsel %vm955, %v823, 0
    %v981 = vsel %vm955, %v824, 0
    %v984 = vsel %vm955, %v825, 0
    %v987 = vsel %vm955, %v826, 0
    %v990 = vsel %vm955, %v827, 0
    %v993 = vsel %vm955, %v828, 0
    %v996 = vsel %vm955, %v829, 0
    %v999 = vsel %vm955, %v830, 0
    %v1002 = vsel %vm955, %v831, 0
    %v1005 = vsel %vm955, %v832, 0
    %v1008 = vsel %vm955, %v833, 0
    %v1011 = vsel %vm955, %v834, 0
    %v1014 = vsel %vm955, %v835, 0
    %v1017 = vsel %vm955, %v836, 0
    %v1020 = vsel %vm955, %v837, 0
    %v1023 = vsel %vm955, %v838, 0
    %v1026 = vsel %vm955, %v839, 0
    %v1029 = vsel %vm955, %v840, 0
    %v1032 = vsel %vm955, %v841, 0
    %v1035 = vsel %vm955, %v842, 0
    %v1038 = vsel %vm955, %v843, 0
    %v1041 = vsel %vm955, %v844, 0
    %v1044 = vsel %vm955, %v845, 0
    %v1047 = vsel %vm955, %v846, 0
    %v1050 = vsel %vm955, %v847, 0
    %v1053 = vsel %vm955, %v848, 0
    %v1056 = vsel %vm955, %v849, 0
    %v1059 = vsel %vm955, %v850, 0
    %v1062 = vsel %vm955, %v851, 0
    %v1065 = vsel %vm955, %v852, 0
    %v1068 = vsel %vm955, %v853, 0
    %v1071 = vsel %vm955, %v854, 0
    %v1074 = vsel %vm955, %v855, 0
    %v1077 = vsel %vm955, %v856, 0
    %v1080 = vsel %vm955, %v857, 0
    %v1083 = vsel %vm955, %v858, 0
    %v1086 = vsel %vm955, %v859, 0
    %v1089 = vsel %vm955, %v860, 0
    %v1092 = vsel %vm955, %v861, 0
    %v1095 = vsel %vm955, %v862, 0
    %v1098 = vsel %vm955, %v863, 0
    %v1101 = vsel %vm955, %v864, 0
    %v1104 = vsel %vm955, %v865, 0
    %v1107 = vsel %vm955, %v866, 0
    %v1110 = vsel %vm955, %v867, 0
    %v1113 = vsel %vm955, %v868, 0
    %v1116 = vsel %vm955, %v869, 0
    %v1119 = vsel %vm955, %v870, 0
    %v1122 = vsel %vm955, %v871, 0
    %v1125 = vsel %vm955, %v872, 0
    %v1128 = vsel %vm955, %v873, 0
    %v1131 = vsel %vm955, %v874, 0
    %v1134 = vsel %vm955, %v875, 0
    %v1137 = vsel %vm955, %v876, 0
    %v1140 = vsel %vm955, %v877, 0
    %v1143 = vsel %vm955, %v878, 0
    %v1146 = vsel %vm955, %v879, 0
    %v1149 = vsel %vm955, %v880, 0
    %v1152 = vsel %vm955, %v881, 0
    %v1155 = vsel %vm955, %v882, 0
    %v1158 = vsel %vm955, %v883, 0
    %v1161 = vsel %vm955, %v884, 0
    %v1164 = vsel %vm955, %v885, 0
    %v1167 = vsel %vm955, %v886, 0
    %v1170 = vsel %vm955, %v887, 0
    %v1173 = vsel %vm955, %v888, 0
    %v1176 = vsel %vm955, %v889, 0
    %v1179 = vsel %vm955, %v890, 0
    %v1182 = vsel %vm955, %v891, 0
    %v1185 = vsel %vm955, %v892, 0
    %v1188 = vsel %vm955, %v893, 0
    %v1191 = vsel %vm955, %v894, 0
    %v1194 = vsel %vm955, %v895, 0
    %v1197 = vsel %vm955, %v896, 0
    %v1200 = vsel %vm955, %v897, 0
    %v1203 = vsel %vm955, %v898, 0
    %v1206 = vsel %vm955, %v899, 0
    %v1209 = vsel %vm955, %v900, 0
    %v1212 = vsel %vm955, %v901, 0
    %v1215 = vsel %vm955, %v902, 0
    %v1218 = vsel %vm955, %v903, 0
    %v1221 = vsel %vm955, %v904, 0
    %v1224 = vsel %vm955, %v905, 0
    %v1227 = vsel %vm955, %v906, 0
    %v1230 = vsel %vm955, %v907, 0
    %v1233 = vsel %vm955, %v908, 0
    %v1236 = vsel %vm955, %v909, 0
    %v1239 = vsel %vm955, %v910, 0
    %v1242 = vsel %vm955, %v911, 0
    %v1245 = vsel %vm955, %v912, 0
    %v1248 = vsel %vm955, %v913, 0
    %v1251 = vsel %vm955, %v914, 0
    %v1254 = vsel %vm955, %v915, 0
    %v1257 = vsel %vm955, %v916, 0
    %v1260 = vsel %vm955, %v917, 0
    %v1263 = vsel %vm955, %v918, 0
    %v1266 = vsel %vm955, %v919, 0
    %v1269 = vsel %vm955, %v920, 0
    %v1272 = vsel %vm955, %v921, 0
    %v1275 = vsel %vm955, %v922, 0
    %v1278 = vsel %vm955, %v923, 0
    %v1281 = vsel %vm955, %v924, 0
    %v1284 = vsel %vm955, %v925, 0
    %v1287 = vsel %vm955, %v926, 0
    %v1290 = vsel %vm955, %v927, 0
    %v1293 = vsel %vm955, %v928, 0
    %v1296 = vsel %vm955, %v929, 0
    %v1299 = vsel %vm955, %v930, 0
    %v1302 = vsel %vm955, %v931, 0
    %v1305 = vsel %vm955, %v932, 0
    %v1308 = vsel %vm955, %v933, 0
    %v1311 = vsel %vm955, %v934, 0
    %v1314 = vsel %vm955, %v935, 0
    %v1317 = vsel %vm955, %v936, 0
    %v1320 = vsel %vm955, %v937, 0
    %v1323 = vsel %vm955, %v938, 0
    %v1326 = vsel %vm955, %v939, 0
    %v1329 = vsel %vm955, %v940, 0
    %v1332 = vsel %vm955, %v941, 0
    %v1335 = vsel %vm955, %v942, 0
    %v1338 = vsel %vm955, %v943, 0
    %vm1340 = vcmask 1044480
    %vm1341 = vcmask 1045504
    %v1342 = vsel %vm1340, 4294967295, 65535
    %v1343 = vsel %vm1341, %v1342, 0
    %v1345 = vand.u32 %v953, %v1343
    %1347 = vmatpush.bf16.msra.mxu0 0
    %1348 = vmatpush.bf16.msra.mxu0 0
    %1349 = vmatpush.bf16.msra.mxu0 0
    %1350 = vmatpush.bf16.msra.mxu0 0
    %1351 = vmatpush.bf16.msra.mxu0 0
    %1352 = vmatpush.bf16.msra.mxu0 0
    %1353 = vmatpush.bf16.msra.mxu0 %v1345
    %1354 = vmatpush.bf16.msra.mxu0 %v952
    %1355 = vmatmul.bf16.gmra.mxu0 %v957
    %v1356 = vpop.f32.mrf.mxu0
    %v1357 = vadd.f32 %v302, %v1356
    %v1358 = vpop.f32.mrf.mxu0
    %v1359 = vadd.f32 %v302, %v1358
    %1360 = vmatmul.bf16.gmra.mxu0 %v960
    %v1361 = vpop.f32.mrf.mxu0
    %v1362 = vadd.f32 %v302, %v1361
    %v1363 = vpop.f32.mrf.mxu0
    %v1364 = vadd.f32 %v302, %v1363
    %1365 = vmatmul.bf16.gmra.mxu0 %v963
    %v1366 = vpop.f32.mrf.mxu0
    %v1367 = vadd.f32 %v302, %v1366
    %v1368 = vpop.f32.mrf.mxu0
    %v1369 = vadd.f32 %v302, %v1368
    %1370 = vmatmul.bf16.gmra.mxu0 %v966
    %v1371 = vpop.f32.mrf.mxu0
    %v1372 = vadd.f32 %v302, %v1371
    %v1373 = vpop.f32.mrf.mxu0
    %v1374 = vadd.f32 %v302, %v1373
    %1375 = vmatmul.bf16.gmra.mxu0 %v969
    %v1376 = vpop.f32.mrf.mxu0
    %v1377 = vadd.f32 %v302, %v1376
    %v1378 = vpop.f32.mrf.mxu0
    %v1379 = vadd.f32 %v302, %v1378
    %1380 = vmatmul.bf16.gmra.mxu0 %v972
    %v1381 = vpop.f32.mrf.mxu0
    %v1382 = vadd.f32 %v302, %v1381
    %v1383 = vpop.f32.mrf.mxu0
    %v1384 = vadd.f32 %v302, %v1383
    %1385 = vmatmul.bf16.gmra.mxu0 %v975
    %v1386 = vpop.f32.mrf.mxu0
    %v1387 = vadd.f32 %v302, %v1386
    %v1388 = vpop.f32.mrf.mxu0
    %v1389 = vadd.f32 %v302, %v1388
    %1390 = vmatmul.bf16.gmra.mxu0 %v978
    %v1391 = vpop.f32.mrf.mxu0
    %v1392 = vadd.f32 %v302, %v1391
    %v1393 = vpop.f32.mrf.mxu0
    %v1394 = vadd.f32 %v302, %v1393
    %1395 = vmatmul.bf16.gmra.mxu0 %v981
    %v1396 = vpop.f32.mrf.mxu0
    %v1397 = vadd.f32 %v302, %v1396
    %v1398 = vpop.f32.mrf.mxu0
    %v1399 = vadd.f32 %v302, %v1398
    %1400 = vmatmul.bf16.gmra.mxu0 %v984
    %v1401 = vpop.f32.mrf.mxu0
    %v1402 = vadd.f32 %v302, %v1401
    %v1403 = vpop.f32.mrf.mxu0
    %v1404 = vadd.f32 %v302, %v1403
    %1405 = vmatmul.bf16.gmra.mxu0 %v987
    %v1406 = vpop.f32.mrf.mxu0
    %v1407 = vadd.f32 %v302, %v1406
    %v1408 = vpop.f32.mrf.mxu0
    %v1409 = vadd.f32 %v302, %v1408
    %1410 = vmatmul.bf16.gmra.mxu0 %v990
    %v1411 = vpop.f32.mrf.mxu0
    %v1412 = vadd.f32 %v302, %v1411
    %v1413 = vpop.f32.mrf.mxu0
    %v1414 = vadd.f32 %v302, %v1413
    %1415 = vmatmul.bf16.gmra.mxu0 %v993
    %v1416 = vpop.f32.mrf.mxu0
    %v1417 = vadd.f32 %v302, %v1416
    %v1418 = vpop.f32.mrf.mxu0
    %v1419 = vadd.f32 %v302, %v1418
    %1420 = vmatmul.bf16.gmra.mxu0 %v996
    %v1421 = vpop.f32.mrf.mxu0
    %v1422 = vadd.f32 %v302, %v1421
    %v1423 = vpop.f32.mrf.mxu0
    %v1424 = vadd.f32 %v302, %v1423
    %1425 = vmatmul.bf16.gmra.mxu0 %v999
    %v1426 = vpop.f32.mrf.mxu0
    %v1427 = vadd.f32 %v302, %v1426
    %v1428 = vpop.f32.mrf.mxu0
    %v1429 = vadd.f32 %v302, %v1428
    %1430 = vmatmul.bf16.gmra.mxu0 %v1002
    %v1431 = vpop.f32.mrf.mxu0
    %v1432 = vadd.f32 %v302, %v1431
    %v1433 = vpop.f32.mrf.mxu0
    %v1434 = vadd.f32 %v302, %v1433
    %1435 = vmatmul.bf16.gmra.mxu0 %v1005
    %v1436 = vpop.f32.mrf.mxu0
    %v1437 = vadd.f32 %v302, %v1436
    %v1438 = vpop.f32.mrf.mxu0
    %v1439 = vadd.f32 %v302, %v1438
    %1440 = vmatmul.bf16.gmra.mxu0 %v1008
    %v1441 = vpop.f32.mrf.mxu0
    %v1442 = vadd.f32 %v302, %v1441
    %v1443 = vpop.f32.mrf.mxu0
    %v1444 = vadd.f32 %v302, %v1443
    %1445 = vmatmul.bf16.gmra.mxu0 %v1011
    %v1446 = vpop.f32.mrf.mxu0
    %v1447 = vadd.f32 %v302, %v1446
    %v1448 = vpop.f32.mrf.mxu0
    %v1449 = vadd.f32 %v302, %v1448
    %1450 = vmatmul.bf16.gmra.mxu0 %v1014
    %v1451 = vpop.f32.mrf.mxu0
    %v1452 = vadd.f32 %v302, %v1451
    %v1453 = vpop.f32.mrf.mxu0
    %v1454 = vadd.f32 %v302, %v1453
    %1455 = vmatmul.bf16.gmra.mxu0 %v1017
    %v1456 = vpop.f32.mrf.mxu0
    %v1457 = vadd.f32 %v302, %v1456
    %v1458 = vpop.f32.mrf.mxu0
    %v1459 = vadd.f32 %v302, %v1458
    %1460 = vmatmul.bf16.gmra.mxu0 %v1020
    %v1461 = vpop.f32.mrf.mxu0
    %v1462 = vadd.f32 %v302, %v1461
    %v1463 = vpop.f32.mrf.mxu0
    %v1464 = vadd.f32 %v302, %v1463
    %1465 = vmatmul.bf16.gmra.mxu0 %v1023
    %v1466 = vpop.f32.mrf.mxu0
    %v1467 = vadd.f32 %v302, %v1466
    %v1468 = vpop.f32.mrf.mxu0
    %v1469 = vadd.f32 %v302, %v1468
    %1470 = vmatmul.bf16.gmra.mxu0 %v1026
    %v1471 = vpop.f32.mrf.mxu0
    %v1472 = vadd.f32 %v302, %v1471
    %v1473 = vpop.f32.mrf.mxu0
    %v1474 = vadd.f32 %v302, %v1473
    %1475 = vmatmul.bf16.gmra.mxu0 %v1029
    %v1476 = vpop.f32.mrf.mxu0
    %v1477 = vadd.f32 %v302, %v1476
    %v1478 = vpop.f32.mrf.mxu0
    %v1479 = vadd.f32 %v302, %v1478
    %1480 = vmatmul.bf16.gmra.mxu0 %v1032
    %v1481 = vpop.f32.mrf.mxu0
    %v1482 = vadd.f32 %v302, %v1481
    %v1483 = vpop.f32.mrf.mxu0
    %v1484 = vadd.f32 %v302, %v1483
    %1485 = vmatmul.bf16.gmra.mxu0 %v1035
    %v1486 = vpop.f32.mrf.mxu0
    %v1487 = vadd.f32 %v302, %v1486
    %v1488 = vpop.f32.mrf.mxu0
    %v1489 = vadd.f32 %v302, %v1488
    %1490 = vmatmul.bf16.gmra.mxu0 %v1038
    %v1491 = vpop.f32.mrf.mxu0
    %v1492 = vadd.f32 %v302, %v1491
    %v1493 = vpop.f32.mrf.mxu0
    %v1494 = vadd.f32 %v302, %v1493
    %1495 = vmatmul.bf16.gmra.mxu0 %v1041
    %v1496 = vpop.f32.mrf.mxu0
    %v1497 = vadd.f32 %v302, %v1496
    %v1498 = vpop.f32.mrf.mxu0
    %v1499 = vadd.f32 %v302, %v1498
    %1500 = vmatmul.bf16.gmra.mxu0 %v1044
    %v1501 = vpop.f32.mrf.mxu0
    %v1502 = vadd.f32 %v302, %v1501
    %v1503 = vpop.f32.mrf.mxu0
    %v1504 = vadd.f32 %v302, %v1503
    %1505 = vmatmul.bf16.gmra.mxu0 %v1047
    %v1506 = vpop.f32.mrf.mxu0
    %v1507 = vadd.f32 %v302, %v1506
    %v1508 = vpop.f32.mrf.mxu0
    %v1509 = vadd.f32 %v302, %v1508
    %1510 = vmatmul.bf16.gmra.mxu0 %v1050
    %v1511 = vpop.f32.mrf.mxu0
    %v1512 = vadd.f32 %v302, %v1511
    %v1513 = vpop.f32.mrf.mxu0
    %v1514 = vadd.f32 %v302, %v1513
    %1515 = vmatmul.bf16.gmra.mxu0 %v1053
    %v1516 = vpop.f32.mrf.mxu0
    %v1517 = vadd.f32 %v302, %v1516
    %v1518 = vpop.f32.mrf.mxu0
    %v1519 = vadd.f32 %v302, %v1518
    %1520 = vmatmul.bf16.gmra.mxu0 %v1056
    %v1521 = vpop.f32.mrf.mxu0
    %v1522 = vadd.f32 %v302, %v1521
    %v1523 = vpop.f32.mrf.mxu0
    %v1524 = vadd.f32 %v302, %v1523
    %1525 = vmatmul.bf16.gmra.mxu0 %v1059
    %v1526 = vpop.f32.mrf.mxu0
    %v1527 = vadd.f32 %v302, %v1526
    %v1528 = vpop.f32.mrf.mxu0
    %v1529 = vadd.f32 %v302, %v1528
    %1530 = vmatmul.bf16.gmra.mxu0 %v1062
    %v1531 = vpop.f32.mrf.mxu0
    %v1532 = vadd.f32 %v302, %v1531
    %v1533 = vpop.f32.mrf.mxu0
    %v1534 = vadd.f32 %v302, %v1533
    %1535 = vmatmul.bf16.gmra.mxu0 %v1065
    %v1536 = vpop.f32.mrf.mxu0
    %v1537 = vadd.f32 %v302, %v1536
    %v1538 = vpop.f32.mrf.mxu0
    %v1539 = vadd.f32 %v302, %v1538
    %1540 = vmatmul.bf16.gmra.mxu0 %v1068
    %v1541 = vpop.f32.mrf.mxu0
    %v1542 = vadd.f32 %v302, %v1541
    %v1543 = vpop.f32.mrf.mxu0
    %v1544 = vadd.f32 %v302, %v1543
    %1545 = vmatmul.bf16.gmra.mxu0 %v1071
    %v1546 = vpop.f32.mrf.mxu0
    %v1547 = vadd.f32 %v302, %v1546
    %v1548 = vpop.f32.mrf.mxu0
    %v1549 = vadd.f32 %v302, %v1548
    %1550 = vmatmul.bf16.gmra.mxu0 %v1074
    %v1551 = vpop.f32.mrf.mxu0
    %v1552 = vadd.f32 %v302, %v1551
    %v1553 = vpop.f32.mrf.mxu0
    %v1554 = vadd.f32 %v302, %v1553
    %1555 = vmatmul.bf16.gmra.mxu0 %v1077
    %v1556 = vpop.f32.mrf.mxu0
    %v1557 = vadd.f32 %v302, %v1556
    %v1558 = vpop.f32.mrf.mxu0
    %v1559 = vadd.f32 %v302, %v1558
    %1560 = vmatmul.bf16.gmra.mxu0 %v1080
    %v1561 = vpop.f32.mrf.mxu0
    %v1562 = vadd.f32 %v302, %v1561
    %v1563 = vpop.f32.mrf.mxu0
    %v1564 = vadd.f32 %v302, %v1563
    %1565 = vmatmul.bf16.gmra.mxu0 %v1083
    %v1566 = vpop.f32.mrf.mxu0
    %v1567 = vadd.f32 %v302, %v1566
    %v1568 = vpop.f32.mrf.mxu0
    %v1569 = vadd.f32 %v302, %v1568
    %1570 = vmatmul.bf16.gmra.mxu0 %v1086
    %v1571 = vpop.f32.mrf.mxu0
    %v1572 = vadd.f32 %v302, %v1571
    %v1573 = vpop.f32.mrf.mxu0
    %v1574 = vadd.f32 %v302, %v1573
    %1575 = vmatmul.bf16.gmra.mxu0 %v1089
    %v1576 = vpop.f32.mrf.mxu0
    %v1577 = vadd.f32 %v302, %v1576
    %v1578 = vpop.f32.mrf.mxu0
    %v1579 = vadd.f32 %v302, %v1578
    %1580 = vmatmul.bf16.gmra.mxu0 %v1092
    %v1581 = vpop.f32.mrf.mxu0
    %v1582 = vadd.f32 %v302, %v1581
    %v1583 = vpop.f32.mrf.mxu0
    %v1584 = vadd.f32 %v302, %v1583
    %1585 = vmatmul.bf16.gmra.mxu0 %v1095
    %v1586 = vpop.f32.mrf.mxu0
    %v1587 = vadd.f32 %v302, %v1586
    %v1588 = vpop.f32.mrf.mxu0
    %v1589 = vadd.f32 %v302, %v1588
    %1590 = vmatmul.bf16.gmra.mxu0 %v1098
    %v1591 = vpop.f32.mrf.mxu0
    %v1592 = vadd.f32 %v302, %v1591
    %v1593 = vpop.f32.mrf.mxu0
    %v1594 = vadd.f32 %v302, %v1593
    %1595 = vmatmul.bf16.gmra.mxu0 %v1101
    %v1596 = vpop.f32.mrf.mxu0
    %v1597 = vadd.f32 %v302, %v1596
    %v1598 = vpop.f32.mrf.mxu0
    %v1599 = vadd.f32 %v302, %v1598
    %1600 = vmatmul.bf16.gmra.mxu0 %v1104
    %v1601 = vpop.f32.mrf.mxu0
    %v1602 = vadd.f32 %v302, %v1601
    %v1603 = vpop.f32.mrf.mxu0
    %v1604 = vadd.f32 %v302, %v1603
    %1605 = vmatmul.bf16.gmra.mxu0 %v1107
    %v1606 = vpop.f32.mrf.mxu0
    %v1607 = vadd.f32 %v302, %v1606
    %v1608 = vpop.f32.mrf.mxu0
    %v1609 = vadd.f32 %v302, %v1608
    %1610 = vmatmul.bf16.gmra.mxu0 %v1110
    %v1611 = vpop.f32.mrf.mxu0
    %v1612 = vadd.f32 %v302, %v1611
    %v1613 = vpop.f32.mrf.mxu0
    %v1614 = vadd.f32 %v302, %v1613
    %1615 = vmatmul.bf16.gmra.mxu0 %v1113
    %v1616 = vpop.f32.mrf.mxu0
    %v1617 = vadd.f32 %v302, %v1616
    %v1618 = vpop.f32.mrf.mxu0
    %v1619 = vadd.f32 %v302, %v1618
    %1620 = vmatmul.bf16.gmra.mxu0 %v1116
    %v1621 = vpop.f32.mrf.mxu0
    %v1622 = vadd.f32 %v302, %v1621
    %v1623 = vpop.f32.mrf.mxu0
    %v1624 = vadd.f32 %v302, %v1623
    %1625 = vmatmul.bf16.gmra.mxu0 %v1119
    %v1626 = vpop.f32.mrf.mxu0
    %v1627 = vadd.f32 %v302, %v1626
    %v1628 = vpop.f32.mrf.mxu0
    %v1629 = vadd.f32 %v302, %v1628
    %1630 = vmatmul.bf16.gmra.mxu0 %v1122
    %v1631 = vpop.f32.mrf.mxu0
    %v1632 = vadd.f32 %v302, %v1631
    %v1633 = vpop.f32.mrf.mxu0
    %v1634 = vadd.f32 %v302, %v1633
    %1635 = vmatmul.bf16.gmra.mxu0 %v1125
    %v1636 = vpop.f32.mrf.mxu0
    %v1637 = vadd.f32 %v302, %v1636
    %v1638 = vpop.f32.mrf.mxu0
    %v1639 = vadd.f32 %v302, %v1638
    %1640 = vmatmul.bf16.gmra.mxu0 %v1128
    %v1641 = vpop.f32.mrf.mxu0
    %v1642 = vadd.f32 %v302, %v1641
    %v1643 = vpop.f32.mrf.mxu0
    %v1644 = vadd.f32 %v302, %v1643
    %1645 = vmatmul.bf16.gmra.mxu0 %v1131
    %v1646 = vpop.f32.mrf.mxu0
    %v1647 = vadd.f32 %v302, %v1646
    %v1648 = vpop.f32.mrf.mxu0
    %v1649 = vadd.f32 %v302, %v1648
    %1650 = vmatmul.bf16.gmra.mxu0 %v1134
    %v1651 = vpop.f32.mrf.mxu0
    %v1652 = vadd.f32 %v302, %v1651
    %v1653 = vpop.f32.mrf.mxu0
    %v1654 = vadd.f32 %v302, %v1653
    %1655 = vmatmul.bf16.gmra.mxu0 %v1137
    %v1656 = vpop.f32.mrf.mxu0
    %v1657 = vadd.f32 %v302, %v1656
    %v1658 = vpop.f32.mrf.mxu0
    %v1659 = vadd.f32 %v302, %v1658
    %1660 = vmatmul.bf16.gmra.mxu0 %v1140
    %v1661 = vpop.f32.mrf.mxu0
    %v1662 = vadd.f32 %v302, %v1661
    %v1663 = vpop.f32.mrf.mxu0
    %v1664 = vadd.f32 %v302, %v1663
    %1665 = vmatmul.bf16.gmra.mxu0 %v1143
    %v1666 = vpop.f32.mrf.mxu0
    %v1667 = vadd.f32 %v302, %v1666
    %v1668 = vpop.f32.mrf.mxu0
    %v1669 = vadd.f32 %v302, %v1668
    %1670 = vmatmul.bf16.gmra.mxu0 %v1146
    %v1671 = vpop.f32.mrf.mxu0
    %v1672 = vadd.f32 %v302, %v1671
    %v1673 = vpop.f32.mrf.mxu0
    %v1674 = vadd.f32 %v302, %v1673
    %1675 = vmatmul.bf16.gmra.mxu0 %v1149
    %v1676 = vpop.f32.mrf.mxu0
    %v1677 = vadd.f32 %v302, %v1676
    %v1678 = vpop.f32.mrf.mxu0
    %v1679 = vadd.f32 %v302, %v1678
    %1680 = vmatmul.bf16.gmra.mxu0 %v1152
    %v1681 = vpop.f32.mrf.mxu0
    %v1682 = vadd.f32 %v302, %v1681
    %v1683 = vpop.f32.mrf.mxu0
    %v1684 = vadd.f32 %v302, %v1683
    %1685 = vmatmul.bf16.gmra.mxu0 %v1155
    %v1686 = vpop.f32.mrf.mxu0
    %v1687 = vadd.f32 %v302, %v1686
    %v1688 = vpop.f32.mrf.mxu0
    %v1689 = vadd.f32 %v302, %v1688
    %1690 = vmatmul.bf16.gmra.mxu0 %v1158
    %v1691 = vpop.f32.mrf.mxu0
    %v1692 = vadd.f32 %v302, %v1691
    %v1693 = vpop.f32.mrf.mxu0
    %v1694 = vadd.f32 %v302, %v1693
    %1695 = vmatmul.bf16.gmra.mxu0 %v1161
    %v1696 = vpop.f32.mrf.mxu0
    %v1697 = vadd.f32 %v302, %v1696
    %v1698 = vpop.f32.mrf.mxu0
    %v1699 = vadd.f32 %v302, %v1698
    %1700 = vmatmul.bf16.gmra.mxu0 %v1164
    %v1701 = vpop.f32.mrf.mxu0
    %v1702 = vadd.f32 %v302, %v1701
    %v1703 = vpop.f32.mrf.mxu0
    %v1704 = vadd.f32 %v302, %v1703
    %1705 = vmatmul.bf16.gmra.mxu0 %v1167
    %v1706 = vpop.f32.mrf.mxu0
    %v1707 = vadd.f32 %v302, %v1706
    %v1708 = vpop.f32.mrf.mxu0
    %v1709 = vadd.f32 %v302, %v1708
    %1710 = vmatmul.bf16.gmra.mxu0 %v1170
    %v1711 = vpop.f32.mrf.mxu0
    %v1712 = vadd.f32 %v302, %v1711
    %v1713 = vpop.f32.mrf.mxu0
    %v1714 = vadd.f32 %v302, %v1713
    %1715 = vmatmul.bf16.gmra.mxu0 %v1173
    %v1716 = vpop.f32.mrf.mxu0
    %v1717 = vadd.f32 %v302, %v1716
    %v1718 = vpop.f32.mrf.mxu0
    %v1719 = vadd.f32 %v302, %v1718
    %1720 = vmatmul.bf16.gmra.mxu0 %v1176
    %v1721 = vpop.f32.mrf.mxu0
    %v1722 = vadd.f32 %v302, %v1721
    %v1723 = vpop.f32.mrf.mxu0
    %v1724 = vadd.f32 %v302, %v1723
    %1725 = vmatmul.bf16.gmra.mxu0 %v1179
    %v1726 = vpop.f32.mrf.mxu0
    %v1727 = vadd.f32 %v302, %v1726
    %v1728 = vpop.f32.mrf.mxu0
    %v1729 = vadd.f32 %v302, %v1728
    %1730 = vmatmul.bf16.gmra.mxu0 %v1182
    %v1731 = vpop.f32.mrf.mxu0
    %v1732 = vadd.f32 %v302, %v1731
    %v1733 = vpop.f32.mrf.mxu0
    %v1734 = vadd.f32 %v302, %v1733
    %1735 = vmatmul.bf16.gmra.mxu0 %v1185
    %v1736 = vpop.f32.mrf.mxu0
    %v1737 = vadd.f32 %v302, %v1736
    %v1738 = vpop.f32.mrf.mxu0
    %v1739 = vadd.f32 %v302, %v1738
    %1740 = vmatmul.bf16.gmra.mxu0 %v1188
    %v1741 = vpop.f32.mrf.mxu0
    %v1742 = vadd.f32 %v302, %v1741
    %v1743 = vpop.f32.mrf.mxu0
    %v1744 = vadd.f32 %v302, %v1743
    %1745 = vmatmul.bf16.gmra.mxu0 %v1191
    %v1746 = vpop.f32.mrf.mxu0
    %v1747 = vadd.f32 %v302, %v1746
    %v1748 = vpop.f32.mrf.mxu0
    %v1749 = vadd.f32 %v302, %v1748
    %1750 = vmatmul.bf16.gmra.mxu0 %v1194
    %v1751 = vpop.f32.mrf.mxu0
    %v1752 = vadd.f32 %v302, %v1751
    %v1753 = vpop.f32.mrf.mxu0
    %v1754 = vadd.f32 %v302, %v1753
    %1755 = vmatmul.bf16.gmra.mxu0 %v1197
    %v1756 = vpop.f32.mrf.mxu0
    %v1757 = vadd.f32 %v302, %v1756
    %v1758 = vpop.f32.mrf.mxu0
    %v1759 = vadd.f32 %v302, %v1758
    %1760 = vmatmul.bf16.gmra.mxu0 %v1200
    %v1761 = vpop.f32.mrf.mxu0
    %v1762 = vadd.f32 %v302, %v1761
    %v1763 = vpop.f32.mrf.mxu0
    %v1764 = vadd.f32 %v302, %v1763
    %1765 = vmatmul.bf16.gmra.mxu0 %v1203
    %v1766 = vpop.f32.mrf.mxu0
    %v1767 = vadd.f32 %v302, %v1766
    %v1768 = vpop.f32.mrf.mxu0
    %v1769 = vadd.f32 %v302, %v1768
    %1770 = vmatmul.bf16.gmra.mxu0 %v1206
    %v1771 = vpop.f32.mrf.mxu0
    %v1772 = vadd.f32 %v302, %v1771
    %v1773 = vpop.f32.mrf.mxu0
    %v1774 = vadd.f32 %v302, %v1773
    %1775 = vmatmul.bf16.gmra.mxu0 %v1209
    %v1776 = vpop.f32.mrf.mxu0
    %v1777 = vadd.f32 %v302, %v1776
    %v1778 = vpop.f32.mrf.mxu0
    %v1779 = vadd.f32 %v302, %v1778
    %1780 = vmatmul.bf16.gmra.mxu0 %v1212
    %v1781 = vpop.f32.mrf.mxu0
    %v1782 = vadd.f32 %v302, %v1781
    %v1783 = vpop.f32.mrf.mxu0
    %v1784 = vadd.f32 %v302, %v1783
    %1785 = vmatmul.bf16.gmra.mxu0 %v1215
    %v1786 = vpop.f32.mrf.mxu0
    %v1787 = vadd.f32 %v302, %v1786
    %v1788 = vpop.f32.mrf.mxu0
    %v1789 = vadd.f32 %v302, %v1788
    %1790 = vmatmul.bf16.gmra.mxu0 %v1218
    %v1791 = vpop.f32.mrf.mxu0
    %v1792 = vadd.f32 %v302, %v1791
    %v1793 = vpop.f32.mrf.mxu0
    %v1794 = vadd.f32 %v302, %v1793
    %1795 = vmatmul.bf16.gmra.mxu0 %v1221
    %v1796 = vpop.f32.mrf.mxu0
    %v1797 = vadd.f32 %v302, %v1796
    %v1798 = vpop.f32.mrf.mxu0
    %v1799 = vadd.f32 %v302, %v1798
    %1800 = vmatmul.bf16.gmra.mxu0 %v1224
    %v1801 = vpop.f32.mrf.mxu0
    %v1802 = vadd.f32 %v302, %v1801
    %v1803 = vpop.f32.mrf.mxu0
    %v1804 = vadd.f32 %v302, %v1803
    %1805 = vmatmul.bf16.gmra.mxu0 %v1227
    %v1806 = vpop.f32.mrf.mxu0
    %v1807 = vadd.f32 %v302, %v1806
    %v1808 = vpop.f32.mrf.mxu0
    %v1809 = vadd.f32 %v302, %v1808
    %1810 = vmatmul.bf16.gmra.mxu0 %v1230
    %v1811 = vpop.f32.mrf.mxu0
    %v1812 = vadd.f32 %v302, %v1811
    %v1813 = vpop.f32.mrf.mxu0
    %v1814 = vadd.f32 %v302, %v1813
    %1815 = vmatmul.bf16.gmra.mxu0 %v1233
    %v1816 = vpop.f32.mrf.mxu0
    %v1817 = vadd.f32 %v302, %v1816
    %v1818 = vpop.f32.mrf.mxu0
    %v1819 = vadd.f32 %v302, %v1818
    %1820 = vmatmul.bf16.gmra.mxu0 %v1236
    %v1821 = vpop.f32.mrf.mxu0
    %v1822 = vadd.f32 %v302, %v1821
    %v1823 = vpop.f32.mrf.mxu0
    %v1824 = vadd.f32 %v302, %v1823
    %1825 = vmatmul.bf16.gmra.mxu0 %v1239
    %v1826 = vpop.f32.mrf.mxu0
    %v1827 = vadd.f32 %v302, %v1826
    %v1828 = vpop.f32.mrf.mxu0
    %v1829 = vadd.f32 %v302, %v1828
    %1830 = vmatmul.bf16.gmra.mxu0 %v1242
    %v1831 = vpop.f32.mrf.mxu0
    %v1832 = vadd.f32 %v302, %v1831
    %v1833 = vpop.f32.mrf.mxu0
    %v1834 = vadd.f32 %v302, %v1833
    %1835 = vmatmul.bf16.gmra.mxu0 %v1245
    %v1836 = vpop.f32.mrf.mxu0
    %v1837 = vadd.f32 %v302, %v1836
    %v1838 = vpop.f32.mrf.mxu0
    %v1839 = vadd.f32 %v302, %v1838
    %1840 = vmatmul.bf16.gmra.mxu0 %v1248
    %v1841 = vpop.f32.mrf.mxu0
    %v1842 = vadd.f32 %v302, %v1841
    %v1843 = vpop.f32.mrf.mxu0
    %v1844 = vadd.f32 %v302, %v1843
    %1845 = vmatmul.bf16.gmra.mxu0 %v1251
    %v1846 = vpop.f32.mrf.mxu0
    %v1847 = vadd.f32 %v302, %v1846
    %v1848 = vpop.f32.mrf.mxu0
    %v1849 = vadd.f32 %v302, %v1848
    %1850 = vmatmul.bf16.gmra.mxu0 %v1254
    %v1851 = vpop.f32.mrf.mxu0
    %v1852 = vadd.f32 %v302, %v1851
    %v1853 = vpop.f32.mrf.mxu0
    %v1854 = vadd.f32 %v302, %v1853
    %1855 = vmatmul.bf16.gmra.mxu0 %v1257
    %v1856 = vpop.f32.mrf.mxu0
    %v1857 = vadd.f32 %v302, %v1856
    %v1858 = vpop.f32.mrf.mxu0
    %v1859 = vadd.f32 %v302, %v1858
    %1860 = vmatmul.bf16.gmra.mxu0 %v1260
    %v1861 = vpop.f32.mrf.mxu0
    %v1862 = vadd.f32 %v302, %v1861
    %v1863 = vpop.f32.mrf.mxu0
    %v1864 = vadd.f32 %v302, %v1863
    %1865 = vmatmul.bf16.gmra.mxu0 %v1263
    %v1866 = vpop.f32.mrf.mxu0
    %v1867 = vadd.f32 %v302, %v1866
    %v1868 = vpop.f32.mrf.mxu0
    %v1869 = vadd.f32 %v302, %v1868
    %1870 = vmatmul.bf16.gmra.mxu0 %v1266
    %v1871 = vpop.f32.mrf.mxu0
    %v1872 = vadd.f32 %v302, %v1871
    %v1873 = vpop.f32.mrf.mxu0
    %v1874 = vadd.f32 %v302, %v1873
    %1875 = vmatmul.bf16.gmra.mxu0 %v1269
    %v1876 = vpop.f32.mrf.mxu0
    %v1877 = vadd.f32 %v302, %v1876
    %v1878 = vpop.f32.mrf.mxu0
    %v1879 = vadd.f32 %v302, %v1878
    %1880 = vmatmul.bf16.gmra.mxu0 %v1272
    %v1881 = vpop.f32.mrf.mxu0
    %v1882 = vadd.f32 %v302, %v1881
    %v1883 = vpop.f32.mrf.mxu0
    %v1884 = vadd.f32 %v302, %v1883
    %1885 = vmatmul.bf16.gmra.mxu0 %v1275
    %v1886 = vpop.f32.mrf.mxu0
    %v1887 = vadd.f32 %v302, %v1886
    %v1888 = vpop.f32.mrf.mxu0
    %v1889 = vadd.f32 %v302, %v1888
    %1890 = vmatmul.bf16.gmra.mxu0 %v1278
    %v1891 = vpop.f32.mrf.mxu0
    %v1892 = vadd.f32 %v302, %v1891
    %v1893 = vpop.f32.mrf.mxu0
    %v1894 = vadd.f32 %v302, %v1893
    %1895 = vmatmul.bf16.gmra.mxu0 %v1281
    %v1896 = vpop.f32.mrf.mxu0
    %v1897 = vadd.f32 %v302, %v1896
    %v1898 = vpop.f32.mrf.mxu0
    %v1899 = vadd.f32 %v302, %v1898
    %1900 = vmatmul.bf16.gmra.mxu0 %v1284
    %v1901 = vpop.f32.mrf.mxu0
    %v1902 = vadd.f32 %v302, %v1901
    %v1903 = vpop.f32.mrf.mxu0
    %v1904 = vadd.f32 %v302, %v1903
    %1905 = vmatmul.bf16.gmra.mxu0 %v1287
    %v1906 = vpop.f32.mrf.mxu0
    %v1907 = vadd.f32 %v302, %v1906
    %v1908 = vpop.f32.mrf.mxu0
    %v1909 = vadd.f32 %v302, %v1908
    %1910 = vmatmul.bf16.gmra.mxu0 %v1290
    %v1911 = vpop.f32.mrf.mxu0
    %v1912 = vadd.f32 %v302, %v1911
    %v1913 = vpop.f32.mrf.mxu0
    %v1914 = vadd.f32 %v302, %v1913
    %1915 = vmatmul.bf16.gmra.mxu0 %v1293
    %v1916 = vpop.f32.mrf.mxu0
    %v1917 = vadd.f32 %v302, %v1916
    %v1918 = vpop.f32.mrf.mxu0
    %v1919 = vadd.f32 %v302, %v1918
    %1920 = vmatmul.bf16.gmra.mxu0 %v1296
    %v1921 = vpop.f32.mrf.mxu0
    %v1922 = vadd.f32 %v302, %v1921
    %v1923 = vpop.f32.mrf.mxu0
    %v1924 = vadd.f32 %v302, %v1923
    %1925 = vmatmul.bf16.gmra.mxu0 %v1299
    %v1926 = vpop.f32.mrf.mxu0
    %v1927 = vadd.f32 %v302, %v1926
    %v1928 = vpop.f32.mrf.mxu0
    %v1929 = vadd.f32 %v302, %v1928
    %1930 = vmatmul.bf16.gmra.mxu0 %v1302
    %v1931 = vpop.f32.mrf.mxu0
    %v1932 = vadd.f32 %v302, %v1931
    %v1933 = vpop.f32.mrf.mxu0
    %v1934 = vadd.f32 %v302, %v1933
    %1935 = vmatmul.bf16.gmra.mxu0 %v1305
    %v1936 = vpop.f32.mrf.mxu0
    %v1937 = vadd.f32 %v302, %v1936
    %v1938 = vpop.f32.mrf.mxu0
    %v1939 = vadd.f32 %v302, %v1938
    %1940 = vmatmul.bf16.gmra.mxu0 %v1308
    %v1941 = vpop.f32.mrf.mxu0
    %v1942 = vadd.f32 %v302, %v1941
    %v1943 = vpop.f32.mrf.mxu0
    %v1944 = vadd.f32 %v302, %v1943
    %1945 = vmatmul.bf16.gmra.mxu0 %v1311
    %v1946 = vpop.f32.mrf.mxu0
    %v1947 = vadd.f32 %v302, %v1946
    %v1948 = vpop.f32.mrf.mxu0
    %v1949 = vadd.f32 %v302, %v1948
    %1950 = vmatmul.bf16.gmra.mxu0 %v1314
    %v1951 = vpop.f32.mrf.mxu0
    %v1952 = vadd.f32 %v302, %v1951
    %v1953 = vpop.f32.mrf.mxu0
    %v1954 = vadd.f32 %v302, %v1953
    %1955 = vmatmul.bf16.gmra.mxu0 %v1317
    %v1956 = vpop.f32.mrf.mxu0
    %v1957 = vadd.f32 %v302, %v1956
    %v1958 = vpop.f32.mrf.mxu0
    %v1959 = vadd.f32 %v302, %v1958
    %1960 = vmatmul.bf16.gmra.mxu0 %v1320
    %v1961 = vpop.f32.mrf.mxu0
    %v1962 = vadd.f32 %v302, %v1961
    %v1963 = vpop.f32.mrf.mxu0
    %v1964 = vadd.f32 %v302, %v1963
    %1965 = vmatmul.bf16.gmra.mxu0 %v1323
    %v1966 = vpop.f32.mrf.mxu0
    %v1967 = vadd.f32 %v302, %v1966
    %v1968 = vpop.f32.mrf.mxu0
    %v1969 = vadd.f32 %v302, %v1968
    %1970 = vmatmul.bf16.gmra.mxu0 %v1326
    %v1971 = vpop.f32.mrf.mxu0
    %v1972 = vadd.f32 %v302, %v1971
    %v1973 = vpop.f32.mrf.mxu0
    %v1974 = vadd.f32 %v302, %v1973
    %1975 = vmatmul.bf16.gmra.mxu0 %v1329
    %v1976 = vpop.f32.mrf.mxu0
    %v1977 = vadd.f32 %v302, %v1976
    %v1978 = vpop.f32.mrf.mxu0
    %v1979 = vadd.f32 %v302, %v1978
    %1980 = vmatmul.bf16.gmra.mxu0 %v1332
    %v1981 = vpop.f32.mrf.mxu0
    %v1982 = vadd.f32 %v302, %v1981
    %v1983 = vpop.f32.mrf.mxu0
    %v1984 = vadd.f32 %v302, %v1983
    %1985 = vmatmul.bf16.gmra.mxu0 %v1335
    %v1986 = vpop.f32.mrf.mxu0
    %v1987 = vadd.f32 %v302, %v1986
    %v1988 = vpop.f32.mrf.mxu0
    %v1989 = vadd.f32 %v302, %v1988
    %1990 = vmatmul.bf16.gmra.mxu0 %v1338
    %v1991 = vpop.f32.mrf.mxu0
    %v1992 = vadd.f32 %v302, %v1991
    %v1993 = vpop.f32.mrf.mxu0
    %v1994 = vadd.f32 %v302, %v1993
    %1995 = vdwg.mxu0
    %v1996 = vmax.f32 %v1357, 0.0
    %v1997 = vmax.f32 %v1359, 0.0
    %v1998 = vmax.f32 %v1362, 0.0
    %v1999 = vmax.f32 %v1364, 0.0
    %v2000 = vmax.f32 %v1367, 0.0
    %v2001 = vmax.f32 %v1369, 0.0
    %v2002 = vmax.f32 %v1372, 0.0
    %v2003 = vmax.f32 %v1374, 0.0
    %v2004 = vmax.f32 %v1377, 0.0
    %v2005 = vmax.f32 %v1379, 0.0
    %v2006 = vmax.f32 %v1382, 0.0
    %v2007 = vmax.f32 %v1384, 0.0
    %v2008 = vmax.f32 %v1387, 0.0
    %v2009 = vmax.f32 %v1389, 0.0
    %v2010 = vmax.f32 %v1392, 0.0
    %v2011 = vmax.f32 %v1394, 0.0
    %v2012 = vmax.f32 %v1397, 0.0
    %v2013 = vmax.f32 %v1399, 0.0
    %v2014 = vmax.f32 %v1402, 0.0
    %v2015 = vmax.f32 %v1404, 0.0
    %v2016 = vmax.f32 %v1407, 0.0
    %v2017 = vmax.f32 %v1409, 0.0
    %v2018 = vmax.f32 %v1412, 0.0
    %v2019 = vmax.f32 %v1414, 0.0
    %v2020 = vmax.f32 %v1417, 0.0
    %v2021 = vmax.f32 %v1419, 0.0
    %v2022 = vmax.f32 %v1422, 0.0
    %v2023 = vmax.f32 %v1424, 0.0
    %v2024 = vmax.f32 %v1427, 0.0
    %v2025 = vmax.f32 %v1429, 0.0
    %v2026 = vmax.f32 %v1432, 0.0
    %v2027 = vmax.f32 %v1434, 0.0
    %v2028 = vmax.f32 %v1437, 0.0
    %v2029 = vmax.f32 %v1439, 0.0
    %v2030 = vmax.f32 %v1442, 0.0
    %v2031 = vmax.f32 %v1444, 0.0
    %v2032 = vmax.f32 %v1447, 0.0
    %v2033 = vmax.f32 %v1449, 0.0
    %v2034 = vmax.f32 %v1452, 0.0
    %v2035 = vmax.f32 %v1454, 0.0
    %v2036 = vmax.f32 %v1457, 0.0
    %v2037 = vmax.f32 %v1459, 0.0
    %v2038 = vmax.f32 %v1462, 0.0
    %v2039 = vmax.f32 %v1464, 0.0
    %v2040 = vmax.f32 %v1467, 0.0
    %v2041 = vmax.f32 %v1469, 0.0
    %v2042 = vmax.f32 %v1472, 0.0
    %v2043 = vmax.f32 %v1474, 0.0
    %v2044 = vmax.f32 %v1477, 0.0
    %v2045 = vmax.f32 %v1479, 0.0
    %v2046 = vmax.f32 %v1482, 0.0
    %v2047 = vmax.f32 %v1484, 0.0
    %v2048 = vmax.f32 %v1487, 0.0
    %v2049 = vmax.f32 %v1489, 0.0
    %v2050 = vmax.f32 %v1492, 0.0
    %v2051 = vmax.f32 %v1494, 0.0
    %v2052 = vmax.f32 %v1497, 0.0
    %v2053 = vmax.f32 %v1499, 0.0
    %v2054 = vmax.f32 %v1502, 0.0
    %v2055 = vmax.f32 %v1504, 0.0
    %v2056 = vmax.f32 %v1507, 0.0
    %v2057 = vmax.f32 %v1509, 0.0
    %v2058 = vmax.f32 %v1512, 0.0
    %v2059 = vmax.f32 %v1514, 0.0
    %v2060 = vmax.f32 %v1517, 0.0
    %v2061 = vmax.f32 %v1519, 0.0
    %v2062 = vmax.f32 %v1522, 0.0
    %v2063 = vmax.f32 %v1524, 0.0
    %v2064 = vmax.f32 %v1527, 0.0
    %v2065 = vmax.f32 %v1529, 0.0
    %v2066 = vmax.f32 %v1532, 0.0
    %v2067 = vmax.f32 %v1534, 0.0
    %v2068 = vmax.f32 %v1537, 0.0
    %v2069 = vmax.f32 %v1539, 0.0
    %v2070 = vmax.f32 %v1542, 0.0
    %v2071 = vmax.f32 %v1544, 0.0
    %v2072 = vmax.f32 %v1547, 0.0
    %v2073 = vmax.f32 %v1549, 0.0
    %v2074 = vmax.f32 %v1552, 0.0
    %v2075 = vmax.f32 %v1554, 0.0
    %v2076 = vmax.f32 %v1557, 0.0
    %v2077 = vmax.f32 %v1559, 0.0
    %v2078 = vmax.f32 %v1562, 0.0
    %v2079 = vmax.f32 %v1564, 0.0
    %v2080 = vmax.f32 %v1567, 0.0
    %v2081 = vmax.f32 %v1569, 0.0
    %v2082 = vmax.f32 %v1572, 0.0
    %v2083 = vmax.f32 %v1574, 0.0
    %v2084 = vmax.f32 %v1577, 0.0
    %v2085 = vmax.f32 %v1579, 0.0
    %v2086 = vmax.f32 %v1582, 0.0
    %v2087 = vmax.f32 %v1584, 0.0
    %v2088 = vmax.f32 %v1587, 0.0
    %v2089 = vmax.f32 %v1589, 0.0
    %v2090 = vmax.f32 %v1592, 0.0
    %v2091 = vmax.f32 %v1594, 0.0
    %v2092 = vmax.f32 %v1597, 0.0
    %v2093 = vmax.f32 %v1599, 0.0
    %v2094 = vmax.f32 %v1602, 0.0
    %v2095 = vmax.f32 %v1604, 0.0
    %v2096 = vmax.f32 %v1607, 0.0
    %v2097 = vmax.f32 %v1609, 0.0
    %v2098 = vmax.f32 %v1612, 0.0
    %v2099 = vmax.f32 %v1614, 0.0
    %v2100 = vmax.f32 %v1617, 0.0
    %v2101 = vmax.f32 %v1619, 0.0
    %v2102 = vmax.f32 %v1622, 0.0
    %v2103 = vmax.f32 %v1624, 0.0
    %v2104 = vmax.f32 %v1627, 0.0
    %v2105 = vmax.f32 %v1629, 0.0
    %v2106 = vmax.f32 %v1632, 0.0
    %v2107 = vmax.f32 %v1634, 0.0
    %v2108 = vmax.f32 %v1637, 0.0
    %v2109 = vmax.f32 %v1639, 0.0
    %v2110 = vmax.f32 %v1642, 0.0
    %v2111 = vmax.f32 %v1644, 0.0
    %v2112 = vmax.f32 %v1647, 0.0
    %v2113 = vmax.f32 %v1649, 0.0
    %v2114 = vmax.f32 %v1652, 0.0
    %v2115 = vmax.f32 %v1654, 0.0
    %v2116 = vmax.f32 %v1657, 0.0
    %v2117 = vmax.f32 %v1659, 0.0
    %v2118 = vmax.f32 %v1662, 0.0
    %v2119 = vmax.f32 %v1664, 0.0
    %v2120 = vmax.f32 %v1667, 0.0
    %v2121 = vmax.f32 %v1669, 0.0
    %v2122 = vmax.f32 %v1672, 0.0
    %v2123 = vmax.f32 %v1674, 0.0
    %v2124 = vmax.f32 %v1677, 0.0
    %v2125 = vmax.f32 %v1679, 0.0
    %v2126 = vmax.f32 %v1682, 0.0
    %v2127 = vmax.f32 %v1684, 0.0
    %v2128 = vmax.f32 %v1687, 0.0
    %v2129 = vmax.f32 %v1689, 0.0
    %v2130 = vmax.f32 %v1692, 0.0
    %v2131 = vmax.f32 %v1694, 0.0
    %v2132 = vmax.f32 %v1697, 0.0
    %v2133 = vmax.f32 %v1699, 0.0
    %v2134 = vmax.f32 %v1702, 0.0
    %v2135 = vmax.f32 %v1704, 0.0
    %v2136 = vmax.f32 %v1707, 0.0
    %v2137 = vmax.f32 %v1709, 0.0
    %v2138 = vmax.f32 %v1712, 0.0
    %v2139 = vmax.f32 %v1714, 0.0
    %v2140 = vmax.f32 %v1717, 0.0
    %v2141 = vmax.f32 %v1719, 0.0
    %v2142 = vmax.f32 %v1722, 0.0
    %v2143 = vmax.f32 %v1724, 0.0
    %v2144 = vmax.f32 %v1727, 0.0
    %v2145 = vmax.f32 %v1729, 0.0
    %v2146 = vmax.f32 %v1732, 0.0
    %v2147 = vmax.f32 %v1734, 0.0
    %v2148 = vmax.f32 %v1737, 0.0
    %v2149 = vmax.f32 %v1739, 0.0
    %v2150 = vmax.f32 %v1742, 0.0
    %v2151 = vmax.f32 %v1744, 0.0
    %v2152 = vmax.f32 %v1747, 0.0
    %v2153 = vmax.f32 %v1749, 0.0
    %v2154 = vmax.f32 %v1752, 0.0
    %v2155 = vmax.f32 %v1754, 0.0
    %v2156 = vmax.f32 %v1757, 0.0
    %v2157 = vmax.f32 %v1759, 0.0
    %v2158 = vmax.f32 %v1762, 0.0
    %v2159 = vmax.f32 %v1764, 0.0
    %v2160 = vmax.f32 %v1767, 0.0
    %v2161 = vmax.f32 %v1769, 0.0
    %v2162 = vmax.f32 %v1772, 0.0
    %v2163 = vmax.f32 %v1774, 0.0
    %v2164 = vmax.f32 %v1777, 0.0
    %v2165 = vmax.f32 %v1779, 0.0
    %v2166 = vmax.f32 %v1782, 0.0
    %v2167 = vmax.f32 %v1784, 0.0
    %v2168 = vmax.f32 %v1787, 0.0
    %v2169 = vmax.f32 %v1789, 0.0
    %v2170 = vmax.f32 %v1792, 0.0
    %v2171 = vmax.f32 %v1794, 0.0
    %v2172 = vmax.f32 %v1797, 0.0
    %v2173 = vmax.f32 %v1799, 0.0
    %v2174 = vmax.f32 %v1802, 0.0
    %v2175 = vmax.f32 %v1804, 0.0
    %v2176 = vmax.f32 %v1807, 0.0
    %v2177 = vmax.f32 %v1809, 0.0
    %v2178 = vmax.f32 %v1812, 0.0
    %v2179 = vmax.f32 %v1814, 0.0
    %v2180 = vmax.f32 %v1817, 0.0
    %v2181 = vmax.f32 %v1819, 0.0
    %v2182 = vmax.f32 %v1822, 0.0
    %v2183 = vmax.f32 %v1824, 0.0
    %v2184 = vmax.f32 %v1827, 0.0
    %v2185 = vmax.f32 %v1829, 0.0
    %v2186 = vmax.f32 %v1832, 0.0
    %v2187 = vmax.f32 %v1834, 0.0
    %v2188 = vmax.f32 %v1837, 0.0
    %v2189 = vmax.f32 %v1839, 0.0
    %v2190 = vmax.f32 %v1842, 0.0
    %v2191 = vmax.f32 %v1844, 0.0
    %v2192 = vmax.f32 %v1847, 0.0
    %v2193 = vmax.f32 %v1849, 0.0
    %v2194 = vmax.f32 %v1852, 0.0
    %v2195 = vmax.f32 %v1854, 0.0
    %v2196 = vmax.f32 %v1857, 0.0
    %v2197 = vmax.f32 %v1859, 0.0
    %v2198 = vmax.f32 %v1862, 0.0
    %v2199 = vmax.f32 %v1864, 0.0
    %v2200 = vmax.f32 %v1867, 0.0
    %v2201 = vmax.f32 %v1869, 0.0
    %v2202 = vmax.f32 %v1872, 0.0
    %v2203 = vmax.f32 %v1874, 0.0
    %v2204 = vmax.f32 %v1877, 0.0
    %v2205 = vmax.f32 %v1879, 0.0
    %v2206 = vmax.f32 %v1882, 0.0
    %v2207 = vmax.f32 %v1884, 0.0
    %v2208 = vmax.f32 %v1887, 0.0
    %v2209 = vmax.f32 %v1889, 0.0
    %v2210 = vmax.f32 %v1892, 0.0
    %v2211 = vmax.f32 %v1894, 0.0
    %v2212 = vmax.f32 %v1897, 0.0
    %v2213 = vmax.f32 %v1899, 0.0
    %v2214 = vmax.f32 %v1902, 0.0
    %v2215 = vmax.f32 %v1904, 0.0
    %v2216 = vmax.f32 %v1907, 0.0
    %v2217 = vmax.f32 %v1909, 0.0
    %v2218 = vmax.f32 %v1912, 0.0
    %v2219 = vmax.f32 %v1914, 0.0
    %v2220 = vmax.f32 %v1917, 0.0
    %v2221 = vmax.f32 %v1919, 0.0
    %v2222 = vmax.f32 %v1922, 0.0
    %v2223 = vmax.f32 %v1924, 0.0
    %v2224 = vmax.f32 %v1927, 0.0
    %v2225 = vmax.f32 %v1929, 0.0
    %v2226 = vmax.f32 %v1932, 0.0
    %v2227 = vmax.f32 %v1934, 0.0
    %v2228 = vmax.f32 %v1937, 0.0
    %v2229 = vmax.f32 %v1939, 0.0
    %v2230 = vmax.f32 %v1942, 0.0
    %v2231 = vmax.f32 %v1944, 0.0
    %v2232 = vmax.f32 %v1947, 0.0
    %v2233 = vmax.f32 %v1949, 0.0
    %v2234 = vmax.f32 %v1952, 0.0
    %v2235 = vmax.f32 %v1954, 0.0
    %v2236 = vmax.f32 %v1957, 0.0
    %v2237 = vmax.f32 %v1959, 0.0
    %v2238 = vmax.f32 %v1962, 0.0
    %v2239 = vmax.f32 %v1964, 0.0
    %v2240 = vmax.f32 %v1967, 0.0
    %v2241 = vmax.f32 %v1969, 0.0
    %v2242 = vmax.f32 %v1972, 0.0
    %v2243 = vmax.f32 %v1974, 0.0
    %v2244 = vmax.f32 %v1977, 0.0
    %v2245 = vmax.f32 %v1979, 0.0
    %v2246 = vmax.f32 %v1982, 0.0
    %v2247 = vmax.f32 %v1984, 0.0
    %v2248 = vmax.f32 %v1987, 0.0
    %v2249 = vmax.f32 %v1989, 0.0
    %v2250 = vmax.f32 %v1992, 0.0
    %v2251 = vmax.f32 %v1994, 0.0
    %v2252 = vmax.f32 %v1996, %v2000
    %v2253 = vmax.f32 %v1997, %v2001
    %v2254 = vmax.f32 %v1998, %v2002
    %v2255 = vmax.f32 %v1999, %v2003
    %v2256 = vmax.f32 %v2004, %v2008
    %v2257 = vmax.f32 %v2005, %v2009
    %v2258 = vmax.f32 %v2006, %v2010
    %v2259 = vmax.f32 %v2007, %v2011
    %v2260 = vmax.f32 %v2012, %v2016
    %v2261 = vmax.f32 %v2013, %v2017
    %v2262 = vmax.f32 %v2014, %v2018
    %v2263 = vmax.f32 %v2015, %v2019
    %v2264 = vmax.f32 %v2020, %v2024
    %v2265 = vmax.f32 %v2021, %v2025
    %v2266 = vmax.f32 %v2022, %v2026
    %v2267 = vmax.f32 %v2023, %v2027
    %v2268 = vmax.f32 %v2028, %v2032
    %v2269 = vmax.f32 %v2029, %v2033
    %v2270 = vmax.f32 %v2030, %v2034
    %v2271 = vmax.f32 %v2031, %v2035
    %v2272 = vmax.f32 %v2036, %v2040
    %v2273 = vmax.f32 %v2037, %v2041
    %v2274 = vmax.f32 %v2038, %v2042
    %v2275 = vmax.f32 %v2039, %v2043
    %v2276 = vmax.f32 %v2044, %v2048
    %v2277 = vmax.f32 %v2045, %v2049
    %v2278 = vmax.f32 %v2046, %v2050
    %v2279 = vmax.f32 %v2047, %v2051
    %v2280 = vmax.f32 %v2052, %v2056
    %v2281 = vmax.f32 %v2053, %v2057
    %v2282 = vmax.f32 %v2054, %v2058
    %v2283 = vmax.f32 %v2055, %v2059
    %v2284 = vmax.f32 %v2060, %v2064
    %v2285 = vmax.f32 %v2061, %v2065
    %v2286 = vmax.f32 %v2062, %v2066
    %v2287 = vmax.f32 %v2063, %v2067
    %v2288 = vmax.f32 %v2068, %v2072
    %v2289 = vmax.f32 %v2069, %v2073
    %v2290 = vmax.f32 %v2070, %v2074
    %v2291 = vmax.f32 %v2071, %v2075
    %v2292 = vmax.f32 %v2076, %v2080
    %v2293 = vmax.f32 %v2077, %v2081
    %v2294 = vmax.f32 %v2078, %v2082
    %v2295 = vmax.f32 %v2079, %v2083
    %v2296 = vmax.f32 %v2084, %v2088
    %v2297 = vmax.f32 %v2085, %v2089
    %v2298 = vmax.f32 %v2086, %v2090
    %v2299 = vmax.f32 %v2087, %v2091
    %v2300 = vmax.f32 %v2092, %v2096
    %v2301 = vmax.f32 %v2093, %v2097
    %v2302 = vmax.f32 %v2094, %v2098
    %v2303 = vmax.f32 %v2095, %v2099
    %v2304 = vmax.f32 %v2100, %v2104
    %v2305 = vmax.f32 %v2101, %v2105
    %v2306 = vmax.f32 %v2102, %v2106
    %v2307 = vmax.f32 %v2103, %v2107
    %v2308 = vmax.f32 %v2108, %v2112
    %v2309 = vmax.f32 %v2109, %v2113
    %v2310 = vmax.f32 %v2110, %v2114
    %v2311 = vmax.f32 %v2111, %v2115
    %v2312 = vmax.f32 %v2116, %v2120
    %v2313 = vmax.f32 %v2117, %v2121
    %v2314 = vmax.f32 %v2118, %v2122
    %v2315 = vmax.f32 %v2119, %v2123
    %v2316 = vmax.f32 %v2124, %v2128
    %v2317 = vmax.f32 %v2125, %v2129
    %v2318 = vmax.f32 %v2126, %v2130
    %v2319 = vmax.f32 %v2127, %v2131
    %v2320 = vmax.f32 %v2132, %v2136
    %v2321 = vmax.f32 %v2133, %v2137
    %v2322 = vmax.f32 %v2134, %v2138
    %v2323 = vmax.f32 %v2135, %v2139
    %v2324 = vmax.f32 %v2140, %v2144
    %v2325 = vmax.f32 %v2141, %v2145
    %v2326 = vmax.f32 %v2142, %v2146
    %v2327 = vmax.f32 %v2143, %v2147
    %v2328 = vmax.f32 %v2148, %v2152
    %v2329 = vmax.f32 %v2149, %v2153
    %v2330 = vmax.f32 %v2150, %v2154
    %v2331 = vmax.f32 %v2151, %v2155
    %v2332 = vmax.f32 %v2156, %v2160
    %v2333 = vmax.f32 %v2157, %v2161
    %v2334 = vmax.f32 %v2158, %v2162
    %v2335 = vmax.f32 %v2159, %v2163
    %v2336 = vmax.f32 %v2164, %v2168
    %v2337 = vmax.f32 %v2165, %v2169
    %v2338 = vmax.f32 %v2166, %v2170
    %v2339 = vmax.f32 %v2167, %v2171
    %v2340 = vmax.f32 %v2172, %v2176
    %v2341 = vmax.f32 %v2173, %v2177
    %v2342 = vmax.f32 %v2174, %v2178
    %v2343 = vmax.f32 %v2175, %v2179
    %v2344 = vmax.f32 %v2180, %v2184
    %v2345 = vmax.f32 %v2181, %v2185
    %v2346 = vmax.f32 %v2182, %v2186
    %v2347 = vmax.f32 %v2183, %v2187
    %v2348 = vmax.f32 %v2188, %v2192
    %v2349 = vmax.f32 %v2189, %v2193
    %v2350 = vmax.f32 %v2190, %v2194
    %v2351 = vmax.f32 %v2191, %v2195
    %v2352 = vmax.f32 %v2196, %v2200
    %v2353 = vmax.f32 %v2197, %v2201
    %v2354 = vmax.f32 %v2198, %v2202
    %v2355 = vmax.f32 %v2199, %v2203
    %v2356 = vmax.f32 %v2204, %v2208
    %v2357 = vmax.f32 %v2205, %v2209
    %v2358 = vmax.f32 %v2206, %v2210
    %v2359 = vmax.f32 %v2207, %v2211
    %v2360 = vmax.f32 %v2212, %v2216
    %v2361 = vmax.f32 %v2213, %v2217
    %v2362 = vmax.f32 %v2214, %v2218
    %v2363 = vmax.f32 %v2215, %v2219
    %v2364 = vmax.f32 %v2220, %v2224
    %v2365 = vmax.f32 %v2221, %v2225
    %v2366 = vmax.f32 %v2222, %v2226
    %v2367 = vmax.f32 %v2223, %v2227
    %v2368 = vmax.f32 %v2228, %v2232
    %v2369 = vmax.f32 %v2229, %v2233
    %v2370 = vmax.f32 %v2230, %v2234
    %v2371 = vmax.f32 %v2231, %v2235
    %v2372 = vmax.f32 %v2236, %v2240
    %v2373 = vmax.f32 %v2237, %v2241
    %v2374 = vmax.f32 %v2238, %v2242
    %v2375 = vmax.f32 %v2239, %v2243
    %v2376 = vmax.f32 %v2244, %v2248
    %v2377 = vmax.f32 %v2245, %v2249
    %v2378 = vmax.f32 %v2246, %v2250
    %v2379 = vmax.f32 %v2247, %v2251
    %vm2380 = vcmask 261120
    %2381 = vst.msk [vmem:[#allocation6] sm:$0xff] %vm2380, %v2252
    %2382 = vst.msk [vmem:[#allocation6 + $0x8] sm:$0xff] %vm2380, %v2253
    %2383 = vst.msk [vmem:[#allocation6 + $0x10] sm:$0xff] %vm2380, %v2254
    %2384 = vst.msk [vmem:[#allocation6 + $0x18] sm:$0xff] %vm2380, %v2255
    %2385 = vst.msk [vmem:[#allocation6 + $0x20] sm:$0xff] %vm2380, %v2256
    %2386 = vst.msk [vmem:[#allocation6 + $0x28] sm:$0xff] %vm2380, %v2257
    %2387 = vst.msk [vmem:[#allocation6 + $0x30] sm:$0xff] %vm2380, %v2258
    %2388 = vst.msk [vmem:[#allocation6 + $0x38] sm:$0xff] %vm2380, %v2259
    %2389 = vst.msk [vmem:[#allocation6 + $0x40] sm:$0xff] %vm2380, %v2260
    %2390 = vst.msk [vmem:[#allocation6 + $0x48] sm:$0xff] %vm2380, %v2261
    %2391 = vst.msk [vmem:[#allocation6 + $0x50] sm:$0xff] %vm2380, %v2262
    %2392 = vst.msk [vmem:[#allocation6 + $0x58] sm:$0xff] %vm2380, %v2263
    %2393 = vst.msk [vmem:[#allocation6 + $0x60] sm:$0xff] %vm2380, %v2264
    %2394 = vst.msk [vmem:[#allocation6 + $0x68] sm:$0xff] %vm2380, %v2265
    %2395 = vst.msk [vmem:[#allocation6 + $0x70] sm:$0xff] %vm2380, %v2266
    %2396 = vst.msk [vmem:[#allocation6 + $0x78] sm:$0xff] %vm2380, %v2267
    %2397 = vst.msk [vmem:[#allocation6 + $0x80] sm:$0xff] %vm2380, %v2268
    %2398 = vst.msk [vmem:[#allocation6 + $0x88] sm:$0xff] %vm2380, %v2269
    %2399 = vst.msk [vmem:[#allocation6 + $0x90] sm:$0xff] %vm2380, %v2270
    %2400 = vst.msk [vmem:[#allocation6 + $0x98] sm:$0xff] %vm2380, %v2271
    %2401 = vst.msk [vmem:[#allocation6 + $0xa0] sm:$0xff] %vm2380, %v2272
    %2402 = vst.msk [vmem:[#allocation6 + $0xa8] sm:$0xff] %vm2380, %v2273
    %2403 = vst.msk [vmem:[#allocation6 + $0xb0] sm:$0xff] %vm2380, %v2274
    %2404 = vst.msk [vmem:[#allocation6 + $0xb8] sm:$0xff] %vm2380, %v2275
    %2405 = vst.msk [vmem:[#allocation6 + $0xc0] sm:$0xff] %vm2380, %v2276
    %2406 = vst.msk [vmem:[#allocation6 + $0xc8] sm:$0xff] %vm2380, %v2277
    %2407 = vst.msk [vmem:[#allocation6 + $0xd0] sm:$0xff] %vm2380, %v2278
    %2408 = vst.msk [vmem:[#allocation6 + $0xd8] sm:$0xff] %vm2380, %v2279
    %2409 = vst.msk [vmem:[#allocation6 + $0xe0] sm:$0xff] %vm2380, %v2280
    %2410 = vst.msk [vmem:[#allocation6 + $0xe8] sm:$0xff] %vm2380, %v2281
    %2411 = vst.msk [vmem:[#allocation6 + $0xf0] sm:$0xff] %vm2380, %v2282
    %2412 = vst.msk [vmem:[#allocation6 + $0xf8] sm:$0xff] %vm2380, %v2283
    %2413 = vst.msk [vmem:[#allocation6 + $0x100] sm:$0xff] %vm2380, %v2284
    %2414 = vst.msk [vmem:[#allocation6 + $0x108] sm:$0xff] %vm2380, %v2285
    %2415 = vst.msk [vmem:[#allocation6 + $0x110] sm:$0xff] %vm2380, %v2286
    %2416 = vst.msk [vmem:[#allocation6 + $0x118] sm:$0xff] %vm2380, %v2287
    %2417 = vst.msk [vmem:[#allocation6 + $0x120] sm:$0xff] %vm2380, %v2288
    %2418 = vst.msk [vmem:[#allocation6 + $0x128] sm:$0xff] %vm2380, %v2289
    %2419 = vst.msk [vmem:[#allocation6 + $0x130] sm:$0xff] %vm2380, %v2290
    %2420 = vst.msk [vmem:[#allocation6 + $0x138] sm:$0xff] %vm2380, %v2291
    %2421 = vst.msk [vmem:[#allocation6 + $0x140] sm:$0xff] %vm2380, %v2292
    %2422 = vst.msk [vmem:[#allocation6 + $0x148] sm:$0xff] %vm2380, %v2293
    %2423 = vst.msk [vmem:[#allocation6 + $0x150] sm:$0xff] %vm2380, %v2294
    %2424 = vst.msk [vmem:[#allocation6 + $0x158] sm:$0xff] %vm2380, %v2295
    %2425 = vst.msk [vmem:[#allocation6 + $0x160] sm:$0xff] %vm2380, %v2296
    %2426 = vst.msk [vmem:[#allocation6 + $0x168] sm:$0xff] %vm2380, %v2297
    %2427 = vst.msk [vmem:[#allocation6 + $0x170] sm:$0xff] %vm2380, %v2298
    %2428 = vst.msk [vmem:[#allocation6 + $0x178] sm:$0xff] %vm2380, %v2299
    %2429 = vst.msk [vmem:[#allocation6 + $0x180] sm:$0xff] %vm2380, %v2300
    %2430 = vst.msk [vmem:[#allocation6 + $0x188] sm:$0xff] %vm2380, %v2301
    %2431 = vst.msk [vmem:[#allocation6 + $0x190] sm:$0xff] %vm2380, %v2302
    %2432 = vst.msk [vmem:[#allocation6 + $0x198] sm:$0xff] %vm2380, %v2303
    %2433 = vst.msk [vmem:[#allocation6 + $0x1a0] sm:$0xff] %vm2380, %v2304
    %2434 = vst.msk [vmem:[#allocation6 + $0x1a8] sm:$0xff] %vm2380, %v2305
    %2435 = vst.msk [vmem:[#allocation6 + $0x1b0] sm:$0xff] %vm2380, %v2306
    %2436 = vst.msk [vmem:[#allocation6 + $0x1b8] sm:$0xff] %vm2380, %v2307
    %2437 = vst.msk [vmem:[#allocation6 + $0x1c0] sm:$0xff] %vm2380, %v2308
    %2438 = vst.msk [vmem:[#allocation6 + $0x1c8] sm:$0xff] %vm2380, %v2309
    %2439 = vst.msk [vmem:[#allocation6 + $0x1d0] sm:$0xff] %vm2380, %v2310
    %2440 = vst.msk [vmem:[#allocation6 + $0x1d8] sm:$0xff] %vm2380, %v2311
    %2441 = vst.msk [vmem:[#allocation6 + $0x1e0] sm:$0xff] %vm2380, %v2312
    %2442 = vst.msk [vmem:[#allocation6 + $0x1e8] sm:$0xff] %vm2380, %v2313
    %2443 = vst.msk [vmem:[#allocation6 + $0x1f0] sm:$0xff] %vm2380, %v2314
    %2444 = vst.msk [vmem:[#allocation6 + $0x1f8] sm:$0xff] %vm2380, %v2315
    %2445 = vst.msk [vmem:[#allocation6 + $0x200] sm:$0xff] %vm2380, %v2316
    %2446 = vst.msk [vmem:[#allocation6 + $0x208] sm:$0xff] %vm2380, %v2317
    %2447 = vst.msk [vmem:[#allocation6 + $0x210] sm:$0xff] %vm2380, %v2318
    %2448 = vst.msk [vmem:[#allocation6 + $0x218] sm:$0xff] %vm2380, %v2319
    %2449 = vst.msk [vmem:[#allocation6 + $0x220] sm:$0xff] %vm2380, %v2320
    %2450 = vst.msk [vmem:[#allocation6 + $0x228] sm:$0xff] %vm2380, %v2321
    %2451 = vst.msk [vmem:[#allocation6 + $0x230] sm:$0xff] %vm2380, %v2322
    %2452 = vst.msk [vmem:[#allocation6 + $0x238] sm:$0xff] %vm2380, %v2323
    %2453 = vst.msk [vmem:[#allocation6 + $0x240] sm:$0xff] %vm2380, %v2324
    %2454 = vst.msk [vmem:[#allocation6 + $0x248] sm:$0xff] %vm2380, %v2325
    %2455 = vst.msk [vmem:[#allocation6 + $0x250] sm:$0xff] %vm2380, %v2326
    %2456 = vst.msk [vmem:[#allocation6 + $0x258] sm:$0xff] %vm2380, %v2327
    %2457 = vst.msk [vmem:[#allocation6 + $0x260] sm:$0xff] %vm2380, %v2328
    %2458 = vst.msk [vmem:[#allocation6 + $0x268] sm:$0xff] %vm2380, %v2329
    %2459 = vst.msk [vmem:[#allocation6 + $0x270] sm:$0xff] %vm2380, %v2330
    %2460 = vst.msk [vmem:[#allocation6 + $0x278] sm:$0xff] %vm2380, %v2331
    %2461 = vst.msk [vmem:[#allocation6 + $0x280] sm:$0xff] %vm2380, %v2332
    %2462 = vst.msk [vmem:[#allocation6 + $0x288] sm:$0xff] %vm2380, %v2333
    %2463 = vst.msk [vmem:[#allocation6 + $0x290] sm:$0xff] %vm2380, %v2334
    %2464 = vst.msk [vmem:[#allocation6 + $0x298] sm:$0xff] %vm2380, %v2335
    %2465 = vst.msk [vmem:[#allocation6 + $0x2a0] sm:$0xff] %vm2380, %v2336
    %2466 = vst.msk [vmem:[#allocation6 + $0x2a8] sm:$0xff] %vm2380, %v2337
    %2467 = vst.msk [vmem:[#allocation6 + $0x2b0] sm:$0xff] %vm2380, %v2338
    %2468 = vst.msk [vmem:[#allocation6 + $0x2b8] sm:$0xff] %vm2380, %v2339
    %2469 = vst.msk [vmem:[#allocation6 + $0x2c0] sm:$0xff] %vm2380, %v2340
    %2470 = vst.msk [vmem:[#allocation6 + $0x2c8] sm:$0xff] %vm2380, %v2341
    %2471 = vst.msk [vmem:[#allocation6 + $0x2d0] sm:$0xff] %vm2380, %v2342
    %2472 = vst.msk [vmem:[#allocation6 + $0x2d8] sm:$0xff] %vm2380, %v2343
    %2473 = vst.msk [vmem:[#allocation6 + $0x2e0] sm:$0xff] %vm2380, %v2344
    %2474 = vst.msk [vmem:[#allocation6 + $0x2e8] sm:$0xff] %vm2380, %v2345
    %2475 = vst.msk [vmem:[#allocation6 + $0x2f0] sm:$0xff] %vm2380, %v2346
    %2476 = vst.msk [vmem:[#allocation6 + $0x2f8] sm:$0xff] %vm2380, %v2347
    %2477 = vst.msk [vmem:[#allocation6 + $0x300] sm:$0xff] %vm2380, %v2348
    %2478 = vst.msk [vmem:[#allocation6 + $0x308] sm:$0xff] %vm2380, %v2349
    %2479 = vst.msk [vmem:[#allocation6 + $0x310] sm:$0xff] %vm2380, %v2350
    %2480 = vst.msk [vmem:[#allocation6 + $0x318] sm:$0xff] %vm2380, %v2351
    %2481 = vst.msk [vmem:[#allocation6 + $0x320] sm:$0xff] %vm2380, %v2352
    %2482 = vst.msk [vmem:[#allocation6 + $0x328] sm:$0xff] %vm2380, %v2353
    %2483 = vst.msk [vmem:[#allocation6 + $0x330] sm:$0xff] %vm2380, %v2354
    %2484 = vst.msk [vmem:[#allocation6 + $0x338] sm:$0xff] %vm2380, %v2355
    %2485 = vst.msk [vmem:[#allocation6 + $0x340] sm:$0xff] %vm2380, %v2356
    %2486 = vst.msk [vmem:[#allocation6 + $0x348] sm:$0xff] %vm2380, %v2357
    %2487 = vst.msk [vmem:[#allocation6 + $0x350] sm:$0xff] %vm2380, %v2358
    %2488 = vst.msk [vmem:[#allocation6 + $0x358] sm:$0xff] %vm2380, %v2359
    %2489 = vst.msk [vmem:[#allocation6 + $0x360] sm:$0xff] %vm2380, %v2360
    %2490 = vst.msk [vmem:[#allocation6 + $0x368] sm:$0xff] %vm2380, %v2361
    %2491 = vst.msk [vmem:[#allocation6 + $0x370] sm:$0xff] %vm2380, %v2362
    %2492 = vst.msk [vmem:[#allocation6 + $0x378] sm:$0xff] %vm2380, %v2363
    %2493 = vst.msk [vmem:[#allocation6 + $0x380] sm:$0xff] %vm2380, %v2364
    %2494 = vst.msk [vmem:[#allocation6 + $0x388] sm:$0xff] %vm2380, %v2365
    %2495 = vst.msk [vmem:[#allocation6 + $0x390] sm:$0xff] %vm2380, %v2366
    %2496 = vst.msk [vmem:[#allocation6 + $0x398] sm:$0xff] %vm2380, %v2367
    %2497 = vst.msk [vmem:[#allocation6 + $0x3a0] sm:$0xff] %vm2380, %v2368
    %2498 = vst.msk [vmem:[#allocation6 + $0x3a8] sm:$0xff] %vm2380, %v2369
    %2499 = vst.msk [vmem:[#allocation6 + $0x3b0] sm:$0xff] %vm2380, %v2370
    %2500 = vst.msk [vmem:[#allocation6 + $0x3b8] sm:$0xff] %vm2380, %v2371
    %2501 = vst.msk [vmem:[#allocation6 + $0x3c0] sm:$0xff] %vm2380, %v2372
    %2502 = vst.msk [vmem:[#allocation6 + $0x3c8] sm:$0xff] %vm2380, %v2373
    %2503 = vst.msk [vmem:[#allocation6 + $0x3d0] sm:$0xff] %vm2380, %v2374
    %2504 = vst.msk [vmem:[#allocation6 + $0x3d8] sm:$0xff] %vm2380, %v2375
    %2505 = vst.msk [vmem:[#allocation6 + $0x3e0] sm:$0xff] %vm2380, %v2376
    %2506 = vst.msk [vmem:[#allocation6 + $0x3e8] sm:$0xff] %vm2380, %v2377
    %2507 = vst.msk [vmem:[#allocation6 + $0x3f0] sm:$0xff] %vm2380, %v2378
    %2508 = vst.msk [vmem:[#allocation6 + $0x3f8] sm:$0xff] %vm2380, %v2379
    %v2509 = vld [vmem:[#allocation6] ss:$2 sm:$0xff]
    %s2510 = scalar_lea.vmem [#allocation6], 16
    %v2511 = vld [vmem:[%s2510] ss:$2 sm:$0xff]
    %s2512 = scalar_lea.vmem [#allocation6], 32
    %v2513 = vld [vmem:[%s2512] ss:$2 sm:$0xff]
    %s2514 = scalar_lea.vmem [#allocation6], 48
    %v2515 = vld [vmem:[%s2514] ss:$2 sm:$0xff]
    %s2516 = scalar_lea.vmem [#allocation6], 64
    %v2517 = vld [vmem:[%s2516] ss:$2 sm:$0xff]
    %s2518 = scalar_lea.vmem [#allocation6], 80
    %v2519 = vld [vmem:[%s2518] ss:$2 sm:$0xff]
    %s2520 = scalar_lea.vmem [#allocation6], 96
    %v2521 = vld [vmem:[%s2520] ss:$2 sm:$0xff]
    %s2522 = scalar_lea.vmem [#allocation6], 112
    %v2523 = vld [vmem:[%s2522] ss:$2 sm:$0xff]
    %s2524 = scalar_lea.vmem [#allocation6], 128
    %v2525 = vld [vmem:[%s2524] ss:$2 sm:$0xff]
    %s2526 = scalar_lea.vmem [#allocation6], 144
    %v2527 = vld [vmem:[%s2526] ss:$2 sm:$0xff]
    %s2528 = scalar_lea.vmem [#allocation6], 160
    %v2529 = vld [vmem:[%s2528] ss:$2 sm:$0xff]
    %s2530 = scalar_lea.vmem [#allocation6], 176
    %v2531 = vld [vmem:[%s2530] ss:$2 sm:$0xff]
    %s2532 = scalar_lea.vmem [#allocation6], 192
    %v2533 = vld [vmem:[%s2532] ss:$2 sm:$0xff]
    %s2534 = scalar_lea.vmem [#allocation6], 208
    %v2535 = vld [vmem:[%s2534] ss:$2 sm:$0xff]
    %s2536 = scalar_lea.vmem [#allocation6], 224
    %v2537 = vld [vmem:[%s2536] ss:$2 sm:$0xff]
    %s2538 = scalar_lea.vmem [#allocation6], 240
    %v2539 = vld [vmem:[%s2538] ss:$2 sm:$0xff]
    %s2540 = scalar_lea.vmem [#allocation6], 256
    %v2541 = vld [vmem:[%s2540] ss:$2 sm:$0xff]
    %s2542 = scalar_lea.vmem [#allocation6], 272
    %v2543 = vld [vmem:[%s2542] ss:$2 sm:$0xff]
    %s2544 = scalar_lea.vmem [#allocation6], 288
    %v2545 = vld [vmem:[%s2544] ss:$2 sm:$0xff]
    %s2546 = scalar_lea.vmem [#allocation6], 304
    %v2547 = vld [vmem:[%s2546] ss:$2 sm:$0xff]
    %s2548 = scalar_lea.vmem [#allocation6], 320
    %v2549 = vld [vmem:[%s2548] ss:$2 sm:$0xff]
    %s2550 = scalar_lea.vmem [#allocation6], 336
    %v2551 = vld [vmem:[%s2550] ss:$2 sm:$0xff]
    %s2552 = scalar_lea.vmem [#allocation6], 352
    %v2553 = vld [vmem:[%s2552] ss:$2 sm:$0xff]
    %s2554 = scalar_lea.vmem [#allocation6], 368
    %v2555 = vld [vmem:[%s2554] ss:$2 sm:$0xff]
    %s2556 = scalar_lea.vmem [#allocation6], 384
    %v2557 = vld [vmem:[%s2556] ss:$2 sm:$0xff]
    %s2558 = scalar_lea.vmem [#allocation6], 400
    %v2559 = vld [vmem:[%s2558] ss:$2 sm:$0xff]
    %s2560 = scalar_lea.vmem [#allocation6], 416
    %v2561 = vld [vmem:[%s2560] ss:$2 sm:$0xff]
    %s2562 = scalar_lea.vmem [#allocation6], 432
    %v2563 = vld [vmem:[%s2562] ss:$2 sm:$0xff]
    %s2564 = scalar_lea.vmem [#allocation6], 448
    %v2565 = vld [vmem:[%s2564] ss:$2 sm:$0xff]
    %s2566 = scalar_lea.vmem [#allocation6], 464
    %v2567 = vld [vmem:[%s2566] ss:$2 sm:$0xff]
    %s2568 = scalar_lea.vmem [#allocation6], 480
    %v2569 = vld [vmem:[%s2568] ss:$2 sm:$0xff]
    %s2570 = scalar_lea.vmem [#allocation6], 496
    %v2571 = vld [vmem:[%s2570] ss:$2 sm:$0xff]
    %s2572 = scalar_lea.vmem [#allocation6], 512
    %v2573 = vld [vmem:[%s2572] ss:$2 sm:$0xff]
    %s2574 = scalar_lea.vmem [#allocation6], 528
    %v2575 = vld [vmem:[%s2574] ss:$2 sm:$0xff]
    %s2576 = scalar_lea.vmem [#allocation6], 544
    %v2577 = vld [vmem:[%s2576] ss:$2 sm:$0xff]
    %s2578 = scalar_lea.vmem [#allocation6], 560
    %v2579 = vld [vmem:[%s2578] ss:$2 sm:$0xff]
    %s2580 = scalar_lea.vmem [#allocation6], 576
    %v2581 = vld [vmem:[%s2580] ss:$2 sm:$0xff]
    %s2582 = scalar_lea.vmem [#allocation6], 592
    %v2583 = vld [vmem:[%s2582] ss:$2 sm:$0xff]
    %s2584 = scalar_lea.vmem [#allocation6], 608
    %v2585 = vld [vmem:[%s2584] ss:$2 sm:$0xff]
    %s2586 = scalar_lea.vmem [#allocation6], 624
    %v2587 = vld [vmem:[%s2586] ss:$2 sm:$0xff]
    %s2588 = scalar_lea.vmem [#allocation6], 640
    %v2589 = vld [vmem:[%s2588] ss:$2 sm:$0xff]
    %s2590 = scalar_lea.vmem [#allocation6], 656
    %v2591 = vld [vmem:[%s2590] ss:$2 sm:$0xff]
    %s2592 = scalar_lea.vmem [#allocation6], 672
    %v2593 = vld [vmem:[%s2592] ss:$2 sm:$0xff]
    %s2594 = scalar_lea.vmem [#allocation6], 688
    %v2595 = vld [vmem:[%s2594] ss:$2 sm:$0xff]
    %s2596 = scalar_lea.vmem [#allocation6], 704
    %v2597 = vld [vmem:[%s2596] ss:$2 sm:$0xff]
    %s2598 = scalar_lea.vmem [#allocation6], 720
    %v2599 = vld [vmem:[%s2598] ss:$2 sm:$0xff]
    %s2600 = scalar_lea.vmem [#allocation6], 736
    %v2601 = vld [vmem:[%s2600] ss:$2 sm:$0xff]
    %s2602 = scalar_lea.vmem [#allocation6], 752
    %v2603 = vld [vmem:[%s2602] ss:$2 sm:$0xff]
    %s2604 = scalar_lea.vmem [#allocation6], 768
    %v2605 = vld [vmem:[%s2604] ss:$2 sm:$0xff]
    %s2606 = scalar_lea.vmem [#allocation6], 784
    %v2607 = vld [vmem:[%s2606] ss:$2 sm:$0xff]
    %s2608 = scalar_lea.vmem [#allocation6], 800
    %v2609 = vld [vmem:[%s2608] ss:$2 sm:$0xff]
    %s2610 = scalar_lea.vmem [#allocation6], 816
    %v2611 = vld [vmem:[%s2610] ss:$2 sm:$0xff]
    %s2612 = scalar_lea.vmem [#allocation6], 832
    %v2613 = vld [vmem:[%s2612] ss:$2 sm:$0xff]
    %s2614 = scalar_lea.vmem [#allocation6], 848
    %v2615 = vld [vmem:[%s2614] ss:$2 sm:$0xff]
    %s2616 = scalar_lea.vmem [#allocation6], 864
    %v2617 = vld [vmem:[%s2616] ss:$2 sm:$0xff]
    %s2618 = scalar_lea.vmem [#allocation6], 880
    %v2619 = vld [vmem:[%s2618] ss:$2 sm:$0xff]
    %s2620 = scalar_lea.vmem [#allocation6], 896
    %v2621 = vld [vmem:[%s2620] ss:$2 sm:$0xff]
    %s2622 = scalar_lea.vmem [#allocation6], 912
    %v2623 = vld [vmem:[%s2622] ss:$2 sm:$0xff]
    %s2624 = scalar_lea.vmem [#allocation6], 928
    %v2625 = vld [vmem:[%s2624] ss:$2 sm:$0xff]
    %s2626 = scalar_lea.vmem [#allocation6], 944
    %v2627 = vld [vmem:[%s2626] ss:$2 sm:$0xff]
    %s2628 = scalar_lea.vmem [#allocation6], 960
    %v2629 = vld [vmem:[%s2628] ss:$2 sm:$0xff]
    %s2630 = scalar_lea.vmem [#allocation6], 976
    %v2631 = vld [vmem:[%s2630] ss:$2 sm:$0xff]
    %s2632 = scalar_lea.vmem [#allocation6], 992
    %v2633 = vld [vmem:[%s2632] ss:$2 sm:$0xff]
    %s2634 = scalar_lea.vmem [#allocation6], 1008
    %v2635 = vld [vmem:[%s2634] ss:$2 sm:$0xff]
    %s2636 = scalar_lea.vmem [#allocation6], 1
    %v2637 = vld [vmem:[%s2636] ss:$2 sm:$0xff]
    %s2638 = scalar_lea.vmem [#allocation6], 17
    %v2639 = vld [vmem:[%s2638] ss:$2 sm:$0xff]
    %s2640 = scalar_lea.vmem [#allocation6], 33
    %v2641 = vld [vmem:[%s2640] ss:$2 sm:$0xff]
    %s2642 = scalar_lea.vmem [#allocation6], 49
    %v2643 = vld [vmem:[%s2642] ss:$2 sm:$0xff]
    %s2644 = scalar_lea.vmem [#allocation6], 65
    %v2645 = vld [vmem:[%s2644] ss:$2 sm:$0xff]
    %s2646 = scalar_lea.vmem [#allocation6], 81
    %v2647 = vld [vmem:[%s2646] ss:$2 sm:$0xff]
    %s2648 = scalar_lea.vmem [#allocation6], 97
    %v2649 = vld [vmem:[%s2648] ss:$2 sm:$0xff]
    %s2650 = scalar_lea.vmem [#allocation6], 113
    %v2651 = vld [vmem:[%s2650] ss:$2 sm:$0xff]
    %s2652 = scalar_lea.vmem [#allocation6], 129
    %v2653 = vld [vmem:[%s2652] ss:$2 sm:$0xff]
    %s2654 = scalar_lea.vmem [#allocation6], 145
    %v2655 = vld [vmem:[%s2654] ss:$2 sm:$0xff]
    %s2656 = scalar_lea.vmem [#allocation6], 161
    %v2657 = vld [vmem:[%s2656] ss:$2 sm:$0xff]
    %s2658 = scalar_lea.vmem [#allocation6], 177
    %v2659 = vld [vmem:[%s2658] ss:$2 sm:$0xff]
    %s2660 = scalar_lea.vmem [#allocation6], 193
    %v2661 = vld [vmem:[%s2660] ss:$2 sm:$0xff]
    %s2662 = scalar_lea.vmem [#allocation6], 209
    %v2663 = vld [vmem:[%s2662] ss:$2 sm:$0xff]
    %s2664 = scalar_lea.vmem [#allocation6], 225
    %v2665 = vld [vmem:[%s2664] ss:$2 sm:$0xff]
    %s2666 = scalar_lea.vmem [#allocation6], 241
    %v2667 = vld [vmem:[%s2666] ss:$2 sm:$0xff]
    %s2668 = scalar_lea.vmem [#allocation6], 257
    %v2669 = vld [vmem:[%s2668] ss:$2 sm:$0xff]
    %s2670 = scalar_lea.vmem [#allocation6], 273
    %v2671 = vld [vmem:[%s2670] ss:$2 sm:$0xff]
    %s2672 = scalar_lea.vmem [#allocation6], 289
    %v2673 = vld [vmem:[%s2672] ss:$2 sm:$0xff]
    %s2674 = scalar_lea.vmem [#allocation6], 305
    %v2675 = vld [vmem:[%s2674] ss:$2 sm:$0xff]
    %s2676 = scalar_lea.vmem [#allocation6], 321
    %v2677 = vld [vmem:[%s2676] ss:$2 sm:$0xff]
    %s2678 = scalar_lea.vmem [#allocation6], 337
    %v2679 = vld [vmem:[%s2678] ss:$2 sm:$0xff]
    %s2680 = scalar_lea.vmem [#allocation6], 353
    %v2681 = vld [vmem:[%s2680] ss:$2 sm:$0xff]
    %s2682 = scalar_lea.vmem [#allocation6], 369
    %v2683 = vld [vmem:[%s2682] ss:$2 sm:$0xff]
    %s2684 = scalar_lea.vmem [#allocation6], 385
    %v2685 = vld [vmem:[%s2684] ss:$2 sm:$0xff]
    %s2686 = scalar_lea.vmem [#allocation6], 401
    %v2687 = vld [vmem:[%s2686] ss:$2 sm:$0xff]
    %s2688 = scalar_lea.vmem [#allocation6], 417
    %v2689 = vld [vmem:[%s2688] ss:$2 sm:$0xff]
    %s2690 = scalar_lea.vmem [#allocation6], 433
    %v2691 = vld [vmem:[%s2690] ss:$2 sm:$0xff]
    %s2692 = scalar_lea.vmem [#allocation6], 449
    %v2693 = vld [vmem:[%s2692] ss:$2 sm:$0xff]
    %s2694 = scalar_lea.vmem [#allocation6], 465
    %v2695 = vld [vmem:[%s2694] ss:$2 sm:$0xff]
    %s2696 = scalar_lea.vmem [#allocation6], 481
    %v2697 = vld [vmem:[%s2696] ss:$2 sm:$0xff]
    %s2698 = scalar_lea.vmem [#allocation6], 497
    %v2699 = vld [vmem:[%s2698] ss:$2 sm:$0xff]
    %s2700 = scalar_lea.vmem [#allocation6], 513
    %v2701 = vld [vmem:[%s2700] ss:$2 sm:$0xff]
    %s2702 = scalar_lea.vmem [#allocation6], 529
    %v2703 = vld [vmem:[%s2702] ss:$2 sm:$0xff]
    %s2704 = scalar_lea.vmem [#allocation6], 545
    %v2705 = vld [vmem:[%s2704] ss:$2 sm:$0xff]
    %s2706 = scalar_lea.vmem [#allocation6], 561
    %v2707 = vld [vmem:[%s2706] ss:$2 sm:$0xff]
    %s2708 = scalar_lea.vmem [#allocation6], 577
    %v2709 = vld [vmem:[%s2708] ss:$2 sm:$0xff]
    %s2710 = scalar_lea.vmem [#allocation6], 593
    %v2711 = vld [vmem:[%s2710] ss:$2 sm:$0xff]
    %s2712 = scalar_lea.vmem [#allocation6], 609
    %v2713 = vld [vmem:[%s2712] ss:$2 sm:$0xff]
    %s2714 = scalar_lea.vmem [#allocation6], 625
    %v2715 = vld [vmem:[%s2714] ss:$2 sm:$0xff]
    %s2716 = scalar_lea.vmem [#allocation6], 641
    %v2717 = vld [vmem:[%s2716] ss:$2 sm:$0xff]
    %s2718 = scalar_lea.vmem [#allocation6], 657
    %v2719 = vld [vmem:[%s2718] ss:$2 sm:$0xff]
    %s2720 = scalar_lea.vmem [#allocation6], 673
    %v2721 = vld [vmem:[%s2720] ss:$2 sm:$0xff]
    %s2722 = scalar_lea.vmem [#allocation6], 689
    %v2723 = vld [vmem:[%s2722] ss:$2 sm:$0xff]
    %s2724 = scalar_lea.vmem [#allocation6], 705
    %v2725 = vld [vmem:[%s2724] ss:$2 sm:$0xff]
    %s2726 = scalar_lea.vmem [#allocation6], 721
    %v2727 = vld [vmem:[%s2726] ss:$2 sm:$0xff]
    %s2728 = scalar_lea.vmem [#allocation6], 737
    %v2729 = vld [vmem:[%s2728] ss:$2 sm:$0xff]
    %s2730 = scalar_lea.vmem [#allocation6], 753
    %v2731 = vld [vmem:[%s2730] ss:$2 sm:$0xff]
    %s2732 = scalar_lea.vmem [#allocation6], 769
    %v2733 = vld [vmem:[%s2732] ss:$2 sm:$0xff]
    %s2734 = scalar_lea.vmem [#allocation6], 785
    %v2735 = vld [vmem:[%s2734] ss:$2 sm:$0xff]
    %s2736 = scalar_lea.vmem [#allocation6], 801
    %v2737 = vld [vmem:[%s2736] ss:$2 sm:$0xff]
    %s2738 = scalar_lea.vmem [#allocation6], 817
    %v2739 = vld [vmem:[%s2738] ss:$2 sm:$0xff]
    %s2740 = scalar_lea.vmem [#allocation6], 833
    %v2741 = vld [vmem:[%s2740] ss:$2 sm:$0xff]
    %s2742 = scalar_lea.vmem [#allocation6], 849
    %v2743 = vld [vmem:[%s2742] ss:$2 sm:$0xff]
    %s2744 = scalar_lea.vmem [#allocation6], 865
    %v2745 = vld [vmem:[%s2744] ss:$2 sm:$0xff]
    %s2746 = scalar_lea.vmem [#allocation6], 881
    %v2747 = vld [vmem:[%s2746] ss:$2 sm:$0xff]
    %s2748 = scalar_lea.vmem [#allocation6], 897
    %v2749 = vld [vmem:[%s2748] ss:$2 sm:$0xff]
    %s2750 = scalar_lea.vmem [#allocation6], 913
    %v2751 = vld [vmem:[%s2750] ss:$2 sm:$0xff]
    %s2752 = scalar_lea.vmem [#allocation6], 929
    %v2753 = vld [vmem:[%s2752] ss:$2 sm:$0xff]
    %s2754 = scalar_lea.vmem [#allocation6], 945
    %v2755 = vld [vmem:[%s2754] ss:$2 sm:$0xff]
    %s2756 = scalar_lea.vmem [#allocation6], 961
    %v2757 = vld [vmem:[%s2756] ss:$2 sm:$0xff]
    %s2758 = scalar_lea.vmem [#allocation6], 977
    %v2759 = vld [vmem:[%s2758] ss:$2 sm:$0xff]
    %s2760 = scalar_lea.vmem [#allocation6], 993
    %v2761 = vld [vmem:[%s2760] ss:$2 sm:$0xff]
    %s2762 = scalar_lea.vmem [#allocation6], 1009
    %v2763 = vld [vmem:[%s2762] ss:$2 sm:$0xff]
    %v2764 = vmax.f32 %v2509, %v2637
    %v2765 = vmax.f32 %v2511, %v2639
    %v2766 = vmax.f32 %v2513, %v2641
    %v2767 = vmax.f32 %v2515, %v2643
    %v2768 = vmax.f32 %v2517, %v2645
    %v2769 = vmax.f32 %v2519, %v2647
    %v2770 = vmax.f32 %v2521, %v2649
    %v2771 = vmax.f32 %v2523, %v2651
    %v2772 = vmax.f32 %v2525, %v2653
    %v2773 = vmax.f32 %v2527, %v2655
    %v2774 = vmax.f32 %v2529, %v2657
    %v2775 = vmax.f32 %v2531, %v2659
    %v2776 = vmax.f32 %v2533, %v2661
    %v2777 = vmax.f32 %v2535, %v2663
    %v2778 = vmax.f32 %v2537, %v2665
    %v2779 = vmax.f32 %v2539, %v2667
    %v2780 = vmax.f32 %v2541, %v2669
    %v2781 = vmax.f32 %v2543, %v2671
    %v2782 = vmax.f32 %v2545, %v2673
    %v2783 = vmax.f32 %v2547, %v2675
    %v2784 = vmax.f32 %v2549, %v2677
    %v2785 = vmax.f32 %v2551, %v2679
    %v2786 = vmax.f32 %v2553, %v2681
    %v2787 = vmax.f32 %v2555, %v2683
    %v2788 = vmax.f32 %v2557, %v2685
    %v2789 = vmax.f32 %v2559, %v2687
    %v2790 = vmax.f32 %v2561, %v2689
    %v2791 = vmax.f32 %v2563, %v2691
    %v2792 = vmax.f32 %v2565, %v2693
    %v2793 = vmax.f32 %v2567, %v2695
    %v2794 = vmax.f32 %v2569, %v2697
    %v2795 = vmax.f32 %v2571, %v2699
    %v2796 = vmax.f32 %v2573, %v2701
    %v2797 = vmax.f32 %v2575, %v2703
    %v2798 = vmax.f32 %v2577, %v2705
    %v2799 = vmax.f32 %v2579, %v2707
    %v2800 = vmax.f32 %v2581, %v2709
    %v2801 = vmax.f32 %v2583, %v2711
    %v2802 = vmax.f32 %v2585, %v2713
    %v2803 = vmax.f32 %v2587, %v2715
    %v2804 = vmax.f32 %v2589, %v2717
    %v2805 = vmax.f32 %v2591, %v2719
    %v2806 = vmax.f32 %v2593, %v2721
    %v2807 = vmax.f32 %v2595, %v2723
    %v2808 = vmax.f32 %v2597, %v2725
    %v2809 = vmax.f32 %v2599, %v2727
    %v2810 = vmax.f32 %v2601, %v2729
    %v2811 = vmax.f32 %v2603, %v2731
    %v2812 = vmax.f32 %v2605, %v2733
    %v2813 = vmax.f32 %v2607, %v2735
    %v2814 = vmax.f32 %v2609, %v2737
    %v2815 = vmax.f32 %v2611, %v2739
    %v2816 = vmax.f32 %v2613, %v2741
    %v2817 = vmax.f32 %v2615, %v2743
    %v2818 = vmax.f32 %v2617, %v2745
    %v2819 = vmax.f32 %v2619, %v2747
    %v2820 = vmax.f32 %v2621, %v2749
    %v2821 = vmax.f32 %v2623, %v2751
    %v2822 = vmax.f32 %v2625, %v2753
    %v2823 = vmax.f32 %v2627, %v2755
    %v2824 = vmax.f32 %v2629, %v2757
    %v2825 = vmax.f32 %v2631, %v2759
    %v2826 = vmax.f32 %v2633, %v2761
    %v2827 = vmax.f32 %v2635, %v2763
    %2828 = vst.msk [vmem:[#allocation2] sm:$0xff] %vm2380, 0.0
    %2829 = vst.msk [vmem:[#allocation2 + $0x8] sm:$0xff] %vm2380, 0.0
    %vm2830 = vcmask 254976
    %2831 = vst.msk [vmem:[#allocation2 + $0x10] sm:$0x3] %vm2830, 0.0
    %2832 = vst.msk [vmem:[#allocation2 + $0x1b0] sm:$0xff] %vm2380, 0.0
    %2833 = vst.msk [vmem:[#allocation2 + $0x1b8] sm:$0xff] %vm2380, 0.0
    %2834 = vst.msk [vmem:[#allocation2 + $0x1c0] sm:$0x3] %vm2830, 0.0
    %s2835 = scalar_lea.vmem [#allocation2], 408
    %2836 = vst.msk [vmem:[%s2835] sm:$0xff] %vm2380, 0.0
    %2837 = vst.msk [vmem:[%s2835 + $0x8] sm:$0xff] %vm2380, 0.0
    %2838 = vst.msk [vmem:[%s2835 + $0x10] sm:$0x3] %vm2830, 0.0
    %2839 = vst.msk [vmem:[%s2835 + $0x1b0] sm:$0xff] %vm2380, 0.0
    %2840 = vst.msk [vmem:[%s2835 + $0x1b8] sm:$0xff] %vm2380, 0.0
    %2841 = vst.msk [vmem:[%s2835 + $0x1c0] sm:$0x3] %vm2830, 0.0
    %vm2842 = vcmask 253952
    %2843 = vst.msk [vmem:[#allocation2] sm:$0x1] %vm2842, 0.0
    %2844 = vst.msk [vmem:[#allocation2 + $0x18] sm:$0x1] %vm2842, 0.0
    %2845 = vst.msk [vmem:[#allocation2 + $0x30] sm:$0x1] %vm2842, 0.0
    %2846 = vst.msk [vmem:[#allocation2 + $0x48] sm:$0x1] %vm2842, 0.0
    %2847 = vst.msk [vmem:[#allocation2 + $0x60] sm:$0x1] %vm2842, 0.0
    %2848 = vst.msk [vmem:[#allocation2 + $0x78] sm:$0x1] %vm2842, 0.0
    %2849 = vst.msk [vmem:[#allocation2 + $0x90] sm:$0x1] %vm2842, 0.0
    %2850 = vst.msk [vmem:[#allocation2 + $0xa8] sm:$0x1] %vm2842, 0.0
    %2851 = vst.msk [vmem:[#allocation2 + $0xc0] sm:$0x1] %vm2842, 0.0
    %2852 = vst.msk [vmem:[#allocation2 + $0xd8] sm:$0x1] %vm2842, 0.0
    %2853 = vst.msk [vmem:[#allocation2 + $0xf0] sm:$0x1] %vm2842, 0.0
    %2854 = vst.msk [vmem:[#allocation2 + $0x108] sm:$0x1] %vm2842, 0.0
    %2855 = vst.msk [vmem:[#allocation2 + $0x120] sm:$0x1] %vm2842, 0.0
    %2856 = vst.msk [vmem:[#allocation2 + $0x138] sm:$0x1] %vm2842, 0.0
    %2857 = vst.msk [vmem:[#allocation2 + $0x150] sm:$0x1] %vm2842, 0.0
    %2858 = vst.msk [vmem:[#allocation2 + $0x168] sm:$0x1] %vm2842, 0.0
    %2859 = vst.msk [vmem:[#allocation2 + $0x180] sm:$0x1] %vm2842, 0.0
    %2860 = vst.msk [vmem:[#allocation2 + $0x198] sm:$0x1] %vm2842, 0.0
    %2861 = vst.msk [vmem:[#allocation2 + $0x1b0] sm:$0x1] %vm2842, 0.0
    %2862 = vst.msk [vmem:[#allocation2 + $0x1c8] sm:$0x1] %vm2842, 0.0
    %2863 = vst.msk [vmem:[#allocation2 + $0x1e0] sm:$0x1] %vm2842, 0.0
    %2864 = vst.msk [vmem:[#allocation2 + $0x1f8] sm:$0x1] %vm2842, 0.0
    %2865 = vst.msk [vmem:[#allocation2 + $0x210] sm:$0x1] %vm2842, 0.0
    %2866 = vst.msk [vmem:[#allocation2 + $0x228] sm:$0x1] %vm2842, 0.0
    %2867 = vst.msk [vmem:[#allocation2 + $0x240] sm:$0x1] %vm2842, 0.0
    %2868 = vst.msk [vmem:[#allocation2 + $0x258] sm:$0x1] %vm2842, 0.0
    %2869 = vst.msk [vmem:[#allocation2 + $0x270] sm:$0x1] %vm2842, 0.0
    %2870 = vst.msk [vmem:[#allocation2 + $0x288] sm:$0x1] %vm2842, 0.0
    %2871 = vst.msk [vmem:[#allocation2 + $0x2a0] sm:$0x1] %vm2842, 0.0
    %2872 = vst.msk [vmem:[#allocation2 + $0x2b8] sm:$0x1] %vm2842, 0.0
    %2873 = vst.msk [vmem:[#allocation2 + $0x2d0] sm:$0x1] %vm2842, 0.0
    %2874 = vst.msk [vmem:[#allocation2 + $0x2e8] sm:$0x1] %vm2842, 0.0
    %2875 = vst.msk [vmem:[#allocation2 + $0x300] sm:$0x1] %vm2842, 0.0
    %2876 = vst.msk [vmem:[#allocation2 + $0x318] sm:$0x1] %vm2842, 0.0
    %2877 = vst.msk [vmem:[#allocation2 + $0x330] sm:$0x1] %vm2842, 0.0
    %2878 = vst.msk [vmem:[#allocation2 + $0x348] sm:$0x1] %vm2842, 0.0
    %2879 = vst.msk [vmem:[#allocation2 + $0x11] sm:$0x1] %vm2842, 0.0
    %2880 = vst.msk [vmem:[#allocation2 + $0x29] sm:$0x1] %vm2842, 0.0
    %2881 = vst.msk [vmem:[#allocation2 + $0x41] sm:$0x1] %vm2842, 0.0
    %2882 = vst.msk [vmem:[#allocation2 + $0x59] sm:$0x1] %vm2842, 0.0
    %2883 = vst.msk [vmem:[#allocation2 + $0x71] sm:$0x1] %vm2842, 0.0
    %2884 = vst.msk [vmem:[#allocation2 + $0x89] sm:$0x1] %vm2842, 0.0
    %2885 = vst.msk [vmem:[#allocation2 + $0xa1] sm:$0x1] %vm2842, 0.0
    %2886 = vst.msk [vmem:[#allocation2 + $0xb9] sm:$0x1] %vm2842, 0.0
    %2887 = vst.msk [vmem:[#allocation2 + $0xd1] sm:$0x1] %vm2842, 0.0
    %2888 = vst.msk [vmem:[#allocation2 + $0xe9] sm:$0x1] %vm2842, 0.0
    %2889 = vst.msk [vmem:[#allocation2 + $0x101] sm:$0x1] %vm2842, 0.0
    %2890 = vst.msk [vmem:[#allocation2 + $0x119] sm:$0x1] %vm2842, 0.0
    %2891 = vst.msk [vmem:[#allocation2 + $0x131] sm:$0x1] %vm2842, 0.0
    %2892 = vst.msk [vmem:[#allocation2 + $0x149] sm:$0x1] %vm2842, 0.0
    %2893 = vst.msk [vmem:[#allocation2 + $0x161] sm:$0x1] %vm2842, 0.0
    %2894 = vst.msk [vmem:[#allocation2 + $0x179] sm:$0x1] %vm2842, 0.0
    %2895 = vst.msk [vmem:[#allocation2 + $0x191] sm:$0x1] %vm2842, 0.0
    %2896 = vst.msk [vmem:[#allocation2 + $0x1a9] sm:$0x1] %vm2842, 0.0
    %2897 = vst.msk [vmem:[#allocation2 + $0x1c1] sm:$0x1] %vm2842, 0.0
    %2898 = vst.msk [vmem:[#allocation2 + $0x1d9] sm:$0x1] %vm2842, 0.0
    %2899 = vst.msk [vmem:[#allocation2 + $0x1f1] sm:$0x1] %vm2842, 0.0
    %2900 = vst.msk [vmem:[#allocation2 + $0x209] sm:$0x1] %vm2842, 0.0
    %2901 = vst.msk [vmem:[#allocation2 + $0x221] sm:$0x1] %vm2842, 0.0
    %2902 = vst.msk [vmem:[#allocation2 + $0x239] sm:$0x1] %vm2842, 0.0
    %2903 = vst.msk [vmem:[#allocation2 + $0x251] sm:$0x1] %vm2842, 0.0
    %2904 = vst.msk [vmem:[#allocation2 + $0x269] sm:$0x1] %vm2842, 0.0
    %2905 = vst.msk [vmem:[#allocation2 + $0x281] sm:$0x1] %vm2842, 0.0
    %2906 = vst.msk [vmem:[#allocation2 + $0x299] sm:$0x1] %vm2842, 0.0
    %2907 = vst.msk [vmem:[#allocation2 + $0x2b1] sm:$0x1] %vm2842, 0.0
    %2908 = vst.msk [vmem:[#allocation2 + $0x2c9] sm:$0x1] %vm2842, 0.0
    %2909 = vst.msk [vmem:[#allocation2 + $0x2e1] sm:$0x1] %vm2842, 0.0
    %2910 = vst.msk [vmem:[#allocation2 + $0x2f9] sm:$0x1] %vm2842, 0.0
    %2911 = vst.msk [vmem:[#allocation2 + $0x311] sm:$0x1] %vm2842, 0.0
    %2912 = vst.msk [vmem:[#allocation2 + $0x329] sm:$0x1] %vm2842, 0.0
    %2913 = vst.msk [vmem:[#allocation2 + $0x341] sm:$0x1] %vm2842, 0.0
    %2914 = vst.msk [vmem:[#allocation2 + $0x359] sm:$0x1] %vm2842, 0.0
    %s2915 = scalar_lea.vmem [#allocation2], 24
    %2916 = vst.msk [vmem:[%s2915 + $0x1] sm:$0xff] %vm2380, %v2764
    %2917 = vst.msk [vmem:[%s2915 + $0x9] sm:$0xff] %vm2380, %v2765
    %2918 = vst.msk [vmem:[%s2915 + $0x19] sm:$0xff] %vm2380, %v2766
    %2919 = vst.msk [vmem:[%s2915 + $0x21] sm:$0xff] %vm2380, %v2767
    %2920 = vst.msk [vmem:[%s2915 + $0x31] sm:$0xff] %vm2380, %v2768
    %2921 = vst.msk [vmem:[%s2915 + $0x39] sm:$0xff] %vm2380, %v2769
    %2922 = vst.msk [vmem:[%s2915 + $0x49] sm:$0xff] %vm2380, %v2770
    %2923 = vst.msk [vmem:[%s2915 + $0x51] sm:$0xff] %vm2380, %v2771
    %2924 = vst.msk [vmem:[%s2915 + $0x61] sm:$0xff] %vm2380, %v2772
    %2925 = vst.msk [vmem:[%s2915 + $0x69] sm:$0xff] %vm2380, %v2773
    %2926 = vst.msk [vmem:[%s2915 + $0x79] sm:$0xff] %vm2380, %v2774
    %2927 = vst.msk [vmem:[%s2915 + $0x81] sm:$0xff] %vm2380, %v2775
    %2928 = vst.msk [vmem:[%s2915 + $0x91] sm:$0xff] %vm2380, %v2776
    %2929 = vst.msk [vmem:[%s2915 + $0x99] sm:$0xff] %vm2380, %v2777
    %2930 = vst.msk [vmem:[%s2915 + $0xa9] sm:$0xff] %vm2380, %v2778
    %2931 = vst.msk [vmem:[%s2915 + $0xb1] sm:$0xff] %vm2380, %v2779
    %2932 = vst.msk [vmem:[%s2915 + $0xc1] sm:$0xff] %vm2380, %v2780
    %2933 = vst.msk [vmem:[%s2915 + $0xc9] sm:$0xff] %vm2380, %v2781
    %2934 = vst.msk [vmem:[%s2915 + $0xd9] sm:$0xff] %vm2380, %v2782
    %2935 = vst.msk [vmem:[%s2915 + $0xe1] sm:$0xff] %vm2380, %v2783
    %2936 = vst.msk [vmem:[%s2915 + $0xf1] sm:$0xff] %vm2380, %v2784
    %2937 = vst.msk [vmem:[%s2915 + $0xf9] sm:$0xff] %vm2380, %v2785
    %2938 = vst.msk [vmem:[%s2915 + $0x109] sm:$0xff] %vm2380, %v2786
    %2939 = vst.msk [vmem:[%s2915 + $0x111] sm:$0xff] %vm2380, %v2787
    %2940 = vst.msk [vmem:[%s2915 + $0x121] sm:$0xff] %vm2380, %v2788
    %2941 = vst.msk [vmem:[%s2915 + $0x129] sm:$0xff] %vm2380, %v2789
    %2942 = vst.msk [vmem:[%s2915 + $0x139] sm:$0xff] %vm2380, %v2790
    %2943 = vst.msk [vmem:[%s2915 + $0x141] sm:$0xff] %vm2380, %v2791
    %2944 = vst.msk [vmem:[%s2915 + $0x151] sm:$0xff] %vm2380, %v2792
    %2945 = vst.msk [vmem:[%s2915 + $0x159] sm:$0xff] %vm2380, %v2793
    %2946 = vst.msk [vmem:[%s2915 + $0x169] sm:$0xff] %vm2380, %v2794
    %2947 = vst.msk [vmem:[%s2915 + $0x171] sm:$0xff] %vm2380, %v2795
    %2948 = vst.msk [vmem:[%s2915 + $0x1b1] sm:$0xff] %vm2380, %v2796
    %2949 = vst.msk [vmem:[%s2915 + $0x1b9] sm:$0xff] %vm2380, %v2797
    %2950 = vst.msk [vmem:[%s2915 + $0x1c9] sm:$0xff] %vm2380, %v2798
    %2951 = vst.msk [vmem:[%s2915 + $0x1d1] sm:$0xff] %vm2380, %v2799
    %2952 = vst.msk [vmem:[%s2915 + $0x1e1] sm:$0xff] %vm2380, %v2800
    %2953 = vst.msk [vmem:[%s2915 + $0x1e9] sm:$0xff] %vm2380, %v2801
    %2954 = vst.msk [vmem:[%s2915 + $0x1f9] sm:$0xff] %vm2380, %v2802
    %2955 = vst.msk [vmem:[%s2915 + $0x201] sm:$0xff] %vm2380, %v2803
    %2956 = vst.msk [vmem:[%s2915 + $0x211] sm:$0xff] %vm2380, %v2804
    %2957 = vst.msk [vmem:[%s2915 + $0x219] sm:$0xff] %vm2380, %v2805
    %2958 = vst.msk [vmem:[%s2915 + $0x229] sm:$0xff] %vm2380, %v2806
    %2959 = vst.msk [vmem:[%s2915 + $0x231] sm:$0xff] %vm2380, %v2807
    %2960 = vst.msk [vmem:[%s2915 + $0x241] sm:$0xff] %vm2380, %v2808
    %2961 = vst.msk [vmem:[%s2915 + $0x249] sm:$0xff] %vm2380, %v2809
    %2962 = vst.msk [vmem:[%s2915 + $0x259] sm:$0xff] %vm2380, %v2810
    %2963 = vst.msk [vmem:[%s2915 + $0x261] sm:$0xff] %vm2380, %v2811
    %2964 = vst.msk [vmem:[%s2915 + $0x271] sm:$0xff] %vm2380, %v2812
    %2965 = vst.msk [vmem:[%s2915 + $0x279] sm:$0xff] %vm2380, %v2813
    %2966 = vst.msk [vmem:[%s2915 + $0x289] sm:$0xff] %vm2380, %v2814
    %2967 = vst.msk [vmem:[%s2915 + $0x291] sm:$0xff] %vm2380, %v2815
    %2968 = vst.msk [vmem:[%s2915 + $0x2a1] sm:$0xff] %vm2380, %v2816
    %2969 = vst.msk [vmem:[%s2915 + $0x2a9] sm:$0xff] %vm2380, %v2817
    %2970 = vst.msk [vmem:[%s2915 + $0x2b9] sm:$0xff] %vm2380, %v2818
    %2971 = vst.msk [vmem:[%s2915 + $0x2c1] sm:$0xff] %vm2380, %v2819
    %2972 = vst.msk [vmem:[%s2915 + $0x2d1] sm:$0xff] %vm2380, %v2820
    %2973 = vst.msk [vmem:[%s2915 + $0x2d9] sm:$0xff] %vm2380, %v2821
    %2974 = vst.msk [vmem:[%s2915 + $0x2e9] sm:$0xff] %vm2380, %v2822
    %2975 = vst.msk [vmem:[%s2915 + $0x2f1] sm:$0xff] %vm2380, %v2823
    %2976 = vst.msk [vmem:[%s2915 + $0x301] sm:$0xff] %vm2380, %v2824
    %2977 = vst.msk [vmem:[%s2915 + $0x309] sm:$0xff] %vm2380, %v2825
    %2978 = vst.msk [vmem:[%s2915 + $0x319] sm:$0xff] %vm2380, %v2826
    %2979 = vst.msk [vmem:[%s2915 + $0x321] sm:$0xff] %vm2380, %v2827
    %v2980 = vld [vmem:[#allocation2] sm:$0xff]
    %v2981 = vld [vmem:[#allocation2 + $0x8] sm:$0xff]
    %v2982 = vld [vmem:[#allocation2 + $0x18] sm:$0xff]
    %v2983 = vld [vmem:[#allocation2 + $0x20] sm:$0xff]
    %v2984 = vld [vmem:[#allocation2 + $0x30] sm:$0xff]
    %v2985 = vld [vmem:[#allocation2 + $0x38] sm:$0xff]
    %v2986 = vld [vmem:[#allocation2 + $0x48] sm:$0xff]
    %v2987 = vld [vmem:[#allocation2 + $0x50] sm:$0xff]
    %v2988 = vld [vmem:[#allocation2 + $0x60] sm:$0xff]
    %v2989 = vld [vmem:[#allocation2 + $0x68] sm:$0xff]
    %v2990 = vld [vmem:[#allocation2 + $0x78] sm:$0xff]
    %v2991 = vld [vmem:[#allocation2 + $0x80] sm:$0xff]
    %v2992 = vld [vmem:[#allocation2 + $0x90] sm:$0xff]
    %v2993 = vld [vmem:[#allocation2 + $0x98] sm:$0xff]
    %v2994 = vld [vmem:[#allocation2 + $0xa8] sm:$0xff]
    %v2995 = vld [vmem:[#allocation2 + $0xb0] sm:$0xff]
    %v2996 = vld [vmem:[#allocation2 + $0xc0] sm:$0xff]
    %v2997 = vld [vmem:[#allocation2 + $0xc8] sm:$0xff]
    %v2998 = vld [vmem:[#allocation2 + $0xd8] sm:$0xff]
    %v2999 = vld [vmem:[#allocation2 + $0xe0] sm:$0xff]
    %v3000 = vld [vmem:[#allocation2 + $0xf0] sm:$0xff]
    %v3001 = vld [vmem:[#allocation2 + $0xf8] sm:$0xff]
    %v3002 = vld [vmem:[#allocation2 + $0x108] sm:$0xff]
    %v3003 = vld [vmem:[#allocation2 + $0x110] sm:$0xff]
    %v3004 = vld [vmem:[#allocation2 + $0x120] sm:$0xff]
    %v3005 = vld [vmem:[#allocation2 + $0x128] sm:$0xff]
    %v3006 = vld [vmem:[#allocation2 + $0x138] sm:$0xff]
    %v3007 = vld [vmem:[#allocation2 + $0x140] sm:$0xff]
    %v3008 = vld [vmem:[#allocation2 + $0x150] sm:$0xff]
    %v3009 = vld [vmem:[#allocation2 + $0x158] sm:$0xff]
    %v3010 = vld [vmem:[#allocation2 + $0x168] sm:$0xff]
    %v3011 = vld [vmem:[#allocation2 + $0x170] sm:$0xff]
    %v3012 = vld [vmem:[#allocation2 + $0x1b0] sm:$0xff]
    %v3013 = vld [vmem:[#allocation2 + $0x1b8] sm:$0xff]
    %v3014 = vld [vmem:[#allocation2 + $0x1c8] sm:$0xff]
    %v3015 = vld [vmem:[#allocation2 + $0x1d0] sm:$0xff]
    %v3016 = vld [vmem:[#allocation2 + $0x1e0] sm:$0xff]
    %v3017 = vld [vmem:[#allocation2 + $0x1e8] sm:$0xff]
    %v3018 = vld [vmem:[#allocation2 + $0x1f8] sm:$0xff]
    %v3019 = vld [vmem:[#allocation2 + $0x200] sm:$0xff]
    %v3020 = vld [vmem:[#allocation2 + $0x210] sm:$0xff]
    %v3021 = vld [vmem:[#allocation2 + $0x218] sm:$0xff]
    %v3022 = vld [vmem:[#allocation2 + $0x228] sm:$0xff]
    %v3023 = vld [vmem:[#allocation2 + $0x230] sm:$0xff]
    %v3024 = vld [vmem:[#allocation2 + $0x240] sm:$0xff]
    %v3025 = vld [vmem:[#allocation2 + $0x248] sm:$0xff]
    %v3026 = vld [vmem:[#allocation2 + $0x258] sm:$0xff]
    %v3027 = vld [vmem:[#allocation2 + $0x260] sm:$0xff]
    %v3028 = vld [vmem:[#allocation2 + $0x270] sm:$0xff]
    %v3029 = vld [vmem:[#allocation2 + $0x278] sm:$0xff]
    %v3030 = vld [vmem:[#allocation2 + $0x288] sm:$0xff]
    %v3031 = vld [vmem:[#allocation2 + $0x290] sm:$0xff]
    %v3032 = vld [vmem:[#allocation2 + $0x2a0] sm:$0xff]
    %v3033 = vld [vmem:[#allocation2 + $0x2a8] sm:$0xff]
    %v3034 = vld [vmem:[#allocation2 + $0x2b8] sm:$0xff]
    %v3035 = vld [vmem:[#allocation2 + $0x2c0] sm:$0xff]
    %v3036 = vld [vmem:[#allocation2 + $0x2d0] sm:$0xff]
    %v3037 = vld [vmem:[#allocation2 + $0x2d8] sm:$0xff]
    %v3038 = vld [vmem:[#allocation2 + $0x2e8] sm:$0xff]
    %v3039 = vld [vmem:[#allocation2 + $0x2f0] sm:$0xff]
    %v3040 = vld [vmem:[#allocation2 + $0x300] sm:$0xff]
    %v3041 = vld [vmem:[#allocation2 + $0x308] sm:$0xff]
    %v3042 = vld [vmem:[#allocation2 + $0x318] sm:$0xff]
    %v3043 = vld [vmem:[#allocation2 + $0x320] sm:$0xff]
    %v3044 = vpack.c.bf16 %v2980, %v2980
    %v3045 = vpack.c.bf16 %v2981, %v2981
    %v3046 = vpack.c.bf16 %v2982, %v2982
    %v3047 = vpack.c.bf16 %v2983, %v2983
    %v3048 = vpack.c.bf16 %v2984, %v2984
    %v3049 = vpack.c.bf16 %v2985, %v2985
    %v3050 = vpack.c.bf16 %v2986, %v2986
    %v3051 = vpack.c.bf16 %v2987, %v2987
    %v3052 = vpack.c.bf16 %v2988, %v2988
    %v3053 = vpack.c.bf16 %v2989, %v2989
    %v3054 = vpack.c.bf16 %v2990, %v2990
    %v3055 = vpack.c.bf16 %v2991, %v2991
    %v3056 = vpack.c.bf16 %v2992, %v2992
    %v3057 = vpack.c.bf16 %v2993, %v2993
    %v3058 = vpack.c.bf16 %v2994, %v2994
    %v3059 = vpack.c.bf16 %v2995, %v2995
    %v3060 = vpack.c.bf16 %v2996, %v2996
    %v3061 = vpack.c.bf16 %v2997, %v2997
    %v3062 = vpack.c.bf16 %v2998, %v2998
    %v3063 = vpack.c.bf16 %v2999, %v2999
    %v3064 = vpack.c.bf16 %v3000, %v3000
    %v3065 = vpack.c.bf16 %v3001, %v3001
    %v3066 = vpack.c.bf16 %v3002, %v3002
    %v3067 = vpack.c.bf16 %v3003, %v3003
    %v3068 = vpack.c.bf16 %v3004, %v3004
    %v3069 = vpack.c.bf16 %v3005, %v3005
    %v3070 = vpack.c.bf16 %v3006, %v3006
    %v3071 = vpack.c.bf16 %v3007, %v3007
    %v3072 = vpack.c.bf16 %v3008, %v3008
    %v3073 = vpack.c.bf16 %v3009, %v3009
    %v3074 = vpack.c.bf16 %v3010, %v3010
    %v3075 = vpack.c.bf16 %v3011, %v3011
    %v3076 = vpack.c.bf16 %v3012, %v3012
    %v3077 = vpack.c.bf16 %v3013, %v3013
    %v3078 = vpack.c.bf16 %v3014, %v3014
    %v3079 = vpack.c.bf16 %v3015, %v3015
    %v3080 = vpack.c.bf16 %v3016, %v3016
    %v3081 = vpack.c.bf16 %v3017, %v3017
    %v3082 = vpack.c.bf16 %v3018, %v3018
    %v3083 = vpack.c.bf16 %v3019, %v3019
    %v3084 = vpack.c.bf16 %v3020, %v3020
    %v3085 = vpack.c.bf16 %v3021, %v3021
    %v3086 = vpack.c.bf16 %v3022, %v3022
    %v3087 = vpack.c.bf16 %v3023, %v3023
    %v3088 = vpack.c.bf16 %v3024, %v3024
    %v3089 = vpack.c.bf16 %v3025, %v3025
    %v3090 = vpack.c.bf16 %v3026, %v3026
    %v3091 = vpack.c.bf16 %v3027, %v3027
    %v3092 = vpack.c.bf16 %v3028, %v3028
    %v3093 = vpack.c.bf16 %v3029, %v3029
    %v3094 = vpack.c.bf16 %v3030, %v3030
    %v3095 = vpack.c.bf16 %v3031, %v3031
    %v3096 = vpack.c.bf16 %v3032, %v3032
    %v3097 = vpack.c.bf16 %v3033, %v3033
    %v3098 = vpack.c.bf16 %v3034, %v3034
    %v3099 = vpack.c.bf16 %v3035, %v3035
    %v3100 = vpack.c.bf16 %v3036, %v3036
    %v3101 = vpack.c.bf16 %v3037, %v3037
    %v3102 = vpack.c.bf16 %v3038, %v3038
    %v3103 = vpack.c.bf16 %v3039, %v3039
    %v3104 = vpack.c.bf16 %v3040, %v3040
    %v3105 = vpack.c.bf16 %v3041, %v3041
    %v3106 = vpack.c.bf16 %v3042, %v3042
    %v3107 = vpack.c.bf16 %v3043, %v3043
    %vm3108 = vcmask 257024
    %3109 = vst.msk [vmem:[#allocation3] sm:$0xf] %vm3108, %v3044
    %3110 = vst.msk [vmem:[#allocation3 + $0xc] sm:$0xf] %vm3108, %v3045
    %3111 = vst.msk [vmem:[#allocation3 + $0x18] sm:$0xf] %vm3108, %v3046
    %3112 = vst.msk [vmem:[#allocation3 + $0x24] sm:$0xf] %vm3108, %v3047
    %3113 = vst.msk [vmem:[#allocation3 + $0x30] sm:$0xf] %vm3108, %v3048
    %3114 = vst.msk [vmem:[#allocation3 + $0x3c] sm:$0xf] %vm3108, %v3049
    %3115 = vst.msk [vmem:[#allocation3 + $0x48] sm:$0xf] %vm3108, %v3050
    %3116 = vst.msk [vmem:[#allocation3 + $0x54] sm:$0xf] %vm3108, %v3051
    %3117 = vst.msk [vmem:[#allocation3 + $0x60] sm:$0xf] %vm3108, %v3052
    %3118 = vst.msk [vmem:[#allocation3 + $0x6c] sm:$0xf] %vm3108, %v3053
    %3119 = vst.msk [vmem:[#allocation3 + $0x78] sm:$0xf] %vm3108, %v3054
    %3120 = vst.msk [vmem:[#allocation3 + $0x84] sm:$0xf] %vm3108, %v3055
    %3121 = vst.msk [vmem:[#allocation3 + $0x90] sm:$0xf] %vm3108, %v3056
    %3122 = vst.msk [vmem:[#allocation3 + $0x9c] sm:$0xf] %vm3108, %v3057
    %3123 = vst.msk [vmem:[#allocation3 + $0xa8] sm:$0xf] %vm3108, %v3058
    %3124 = vst.msk [vmem:[#allocation3 + $0xb4] sm:$0xf] %vm3108, %v3059
    %3125 = vst.msk [vmem:[#allocation3 + $0xc0] sm:$0xf] %vm3108, %v3060
    %3126 = vst.msk [vmem:[#allocation3 + $0xcc] sm:$0xf] %vm3108, %v3061
    %3127 = vst.msk [vmem:[#allocation3 + $0xd8] sm:$0xf] %vm3108, %v3062
    %3128 = vst.msk [vmem:[#allocation3 + $0xe4] sm:$0xf] %vm3108, %v3063
    %3129 = vst.msk [vmem:[#allocation3 + $0xf0] sm:$0xf] %vm3108, %v3064
    %3130 = vst.msk [vmem:[#allocation3 + $0xfc] sm:$0xf] %vm3108, %v3065
    %3131 = vst.msk [vmem:[#allocation3 + $0x108] sm:$0xf] %vm3108, %v3066
    %3132 = vst.msk [vmem:[#allocation3 + $0x114] sm:$0xf] %vm3108, %v3067
    %3133 = vst.msk [vmem:[#allocation3 + $0x120] sm:$0xf] %vm3108, %v3068
    %3134 = vst.msk [vmem:[#allocation3 + $0x12c] sm:$0xf] %vm3108, %v3069
    %3135 = vst.msk [vmem:[#allocation3 + $0x138] sm:$0xf] %vm3108, %v3070
    %3136 = vst.msk [vmem:[#allocation3 + $0x144] sm:$0xf] %vm3108, %v3071
    %3137 = vst.msk [vmem:[#allocation3 + $0x150] sm:$0xf] %vm3108, %v3072
    %3138 = vst.msk [vmem:[#allocation3 + $0x15c] sm:$0xf] %vm3108, %v3073
    %3139 = vst.msk [vmem:[#allocation3 + $0x168] sm:$0xf] %vm3108, %v3074
    %3140 = vst.msk [vmem:[#allocation3 + $0x174] sm:$0xf] %vm3108, %v3075
    %3141 = vst.msk [vmem:[#allocation3 + $0x180] sm:$0xf] %vm3108, %v3076
    %3142 = vst.msk [vmem:[#allocation3 + $0x18c] sm:$0xf] %vm3108, %v3077
    %3143 = vst.msk [vmem:[#allocation3 + $0x198] sm:$0xf] %vm3108, %v3078
    %3144 = vst.msk [vmem:[#allocation3 + $0x1a4] sm:$0xf] %vm3108, %v3079
    %3145 = vst.msk [vmem:[#allocation3 + $0x1b0] sm:$0xf] %vm3108, %v3080
    %3146 = vst.msk [vmem:[#allocation3 + $0x1bc] sm:$0xf] %vm3108, %v3081
    %3147 = vst.msk [vmem:[#allocation3 + $0x1c8] sm:$0xf] %vm3108, %v3082
    %3148 = vst.msk [vmem:[#allocation3 + $0x1d4] sm:$0xf] %vm3108, %v3083
    %3149 = vst.msk [vmem:[#allocation3 + $0x1e0] sm:$0xf] %vm3108, %v3084
    %3150 = vst.msk [vmem:[#allocation3 + $0x1ec] sm:$0xf] %vm3108, %v3085
    %3151 = vst.msk [vmem:[#allocation3 + $0x1f8] sm:$0xf] %vm3108, %v3086
    %3152 = vst.msk [vmem:[#allocation3 + $0x204] sm:$0xf] %vm3108, %v3087
    %3153 = vst.msk [vmem:[#allocation3 + $0x210] sm:$0xf] %vm3108, %v3088
    %3154 = vst.msk [vmem:[#allocation3 + $0x21c] sm:$0xf] %vm3108, %v3089
    %3155 = vst.msk [vmem:[#allocation3 + $0x228] sm:$0xf] %vm3108, %v3090
    %3156 = vst.msk [vmem:[#allocation3 + $0x234] sm:$0xf] %vm3108, %v3091
    %3157 = vst.msk [vmem:[#allocation3 + $0x240] sm:$0xf] %vm3108, %v3092
    %3158 = vst.msk [vmem:[#allocation3 + $0x24c] sm:$0xf] %vm3108, %v3093
    %3159 = vst.msk [vmem:[#allocation3 + $0x258] sm:$0xf] %vm3108, %v3094
    %3160 = vst.msk [vmem:[#allocation3 + $0x264] sm:$0xf] %vm3108, %v3095
    %3161 = vst.msk [vmem:[#allocation3 + $0x270] sm:$0xf] %vm3108, %v3096
    %3162 = vst.msk [vmem:[#allocation3 + $0x27c] sm:$0xf] %vm3108, %v3097
    %3163 = vst.msk [vmem:[#allocation3 + $0x288] sm:$0xf] %vm3108, %v3098
    %3164 = vst.msk [vmem:[#allocation3 + $0x294] sm:$0xf] %vm3108, %v3099
    %3165 = vst.msk [vmem:[#allocation3 + $0x2a0] sm:$0xf] %vm3108, %v3100
    %3166 = vst.msk [vmem:[#allocation3 + $0x2ac] sm:$0xf] %vm3108, %v3101
    %3167 = vst.msk [vmem:[#allocation3 + $0x2b8] sm:$0xf] %vm3108, %v3102
    %3168 = vst.msk [vmem:[#allocation3 + $0x2c4] sm:$0xf] %vm3108, %v3103
    %3169 = vst.msk [vmem:[#allocation3 + $0x2d0] sm:$0xf] %vm3108, %v3104
    %3170 = vst.msk [vmem:[#allocation3 + $0x2dc] sm:$0xf] %vm3108, %v3105
    %3171 = vst.msk [vmem:[#allocation3 + $0x2e8] sm:$0xf] %vm3108, %v3106
    %3172 = vst.msk [vmem:[#allocation3 + $0x2f4] sm:$0xf] %vm3108, %v3107
    %v3173 = vld [vmem:[#allocation2 + $0x1] sm:$0xff]
    %v3174 = vld [vmem:[#allocation2 + $0x9] sm:$0xff]
    %v3175 = vld [vmem:[#allocation2 + $0x19] sm:$0xff]
    %v3176 = vld [vmem:[#allocation2 + $0x21] sm:$0xff]
    %v3177 = vld [vmem:[#allocation2 + $0x31] sm:$0xff]
    %v3178 = vld [vmem:[#allocation2 + $0x39] sm:$0xff]
    %v3179 = vld [vmem:[#allocation2 + $0x49] sm:$0xff]
    %v3180 = vld [vmem:[#allocation2 + $0x51] sm:$0xff]
    %v3181 = vld [vmem:[#allocation2 + $0x61] sm:$0xff]
    %v3182 = vld [vmem:[#allocation2 + $0x69] sm:$0xff]
    %v3183 = vld [vmem:[#allocation2 + $0x79] sm:$0xff]
    %v3184 = vld [vmem:[#allocation2 + $0x81] sm:$0xff]
    %v3185 = vld [vmem:[#allocation2 + $0x91] sm:$0xff]
    %v3186 = vld [vmem:[#allocation2 + $0x99] sm:$0xff]
    %v3187 = vld [vmem:[#allocation2 + $0xa9] sm:$0xff]
    %v3188 = vld [vmem:[#allocation2 + $0xb1] sm:$0xff]
    %v3189 = vld [vmem:[#allocation2 + $0xc1] sm:$0xff]
    %v3190 = vld [vmem:[#allocation2 + $0xc9] sm:$0xff]
    %v3191 = vld [vmem:[#allocation2 + $0xd9] sm:$0xff]
    %v3192 = vld [vmem:[#allocation2 + $0xe1] sm:$0xff]
    %v3193 = vld [vmem:[#allocation2 + $0xf1] sm:$0xff]
    %v3194 = vld [vmem:[#allocation2 + $0xf9] sm:$0xff]
    %v3195 = vld [vmem:[#allocation2 + $0x109] sm:$0xff]
    %v3196 = vld [vmem:[#allocation2 + $0x111] sm:$0xff]
    %v3197 = vld [vmem:[#allocation2 + $0x121] sm:$0xff]
    %v3198 = vld [vmem:[#allocation2 + $0x129] sm:$0xff]
    %v3199 = vld [vmem:[#allocation2 + $0x139] sm:$0xff]
    %v3200 = vld [vmem:[#allocation2 + $0x141] sm:$0xff]
    %v3201 = vld [vmem:[#allocation2 + $0x151] sm:$0xff]
    %v3202 = vld [vmem:[#allocation2 + $0x159] sm:$0xff]
    %v3203 = vld [vmem:[#allocation2 + $0x169] sm:$0xff]
    %v3204 = vld [vmem:[#allocation2 + $0x171] sm:$0xff]
    %v3205 = vld [vmem:[#allocation2 + $0x1b1] sm:$0xff]
    %v3206 = vld [vmem:[#allocation2 + $0x1b9] sm:$0xff]
    %v3207 = vld [vmem:[#allocation2 + $0x1c9] sm:$0xff]
    %v3208 = vld [vmem:[#allocation2 + $0x1d1] sm:$0xff]
    %v3209 = vld [vmem:[#allocation2 + $0x1e1] sm:$0xff]
    %v3210 = vld [vmem:[#allocation2 + $0x1e9] sm:$0xff]
    %v3211 = vld [vmem:[#allocation2 + $0x1f9] sm:$0xff]
    %v3212 = vld [vmem:[#allocation2 + $0x201] sm:$0xff]
    %v3213 = vld [vmem:[#allocation2 + $0x211] sm:$0xff]
    %v3214 = vld [vmem:[#allocation2 + $0x219] sm:$0xff]
    %v3215 = vld [vmem:[#allocation2 + $0x229] sm:$0xff]
    %v3216 = vld [vmem:[#allocation2 + $0x231] sm:$0xff]
    %v3217 = vld [vmem:[#allocation2 + $0x241] sm:$0xff]
    %v3218 = vld [vmem:[#allocation2 + $0x249] sm:$0xff]
    %v3219 = vld [vmem:[#allocation2 + $0x259] sm:$0xff]
    %v3220 = vld [vmem:[#allocation2 + $0x261] sm:$0xff]
    %v3221 = vld [vmem:[#allocation2 + $0x271] sm:$0xff]
    %v3222 = vld [vmem:[#allocation2 + $0x279] sm:$0xff]
    %v3223 = vld [vmem:[#allocation2 + $0x289] sm:$0xff]
    %v3224 = vld [vmem:[#allocation2 + $0x291] sm:$0xff]
    %v3225 = vld [vmem:[#allocation2 + $0x2a1] sm:$0xff]
    %v3226 = vld [vmem:[#allocation2 + $0x2a9] sm:$0xff]
    %v3227 = vld [vmem:[#allocation2 + $0x2b9] sm:$0xff]
    %v3228 = vld [vmem:[#allocation2 + $0x2c1] sm:$0xff]
    %v3229 = vld [vmem:[#allocation2 + $0x2d1] sm:$0xff]
    %v3230 = vld [vmem:[#allocation2 + $0x2d9] sm:$0xff]
    %v3231 = vld [vmem:[#allocation2 + $0x2e9] sm:$0xff]
    %v3232 = vld [vmem:[#allocation2 + $0x2f1] sm:$0xff]
    %v3233 = vld [vmem:[#allocation2 + $0x301] sm:$0xff]
    %v3234 = vld [vmem:[#allocation2 + $0x309] sm:$0xff]
    %v3235 = vld [vmem:[#allocation2 + $0x319] sm:$0xff]
    %v3236 = vld [vmem:[#allocation2 + $0x321] sm:$0xff]
    %v3237 = vpack.c.bf16 %v3173, %v3173
    %v3238 = vpack.c.bf16 %v3174, %v3174
    %v3239 = vpack.c.bf16 %v3175, %v3175
    %v3240 = vpack.c.bf16 %v3176, %v3176
    %v3241 = vpack.c.bf16 %v3177, %v3177
    %v3242 = vpack.c.bf16 %v3178, %v3178
    %v3243 = vpack.c.bf16 %v3179, %v3179
    %v3244 = vpack.c.bf16 %v3180, %v3180
    %v3245 = vpack.c.bf16 %v3181, %v3181
    %v3246 = vpack.c.bf16 %v3182, %v3182
    %v3247 = vpack.c.bf16 %v3183, %v3183
    %v3248 = vpack.c.bf16 %v3184, %v3184
    %v3249 = vpack.c.bf16 %v3185, %v3185
    %v3250 = vpack.c.bf16 %v3186, %v3186
    %v3251 = vpack.c.bf16 %v3187, %v3187
    %v3252 = vpack.c.bf16 %v3188, %v3188
    %v3253 = vpack.c.bf16 %v3189, %v3189
    %v3254 = vpack.c.bf16 %v3190, %v3190
    %v3255 = vpack.c.bf16 %v3191, %v3191
    %v3256 = vpack.c.bf16 %v3192, %v3192
    %v3257 = vpack.c.bf16 %v3193, %v3193
    %v3258 = vpack.c.bf16 %v3194, %v3194
    %v3259 = vpack.c.bf16 %v3195, %v3195
    %v3260 = vpack.c.bf16 %v3196, %v3196
    %v3261 = vpack.c.bf16 %v3197, %v3197
    %v3262 = vpack.c.bf16 %v3198, %v3198
    %v3263 = vpack.c.bf16 %v3199, %v3199
    %v3264 = vpack.c.bf16 %v3200, %v3200
    %v3265 = vpack.c.bf16 %v3201, %v3201
    %v3266 = vpack.c.bf16 %v3202, %v3202
    %v3267 = vpack.c.bf16 %v3203, %v3203
    %v3268 = vpack.c.bf16 %v3204, %v3204
    %v3269 = vpack.c.bf16 %v3205, %v3205
    %v3270 = vpack.c.bf16 %v3206, %v3206
    %v3271 = vpack.c.bf16 %v3207, %v3207
    %v3272 = vpack.c.bf16 %v3208, %v3208
    %v3273 = vpack.c.bf16 %v3209, %v3209
    %v3274 = vpack.c.bf16 %v3210, %v3210
    %v3275 = vpack.c.bf16 %v3211, %v3211
    %v3276 = vpack.c.bf16 %v3212, %v3212
    %v3277 = vpack.c.bf16 %v3213, %v3213
    %v3278 = vpack.c.bf16 %v3214, %v3214
    %v3279 = vpack.c.bf16 %v3215, %v3215
    %v3280 = vpack.c.bf16 %v3216, %v3216
    %v3281 = vpack.c.bf16 %v3217, %v3217
    %v3282 = vpack.c.bf16 %v3218, %v3218
    %v3283 = vpack.c.bf16 %v3219, %v3219
    %v3284 = vpack.c.bf16 %v3220, %v3220
    %v3285 = vpack.c.bf16 %v3221, %v3221
    %v3286 = vpack.c.bf16 %v3222, %v3222
    %v3287 = vpack.c.bf16 %v3223, %v3223
    %v3288 = vpack.c.bf16 %v3224, %v3224
    %v3289 = vpack.c.bf16 %v3225, %v3225
    %v3290 = vpack.c.bf16 %v3226, %v3226
    %v3291 = vpack.c.bf16 %v3227, %v3227
    %v3292 = vpack.c.bf16 %v3228, %v3228
    %v3293 = vpack.c.bf16 %v3229, %v3229
    %v3294 = vpack.c.bf16 %v3230, %v3230
    %v3295 = vpack.c.bf16 %v3231, %v3231
    %v3296 = vpack.c.bf16 %v3232, %v3232
    %v3297 = vpack.c.bf16 %v3233, %v3233
    %v3298 = vpack.c.bf16 %v3234, %v3234
    %v3299 = vpack.c.bf16 %v3235, %v3235
    %v3300 = vpack.c.bf16 %v3236, %v3236
    %3365 = vrot.lane.b32.xlu0 %v3237, 32
    %v3366 = vpop.permute.xlu0 %3365
    %3367 = vrot.lane.b32.xlu0 %v3238, 32
    %v3368 = vpop.permute.xlu0 %3367
    %3369 = vrot.lane.b32.xlu0 %v3239, 32
    %v3370 = vpop.permute.xlu0 %3369
    %3371 = vrot.lane.b32.xlu0 %v3240, 32
    %v3372 = vpop.permute.xlu0 %3371
    %3373 = vrot.lane.b32.xlu0 %v3241, 32
    %v3374 = vpop.permute.xlu0 %3373
    %3375 = vrot.lane.b32.xlu0 %v3242, 32
    %v3376 = vpop.permute.xlu0 %3375
    %3377 = vrot.lane.b32.xlu0 %v3243, 32
    %v3378 = vpop.permute.xlu0 %3377
    %3379 = vrot.lane.b32.xlu0 %v3244, 32
    %v3380 = vpop.permute.xlu0 %3379
    %3381 = vrot.lane.b32.xlu0 %v3245, 32
    %v3382 = vpop.permute.xlu0 %3381
    %3383 = vrot.lane.b32.xlu0 %v3246, 32
    %v3384 = vpop.permute.xlu0 %3383
    %3385 = vrot.lane.b32.xlu0 %v3247, 32
    %v3386 = vpop.permute.xlu0 %3385
    %3387 = vrot.lane.b32.xlu0 %v3248, 32
    %v3388 = vpop.permute.xlu0 %3387
    %3389 = vrot.lane.b32.xlu0 %v3249, 32
    %v3390 = vpop.permute.xlu0 %3389
    %3391 = vrot.lane.b32.xlu0 %v3250, 32
    %v3392 = vpop.permute.xlu0 %3391
    %3393 = vrot.lane.b32.xlu0 %v3251, 32
    %v3394 = vpop.permute.xlu0 %3393
    %3395 = vrot.lane.b32.xlu0 %v3252, 32
    %v3396 = vpop.permute.xlu0 %3395
    %3397 = vrot.lane.b32.xlu0 %v3253, 32
    %v3398 = vpop.permute.xlu0 %3397
    %3399 = vrot.lane.b32.xlu0 %v3254, 32
    %v3400 = vpop.permute.xlu0 %3399
    %3401 = vrot.lane.b32.xlu0 %v3255, 32
    %v3402 = vpop.permute.xlu0 %3401
    %3403 = vrot.lane.b32.xlu0 %v3256, 32
    %v3404 = vpop.permute.xlu0 %3403
    %3405 = vrot.lane.b32.xlu0 %v3257, 32
    %v3406 = vpop.permute.xlu0 %3405
    %3407 = vrot.lane.b32.xlu0 %v3258, 32
    %v3408 = vpop.permute.xlu0 %3407
    %3409 = vrot.lane.b32.xlu0 %v3259, 32
    %v3410 = vpop.permute.xlu0 %3409
    %3411 = vrot.lane.b32.xlu0 %v3260, 32
    %v3412 = vpop.permute.xlu0 %3411
    %3413 = vrot.lane.b32.xlu0 %v3261, 32
    %v3414 = vpop.permute.xlu0 %3413
    %3415 = vrot.lane.b32.xlu0 %v3262, 32
    %v3416 = vpop.permute.xlu0 %3415
    %3417 = vrot.lane.b32.xlu0 %v3263, 32
    %v3418 = vpop.permute.xlu0 %3417
    %3419 = vrot.lane.b32.xlu0 %v3264, 32
    %v3420 = vpop.permute.xlu0 %3419
    %3421 = vrot.lane.b32.xlu0 %v3265, 32
    %v3422 = vpop.permute.xlu0 %3421
    %3423 = vrot.lane.b32.xlu0 %v3266, 32
    %v3424 = vpop.permute.xlu0 %3423
    %3425 = vrot.lane.b32.xlu0 %v3267, 32
    %v3426 = vpop.permute.xlu0 %3425
    %3427 = vrot.lane.b32.xlu0 %v3268, 32
    %v3428 = vpop.permute.xlu0 %3427
    %3429 = vrot.lane.b32.xlu0 %v3269, 32
    %v3430 = vpop.permute.xlu0 %3429
    %3431 = vrot.lane.b32.xlu0 %v3270, 32
    %v3432 = vpop.permute.xlu0 %3431
    %3433 = vrot.lane.b32.xlu0 %v3271, 32
    %v3434 = vpop.permute.xlu0 %3433
    %3435 = vrot.lane.b32.xlu0 %v3272, 32
    %v3436 = vpop.permute.xlu0 %3435
    %3437 = vrot.lane.b32.xlu0 %v3273, 32
    %v3438 = vpop.permute.xlu0 %3437
    %3439 = vrot.lane.b32.xlu0 %v3274, 32
    %v3440 = vpop.permute.xlu0 %3439
    %3441 = vrot.lane.b32.xlu0 %v3275, 32
    %v3442 = vpop.permute.xlu0 %3441
    %3443 = vrot.lane.b32.xlu0 %v3276, 32
    %v3444 = vpop.permute.xlu0 %3443
    %3445 = vrot.lane.b32.xlu0 %v3277, 32
    %v3446 = vpop.permute.xlu0 %3445
    %3447 = vrot.lane.b32.xlu0 %v3278, 32
    %v3448 = vpop.permute.xlu0 %3447
    %3449 = vrot.lane.b32.xlu0 %v3279, 32
    %v3450 = vpop.permute.xlu0 %3449
    %3451 = vrot.lane.b32.xlu0 %v3280, 32
    %v3452 = vpop.permute.xlu0 %3451
    %3453 = vrot.lane.b32.xlu0 %v3281, 32
    %v3454 = vpop.permute.xlu0 %3453
    %3455 = vrot.lane.b32.xlu0 %v3282, 32
    %v3456 = vpop.permute.xlu0 %3455
    %3457 = vrot.lane.b32.xlu0 %v3283, 32
    %v3458 = vpop.permute.xlu0 %3457
    %3459 = vrot.lane.b32.xlu0 %v3284, 32
    %v3460 = vpop.permute.xlu0 %3459
    %3461 = vrot.lane.b32.xlu0 %v3285, 32
    %v3462 = vpop.permute.xlu0 %3461
    %3463 = vrot.lane.b32.xlu0 %v3286, 32
    %v3464 = vpop.permute.xlu0 %3463
    %3465 = vrot.lane.b32.xlu0 %v3287, 32
    %v3466 = vpop.permute.xlu0 %3465
    %3467 = vrot.lane.b32.xlu0 %v3288, 32
    %v3468 = vpop.permute.xlu0 %3467
    %3469 = vrot.lane.b32.xlu0 %v3289, 32
    %v3470 = vpop.permute.xlu0 %3469
    %3471 = vrot.lane.b32.xlu0 %v3290, 32
    %v3472 = vpop.permute.xlu0 %3471
    %3473 = vrot.lane.b32.xlu0 %v3291, 32
    %v3474 = vpop.permute.xlu0 %3473
    %3475 = vrot.lane.b32.xlu0 %v3292, 32
    %v3476 = vpop.permute.xlu0 %3475
    %3477 = vrot.lane.b32.xlu0 %v3293, 32
    %v3478 = vpop.permute.xlu0 %3477
    %3479 = vrot.lane.b32.xlu0 %v3294, 32
    %v3480 = vpop.permute.xlu0 %3479
    %3481 = vrot.lane.b32.xlu0 %v3295, 32
    %v3482 = vpop.permute.xlu0 %3481
    %3483 = vrot.lane.b32.xlu0 %v3296, 32
    %v3484 = vpop.permute.xlu0 %3483
    %3485 = vrot.lane.b32.xlu0 %v3297, 32
    %v3486 = vpop.permute.xlu0 %3485
    %3487 = vrot.lane.b32.xlu0 %v3298, 32
    %v3488 = vpop.permute.xlu0 %3487
    %3489 = vrot.lane.b32.xlu0 %v3299, 32
    %v3490 = vpop.permute.xlu0 %3489
    %3491 = vrot.lane.b32.xlu0 %v3300, 32
    %v3492 = vpop.permute.xlu0 %3491
    %vm3557 = vcmask 519424
    %3558 = vst.msk [vmem:[#allocation3] sm:$0xf] %vm3557, %v3366
    %3559 = vst.msk [vmem:[#allocation3 + $0xc] sm:$0xf] %vm3557, %v3368
    %3560 = vst.msk [vmem:[#allocation3 + $0x18] sm:$0xf] %vm3557, %v3370
    %3561 = vst.msk [vmem:[#allocation3 + $0x24] sm:$0xf] %vm3557, %v3372
    %3562 = vst.msk [vmem:[#allocation3 + $0x30] sm:$0xf] %vm3557, %v3374
    %3563 = vst.msk [vmem:[#allocation3 + $0x3c] sm:$0xf] %vm3557, %v3376
    %3564 = vst.msk [vmem:[#allocation3 + $0x48] sm:$0xf] %vm3557, %v3378
    %3565 = vst.msk [vmem:[#allocation3 + $0x54] sm:$0xf] %vm3557, %v3380
    %3566 = vst.msk [vmem:[#allocation3 + $0x60] sm:$0xf] %vm3557, %v3382
    %3567 = vst.msk [vmem:[#allocation3 + $0x6c] sm:$0xf] %vm3557, %v3384
    %3568 = vst.msk [vmem:[#allocation3 + $0x78] sm:$0xf] %vm3557, %v3386
    %3569 = vst.msk [vmem:[#allocation3 + $0x84] sm:$0xf] %vm3557, %v3388
    %3570 = vst.msk [vmem:[#allocation3 + $0x90] sm:$0xf] %vm3557, %v3390
    %3571 = vst.msk [vmem:[#allocation3 + $0x9c] sm:$0xf] %vm3557, %v3392
    %3572 = vst.msk [vmem:[#allocation3 + $0xa8] sm:$0xf] %vm3557, %v3394
    %3573 = vst.msk [vmem:[#allocation3 + $0xb4] sm:$0xf] %vm3557, %v3396
    %3574 = vst.msk [vmem:[#allocation3 + $0xc0] sm:$0xf] %vm3557, %v3398
    %3575 = vst.msk [vmem:[#allocation3 + $0xcc] sm:$0xf] %vm3557, %v3400
    %3576 = vst.msk [vmem:[#allocation3 + $0xd8] sm:$0xf] %vm3557, %v3402
    %3577 = vst.msk [vmem:[#allocation3 + $0xe4] sm:$0xf] %vm3557, %v3404
    %3578 = vst.msk [vmem:[#allocation3 + $0xf0] sm:$0xf] %vm3557, %v3406
    %3579 = vst.msk [vmem:[#allocation3 + $0xfc] sm:$0xf] %vm3557, %v3408
    %3580 = vst.msk [vmem:[#allocation3 + $0x108] sm:$0xf] %vm3557, %v3410
    %3581 = vst.msk [vmem:[#allocation3 + $0x114] sm:$0xf] %vm3557, %v3412
    %3582 = vst.msk [vmem:[#allocation3 + $0x120] sm:$0xf] %vm3557, %v3414
    %3583 = vst.msk [vmem:[#allocation3 + $0x12c] sm:$0xf] %vm3557, %v3416
    %3584 = vst.msk [vmem:[#allocation3 + $0x138] sm:$0xf] %vm3557, %v3418
    %3585 = vst.msk [vmem:[#allocation3 + $0x144] sm:$0xf] %vm3557, %v3420
    %3586 = vst.msk [vmem:[#allocation3 + $0x150] sm:$0xf] %vm3557, %v3422
    %3587 = vst.msk [vmem:[#allocation3 + $0x15c] sm:$0xf] %vm3557, %v3424
    %3588 = vst.msk [vmem:[#allocation3 + $0x168] sm:$0xf] %vm3557, %v3426
    %3589 = vst.msk [vmem:[#allocation3 + $0x174] sm:$0xf] %vm3557, %v3428
    %3590 = vst.msk [vmem:[#allocation3 + $0x180] sm:$0xf] %vm3557, %v3430
    %3591 = vst.msk [vmem:[#allocation3 + $0x18c] sm:$0xf] %vm3557, %v3432
    %3592 = vst.msk [vmem:[#allocation3 + $0x198] sm:$0xf] %vm3557, %v3434
    %3593 = vst.msk [vmem:[#allocation3 + $0x1a4] sm:$0xf] %vm3557, %v3436
    %3594 = vst.msk [vmem:[#allocation3 + $0x1b0] sm:$0xf] %vm3557, %v3438
    %3595 = vst.msk [vmem:[#allocation3 + $0x1bc] sm:$0xf] %vm3557, %v3440
    %3596 = vst.msk [vmem:[#allocation3 + $0x1c8] sm:$0xf] %vm3557, %v3442
    %3597 = vst.msk [vmem:[#allocation3 + $0x1d4] sm:$0xf] %vm3557, %v3444
    %3598 = vst.msk [vmem:[#allocation3 + $0x1e0] sm:$0xf] %vm3557, %v3446
    %3599 = vst.msk [vmem:[#allocation3 + $0x1ec] sm:$0xf] %vm3557, %v3448
    %3600 = vst.msk [vmem:[#allocation3 + $0x1f8] sm:$0xf] %vm3557, %v3450
    %3601 = vst.msk [vmem:[#allocation3 + $0x204] sm:$0xf] %vm3557, %v3452
    %3602 = vst.msk [vmem:[#allocation3 + $0x210] sm:$0xf] %vm3557, %v3454
    %3603 = vst.msk [vmem:[#allocation3 + $0x21c] sm:$0xf] %vm3557, %v3456
    %3604 = vst.msk [vmem:[#allocation3 + $0x228] sm:$0xf] %vm3557, %v3458
    %3605 = vst.msk [vmem:[#allocation3 + $0x234] sm:$0xf] %vm3557, %v3460
    %3606 = vst.msk [vmem:[#allocation3 + $0x240] sm:$0xf] %vm3557, %v3462
    %3607 = vst.msk [vmem:[#allocation3 + $0x24c] sm:$0xf] %vm3557, %v3464
    %3608 = vst.msk [vmem:[#allocation3 + $0x258] sm:$0xf] %vm3557, %v3466
    %3609 = vst.msk [vmem:[#allocation3 + $0x264] sm:$0xf] %vm3557, %v3468
    %3610 = vst.msk [vmem:[#allocation3 + $0x270] sm:$0xf] %vm3557, %v3470
    %3611 = vst.msk [vmem:[#allocation3 + $0x27c] sm:$0xf] %vm3557, %v3472
    %3612 = vst.msk [vmem:[#allocation3 + $0x288] sm:$0xf] %vm3557, %v3474
    %3613 = vst.msk [vmem:[#allocation3 + $0x294] sm:$0xf] %vm3557, %v3476
    %3614 = vst.msk [vmem:[#allocation3 + $0x2a0] sm:$0xf] %vm3557, %v3478
    %3615 = vst.msk [vmem:[#allocation3 + $0x2ac] sm:$0xf] %vm3557, %v3480
    %3616 = vst.msk [vmem:[#allocation3 + $0x2b8] sm:$0xf] %vm3557, %v3482
    %3617 = vst.msk [vmem:[#allocation3 + $0x2c4] sm:$0xf] %vm3557, %v3484
    %3618 = vst.msk [vmem:[#allocation3 + $0x2d0] sm:$0xf] %vm3557, %v3486
    %3619 = vst.msk [vmem:[#allocation3 + $0x2dc] sm:$0xf] %vm3557, %v3488
    %3620 = vst.msk [vmem:[#allocation3 + $0x2e8] sm:$0xf] %vm3557, %v3490
    %3621 = vst.msk [vmem:[#allocation3 + $0x2f4] sm:$0xf] %vm3557, %v3492
    %v3622 = vld [vmem:[#allocation2 + $0x2] sm:$0xff]
    %v3623 = vld [vmem:[#allocation2 + $0xa] sm:$0xff]
    %v3624 = vld [vmem:[#allocation2 + $0x1a] sm:$0xff]
    %v3625 = vld [vmem:[#allocation2 + $0x22] sm:$0xff]
    %v3626 = vld [vmem:[#allocation2 + $0x32] sm:$0xff]
    %v3627 = vld [vmem:[#allocation2 + $0x3a] sm:$0xff]
    %v3628 = vld [vmem:[#allocation2 + $0x4a] sm:$0xff]
    %v3629 = vld [vmem:[#allocation2 + $0x52] sm:$0xff]
    %v3630 = vld [vmem:[#allocation2 + $0x62] sm:$0xff]
    %v3631 = vld [vmem:[#allocation2 + $0x6a] sm:$0xff]
    %v3632 = vld [vmem:[#allocation2 + $0x7a] sm:$0xff]
    %v3633 = vld [vmem:[#allocation2 + $0x82] sm:$0xff]
    %v3634 = vld [vmem:[#allocation2 + $0x92] sm:$0xff]
    %v3635 = vld [vmem:[#allocation2 + $0x9a] sm:$0xff]
    %v3636 = vld [vmem:[#allocation2 + $0xaa] sm:$0xff]
    %v3637 = vld [vmem:[#allocation2 + $0xb2] sm:$0xff]
    %v3638 = vld [vmem:[#allocation2 + $0xc2] sm:$0xff]
    %v3639 = vld [vmem:[#allocation2 + $0xca] sm:$0xff]
    %v3640 = vld [vmem:[#allocation2 + $0xda] sm:$0xff]
    %v3641 = vld [vmem:[#allocation2 + $0xe2] sm:$0xff]
    %v3642 = vld [vmem:[#allocation2 + $0xf2] sm:$0xff]
    %v3643 = vld [vmem:[#allocation2 + $0xfa] sm:$0xff]
    %v3644 = vld [vmem:[#allocation2 + $0x10a] sm:$0xff]
    %v3645 = vld [vmem:[#allocation2 + $0x112] sm:$0xff]
    %v3646 = vld [vmem:[#allocation2 + $0x122] sm:$0xff]
    %v3647 = vld [vmem:[#allocation2 + $0x12a] sm:$0xff]
    %v3648 = vld [vmem:[#allocation2 + $0x13a] sm:$0xff]
    %v3649 = vld [vmem:[#allocation2 + $0x142] sm:$0xff]
    %v3650 = vld [vmem:[#allocation2 + $0x152] sm:$0xff]
    %v3651 = vld [vmem:[#allocation2 + $0x15a] sm:$0xff]
    %v3652 = vld [vmem:[#allocation2 + $0x16a] sm:$0xff]
    %v3653 = vld [vmem:[#allocation2 + $0x172] sm:$0xff]
    %v3654 = vld [vmem:[#allocation2 + $0x1b2] sm:$0xff]
    %v3655 = vld [vmem:[#allocation2 + $0x1ba] sm:$0xff]
    %v3656 = vld [vmem:[#allocation2 + $0x1ca] sm:$0xff]
    %v3657 = vld [vmem:[#allocation2 + $0x1d2] sm:$0xff]
    %v3658 = vld [vmem:[#allocation2 + $0x1e2] sm:$0xff]
    %v3659 = vld [vmem:[#allocation2 + $0x1ea] sm:$0xff]
    %v3660 = vld [vmem:[#allocation2 + $0x1fa] sm:$0xff]
    %v3661 = vld [vmem:[#allocation2 + $0x202] sm:$0xff]
    %v3662 = vld [vmem:[#allocation2 + $0x212] sm:$0xff]
    %v3663 = vld [vmem:[#allocation2 + $0x21a] sm:$0xff]
    %v3664 = vld [vmem:[#allocation2 + $0x22a] sm:$0xff]
    %v3665 = vld [vmem:[#allocation2 + $0x232] sm:$0xff]
    %v3666 = vld [vmem:[#allocation2 + $0x242] sm:$0xff]
    %v3667 = vld [vmem:[#allocation2 + $0x24a] sm:$0xff]
    %v3668 = vld [vmem:[#allocation2 + $0x25a] sm:$0xff]
    %v3669 = vld [vmem:[#allocation2 + $0x262] sm:$0xff]
    %v3670 = vld [vmem:[#allocation2 + $0x272] sm:$0xff]
    %v3671 = vld [vmem:[#allocation2 + $0x27a] sm:$0xff]
    %v3672 = vld [vmem:[#allocation2 + $0x28a] sm:$0xff]
    %v3673 = vld [vmem:[#allocation2 + $0x292] sm:$0xff]
    %v3674 = vld [vmem:[#allocation2 + $0x2a2] sm:$0xff]
    %v3675 = vld [vmem:[#allocation2 + $0x2aa] sm:$0xff]
    %v3676 = vld [vmem:[#allocation2 + $0x2ba] sm:$0xff]
    %v3677 = vld [vmem:[#allocation2 + $0x2c2] sm:$0xff]
    %v3678 = vld [vmem:[#allocation2 + $0x2d2] sm:$0xff]
    %v3679 = vld [vmem:[#allocation2 + $0x2da] sm:$0xff]
    %v3680 = vld [vmem:[#allocation2 + $0x2ea] sm:$0xff]
    %v3681 = vld [vmem:[#allocation2 + $0x2f2] sm:$0xff]
    %v3682 = vld [vmem:[#allocation2 + $0x302] sm:$0xff]
    %v3683 = vld [vmem:[#allocation2 + $0x30a] sm:$0xff]
    %v3684 = vld [vmem:[#allocation2 + $0x31a] sm:$0xff]
    %v3685 = vld [vmem:[#allocation2 + $0x322] sm:$0xff]
    %v3686 = vpack.c.bf16 %v3622, %v3622
    %v3687 = vpack.c.bf16 %v3623, %v3623
    %v3688 = vpack.c.bf16 %v3624, %v3624
    %v3689 = vpack.c.bf16 %v3625, %v3625
    %v3690 = vpack.c.bf16 %v3626, %v3626
    %v3691 = vpack.c.bf16 %v3627, %v3627
    %v3692 = vpack.c.bf16 %v3628, %v3628
    %v3693 = vpack.c.bf16 %v3629, %v3629
    %v3694 = vpack.c.bf16 %v3630, %v3630
    %v3695 = vpack.c.bf16 %v3631, %v3631
    %v3696 = vpack.c.bf16 %v3632, %v3632
    %v3697 = vpack.c.bf16 %v3633, %v3633
    %v3698 = vpack.c.bf16 %v3634, %v3634
    %v3699 = vpack.c.bf16 %v3635, %v3635
    %v3700 = vpack.c.bf16 %v3636, %v3636
    %v3701 = vpack.c.bf16 %v3637, %v3637
    %v3702 = vpack.c.bf16 %v3638, %v3638
    %v3703 = vpack.c.bf16 %v3639, %v3639
    %v3704 = vpack.c.bf16 %v3640, %v3640
    %v3705 = vpack.c.bf16 %v3641, %v3641
    %v3706 = vpack.c.bf16 %v3642, %v3642
    %v3707 = vpack.c.bf16 %v3643, %v3643
    %v3708 = vpack.c.bf16 %v3644, %v3644
    %v3709 = vpack.c.bf16 %v3645, %v3645
    %v3710 = vpack.c.bf16 %v3646, %v3646
    %v3711 = vpack.c.bf16 %v3647, %v3647
    %v3712 = vpack.c.bf16 %v3648, %v3648
    %v3713 = vpack.c.bf16 %v3649, %v3649
    %v3714 = vpack.c.bf16 %v3650, %v3650
    %v3715 = vpack.c.bf16 %v3651, %v3651
    %v3716 = vpack.c.bf16 %v3652, %v3652
    %v3717 = vpack.c.bf16 %v3653, %v3653
    %v3718 = vpack.c.bf16 %v3654, %v3654
    %v3719 = vpack.c.bf16 %v3655, %v3655
    %v3720 = vpack.c.bf16 %v3656, %v3656
    %v3721 = vpack.c.bf16 %v3657, %v3657
    %v3722 = vpack.c.bf16 %v3658, %v3658
    %v3723 = vpack.c.bf16 %v3659, %v3659
    %v3724 = vpack.c.bf16 %v3660, %v3660
    %v3725 = vpack.c.bf16 %v3661, %v3661
    %v3726 = vpack.c.bf16 %v3662, %v3662
    %v3727 = vpack.c.bf16 %v3663, %v3663
    %v3728 = vpack.c.bf16 %v3664, %v3664
    %v3729 = vpack.c.bf16 %v3665, %v3665
    %v3730 = vpack.c.bf16 %v3666, %v3666
    %v3731 = vpack.c.bf16 %v3667, %v3667
    %v3732 = vpack.c.bf16 %v3668, %v3668
    %v3733 = vpack.c.bf16 %v3669, %v3669
    %v3734 = vpack.c.bf16 %v3670, %v3670
    %v3735 = vpack.c.bf16 %v3671, %v3671
    %v3736 = vpack.c.bf16 %v3672, %v3672
    %v3737 = vpack.c.bf16 %v3673, %v3673
    %v3738 = vpack.c.bf16 %v3674, %v3674
    %v3739 = vpack.c.bf16 %v3675, %v3675
    %v3740 = vpack.c.bf16 %v3676, %v3676
    %v3741 = vpack.c.bf16 %v3677, %v3677
    %v3742 = vpack.c.bf16 %v3678, %v3678
    %v3743 = vpack.c.bf16 %v3679, %v3679
    %v3744 = vpack.c.bf16 %v3680, %v3680
    %v3745 = vpack.c.bf16 %v3681, %v3681
    %v3746 = vpack.c.bf16 %v3682, %v3682
    %v3747 = vpack.c.bf16 %v3683, %v3683
    %v3748 = vpack.c.bf16 %v3684, %v3684
    %v3749 = vpack.c.bf16 %v3685, %v3685
    %3814 = vrot.lane.b32.xlu0 %v3686, 64
    %v3815 = vpop.permute.xlu0 %3814
    %3816 = vrot.lane.b32.xlu0 %v3687, 64
    %v3817 = vpop.permute.xlu0 %3816
    %3818 = vrot.lane.b32.xlu0 %v3688, 64
    %v3819 = vpop.permute.xlu0 %3818
    %3820 = vrot.lane.b32.xlu0 %v3689, 64
    %v3821 = vpop.permute.xlu0 %3820
    %3822 = vrot.lane.b32.xlu0 %v3690, 64
    %v3823 = vpop.permute.xlu0 %3822
    %3824 = vrot.lane.b32.xlu0 %v3691, 64
    %v3825 = vpop.permute.xlu0 %3824
    %3826 = vrot.lane.b32.xlu0 %v3692, 64
    %v3827 = vpop.permute.xlu0 %3826
    %3828 = vrot.lane.b32.xlu0 %v3693, 64
    %v3829 = vpop.permute.xlu0 %3828
    %3830 = vrot.lane.b32.xlu0 %v3694, 64
    %v3831 = vpop.permute.xlu0 %3830
    %3832 = vrot.lane.b32.xlu0 %v3695, 64
    %v3833 = vpop.permute.xlu0 %3832
    %3834 = vrot.lane.b32.xlu0 %v3696, 64
    %v3835 = vpop.permute.xlu0 %3834
    %3836 = vrot.lane.b32.xlu0 %v3697, 64
    %v3837 = vpop.permute.xlu0 %3836
    %3838 = vrot.lane.b32.xlu0 %v3698, 64
    %v3839 = vpop.permute.xlu0 %3838
    %3840 = vrot.lane.b32.xlu0 %v3699, 64
    %v3841 = vpop.permute.xlu0 %3840
    %3842 = vrot.lane.b32.xlu0 %v3700, 64
    %v3843 = vpop.permute.xlu0 %3842
    %3844 = vrot.lane.b32.xlu0 %v3701, 64
    %v3845 = vpop.permute.xlu0 %3844
    %3846 = vrot.lane.b32.xlu0 %v3702, 64
    %v3847 = vpop.permute.xlu0 %3846
    %3848 = vrot.lane.b32.xlu0 %v3703, 64
    %v3849 = vpop.permute.xlu0 %3848
    %3850 = vrot.lane.b32.xlu0 %v3704, 64
    %v3851 = vpop.permute.xlu0 %3850
    %3852 = vrot.lane.b32.xlu0 %v3705, 64
    %v3853 = vpop.permute.xlu0 %3852
    %3854 = vrot.lane.b32.xlu0 %v3706, 64
    %v3855 = vpop.permute.xlu0 %3854
    %3856 = vrot.lane.b32.xlu0 %v3707, 64
    %v3857 = vpop.permute.xlu0 %3856
    %3858 = vrot.lane.b32.xlu0 %v3708, 64
    %v3859 = vpop.permute.xlu0 %3858
    %3860 = vrot.lane.b32.xlu0 %v3709, 64
    %v3861 = vpop.permute.xlu0 %3860
    %3862 = vrot.lane.b32.xlu0 %v3710, 64
    %v3863 = vpop.permute.xlu0 %3862
    %3864 = vrot.lane.b32.xlu0 %v3711, 64
    %v3865 = vpop.permute.xlu0 %3864
    %3866 = vrot.lane.b32.xlu0 %v3712, 64
    %v3867 = vpop.permute.xlu0 %3866
    %3868 = vrot.lane.b32.xlu0 %v3713, 64
    %v3869 = vpop.permute.xlu0 %3868
    %3870 = vrot.lane.b32.xlu0 %v3714, 64
    %v3871 = vpop.permute.xlu0 %3870
    %3872 = vrot.lane.b32.xlu0 %v3715, 64
    %v3873 = vpop.permute.xlu0 %3872
    %3874 = vrot.lane.b32.xlu0 %v3716, 64
    %v3875 = vpop.permute.xlu0 %3874
    %3876 = vrot.lane.b32.xlu0 %v3717, 64
    %v3877 = vpop.permute.xlu0 %3876
    %3878 = vrot.lane.b32.xlu0 %v3718, 64
    %v3879 = vpop.permute.xlu0 %3878
    %3880 = vrot.lane.b32.xlu0 %v3719, 64
    %v3881 = vpop.permute.xlu0 %3880
    %3882 = vrot.lane.b32.xlu0 %v3720, 64
    %v3883 = vpop.permute.xlu0 %3882
    %3884 = vrot.lane.b32.xlu0 %v3721, 64
    %v3885 = vpop.permute.xlu0 %3884
    %3886 = vrot.lane.b32.xlu0 %v3722, 64
    %v3887 = vpop.permute.xlu0 %3886
    %3888 = vrot.lane.b32.xlu0 %v3723, 64
    %v3889 = vpop.permute.xlu0 %3888
    %3890 = vrot.lane.b32.xlu0 %v3724, 64
    %v3891 = vpop.permute.xlu0 %3890
    %3892 = vrot.lane.b32.xlu0 %v3725, 64
    %v3893 = vpop.permute.xlu0 %3892
    %3894 = vrot.lane.b32.xlu0 %v3726, 64
    %v3895 = vpop.permute.xlu0 %3894
    %3896 = vrot.lane.b32.xlu0 %v3727, 64
    %v3897 = vpop.permute.xlu0 %3896
    %3898 = vrot.lane.b32.xlu0 %v3728, 64
    %v3899 = vpop.permute.xlu0 %3898
    %3900 = vrot.lane.b32.xlu0 %v3729, 64
    %v3901 = vpop.permute.xlu0 %3900
    %3902 = vrot.lane.b32.xlu0 %v3730, 64
    %v3903 = vpop.permute.xlu0 %3902
    %3904 = vrot.lane.b32.xlu0 %v3731, 64
    %v3905 = vpop.permute.xlu0 %3904
    %3906 = vrot.lane.b32.xlu0 %v3732, 64
    %v3907 = vpop.permute.xlu0 %3906
    %3908 = vrot.lane.b32.xlu0 %v3733, 64
    %v3909 = vpop.permute.xlu0 %3908
    %3910 = vrot.lane.b32.xlu0 %v3734, 64
    %v3911 = vpop.permute.xlu0 %3910
    %3912 = vrot.lane.b32.xlu0 %v3735, 64
    %v3913 = vpop.permute.xlu0 %3912
    %3914 = vrot.lane.b32.xlu0 %v3736, 64
    %v3915 = vpop.permute.xlu0 %3914
    %3916 = vrot.lane.b32.xlu0 %v3737, 64
    %v3917 = vpop.permute.xlu0 %3916
    %3918 = vrot.lane.b32.xlu0 %v3738, 64
    %v3919 = vpop.permute.xlu0 %3918
    %3920 = vrot.lane.b32.xlu0 %v3739, 64
    %v3921 = vpop.permute.xlu0 %3920
    %3922 = vrot.lane.b32.xlu0 %v3740, 64
    %v3923 = vpop.permute.xlu0 %3922
    %3924 = vrot.lane.b32.xlu0 %v3741, 64
    %v3925 = vpop.permute.xlu0 %3924
    %3926 = vrot.lane.b32.xlu0 %v3742, 64
    %v3927 = vpop.permute.xlu0 %3926
    %3928 = vrot.lane.b32.xlu0 %v3743, 64
    %v3929 = vpop.permute.xlu0 %3928
    %3930 = vrot.lane.b32.xlu0 %v3744, 64
    %v3931 = vpop.permute.xlu0 %3930
    %3932 = vrot.lane.b32.xlu0 %v3745, 64
    %v3933 = vpop.permute.xlu0 %3932
    %3934 = vrot.lane.b32.xlu0 %v3746, 64
    %v3935 = vpop.permute.xlu0 %3934
    %3936 = vrot.lane.b32.xlu0 %v3747, 64
    %v3937 = vpop.permute.xlu0 %3936
    %3938 = vrot.lane.b32.xlu0 %v3748, 64
    %v3939 = vpop.permute.xlu0 %3938
    %3940 = vrot.lane.b32.xlu0 %v3749, 64
    %v3941 = vpop.permute.xlu0 %3940
    %vm4006 = vcmask 781824
    %4007 = vst.msk [vmem:[#allocation3] sm:$0xf] %vm4006, %v3815
    %4008 = vst.msk [vmem:[#allocation3 + $0xc] sm:$0xf] %vm4006, %v3817
    %4009 = vst.msk [vmem:[#allocation3 + $0x18] sm:$0xf] %vm4006, %v3819
    %4010 = vst.msk [vmem:[#allocation3 + $0x24] sm:$0xf] %vm4006, %v3821
    %4011 = vst.msk [vmem:[#allocation3 + $0x30] sm:$0xf] %vm4006, %v3823
    %4012 = vst.msk [vmem:[#allocation3 + $0x3c] sm:$0xf] %vm4006, %v3825
    %4013 = vst.msk [vmem:[#allocation3 + $0x48] sm:$0xf] %vm4006, %v3827
    %4014 = vst.msk [vmem:[#allocation3 + $0x54] sm:$0xf] %vm4006, %v3829
    %4015 = vst.msk [vmem:[#allocation3 + $0x60] sm:$0xf] %vm4006, %v3831
    %4016 = vst.msk [vmem:[#allocation3 + $0x6c] sm:$0xf] %vm4006, %v3833
    %4017 = vst.msk [vmem:[#allocation3 + $0x78] sm:$0xf] %vm4006, %v3835
    %4018 = vst.msk [vmem:[#allocation3 + $0x84] sm:$0xf] %vm4006, %v3837
    %4019 = vst.msk [vmem:[#allocation3 + $0x90] sm:$0xf] %vm4006, %v3839
    %4020 = vst.msk [vmem:[#allocation3 + $0x9c] sm:$0xf] %vm4006, %v3841
    %4021 = vst.msk [vmem:[#allocation3 + $0xa8] sm:$0xf] %vm4006, %v3843
    %4022 = vst.msk [vmem:[#allocation3 + $0xb4] sm:$0xf] %vm4006, %v3845
    %4023 = vst.msk [vmem:[#allocation3 + $0xc0] sm:$0xf] %vm4006, %v3847
    %4024 = vst.msk [vmem:[#allocation3 + $0xcc] sm:$0xf] %vm4006, %v3849
    %4025 = vst.msk [vmem:[#allocation3 + $0xd8] sm:$0xf] %vm4006, %v3851
    %4026 = vst.msk [vmem:[#allocation3 + $0xe4] sm:$0xf] %vm4006, %v3853
    %4027 = vst.msk [vmem:[#allocation3 + $0xf0] sm:$0xf] %vm4006, %v3855
    %4028 = vst.msk [vmem:[#allocation3 + $0xfc] sm:$0xf] %vm4006, %v3857
    %4029 = vst.msk [vmem:[#allocation3 + $0x108] sm:$0xf] %vm4006, %v3859
    %4030 = vst.msk [vmem:[#allocation3 + $0x114] sm:$0xf] %vm4006, %v3861
    %4031 = vst.msk [vmem:[#allocation3 + $0x120] sm:$0xf] %vm4006, %v3863
    %4032 = vst.msk [vmem:[#allocation3 + $0x12c] sm:$0xf] %vm4006, %v3865
    %4033 = vst.msk [vmem:[#allocation3 + $0x138] sm:$0xf] %vm4006, %v3867
    %4034 = vst.msk [vmem:[#allocation3 + $0x144] sm:$0xf] %vm4006, %v3869
    %4035 = vst.msk [vmem:[#allocation3 + $0x150] sm:$0xf] %vm4006, %v3871
    %4036 = vst.msk [vmem:[#allocation3 + $0x15c] sm:$0xf] %vm4006, %v3873
    %4037 = vst.msk [vmem:[#allocation3 + $0x168] sm:$0xf] %vm4006, %v3875
    %4038 = vst.msk [vmem:[#allocation3 + $0x174] sm:$0xf] %vm4006, %v3877
    %4039 = vst.msk [vmem:[#allocation3 + $0x180] sm:$0xf] %vm4006, %v3879
    %4040 = vst.msk [vmem:[#allocation3 + $0x18c] sm:$0xf] %vm4006, %v3881
    %4041 = vst.msk [vmem:[#allocation3 + $0x198] sm:$0xf] %vm4006, %v3883
    %4042 = vst.msk [vmem:[#allocation3 + $0x1a4] sm:$0xf] %vm4006, %v3885
    %4043 = vst.msk [vmem:[#allocation3 + $0x1b0] sm:$0xf] %vm4006, %v3887
    %4044 = vst.msk [vmem:[#allocation3 + $0x1bc] sm:$0xf] %vm4006, %v3889
    %4045 = vst.msk [vmem:[#allocation3 + $0x1c8] sm:$0xf] %vm4006, %v3891
    %4046 = vst.msk [vmem:[#allocation3 + $0x1d4] sm:$0xf] %vm4006, %v3893
    %4047 = vst.msk [vmem:[#allocation3 + $0x1e0] sm:$0xf] %vm4006, %v3895
    %4048 = vst.msk [vmem:[#allocation3 + $0x1ec] sm:$0xf] %vm4006, %v3897
    %4049 = vst.msk [vmem:[#allocation3 + $0x1f8] sm:$0xf] %vm4006, %v3899
    %4050 = vst.msk [vmem:[#allocation3 + $0x204] sm:$0xf] %vm4006, %v3901
    %4051 = vst.msk [vmem:[#allocation3 + $0x210] sm:$0xf] %vm4006, %v3903
    %4052 = vst.msk [vmem:[#allocation3 + $0x21c] sm:$0xf] %vm4006, %v3905
    %4053 = vst.msk [vmem:[#allocation3 + $0x228] sm:$0xf] %vm4006, %v3907
    %4054 = vst.msk [vmem:[#allocation3 + $0x234] sm:$0xf] %vm4006, %v3909
    %4055 = vst.msk [vmem:[#allocation3 + $0x240] sm:$0xf] %vm4006, %v3911
    %4056 = vst.msk [vmem:[#allocation3 + $0x24c] sm:$0xf] %vm4006, %v3913
    %4057 = vst.msk [vmem:[#allocation3 + $0x258] sm:$0xf] %vm4006, %v3915
    %4058 = vst.msk [vmem:[#allocation3 + $0x264] sm:$0xf] %vm4006, %v3917
    %4059 = vst.msk [vmem:[#allocation3 + $0x270] sm:$0xf] %vm4006, %v3919
    %4060 = vst.msk [vmem:[#allocation3 + $0x27c] sm:$0xf] %vm4006, %v3921
    %4061 = vst.msk [vmem:[#allocation3 + $0x288] sm:$0xf] %vm4006, %v3923
    %4062 = vst.msk [vmem:[#allocation3 + $0x294] sm:$0xf] %vm4006, %v3925
    %4063 = vst.msk [vmem:[#allocation3 + $0x2a0] sm:$0xf] %vm4006, %v3927
    %4064 = vst.msk [vmem:[#allocation3 + $0x2ac] sm:$0xf] %vm4006, %v3929
    %4065 = vst.msk [vmem:[#allocation3 + $0x2b8] sm:$0xf] %vm4006, %v3931
    %4066 = vst.msk [vmem:[#allocation3 + $0x2c4] sm:$0xf] %vm4006, %v3933
    %4067 = vst.msk [vmem:[#allocation3 + $0x2d0] sm:$0xf] %vm4006, %v3935
    %4068 = vst.msk [vmem:[#allocation3 + $0x2dc] sm:$0xf] %vm4006, %v3937
    %4069 = vst.msk [vmem:[#allocation3 + $0x2e8] sm:$0xf] %vm4006, %v3939
    %4070 = vst.msk [vmem:[#allocation3 + $0x2f4] sm:$0xf] %vm4006, %v3941
    %v4071 = vld [vmem:[%s2915] sm:$0xff]
    %v4072 = vld [vmem:[%s2915 + $0x8] sm:$0xff]
    %v4073 = vld [vmem:[%s2915 + $0x18] sm:$0xff]
    %v4074 = vld [vmem:[%s2915 + $0x20] sm:$0xff]
    %v4075 = vld [vmem:[%s2915 + $0x30] sm:$0xff]
    %v4076 = vld [vmem:[%s2915 + $0x38] sm:$0xff]
    %v4077 = vld [vmem:[%s2915 + $0x48] sm:$0xff]
    %v4078 = vld [vmem:[%s2915 + $0x50] sm:$0xff]
    %v4079 = vld [vmem:[%s2915 + $0x60] sm:$0xff]
    %v4080 = vld [vmem:[%s2915 + $0x68] sm:$0xff]
    %v4081 = vld [vmem:[%s2915 + $0x78] sm:$0xff]
    %v4082 = vld [vmem:[%s2915 + $0x80] sm:$0xff]
    %v4083 = vld [vmem:[%s2915 + $0x90] sm:$0xff]
    %v4084 = vld [vmem:[%s2915 + $0x98] sm:$0xff]
    %v4085 = vld [vmem:[%s2915 + $0xa8] sm:$0xff]
    %v4086 = vld [vmem:[%s2915 + $0xb0] sm:$0xff]
    %v4087 = vld [vmem:[%s2915 + $0xc0] sm:$0xff]
    %v4088 = vld [vmem:[%s2915 + $0xc8] sm:$0xff]
    %v4089 = vld [vmem:[%s2915 + $0xd8] sm:$0xff]
    %v4090 = vld [vmem:[%s2915 + $0xe0] sm:$0xff]
    %v4091 = vld [vmem:[%s2915 + $0xf0] sm:$0xff]
    %v4092 = vld [vmem:[%s2915 + $0xf8] sm:$0xff]
    %v4093 = vld [vmem:[%s2915 + $0x108] sm:$0xff]
    %v4094 = vld [vmem:[%s2915 + $0x110] sm:$0xff]
    %v4095 = vld [vmem:[%s2915 + $0x120] sm:$0xff]
    %v4096 = vld [vmem:[%s2915 + $0x128] sm:$0xff]
    %v4097 = vld [vmem:[%s2915 + $0x138] sm:$0xff]
    %v4098 = vld [vmem:[%s2915 + $0x140] sm:$0xff]
    %v4099 = vld [vmem:[%s2915 + $0x150] sm:$0xff]
    %v4100 = vld [vmem:[%s2915 + $0x158] sm:$0xff]
    %v4101 = vld [vmem:[%s2915 + $0x168] sm:$0xff]
    %v4102 = vld [vmem:[%s2915 + $0x170] sm:$0xff]
    %v4103 = vld [vmem:[%s2915 + $0x1b0] sm:$0xff]
    %v4104 = vld [vmem:[%s2915 + $0x1b8] sm:$0xff]
    %v4105 = vld [vmem:[%s2915 + $0x1c8] sm:$0xff]
    %v4106 = vld [vmem:[%s2915 + $0x1d0] sm:$0xff]
    %v4107 = vld [vmem:[%s2915 + $0x1e0] sm:$0xff]
    %v4108 = vld [vmem:[%s2915 + $0x1e8] sm:$0xff]
    %v4109 = vld [vmem:[%s2915 + $0x1f8] sm:$0xff]
    %v4110 = vld [vmem:[%s2915 + $0x200] sm:$0xff]
    %v4111 = vld [vmem:[%s2915 + $0x210] sm:$0xff]
    %v4112 = vld [vmem:[%s2915 + $0x218] sm:$0xff]
    %v4113 = vld [vmem:[%s2915 + $0x228] sm:$0xff]
    %v4114 = vld [vmem:[%s2915 + $0x230] sm:$0xff]
    %v4115 = vld [vmem:[%s2915 + $0x240] sm:$0xff]
    %v4116 = vld [vmem:[%s2915 + $0x248] sm:$0xff]
    %v4117 = vld [vmem:[%s2915 + $0x258] sm:$0xff]
    %v4118 = vld [vmem:[%s2915 + $0x260] sm:$0xff]
    %v4119 = vld [vmem:[%s2915 + $0x270] sm:$0xff]
    %v4120 = vld [vmem:[%s2915 + $0x278] sm:$0xff]
    %v4121 = vld [vmem:[%s2915 + $0x288] sm:$0xff]
    %v4122 = vld [vmem:[%s2915 + $0x290] sm:$0xff]
    %v4123 = vld [vmem:[%s2915 + $0x2a0] sm:$0xff]
    %v4124 = vld [vmem:[%s2915 + $0x2a8] sm:$0xff]
    %v4125 = vld [vmem:[%s2915 + $0x2b8] sm:$0xff]
    %v4126 = vld [vmem:[%s2915 + $0x2c0] sm:$0xff]
    %v4127 = vld [vmem:[%s2915 + $0x2d0] sm:$0xff]
    %v4128 = vld [vmem:[%s2915 + $0x2d8] sm:$0xff]
    %v4129 = vld [vmem:[%s2915 + $0x2e8] sm:$0xff]
    %v4130 = vld [vmem:[%s2915 + $0x2f0] sm:$0xff]
    %v4131 = vld [vmem:[%s2915 + $0x300] sm:$0xff]
    %v4132 = vld [vmem:[%s2915 + $0x308] sm:$0xff]
    %v4133 = vld [vmem:[%s2915 + $0x318] sm:$0xff]
    %v4134 = vld [vmem:[%s2915 + $0x320] sm:$0xff]
    %v4135 = vpack.c.bf16 %v4071, %v4071
    %v4136 = vpack.c.bf16 %v4072, %v4072
    %v4137 = vpack.c.bf16 %v4073, %v4073
    %v4138 = vpack.c.bf16 %v4074, %v4074
    %v4139 = vpack.c.bf16 %v4075, %v4075
    %v4140 = vpack.c.bf16 %v4076, %v4076
    %v4141 = vpack.c.bf16 %v4077, %v4077
    %v4142 = vpack.c.bf16 %v4078, %v4078
    %v4143 = vpack.c.bf16 %v4079, %v4079
    %v4144 = vpack.c.bf16 %v4080, %v4080
    %v4145 = vpack.c.bf16 %v4081, %v4081
    %v4146 = vpack.c.bf16 %v4082, %v4082
    %v4147 = vpack.c.bf16 %v4083, %v4083
    %v4148 = vpack.c.bf16 %v4084, %v4084
    %v4149 = vpack.c.bf16 %v4085, %v4085
    %v4150 = vpack.c.bf16 %v4086, %v4086
    %v4151 = vpack.c.bf16 %v4087, %v4087
    %v4152 = vpack.c.bf16 %v4088, %v4088
    %v4153 = vpack.c.bf16 %v4089, %v4089
    %v4154 = vpack.c.bf16 %v4090, %v4090
    %v4155 = vpack.c.bf16 %v4091, %v4091
    %v4156 = vpack.c.bf16 %v4092, %v4092
    %v4157 = vpack.c.bf16 %v4093, %v4093
    %v4158 = vpack.c.bf16 %v4094, %v4094
    %v4159 = vpack.c.bf16 %v4095, %v4095
    %v4160 = vpack.c.bf16 %v4096, %v4096
    %v4161 = vpack.c.bf16 %v4097, %v4097
    %v4162 = vpack.c.bf16 %v4098, %v4098
    %v4163 = vpack.c.bf16 %v4099, %v4099
    %v4164 = vpack.c.bf16 %v4100, %v4100
    %v4165 = vpack.c.bf16 %v4101, %v4101
    %v4166 = vpack.c.bf16 %v4102, %v4102
    %v4167 = vpack.c.bf16 %v4103, %v4103
    %v4168 = vpack.c.bf16 %v4104, %v4104
    %v4169 = vpack.c.bf16 %v4105, %v4105
    %v4170 = vpack.c.bf16 %v4106, %v4106
    %v4171 = vpack.c.bf16 %v4107, %v4107
    %v4172 = vpack.c.bf16 %v4108, %v4108
    %v4173 = vpack.c.bf16 %v4109, %v4109
    %v4174 = vpack.c.bf16 %v4110, %v4110
    %v4175 = vpack.c.bf16 %v4111, %v4111
    %v4176 = vpack.c.bf16 %v4112, %v4112
    %v4177 = vpack.c.bf16 %v4113, %v4113
    %v4178 = vpack.c.bf16 %v4114, %v4114
    %v4179 = vpack.c.bf16 %v4115, %v4115
    %v4180 = vpack.c.bf16 %v4116, %v4116
    %v4181 = vpack.c.bf16 %v4117, %v4117
    %v4182 = vpack.c.bf16 %v4118, %v4118
    %v4183 = vpack.c.bf16 %v4119, %v4119
    %v4184 = vpack.c.bf16 %v4120, %v4120
    %v4185 = vpack.c.bf16 %v4121, %v4121
    %v4186 = vpack.c.bf16 %v4122, %v4122
    %v4187 = vpack.c.bf16 %v4123, %v4123
    %v4188 = vpack.c.bf16 %v4124, %v4124
    %v4189 = vpack.c.bf16 %v4125, %v4125
    %v4190 = vpack.c.bf16 %v4126, %v4126
    %v4191 = vpack.c.bf16 %v4127, %v4127
    %v4192 = vpack.c.bf16 %v4128, %v4128
    %v4193 = vpack.c.bf16 %v4129, %v4129
    %v4194 = vpack.c.bf16 %v4130, %v4130
    %v4195 = vpack.c.bf16 %v4131, %v4131
    %v4196 = vpack.c.bf16 %v4132, %v4132
    %v4197 = vpack.c.bf16 %v4133, %v4133
    %v4198 = vpack.c.bf16 %v4134, %v4134
    %4263 = vrot.lane.b32.xlu0 %v4135, 96
    %v4264 = vpop.permute.xlu0 %4263
    %4265 = vrot.lane.b32.xlu0 %v4136, 96
    %v4266 = vpop.permute.xlu0 %4265
    %4267 = vrot.lane.b32.xlu0 %v4137, 96
    %v4268 = vpop.permute.xlu0 %4267
    %4269 = vrot.lane.b32.xlu0 %v4138, 96
    %v4270 = vpop.permute.xlu0 %4269
    %4271 = vrot.lane.b32.xlu0 %v4139, 96
    %v4272 = vpop.permute.xlu0 %4271
    %4273 = vrot.lane.b32.xlu0 %v4140, 96
    %v4274 = vpop.permute.xlu0 %4273
    %4275 = vrot.lane.b32.xlu0 %v4141, 96
    %v4276 = vpop.permute.xlu0 %4275
    %4277 = vrot.lane.b32.xlu0 %v4142, 96
    %v4278 = vpop.permute.xlu0 %4277
    %4279 = vrot.lane.b32.xlu0 %v4143, 96
    %v4280 = vpop.permute.xlu0 %4279
    %4281 = vrot.lane.b32.xlu0 %v4144, 96
    %v4282 = vpop.permute.xlu0 %4281
    %4283 = vrot.lane.b32.xlu0 %v4145, 96
    %v4284 = vpop.permute.xlu0 %4283
    %4285 = vrot.lane.b32.xlu0 %v4146, 96
    %v4286 = vpop.permute.xlu0 %4285
    %4287 = vrot.lane.b32.xlu0 %v4147, 96
    %v4288 = vpop.permute.xlu0 %4287
    %4289 = vrot.lane.b32.xlu0 %v4148, 96
    %v4290 = vpop.permute.xlu0 %4289
    %4291 = vrot.lane.b32.xlu0 %v4149, 96
    %v4292 = vpop.permute.xlu0 %4291
    %4293 = vrot.lane.b32.xlu0 %v4150, 96
    %v4294 = vpop.permute.xlu0 %4293
    %4295 = vrot.lane.b32.xlu0 %v4151, 96
    %v4296 = vpop.permute.xlu0 %4295
    %4297 = vrot.lane.b32.xlu0 %v4152, 96
    %v4298 = vpop.permute.xlu0 %4297
    %4299 = vrot.lane.b32.xlu0 %v4153, 96
    %v4300 = vpop.permute.xlu0 %4299
    %4301 = vrot.lane.b32.xlu0 %v4154, 96
    %v4302 = vpop.permute.xlu0 %4301
    %4303 = vrot.lane.b32.xlu0 %v4155, 96
    %v4304 = vpop.permute.xlu0 %4303
    %4305 = vrot.lane.b32.xlu0 %v4156, 96
    %v4306 = vpop.permute.xlu0 %4305
    %4307 = vrot.lane.b32.xlu0 %v4157, 96
    %v4308 = vpop.permute.xlu0 %4307
    %4309 = vrot.lane.b32.xlu0 %v4158, 96
    %v4310 = vpop.permute.xlu0 %4309
    %4311 = vrot.lane.b32.xlu0 %v4159, 96
    %v4312 = vpop.permute.xlu0 %4311
    %4313 = vrot.lane.b32.xlu0 %v4160, 96
    %v4314 = vpop.permute.xlu0 %4313
    %4315 = vrot.lane.b32.xlu0 %v4161, 96
    %v4316 = vpop.permute.xlu0 %4315
    %4317 = vrot.lane.b32.xlu0 %v4162, 96
    %v4318 = vpop.permute.xlu0 %4317
    %4319 = vrot.lane.b32.xlu0 %v4163, 96
    %v4320 = vpop.permute.xlu0 %4319
    %4321 = vrot.lane.b32.xlu0 %v4164, 96
    %v4322 = vpop.permute.xlu0 %4321
    %4323 = vrot.lane.b32.xlu0 %v4165, 96
    %v4324 = vpop.permute.xlu0 %4323
    %4325 = vrot.lane.b32.xlu0 %v4166, 96
    %v4326 = vpop.permute.xlu0 %4325
    %4327 = vrot.lane.b32.xlu0 %v4167, 96
    %v4328 = vpop.permute.xlu0 %4327
    %4329 = vrot.lane.b32.xlu0 %v4168, 96
    %v4330 = vpop.permute.xlu0 %4329
    %4331 = vrot.lane.b32.xlu0 %v4169, 96
    %v4332 = vpop.permute.xlu0 %4331
    %4333 = vrot.lane.b32.xlu0 %v4170, 96
    %v4334 = vpop.permute.xlu0 %4333
    %4335 = vrot.lane.b32.xlu0 %v4171, 96
    %v4336 = vpop.permute.xlu0 %4335
    %4337 = vrot.lane.b32.xlu0 %v4172, 96
    %v4338 = vpop.permute.xlu0 %4337
    %4339 = vrot.lane.b32.xlu0 %v4173, 96
    %v4340 = vpop.permute.xlu0 %4339
    %4341 = vrot.lane.b32.xlu0 %v4174, 96
    %v4342 = vpop.permute.xlu0 %4341
    %4343 = vrot.lane.b32.xlu0 %v4175, 96
    %v4344 = vpop.permute.xlu0 %4343
    %4345 = vrot.lane.b32.xlu0 %v4176, 96
    %v4346 = vpop.permute.xlu0 %4345
    %4347 = vrot.lane.b32.xlu0 %v4177, 96
    %v4348 = vpop.permute.xlu0 %4347
    %4349 = vrot.lane.b32.xlu0 %v4178, 96
    %v4350 = vpop.permute.xlu0 %4349
    %4351 = vrot.lane.b32.xlu0 %v4179, 96
    %v4352 = vpop.permute.xlu0 %4351
    %4353 = vrot.lane.b32.xlu0 %v4180, 96
    %v4354 = vpop.permute.xlu0 %4353
    %4355 = vrot.lane.b32.xlu0 %v4181, 96
    %v4356 = vpop.permute.xlu0 %4355
    %4357 = vrot.lane.b32.xlu0 %v4182, 96
    %v4358 = vpop.permute.xlu0 %4357
    %4359 = vrot.lane.b32.xlu0 %v4183, 96
    %v4360 = vpop.permute.xlu0 %4359
    %4361 = vrot.lane.b32.xlu0 %v4184, 96
    %v4362 = vpop.permute.xlu0 %4361
    %4363 = vrot.lane.b32.xlu0 %v4185, 96
    %v4364 = vpop.permute.xlu0 %4363
    %4365 = vrot.lane.b32.xlu0 %v4186, 96
    %v4366 = vpop.permute.xlu0 %4365
    %4367 = vrot.lane.b32.xlu0 %v4187, 96
    %v4368 = vpop.permute.xlu0 %4367
    %4369 = vrot.lane.b32.xlu0 %v4188, 96
    %v4370 = vpop.permute.xlu0 %4369
    %4371 = vrot.lane.b32.xlu0 %v4189, 96
    %v4372 = vpop.permute.xlu0 %4371
    %4373 = vrot.lane.b32.xlu0 %v4190, 96
    %v4374 = vpop.permute.xlu0 %4373
    %4375 = vrot.lane.b32.xlu0 %v4191, 96
    %v4376 = vpop.permute.xlu0 %4375
    %4377 = vrot.lane.b32.xlu0 %v4192, 96
    %v4378 = vpop.permute.xlu0 %4377
    %4379 = vrot.lane.b32.xlu0 %v4193, 96
    %v4380 = vpop.permute.xlu0 %4379
    %4381 = vrot.lane.b32.xlu0 %v4194, 96
    %v4382 = vpop.permute.xlu0 %4381
    %4383 = vrot.lane.b32.xlu0 %v4195, 96
    %v4384 = vpop.permute.xlu0 %4383
    %4385 = vrot.lane.b32.xlu0 %v4196, 96
    %v4386 = vpop.permute.xlu0 %4385
    %4387 = vrot.lane.b32.xlu0 %v4197, 96
    %v4388 = vpop.permute.xlu0 %4387
    %4389 = vrot.lane.b32.xlu0 %v4198, 96
    %v4390 = vpop.permute.xlu0 %4389
    %vm4455 = vcmask 1044224
    %4456 = vst.msk [vmem:[#allocation3] sm:$0xf] %vm4455, %v4264
    %4457 = vst.msk [vmem:[#allocation3 + $0xc] sm:$0xf] %vm4455, %v4266
    %4458 = vst.msk [vmem:[#allocation3 + $0x18] sm:$0xf] %vm4455, %v4268
    %4459 = vst.msk [vmem:[#allocation3 + $0x24] sm:$0xf] %vm4455, %v4270
    %4460 = vst.msk [vmem:[#allocation3 + $0x30] sm:$0xf] %vm4455, %v4272
    %4461 = vst.msk [vmem:[#allocation3 + $0x3c] sm:$0xf] %vm4455, %v4274
    %4462 = vst.msk [vmem:[#allocation3 + $0x48] sm:$0xf] %vm4455, %v4276
    %4463 = vst.msk [vmem:[#allocation3 + $0x54] sm:$0xf] %vm4455, %v4278
    %4464 = vst.msk [vmem:[#allocation3 + $0x60] sm:$0xf] %vm4455, %v4280
    %4465 = vst.msk [vmem:[#allocation3 + $0x6c] sm:$0xf] %vm4455, %v4282
    %4466 = vst.msk [vmem:[#allocation3 + $0x78] sm:$0xf] %vm4455, %v4284
    %4467 = vst.msk [vmem:[#allocation3 + $0x84] sm:$0xf] %vm4455, %v4286
    %4468 = vst.msk [vmem:[#allocation3 + $0x90] sm:$0xf] %vm4455, %v4288
    %4469 = vst.msk [vmem:[#allocation3 + $0x9c] sm:$0xf] %vm4455, %v4290
    %4470 = vst.msk [vmem:[#allocation3 + $0xa8] sm:$0xf] %vm4455, %v4292
    %4471 = vst.msk [vmem:[#allocation3 + $0xb4] sm:$0xf] %vm4455, %v4294
    %4472 = vst.msk [vmem:[#allocation3 + $0xc0] sm:$0xf] %vm4455, %v4296
    %4473 = vst.msk [vmem:[#allocation3 + $0xcc] sm:$0xf] %vm4455, %v4298
    %4474 = vst.msk [vmem:[#allocation3 + $0xd8] sm:$0xf] %vm4455, %v4300
    %4475 = vst.msk [vmem:[#allocation3 + $0xe4] sm:$0xf] %vm4455, %v4302
    %4476 = vst.msk [vmem:[#allocation3 + $0xf0] sm:$0xf] %vm4455, %v4304
    %4477 = vst.msk [vmem:[#allocation3 + $0xfc] sm:$0xf] %vm4455, %v4306
    %4478 = vst.msk [vmem:[#allocation3 + $0x108] sm:$0xf] %vm4455, %v4308
    %4479 = vst.msk [vmem:[#allocation3 + $0x114] sm:$0xf] %vm4455, %v4310
    %4480 = vst.msk [vmem:[#allocation3 + $0x120] sm:$0xf] %vm4455, %v4312
    %4481 = vst.msk [vmem:[#allocation3 + $0x12c] sm:$0xf] %vm4455, %v4314
    %4482 = vst.msk [vmem:[#allocation3 + $0x138] sm:$0xf] %vm4455, %v4316
    %4483 = vst.msk [vmem:[#allocation3 + $0x144] sm:$0xf] %vm4455, %v4318
    %4484 = vst.msk [vmem:[#allocation3 + $0x150] sm:$0xf] %vm4455, %v4320
    %4485 = vst.msk [vmem:[#allocation3 + $0x15c] sm:$0xf] %vm4455, %v4322
    %4486 = vst.msk [vmem:[#allocation3 + $0x168] sm:$0xf] %vm4455, %v4324
    %4487 = vst.msk [vmem:[#allocation3 + $0x174] sm:$0xf] %vm4455, %v4326
    %4488 = vst.msk [vmem:[#allocation3 + $0x180] sm:$0xf] %vm4455, %v4328
    %4489 = vst.msk [vmem:[#allocation3 + $0x18c] sm:$0xf] %vm4455, %v4330
    %4490 = vst.msk [vmem:[#allocation3 + $0x198] sm:$0xf] %vm4455, %v4332
    %4491 = vst.msk [vmem:[#allocation3 + $0x1a4] sm:$0xf] %vm4455, %v4334
    %4492 = vst.msk [vmem:[#allocation3 + $0x1b0] sm:$0xf] %vm4455, %v4336
    %4493 = vst.msk [vmem:[#allocation3 + $0x1bc] sm:$0xf] %vm4455, %v4338
    %4494 = vst.msk [vmem:[#allocation3 + $0x1c8] sm:$0xf] %vm4455, %v4340
    %4495 = vst.msk [vmem:[#allocation3 + $0x1d4] sm:$0xf] %vm4455, %v4342
    %4496 = vst.msk [vmem:[#allocation3 + $0x1e0] sm:$0xf] %vm4455, %v4344
    %4497 = vst.msk [vmem:[#allocation3 + $0x1ec] sm:$0xf] %vm4455, %v4346
    %4498 = vst.msk [vmem:[#allocation3 + $0x1f8] sm:$0xf] %vm4455, %v4348
    %4499 = vst.msk [vmem:[#allocation3 + $0x204] sm:$0xf] %vm4455, %v4350
    %4500 = vst.msk [vmem:[#allocation3 + $0x210] sm:$0xf] %vm4455, %v4352
    %4501 = vst.msk [vmem:[#allocation3 + $0x21c] sm:$0xf] %vm4455, %v4354
    %4502 = vst.msk [vmem:[#allocation3 + $0x228] sm:$0xf] %vm4455, %v4356
    %4503 = vst.msk [vmem:[#allocation3 + $0x234] sm:$0xf] %vm4455, %v4358
    %4504 = vst.msk [vmem:[#allocation3 + $0x240] sm:$0xf] %vm4455, %v4360
    %4505 = vst.msk [vmem:[#allocation3 + $0x24c] sm:$0xf] %vm4455, %v4362
    %4506 = vst.msk [vmem:[#allocation3 + $0x258] sm:$0xf] %vm4455, %v4364
    %4507 = vst.msk [vmem:[#allocation3 + $0x264] sm:$0xf] %vm4455, %v4366
    %4508 = vst.msk [vmem:[#allocation3 + $0x270] sm:$0xf] %vm4455, %v4368
    %4509 = vst.msk [vmem:[#allocation3 + $0x27c] sm:$0xf] %vm4455, %v4370
    %4510 = vst.msk [vmem:[#allocation3 + $0x288] sm:$0xf] %vm4455, %v4372
    %4511 = vst.msk [vmem:[#allocation3 + $0x294] sm:$0xf] %vm4455, %v4374
    %4512 = vst.msk [vmem:[#allocation3 + $0x2a0] sm:$0xf] %vm4455, %v4376
    %4513 = vst.msk [vmem:[#allocation3 + $0x2ac] sm:$0xf] %vm4455, %v4378
    %4514 = vst.msk [vmem:[#allocation3 + $0x2b8] sm:$0xf] %vm4455, %v4380
    %4515 = vst.msk [vmem:[#allocation3 + $0x2c4] sm:$0xf] %vm4455, %v4382
    %4516 = vst.msk [vmem:[#allocation3 + $0x2d0] sm:$0xf] %vm4455, %v4384
    %4517 = vst.msk [vmem:[#allocation3 + $0x2dc] sm:$0xf] %vm4455, %v4386
    %4518 = vst.msk [vmem:[#allocation3 + $0x2e8] sm:$0xf] %vm4455, %v4388
    %4519 = vst.msk [vmem:[#allocation3 + $0x2f4] sm:$0xf] %vm4455, %v4390
    %v4520 = vld [vmem:[%s2915 + $0x1] sm:$0xff]
    %v4521 = vld [vmem:[%s2915 + $0x9] sm:$0xff]
    %v4522 = vld [vmem:[%s2915 + $0x19] sm:$0xff]
    %v4523 = vld [vmem:[%s2915 + $0x21] sm:$0xff]
    %v4524 = vld [vmem:[%s2915 + $0x31] sm:$0xff]
    %v4525 = vld [vmem:[%s2915 + $0x39] sm:$0xff]
    %v4526 = vld [vmem:[%s2915 + $0x49] sm:$0xff]
    %v4527 = vld [vmem:[%s2915 + $0x51] sm:$0xff]
    %v4528 = vld [vmem:[%s2915 + $0x61] sm:$0xff]
    %v4529 = vld [vmem:[%s2915 + $0x69] sm:$0xff]
    %v4530 = vld [vmem:[%s2915 + $0x79] sm:$0xff]
    %v4531 = vld [vmem:[%s2915 + $0x81] sm:$0xff]
    %v4532 = vld [vmem:[%s2915 + $0x91] sm:$0xff]
    %v4533 = vld [vmem:[%s2915 + $0x99] sm:$0xff]
    %v4534 = vld [vmem:[%s2915 + $0xa9] sm:$0xff]
    %v4535 = vld [vmem:[%s2915 + $0xb1] sm:$0xff]
    %v4536 = vld [vmem:[%s2915 + $0xc1] sm:$0xff]
    %v4537 = vld [vmem:[%s2915 + $0xc9] sm:$0xff]
    %v4538 = vld [vmem:[%s2915 + $0xd9] sm:$0xff]
    %v4539 = vld [vmem:[%s2915 + $0xe1] sm:$0xff]
    %v4540 = vld [vmem:[%s2915 + $0xf1] sm:$0xff]
    %v4541 = vld [vmem:[%s2915 + $0xf9] sm:$0xff]
    %v4542 = vld [vmem:[%s2915 + $0x109] sm:$0xff]
    %v4543 = vld [vmem:[%s2915 + $0x111] sm:$0xff]
    %v4544 = vld [vmem:[%s2915 + $0x121] sm:$0xff]
    %v4545 = vld [vmem:[%s2915 + $0x129] sm:$0xff]
    %v4546 = vld [vmem:[%s2915 + $0x139] sm:$0xff]
    %v4547 = vld [vmem:[%s2915 + $0x141] sm:$0xff]
    %v4548 = vld [vmem:[%s2915 + $0x151] sm:$0xff]
    %v4549 = vld [vmem:[%s2915 + $0x159] sm:$0xff]
    %v4550 = vld [vmem:[%s2915 + $0x169] sm:$0xff]
    %v4551 = vld [vmem:[%s2915 + $0x171] sm:$0xff]
    %v4552 = vld [vmem:[%s2915 + $0x1b1] sm:$0xff]
    %v4553 = vld [vmem:[%s2915 + $0x1b9] sm:$0xff]
    %v4554 = vld [vmem:[%s2915 + $0x1c9] sm:$0xff]
    %v4555 = vld [vmem:[%s2915 + $0x1d1] sm:$0xff]
    %v4556 = vld [vmem:[%s2915 + $0x1e1] sm:$0xff]
    %v4557 = vld [vmem:[%s2915 + $0x1e9] sm:$0xff]
    %v4558 = vld [vmem:[%s2915 + $0x1f9] sm:$0xff]
    %v4559 = vld [vmem:[%s2915 + $0x201] sm:$0xff]
    %v4560 = vld [vmem:[%s2915 + $0x211] sm:$0xff]
    %v4561 = vld [vmem:[%s2915 + $0x219] sm:$0xff]
    %v4562 = vld [vmem:[%s2915 + $0x229] sm:$0xff]
    %v4563 = vld [vmem:[%s2915 + $0x231] sm:$0xff]
    %v4564 = vld [vmem:[%s2915 + $0x241] sm:$0xff]
    %v4565 = vld [vmem:[%s2915 + $0x249] sm:$0xff]
    %v4566 = vld [vmem:[%s2915 + $0x259] sm:$0xff]
    %v4567 = vld [vmem:[%s2915 + $0x261] sm:$0xff]
    %v4568 = vld [vmem:[%s2915 + $0x271] sm:$0xff]
    %v4569 = vld [vmem:[%s2915 + $0x279] sm:$0xff]
    %v4570 = vld [vmem:[%s2915 + $0x289] sm:$0xff]
    %v4571 = vld [vmem:[%s2915 + $0x291] sm:$0xff]
    %v4572 = vld [vmem:[%s2915 + $0x2a1] sm:$0xff]
    %v4573 = vld [vmem:[%s2915 + $0x2a9] sm:$0xff]
    %v4574 = vld [vmem:[%s2915 + $0x2b9] sm:$0xff]
    %v4575 = vld [vmem:[%s2915 + $0x2c1] sm:$0xff]
    %v4576 = vld [vmem:[%s2915 + $0x2d1] sm:$0xff]
    %v4577 = vld [vmem:[%s2915 + $0x2d9] sm:$0xff]
    %v4578 = vld [vmem:[%s2915 + $0x2e9] sm:$0xff]
    %v4579 = vld [vmem:[%s2915 + $0x2f1] sm:$0xff]
    %v4580 = vld [vmem:[%s2915 + $0x301] sm:$0xff]
    %v4581 = vld [vmem:[%s2915 + $0x309] sm:$0xff]
    %v4582 = vld [vmem:[%s2915 + $0x319] sm:$0xff]
    %v4583 = vld [vmem:[%s2915 + $0x321] sm:$0xff]
    %v4584 = vpack.c.bf16 %v4520, %v4520
    %v4585 = vpack.c.bf16 %v4521, %v4521
    %v4586 = vpack.c.bf16 %v4522, %v4522
    %v4587 = vpack.c.bf16 %v4523, %v4523
    %v4588 = vpack.c.bf16 %v4524, %v4524
    %v4589 = vpack.c.bf16 %v4525, %v4525
    %v4590 = vpack.c.bf16 %v4526, %v4526
    %v4591 = vpack.c.bf16 %v4527, %v4527
    %v4592 = vpack.c.bf16 %v4528, %v4528
    %v4593 = vpack.c.bf16 %v4529, %v4529
    %v4594 = vpack.c.bf16 %v4530, %v4530
    %v4595 = vpack.c.bf16 %v4531, %v4531
    %v4596 = vpack.c.bf16 %v4532, %v4532
    %v4597 = vpack.c.bf16 %v4533, %v4533
    %v4598 = vpack.c.bf16 %v4534, %v4534
    %v4599 = vpack.c.bf16 %v4535, %v4535
    %v4600 = vpack.c.bf16 %v4536, %v4536
    %v4601 = vpack.c.bf16 %v4537, %v4537
    %v4602 = vpack.c.bf16 %v4538, %v4538
    %v4603 = vpack.c.bf16 %v4539, %v4539
    %v4604 = vpack.c.bf16 %v4540, %v4540
    %v4605 = vpack.c.bf16 %v4541, %v4541
    %v4606 = vpack.c.bf16 %v4542, %v4542
    %v4607 = vpack.c.bf16 %v4543, %v4543
    %v4608 = vpack.c.bf16 %v4544, %v4544
    %v4609 = vpack.c.bf16 %v4545, %v4545
    %v4610 = vpack.c.bf16 %v4546, %v4546
    %v4611 = vpack.c.bf16 %v4547, %v4547
    %v4612 = vpack.c.bf16 %v4548, %v4548
    %v4613 = vpack.c.bf16 %v4549, %v4549
    %v4614 = vpack.c.bf16 %v4550, %v4550
    %v4615 = vpack.c.bf16 %v4551, %v4551
    %v4616 = vpack.c.bf16 %v4552, %v4552
    %v4617 = vpack.c.bf16 %v4553, %v4553
    %v4618 = vpack.c.bf16 %v4554, %v4554
    %v4619 = vpack.c.bf16 %v4555, %v4555
    %v4620 = vpack.c.bf16 %v4556, %v4556
    %v4621 = vpack.c.bf16 %v4557, %v4557
    %v4622 = vpack.c.bf16 %v4558, %v4558
    %v4623 = vpack.c.bf16 %v4559, %v4559
    %v4624 = vpack.c.bf16 %v4560, %v4560
    %v4625 = vpack.c.bf16 %v4561, %v4561
    %v4626 = vpack.c.bf16 %v4562, %v4562
    %v4627 = vpack.c.bf16 %v4563, %v4563
    %v4628 = vpack.c.bf16 %v4564, %v4564
    %v4629 = vpack.c.bf16 %v4565, %v4565
    %v4630 = vpack.c.bf16 %v4566, %v4566
    %v4631 = vpack.c.bf16 %v4567, %v4567
    %v4632 = vpack.c.bf16 %v4568, %v4568
    %v4633 = vpack.c.bf16 %v4569, %v4569
    %v4634 = vpack.c.bf16 %v4570, %v4570
    %v4635 = vpack.c.bf16 %v4571, %v4571
    %v4636 = vpack.c.bf16 %v4572, %v4572
    %v4637 = vpack.c.bf16 %v4573, %v4573
    %v4638 = vpack.c.bf16 %v4574, %v4574
    %v4639 = vpack.c.bf16 %v4575, %v4575
    %v4640 = vpack.c.bf16 %v4576, %v4576
    %v4641 = vpack.c.bf16 %v4577, %v4577
    %v4642 = vpack.c.bf16 %v4578, %v4578
    %v4643 = vpack.c.bf16 %v4579, %v4579
    %v4644 = vpack.c.bf16 %v4580, %v4580
    %v4645 = vpack.c.bf16 %v4581, %v4581
    %v4646 = vpack.c.bf16 %v4582, %v4582
    %v4647 = vpack.c.bf16 %v4583, %v4583
    %4648 = vst.msk [vmem:[#allocation3 + $0x4] sm:$0xf] %vm3108, %v4584
    %4649 = vst.msk [vmem:[#allocation3 + $0x10] sm:$0xf] %vm3108, %v4585
    %4650 = vst.msk [vmem:[#allocation3 + $0x1c] sm:$0xf] %vm3108, %v4586
    %4651 = vst.msk [vmem:[#allocation3 + $0x28] sm:$0xf] %vm3108, %v4587
    %4652 = vst.msk [vmem:[#allocation3 + $0x34] sm:$0xf] %vm3108, %v4588
    %4653 = vst.msk [vmem:[#allocation3 + $0x40] sm:$0xf] %vm3108, %v4589
    %4654 = vst.msk [vmem:[#allocation3 + $0x4c] sm:$0xf] %vm3108, %v4590
    %4655 = vst.msk [vmem:[#allocation3 + $0x58] sm:$0xf] %vm3108, %v4591
    %4656 = vst.msk [vmem:[#allocation3 + $0x64] sm:$0xf] %vm3108, %v4592
    %4657 = vst.msk [vmem:[#allocation3 + $0x70] sm:$0xf] %vm3108, %v4593
    %4658 = vst.msk [vmem:[#allocation3 + $0x7c] sm:$0xf] %vm3108, %v4594
    %4659 = vst.msk [vmem:[#allocation3 + $0x88] sm:$0xf] %vm3108, %v4595
    %4660 = vst.msk [vmem:[#allocation3 + $0x94] sm:$0xf] %vm3108, %v4596
    %4661 = vst.msk [vmem:[#allocation3 + $0xa0] sm:$0xf] %vm3108, %v4597
    %4662 = vst.msk [vmem:[#allocation3 + $0xac] sm:$0xf] %vm3108, %v4598
    %4663 = vst.msk [vmem:[#allocation3 + $0xb8] sm:$0xf] %vm3108, %v4599
    %4664 = vst.msk [vmem:[#allocation3 + $0xc4] sm:$0xf] %vm3108, %v4600
    %4665 = vst.msk [vmem:[#allocation3 + $0xd0] sm:$0xf] %vm3108, %v4601
    %4666 = vst.msk [vmem:[#allocation3 + $0xdc] sm:$0xf] %vm3108, %v4602
    %4667 = vst.msk [vmem:[#allocation3 + $0xe8] sm:$0xf] %vm3108, %v4603
    %4668 = vst.msk [vmem:[#allocation3 + $0xf4] sm:$0xf] %vm3108, %v4604
    %4669 = vst.msk [vmem:[#allocation3 + $0x100] sm:$0xf] %vm3108, %v4605
    %4670 = vst.msk [vmem:[#allocation3 + $0x10c] sm:$0xf] %vm3108, %v4606
    %4671 = vst.msk [vmem:[#allocation3 + $0x118] sm:$0xf] %vm3108, %v4607
    %4672 = vst.msk [vmem:[#allocation3 + $0x124] sm:$0xf] %vm3108, %v4608
    %4673 = vst.msk [vmem:[#allocation3 + $0x130] sm:$0xf] %vm3108, %v4609
    %4674 = vst.msk [vmem:[#allocation3 + $0x13c] sm:$0xf] %vm3108, %v4610
    %4675 = vst.msk [vmem:[#allocation3 + $0x148] sm:$0xf] %vm3108, %v4611
    %4676 = vst.msk [vmem:[#allocation3 + $0x154] sm:$0xf] %vm3108, %v4612
    %4677 = vst.msk [vmem:[#allocation3 + $0x160] sm:$0xf] %vm3108, %v4613
    %4678 = vst.msk [vmem:[#allocation3 + $0x16c] sm:$0xf] %vm3108, %v4614
    %4679 = vst.msk [vmem:[#allocation3 + $0x178] sm:$0xf] %vm3108, %v4615
    %4680 = vst.msk [vmem:[#allocation3 + $0x184] sm:$0xf] %vm3108, %v4616
    %4681 = vst.msk [vmem:[#allocation3 + $0x190] sm:$0xf] %vm3108, %v4617
    %4682 = vst.msk [vmem:[#allocation3 + $0x19c] sm:$0xf] %vm3108, %v4618
    %4683 = vst.msk [vmem:[#allocation3 + $0x1a8] sm:$0xf] %vm3108, %v4619
    %4684 = vst.msk [vmem:[#allocation3 + $0x1b4] sm:$0xf] %vm3108, %v4620
    %4685 = vst.msk [vmem:[#allocation3 + $0x1c0] sm:$0xf] %vm3108, %v4621
    %4686 = vst.msk [vmem:[#allocation3 + $0x1cc] sm:$0xf] %vm3108, %v4622
    %4687 = vst.msk [vmem:[#allocation3 + $0x1d8] sm:$0xf] %vm3108, %v4623
    %4688 = vst.msk [vmem:[#allocation3 + $0x1e4] sm:$0xf] %vm3108, %v4624
    %4689 = vst.msk [vmem:[#allocation3 + $0x1f0] sm:$0xf] %vm3108, %v4625
    %4690 = vst.msk [vmem:[#allocation3 + $0x1fc] sm:$0xf] %vm3108, %v4626
    %4691 = vst.msk [vmem:[#allocation3 + $0x208] sm:$0xf] %vm3108, %v4627
    %4692 = vst.msk [vmem:[#allocation3 + $0x214] sm:$0xf] %vm3108, %v4628
    %4693 = vst.msk [vmem:[#allocation3 + $0x220] sm:$0xf] %vm3108, %v4629
    %4694 = vst.msk [vmem:[#allocation3 + $0x22c] sm:$0xf] %vm3108, %v4630
    %4695 = vst.msk [vmem:[#allocation3 + $0x238] sm:$0xf] %vm3108, %v4631
    %4696 = vst.msk [vmem:[#allocation3 + $0x244] sm:$0xf] %vm3108, %v4632
    %4697 = vst.msk [vmem:[#allocation3 + $0x250] sm:$0xf] %vm3108, %v4633
    %4698 = vst.msk [vmem:[#allocation3 + $0x25c] sm:$0xf] %vm3108, %v4634
    %4699 = vst.msk [vmem:[#allocation3 + $0x268] sm:$0xf] %vm3108, %v4635
    %4700 = vst.msk [vmem:[#allocation3 + $0x274] sm:$0xf] %vm3108, %v4636
    %4701 = vst.msk [vmem:[#allocation3 + $0x280] sm:$0xf] %vm3108, %v4637
    %4702 = vst.msk [vmem:[#allocation3 + $0x28c] sm:$0xf] %vm3108, %v4638
    %4703 = vst.msk [vmem:[#allocation3 + $0x298] sm:$0xf] %vm3108, %v4639
    %4704 = vst.msk [vmem:[#allocation3 + $0x2a4] sm:$0xf] %vm3108, %v4640
    %4705 = vst.msk [vmem:[#allocation3 + $0x2b0] sm:$0xf] %vm3108, %v4641
    %4706 = vst.msk [vmem:[#allocation3 + $0x2bc] sm:$0xf] %vm3108, %v4642
    %4707 = vst.msk [vmem:[#allocation3 + $0x2c8] sm:$0xf] %vm3108, %v4643
    %4708 = vst.msk [vmem:[#allocation3 + $0x2d4] sm:$0xf] %vm3108, %v4644
    %4709 = vst.msk [vmem:[#allocation3 + $0x2e0] sm:$0xf] %vm3108, %v4645
    %4710 = vst.msk [vmem:[#allocation3 + $0x2ec] sm:$0xf] %vm3108, %v4646
    %4711 = vst.msk [vmem:[#allocation3 + $0x2f8] sm:$0xf] %vm3108, %v4647
    %v4712 = vld [vmem:[%s2915 + $0x2] sm:$0xff]
    %v4713 = vld [vmem:[%s2915 + $0xa] sm:$0xff]
    %v4714 = vld [vmem:[%s2915 + $0x1a] sm:$0xff]
    %v4715 = vld [vmem:[%s2915 + $0x22] sm:$0xff]
    %v4716 = vld [vmem:[%s2915 + $0x32] sm:$0xff]
    %v4717 = vld [vmem:[%s2915 + $0x3a] sm:$0xff]
    %v4718 = vld [vmem:[%s2915 + $0x4a] sm:$0xff]
    %v4719 = vld [vmem:[%s2915 + $0x52] sm:$0xff]
    %v4720 = vld [vmem:[%s2915 + $0x62] sm:$0xff]
    %v4721 = vld [vmem:[%s2915 + $0x6a] sm:$0xff]
    %v4722 = vld [vmem:[%s2915 + $0x7a] sm:$0xff]
    %v4723 = vld [vmem:[%s2915 + $0x82] sm:$0xff]
    %v4724 = vld [vmem:[%s2915 + $0x92] sm:$0xff]
    %v4725 = vld [vmem:[%s2915 + $0x9a] sm:$0xff]
    %v4726 = vld [vmem:[%s2915 + $0xaa] sm:$0xff]
    %v4727 = vld [vmem:[%s2915 + $0xb2] sm:$0xff]
    %v4728 = vld [vmem:[%s2915 + $0xc2] sm:$0xff]
    %v4729 = vld [vmem:[%s2915 + $0xca] sm:$0xff]
    %v4730 = vld [vmem:[%s2915 + $0xda] sm:$0xff]
    %v4731 = vld [vmem:[%s2915 + $0xe2] sm:$0xff]
    %v4732 = vld [vmem:[%s2915 + $0xf2] sm:$0xff]
    %v4733 = vld [vmem:[%s2915 + $0xfa] sm:$0xff]
    %v4734 = vld [vmem:[%s2915 + $0x10a] sm:$0xff]
    %v4735 = vld [vmem:[%s2915 + $0x112] sm:$0xff]
    %v4736 = vld [vmem:[%s2915 + $0x122] sm:$0xff]
    %v4737 = vld [vmem:[%s2915 + $0x12a] sm:$0xff]
    %v4738 = vld [vmem:[%s2915 + $0x13a] sm:$0xff]
    %v4739 = vld [vmem:[%s2915 + $0x142] sm:$0xff]
    %v4740 = vld [vmem:[%s2915 + $0x152] sm:$0xff]
    %v4741 = vld [vmem:[%s2915 + $0x15a] sm:$0xff]
    %v4742 = vld [vmem:[%s2915 + $0x16a] sm:$0xff]
    %v4743 = vld [vmem:[%s2915 + $0x172] sm:$0xff]
    %v4744 = vld [vmem:[%s2915 + $0x1b2] sm:$0xff]
    %v4745 = vld [vmem:[%s2915 + $0x1ba] sm:$0xff]
    %v4746 = vld [vmem:[%s2915 + $0x1ca] sm:$0xff]
    %v4747 = vld [vmem:[%s2915 + $0x1d2] sm:$0xff]
    %v4748 = vld [vmem:[%s2915 + $0x1e2] sm:$0xff]
    %v4749 = vld [vmem:[%s2915 + $0x1ea] sm:$0xff]
    %v4750 = vld [vmem:[%s2915 + $0x1fa] sm:$0xff]
    %v4751 = vld [vmem:[%s2915 + $0x202] sm:$0xff]
    %v4752 = vld [vmem:[%s2915 + $0x212] sm:$0xff]
    %v4753 = vld [vmem:[%s2915 + $0x21a] sm:$0xff]
    %v4754 = vld [vmem:[%s2915 + $0x22a] sm:$0xff]
    %v4755 = vld [vmem:[%s2915 + $0x232] sm:$0xff]
    %v4756 = vld [vmem:[%s2915 + $0x242] sm:$0xff]
    %v4757 = vld [vmem:[%s2915 + $0x24a] sm:$0xff]
    %v4758 = vld [vmem:[%s2915 + $0x25a] sm:$0xff]
    %v4759 = vld [vmem:[%s2915 + $0x262] sm:$0xff]
    %v4760 = vld [vmem:[%s2915 + $0x272] sm:$0xff]
    %v4761 = vld [vmem:[%s2915 + $0x27a] sm:$0xff]
    %v4762 = vld [vmem:[%s2915 + $0x28a] sm:$0xff]
    %v4763 = vld [vmem:[%s2915 + $0x292] sm:$0xff]
    %v4764 = vld [vmem:[%s2915 + $0x2a2] sm:$0xff]
    %v4765 = vld [vmem:[%s2915 + $0x2aa] sm:$0xff]
    %v4766 = vld [vmem:[%s2915 + $0x2ba] sm:$0xff]
    %v4767 = vld [vmem:[%s2915 + $0x2c2] sm:$0xff]
    %v4768 = vld [vmem:[%s2915 + $0x2d2] sm:$0xff]
    %v4769 = vld [vmem:[%s2915 + $0x2da] sm:$0xff]
    %v4770 = vld [vmem:[%s2915 + $0x2ea] sm:$0xff]
    %v4771 = vld [vmem:[%s2915 + $0x2f2] sm:$0xff]
    %v4772 = vld [vmem:[%s2915 + $0x302] sm:$0xff]
    %v4773 = vld [vmem:[%s2915 + $0x30a] sm:$0xff]
    %v4774 = vld [vmem:[%s2915 + $0x31a] sm:$0xff]
    %v4775 = vld [vmem:[%s2915 + $0x322] sm:$0xff]
    %v4776 = vpack.c.bf16 %v4712, %v4712
    %v4777 = vpack.c.bf16 %v4713, %v4713
    %v4778 = vpack.c.bf16 %v4714, %v4714
    %v4779 = vpack.c.bf16 %v4715, %v4715
    %v4780 = vpack.c.bf16 %v4716, %v4716
    %v4781 = vpack.c.bf16 %v4717, %v4717
    %v4782 = vpack.c.bf16 %v4718, %v4718
    %v4783 = vpack.c.bf16 %v4719, %v4719
    %v4784 = vpack.c.bf16 %v4720, %v4720
    %v4785 = vpack.c.bf16 %v4721, %v4721
    %v4786 = vpack.c.bf16 %v4722, %v4722
    %v4787 = vpack.c.bf16 %v4723, %v4723
    %v4788 = vpack.c.bf16 %v4724, %v4724
    %v4789 = vpack.c.bf16 %v4725, %v4725
    %v4790 = vpack.c.bf16 %v4726, %v4726
    %v4791 = vpack.c.bf16 %v4727, %v4727
    %v4792 = vpack.c.bf16 %v4728, %v4728
    %v4793 = vpack.c.bf16 %v4729, %v4729
    %v4794 = vpack.c.bf16 %v4730, %v4730
    %v4795 = vpack.c.bf16 %v4731, %v4731
    %v4796 = vpack.c.bf16 %v4732, %v4732
    %v4797 = vpack.c.bf16 %v4733, %v4733
    %v4798 = vpack.c.bf16 %v4734, %v4734
    %v4799 = vpack.c.bf16 %v4735, %v4735
    %v4800 = vpack.c.bf16 %v4736, %v4736
    %v4801 = vpack.c.bf16 %v4737, %v4737
    %v4802 = vpack.c.bf16 %v4738, %v4738
    %v4803 = vpack.c.bf16 %v4739, %v4739
    %v4804 = vpack.c.bf16 %v4740, %v4740
    %v4805 = vpack.c.bf16 %v4741, %v4741
    %v4806 = vpack.c.bf16 %v4742, %v4742
    %v4807 = vpack.c.bf16 %v4743, %v4743
    %v4808 = vpack.c.bf16 %v4744, %v4744
    %v4809 = vpack.c.bf16 %v4745, %v4745
    %v4810 = vpack.c.bf16 %v4746, %v4746
    %v4811 = vpack.c.bf16 %v4747, %v4747
    %v4812 = vpack.c.bf16 %v4748, %v4748
    %v4813 = vpack.c.bf16 %v4749, %v4749
    %v4814 = vpack.c.bf16 %v4750, %v4750
    %v4815 = vpack.c.bf16 %v4751, %v4751
    %v4816 = vpack.c.bf16 %v4752, %v4752
    %v4817 = vpack.c.bf16 %v4753, %v4753
    %v4818 = vpack.c.bf16 %v4754, %v4754
    %v4819 = vpack.c.bf16 %v4755, %v4755
    %v4820 = vpack.c.bf16 %v4756, %v4756
    %v4821 = vpack.c.bf16 %v4757, %v4757
    %v4822 = vpack.c.bf16 %v4758, %v4758
    %v4823 = vpack.c.bf16 %v4759, %v4759
    %v4824 = vpack.c.bf16 %v4760, %v4760
    %v4825 = vpack.c.bf16 %v4761, %v4761
    %v4826 = vpack.c.bf16 %v4762, %v4762
    %v4827 = vpack.c.bf16 %v4763, %v4763
    %v4828 = vpack.c.bf16 %v4764, %v4764
    %v4829 = vpack.c.bf16 %v4765, %v4765
    %v4830 = vpack.c.bf16 %v4766, %v4766
    %v4831 = vpack.c.bf16 %v4767, %v4767
    %v4832 = vpack.c.bf16 %v4768, %v4768
    %v4833 = vpack.c.bf16 %v4769, %v4769
    %v4834 = vpack.c.bf16 %v4770, %v4770
    %v4835 = vpack.c.bf16 %v4771, %v4771
    %v4836 = vpack.c.bf16 %v4772, %v4772
    %v4837 = vpack.c.bf16 %v4773, %v4773
    %v4838 = vpack.c.bf16 %v4774, %v4774
    %v4839 = vpack.c.bf16 %v4775, %v4775
    %4904 = vrot.lane.b32.xlu0 %v4776, 32
    %v4905 = vpop.permute.xlu0 %4904
    %4906 = vrot.lane.b32.xlu0 %v4777, 32
    %v4907 = vpop.permute.xlu0 %4906
    %4908 = vrot.lane.b32.xlu0 %v4778, 32
    %v4909 = vpop.permute.xlu0 %4908
    %4910 = vrot.lane.b32.xlu0 %v4779, 32
    %v4911 = vpop.permute.xlu0 %4910
    %4912 = vrot.lane.b32.xlu0 %v4780, 32
    %v4913 = vpop.permute.xlu0 %4912
    %4914 = vrot.lane.b32.xlu0 %v4781, 32
    %v4915 = vpop.permute.xlu0 %4914
    %4916 = vrot.lane.b32.xlu0 %v4782, 32
    %v4917 = vpop.permute.xlu0 %4916
    %4918 = vrot.lane.b32.xlu0 %v4783, 32
    %v4919 = vpop.permute.xlu0 %4918
    %4920 = vrot.lane.b32.xlu0 %v4784, 32
    %v4921 = vpop.permute.xlu0 %4920
    %4922 = vrot.lane.b32.xlu0 %v4785, 32
    %v4923 = vpop.permute.xlu0 %4922
    %4924 = vrot.lane.b32.xlu0 %v4786, 32
    %v4925 = vpop.permute.xlu0 %4924
    %4926 = vrot.lane.b32.xlu0 %v4787, 32
    %v4927 = vpop.permute.xlu0 %4926
    %4928 = vrot.lane.b32.xlu0 %v4788, 32
    %v4929 = vpop.permute.xlu0 %4928
    %4930 = vrot.lane.b32.xlu0 %v4789, 32
    %v4931 = vpop.permute.xlu0 %4930
    %4932 = vrot.lane.b32.xlu0 %v4790, 32
    %v4933 = vpop.permute.xlu0 %4932
    %4934 = vrot.lane.b32.xlu0 %v4791, 32
    %v4935 = vpop.permute.xlu0 %4934
    %4936 = vrot.lane.b32.xlu0 %v4792, 32
    %v4937 = vpop.permute.xlu0 %4936
    %4938 = vrot.lane.b32.xlu0 %v4793, 32
    %v4939 = vpop.permute.xlu0 %4938
    %4940 = vrot.lane.b32.xlu0 %v4794, 32
    %v4941 = vpop.permute.xlu0 %4940
    %4942 = vrot.lane.b32.xlu0 %v4795, 32
    %v4943 = vpop.permute.xlu0 %4942
    %4944 = vrot.lane.b32.xlu0 %v4796, 32
    %v4945 = vpop.permute.xlu0 %4944
    %4946 = vrot.lane.b32.xlu0 %v4797, 32
    %v4947 = vpop.permute.xlu0 %4946
    %4948 = vrot.lane.b32.xlu0 %v4798, 32
    %v4949 = vpop.permute.xlu0 %4948
    %4950 = vrot.lane.b32.xlu0 %v4799, 32
    %v4951 = vpop.permute.xlu0 %4950
    %4952 = vrot.lane.b32.xlu0 %v4800, 32
    %v4953 = vpop.permute.xlu0 %4952
    %4954 = vrot.lane.b32.xlu0 %v4801, 32
    %v4955 = vpop.permute.xlu0 %4954
    %4956 = vrot.lane.b32.xlu0 %v4802, 32
    %v4957 = vpop.permute.xlu0 %4956
    %4958 = vrot.lane.b32.xlu0 %v4803, 32
    %v4959 = vpop.permute.xlu0 %4958
    %4960 = vrot.lane.b32.xlu0 %v4804, 32
    %v4961 = vpop.permute.xlu0 %4960
    %4962 = vrot.lane.b32.xlu0 %v4805, 32
    %v4963 = vpop.permute.xlu0 %4962
    %4964 = vrot.lane.b32.xlu0 %v4806, 32
    %v4965 = vpop.permute.xlu0 %4964
    %4966 = vrot.lane.b32.xlu0 %v4807, 32
    %v4967 = vpop.permute.xlu0 %4966
    %4968 = vrot.lane.b32.xlu0 %v4808, 32
    %v4969 = vpop.permute.xlu0 %4968
    %4970 = vrot.lane.b32.xlu0 %v4809, 32
    %v4971 = vpop.permute.xlu0 %4970
    %4972 = vrot.lane.b32.xlu0 %v4810, 32
    %v4973 = vpop.permute.xlu0 %4972
    %4974 = vrot.lane.b32.xlu0 %v4811, 32
    %v4975 = vpop.permute.xlu0 %4974
    %4976 = vrot.lane.b32.xlu0 %v4812, 32
    %v4977 = vpop.permute.xlu0 %4976
    %4978 = vrot.lane.b32.xlu0 %v4813, 32
    %v4979 = vpop.permute.xlu0 %4978
    %4980 = vrot.lane.b32.xlu0 %v4814, 32
    %v4981 = vpop.permute.xlu0 %4980
    %4982 = vrot.lane.b32.xlu0 %v4815, 32
    %v4983 = vpop.permute.xlu0 %4982
    %4984 = vrot.lane.b32.xlu0 %v4816, 32
    %v4985 = vpop.permute.xlu0 %4984
    %4986 = vrot.lane.b32.xlu0 %v4817, 32
    %v4987 = vpop.permute.xlu0 %4986
    %4988 = vrot.lane.b32.xlu0 %v4818, 32
    %v4989 = vpop.permute.xlu0 %4988
    %4990 = vrot.lane.b32.xlu0 %v4819, 32
    %v4991 = vpop.permute.xlu0 %4990
    %4992 = vrot.lane.b32.xlu0 %v4820, 32
    %v4993 = vpop.permute.xlu0 %4992
    %4994 = vrot.lane.b32.xlu0 %v4821, 32
    %v4995 = vpop.permute.xlu0 %4994
    %4996 = vrot.lane.b32.xlu0 %v4822, 32
    %v4997 = vpop.permute.xlu0 %4996
    %4998 = vrot.lane.b32.xlu0 %v4823, 32
    %v4999 = vpop.permute.xlu0 %4998
    %5000 = vrot.lane.b32.xlu0 %v4824, 32
    %v5001 = vpop.permute.xlu0 %5000
    %5002 = vrot.lane.b32.xlu0 %v4825, 32
    %v5003 = vpop.permute.xlu0 %5002
    %5004 = vrot.lane.b32.xlu0 %v4826, 32
    %v5005 = vpop.permute.xlu0 %5004
    %5006 = vrot.lane.b32.xlu0 %v4827, 32
    %v5007 = vpop.permute.xlu0 %5006
    %5008 = vrot.lane.b32.xlu0 %v4828, 32
    %v5009 = vpop.permute.xlu0 %5008
    %5010 = vrot.lane.b32.xlu0 %v4829, 32
    %v5011 = vpop.permute.xlu0 %5010
    %5012 = vrot.lane.b32.xlu0 %v4830, 32
    %v5013 = vpop.permute.xlu0 %5012
    %5014 = vrot.lane.b32.xlu0 %v4831, 32
    %v5015 = vpop.permute.xlu0 %5014
    %5016 = vrot.lane.b32.xlu0 %v4832, 32
    %v5017 = vpop.permute.xlu0 %5016
    %5018 = vrot.lane.b32.xlu0 %v4833, 32
    %v5019 = vpop.permute.xlu0 %5018
    %5020 = vrot.lane.b32.xlu0 %v4834, 32
    %v5021 = vpop.permute.xlu0 %5020
    %5022 = vrot.lane.b32.xlu0 %v4835, 32
    %v5023 = vpop.permute.xlu0 %5022
    %5024 = vrot.lane.b32.xlu0 %v4836, 32
    %v5025 = vpop.permute.xlu0 %5024
    %5026 = vrot.lane.b32.xlu0 %v4837, 32
    %v5027 = vpop.permute.xlu0 %5026
    %5028 = vrot.lane.b32.xlu0 %v4838, 32
    %v5029 = vpop.permute.xlu0 %5028
    %5030 = vrot.lane.b32.xlu0 %v4839, 32
    %v5031 = vpop.permute.xlu0 %5030
    %5096 = vst.msk [vmem:[#allocation3 + $0x4] sm:$0xf] %vm3557, %v4905
    %5097 = vst.msk [vmem:[#allocation3 + $0x10] sm:$0xf] %vm3557, %v4907
    %5098 = vst.msk [vmem:[#allocation3 + $0x1c] sm:$0xf] %vm3557, %v4909
    %5099 = vst.msk [vmem:[#allocation3 + $0x28] sm:$0xf] %vm3557, %v4911
    %5100 = vst.msk [vmem:[#allocation3 + $0x34] sm:$0xf] %vm3557, %v4913
    %5101 = vst.msk [vmem:[#allocation3 + $0x40] sm:$0xf] %vm3557, %v4915
    %5102 = vst.msk [vmem:[#allocation3 + $0x4c] sm:$0xf] %vm3557, %v4917
    %5103 = vst.msk [vmem:[#allocation3 + $0x58] sm:$0xf] %vm3557, %v4919
    %5104 = vst.msk [vmem:[#allocation3 + $0x64] sm:$0xf] %vm3557, %v4921
    %5105 = vst.msk [vmem:[#allocation3 + $0x70] sm:$0xf] %vm3557, %v4923
    %5106 = vst.msk [vmem:[#allocation3 + $0x7c] sm:$0xf] %vm3557, %v4925
    %5107 = vst.msk [vmem:[#allocation3 + $0x88] sm:$0xf] %vm3557, %v4927
    %5108 = vst.msk [vmem:[#allocation3 + $0x94] sm:$0xf] %vm3557, %v4929
    %5109 = vst.msk [vmem:[#allocation3 + $0xa0] sm:$0xf] %vm3557, %v4931
    %5110 = vst.msk [vmem:[#allocation3 + $0xac] sm:$0xf] %vm3557, %v4933
    %5111 = vst.msk [vmem:[#allocation3 + $0xb8] sm:$0xf] %vm3557, %v4935
    %5112 = vst.msk [vmem:[#allocation3 + $0xc4] sm:$0xf] %vm3557, %v4937
    %5113 = vst.msk [vmem:[#allocation3 + $0xd0] sm:$0xf] %vm3557, %v4939
    %5114 = vst.msk [vmem:[#allocation3 + $0xdc] sm:$0xf] %vm3557, %v4941
    %5115 = vst.msk [vmem:[#allocation3 + $0xe8] sm:$0xf] %vm3557, %v4943
    %5116 = vst.msk [vmem:[#allocation3 + $0xf4] sm:$0xf] %vm3557, %v4945
    %5117 = vst.msk [vmem:[#allocation3 + $0x100] sm:$0xf] %vm3557, %v4947
    %5118 = vst.msk [vmem:[#allocation3 + $0x10c] sm:$0xf] %vm3557, %v4949
    %5119 = vst.msk [vmem:[#allocation3 + $0x118] sm:$0xf] %vm3557, %v4951
    %5120 = vst.msk [vmem:[#allocation3 + $0x124] sm:$0xf] %vm3557, %v4953
    %5121 = vst.msk [vmem:[#allocation3 + $0x130] sm:$0xf] %vm3557, %v4955
    %5122 = vst.msk [vmem:[#allocation3 + $0x13c] sm:$0xf] %vm3557, %v4957
    %5123 = vst.msk [vmem:[#allocation3 + $0x148] sm:$0xf] %vm3557, %v4959
    %5124 = vst.msk [vmem:[#allocation3 + $0x154] sm:$0xf] %vm3557, %v4961
    %5125 = vst.msk [vmem:[#allocation3 + $0x160] sm:$0xf] %vm3557, %v4963
    %5126 = vst.msk [vmem:[#allocation3 + $0x16c] sm:$0xf] %vm3557, %v4965
    %5127 = vst.msk [vmem:[#allocation3 + $0x178] sm:$0xf] %vm3557, %v4967
    %5128 = vst.msk [vmem:[#allocation3 + $0x184] sm:$0xf] %vm3557, %v4969
    %5129 = vst.msk [vmem:[#allocation3 + $0x190] sm:$0xf] %vm3557, %v4971
    %5130 = vst.msk [vmem:[#allocation3 + $0x19c] sm:$0xf] %vm3557, %v4973
    %5131 = vst.msk [vmem:[#allocation3 + $0x1a8] sm:$0xf] %vm3557, %v4975
    %5132 = vst.msk [vmem:[#allocation3 + $0x1b4] sm:$0xf] %vm3557, %v4977
    %5133 = vst.msk [vmem:[#allocation3 + $0x1c0] sm:$0xf] %vm3557, %v4979
    %5134 = vst.msk [vmem:[#allocation3 + $0x1cc] sm:$0xf] %vm3557, %v4981
    %5135 = vst.msk [vmem:[#allocation3 + $0x1d8] sm:$0xf] %vm3557, %v4983
    %5136 = vst.msk [vmem:[#allocation3 + $0x1e4] sm:$0xf] %vm3557, %v4985
    %5137 = vst.msk [vmem:[#allocation3 + $0x1f0] sm:$0xf] %vm3557, %v4987
    %5138 = vst.msk [vmem:[#allocation3 + $0x1fc] sm:$0xf] %vm3557, %v4989
    %5139 = vst.msk [vmem:[#allocation3 + $0x208] sm:$0xf] %vm3557, %v4991
    %5140 = vst.msk [vmem:[#allocation3 + $0x214] sm:$0xf] %vm3557, %v4993
    %5141 = vst.msk [vmem:[#allocation3 + $0x220] sm:$0xf] %vm3557, %v4995
    %5142 = vst.msk [vmem:[#allocation3 + $0x22c] sm:$0xf] %vm3557, %v4997
    %5143 = vst.msk [vmem:[#allocation3 + $0x238] sm:$0xf] %vm3557, %v4999
    %5144 = vst.msk [vmem:[#allocation3 + $0x244] sm:$0xf] %vm3557, %v5001
    %5145 = vst.msk [vmem:[#allocation3 + $0x250] sm:$0xf] %vm3557, %v5003
    %5146 = vst.msk [vmem:[#allocation3 + $0x25c] sm:$0xf] %vm3557, %v5005
    %5147 = vst.msk [vmem:[#allocation3 + $0x268] sm:$0xf] %vm3557, %v5007
    %5148 = vst.msk [vmem:[#allocation3 + $0x274] sm:$0xf] %vm3557, %v5009
    %5149 = vst.msk [vmem:[#allocation3 + $0x280] sm:$0xf] %vm3557, %v5011
    %5150 = vst.msk [vmem:[#allocation3 + $0x28c] sm:$0xf] %vm3557, %v5013
    %5151 = vst.msk [vmem:[#allocation3 + $0x298] sm:$0xf] %vm3557, %v5015
    %5152 = vst.msk [vmem:[#allocation3 + $0x2a4] sm:$0xf] %vm3557, %v5017
    %5153 = vst.msk [vmem:[#allocation3 + $0x2b0] sm:$0xf] %vm3557, %v5019
    %5154 = vst.msk [vmem:[#allocation3 + $0x2bc] sm:$0xf] %vm3557, %v5021
    %5155 = vst.msk [vmem:[#allocation3 + $0x2c8] sm:$0xf] %vm3557, %v5023
    %5156 = vst.msk [vmem:[#allocation3 + $0x2d4] sm:$0xf] %vm3557, %v5025
    %5157 = vst.msk [vmem:[#allocation3 + $0x2e0] sm:$0xf] %vm3557, %v5027
    %5158 = vst.msk [vmem:[#allocation3 + $0x2ec] sm:$0xf] %vm3557, %v5029
    %5159 = vst.msk [vmem:[#allocation3 + $0x2f8] sm:$0xf] %vm3557, %v5031
    %s5160 = scalar_lea.vmem [#allocation2], 48
    %v5161 = vld [vmem:[%s5160] sm:$0xff]
    %v5162 = vld [vmem:[%s5160 + $0x8] sm:$0xff]
    %v5163 = vld [vmem:[%s5160 + $0x18] sm:$0xff]
    %v5164 = vld [vmem:[%s5160 + $0x20] sm:$0xff]
    %v5165 = vld [vmem:[%s5160 + $0x30] sm:$0xff]
    %v5166 = vld [vmem:[%s5160 + $0x38] sm:$0xff]
    %v5167 = vld [vmem:[%s5160 + $0x48] sm:$0xff]
    %v5168 = vld [vmem:[%s5160 + $0x50] sm:$0xff]
    %v5169 = vld [vmem:[%s5160 + $0x60] sm:$0xff]
    %v5170 = vld [vmem:[%s5160 + $0x68] sm:$0xff]
    %v5171 = vld [vmem:[%s5160 + $0x78] sm:$0xff]
    %v5172 = vld [vmem:[%s5160 + $0x80] sm:$0xff]
    %v5173 = vld [vmem:[%s5160 + $0x90] sm:$0xff]
    %v5174 = vld [vmem:[%s5160 + $0x98] sm:$0xff]
    %v5175 = vld [vmem:[%s5160 + $0xa8] sm:$0xff]
    %v5176 = vld [vmem:[%s5160 + $0xb0] sm:$0xff]
    %v5177 = vld [vmem:[%s5160 + $0xc0] sm:$0xff]
    %v5178 = vld [vmem:[%s5160 + $0xc8] sm:$0xff]
    %v5179 = vld [vmem:[%s5160 + $0xd8] sm:$0xff]
    %v5180 = vld [vmem:[%s5160 + $0xe0] sm:$0xff]
    %v5181 = vld [vmem:[%s5160 + $0xf0] sm:$0xff]
    %v5182 = vld [vmem:[%s5160 + $0xf8] sm:$0xff]
    %v5183 = vld [vmem:[%s5160 + $0x108] sm:$0xff]
    %v5184 = vld [vmem:[%s5160 + $0x110] sm:$0xff]
    %v5185 = vld [vmem:[%s5160 + $0x120] sm:$0xff]
    %v5186 = vld [vmem:[%s5160 + $0x128] sm:$0xff]
    %v5187 = vld [vmem:[%s5160 + $0x138] sm:$0xff]
    %v5188 = vld [vmem:[%s5160 + $0x140] sm:$0xff]
    %v5189 = vld [vmem:[%s5160 + $0x150] sm:$0xff]
    %v5190 = vld [vmem:[%s5160 + $0x158] sm:$0xff]
    %v5191 = vld [vmem:[%s5160 + $0x168] sm:$0xff]
    %v5192 = vld [vmem:[%s5160 + $0x170] sm:$0xff]
    %v5193 = vld [vmem:[%s5160 + $0x1b0] sm:$0xff]
    %v5194 = vld [vmem:[%s5160 + $0x1b8] sm:$0xff]
    %v5195 = vld [vmem:[%s5160 + $0x1c8] sm:$0xff]
    %v5196 = vld [vmem:[%s5160 + $0x1d0] sm:$0xff]
    %v5197 = vld [vmem:[%s5160 + $0x1e0] sm:$0xff]
    %v5198 = vld [vmem:[%s5160 + $0x1e8] sm:$0xff]
    %v5199 = vld [vmem:[%s5160 + $0x1f8] sm:$0xff]
    %v5200 = vld [vmem:[%s5160 + $0x200] sm:$0xff]
    %v5201 = vld [vmem:[%s5160 + $0x210] sm:$0xff]
    %v5202 = vld [vmem:[%s5160 + $0x218] sm:$0xff]
    %v5203 = vld [vmem:[%s5160 + $0x228] sm:$0xff]
    %v5204 = vld [vmem:[%s5160 + $0x230] sm:$0xff]
    %v5205 = vld [vmem:[%s5160 + $0x240] sm:$0xff]
    %v5206 = vld [vmem:[%s5160 + $0x248] sm:$0xff]
    %v5207 = vld [vmem:[%s5160 + $0x258] sm:$0xff]
    %v5208 = vld [vmem:[%s5160 + $0x260] sm:$0xff]
    %v5209 = vld [vmem:[%s5160 + $0x270] sm:$0xff]
    %v5210 = vld [vmem:[%s5160 + $0x278] sm:$0xff]
    %v5211 = vld [vmem:[%s5160 + $0x288] sm:$0xff]
    %v5212 = vld [vmem:[%s5160 + $0x290] sm:$0xff]
    %v5213 = vld [vmem:[%s5160 + $0x2a0] sm:$0xff]
    %v5214 = vld [vmem:[%s5160 + $0x2a8] sm:$0xff]
    %v5215 = vld [vmem:[%s5160 + $0x2b8] sm:$0xff]
    %v5216 = vld [vmem:[%s5160 + $0x2c0] sm:$0xff]
    %v5217 = vld [vmem:[%s5160 + $0x2d0] sm:$0xff]
    %v5218 = vld [vmem:[%s5160 + $0x2d8] sm:$0xff]
    %v5219 = vld [vmem:[%s5160 + $0x2e8] sm:$0xff]
    %v5220 = vld [vmem:[%s5160 + $0x2f0] sm:$0xff]
    %v5221 = vld [vmem:[%s5160 + $0x300] sm:$0xff]
    %v5222 = vld [vmem:[%s5160 + $0x308] sm:$0xff]
    %v5223 = vld [vmem:[%s5160 + $0x318] sm:$0xff]
    %v5224 = vld [vmem:[%s5160 + $0x320] sm:$0xff]
    %v5225 = vpack.c.bf16 %v5161, %v5161
    %v5226 = vpack.c.bf16 %v5162, %v5162
    %v5227 = vpack.c.bf16 %v5163, %v5163
    %v5228 = vpack.c.bf16 %v5164, %v5164
    %v5229 = vpack.c.bf16 %v5165, %v5165
    %v5230 = vpack.c.bf16 %v5166, %v5166
    %v5231 = vpack.c.bf16 %v5167, %v5167
    %v5232 = vpack.c.bf16 %v5168, %v5168
    %v5233 = vpack.c.bf16 %v5169, %v5169
    %v5234 = vpack.c.bf16 %v5170, %v5170
    %v5235 = vpack.c.bf16 %v5171, %v5171
    %v5236 = vpack.c.bf16 %v5172, %v5172
    %v5237 = vpack.c.bf16 %v5173, %v5173
    %v5238 = vpack.c.bf16 %v5174, %v5174
    %v5239 = vpack.c.bf16 %v5175, %v5175
    %v5240 = vpack.c.bf16 %v5176, %v5176
    %v5241 = vpack.c.bf16 %v5177, %v5177
    %v5242 = vpack.c.bf16 %v5178, %v5178
    %v5243 = vpack.c.bf16 %v5179, %v5179
    %v5244 = vpack.c.bf16 %v5180, %v5180
    %v5245 = vpack.c.bf16 %v5181, %v5181
    %v5246 = vpack.c.bf16 %v5182, %v5182
    %v5247 = vpack.c.bf16 %v5183, %v5183
    %v5248 = vpack.c.bf16 %v5184, %v5184
    %v5249 = vpack.c.bf16 %v5185, %v5185
    %v5250 = vpack.c.bf16 %v5186, %v5186
    %v5251 = vpack.c.bf16 %v5187, %v5187
    %v5252 = vpack.c.bf16 %v5188, %v5188
    %v5253 = vpack.c.bf16 %v5189, %v5189
    %v5254 = vpack.c.bf16 %v5190, %v5190
    %v5255 = vpack.c.bf16 %v5191, %v5191
    %v5256 = vpack.c.bf16 %v5192, %v5192
    %v5257 = vpack.c.bf16 %v5193, %v5193
    %v5258 = vpack.c.bf16 %v5194, %v5194
    %v5259 = vpack.c.bf16 %v5195, %v5195
    %v5260 = vpack.c.bf16 %v5196, %v5196
    %v5261 = vpack.c.bf16 %v5197, %v5197
    %v5262 = vpack.c.bf16 %v5198, %v5198
    %v5263 = vpack.c.bf16 %v5199, %v5199
    %v5264 = vpack.c.bf16 %v5200, %v5200
    %v5265 = vpack.c.bf16 %v5201, %v5201
    %v5266 = vpack.c.bf16 %v5202, %v5202
    %v5267 = vpack.c.bf16 %v5203, %v5203
    %v5268 = vpack.c.bf16 %v5204, %v5204
    %v5269 = vpack.c.bf16 %v5205, %v5205
    %v5270 = vpack.c.bf16 %v5206, %v5206
    %v5271 = vpack.c.bf16 %v5207, %v5207
    %v5272 = vpack.c.bf16 %v5208, %v5208
    %v5273 = vpack.c.bf16 %v5209, %v5209
    %v5274 = vpack.c.bf16 %v5210, %v5210
    %v5275 = vpack.c.bf16 %v5211, %v5211
    %v5276 = vpack.c.bf16 %v5212, %v5212
    %v5277 = vpack.c.bf16 %v5213, %v5213
    %v5278 = vpack.c.bf16 %v5214, %v5214
    %v5279 = vpack.c.bf16 %v5215, %v5215
    %v5280 = vpack.c.bf16 %v5216, %v5216
    %v5281 = vpack.c.bf16 %v5217, %v5217
    %v5282 = vpack.c.bf16 %v5218, %v5218
    %v5283 = vpack.c.bf16 %v5219, %v5219
    %v5284 = vpack.c.bf16 %v5220, %v5220
    %v5285 = vpack.c.bf16 %v5221, %v5221
    %v5286 = vpack.c.bf16 %v5222, %v5222
    %v5287 = vpack.c.bf16 %v5223, %v5223
    %v5288 = vpack.c.bf16 %v5224, %v5224
    %5353 = vrot.lane.b32.xlu0 %v5225, 64
    %v5354 = vpop.permute.xlu0 %5353
    %5355 = vrot.lane.b32.xlu0 %v5226, 64
    %v5356 = vpop.permute.xlu0 %5355
    %5357 = vrot.lane.b32.xlu0 %v5227, 64
    %v5358 = vpop.permute.xlu0 %5357
    %5359 = vrot.lane.b32.xlu0 %v5228, 64
    %v5360 = vpop.permute.xlu0 %5359
    %5361 = vrot.lane.b32.xlu0 %v5229, 64
    %v5362 = vpop.permute.xlu0 %5361
    %5363 = vrot.lane.b32.xlu0 %v5230, 64
    %v5364 = vpop.permute.xlu0 %5363
    %5365 = vrot.lane.b32.xlu0 %v5231, 64
    %v5366 = vpop.permute.xlu0 %5365
    %5367 = vrot.lane.b32.xlu0 %v5232, 64
    %v5368 = vpop.permute.xlu0 %5367
    %5369 = vrot.lane.b32.xlu0 %v5233, 64
    %v5370 = vpop.permute.xlu0 %5369
    %5371 = vrot.lane.b32.xlu0 %v5234, 64
    %v5372 = vpop.permute.xlu0 %5371
    %5373 = vrot.lane.b32.xlu0 %v5235, 64
    %v5374 = vpop.permute.xlu0 %5373
    %5375 = vrot.lane.b32.xlu0 %v5236, 64
    %v5376 = vpop.permute.xlu0 %5375
    %5377 = vrot.lane.b32.xlu0 %v5237, 64
    %v5378 = vpop.permute.xlu0 %5377
    %5379 = vrot.lane.b32.xlu0 %v5238, 64
    %v5380 = vpop.permute.xlu0 %5379
    %5381 = vrot.lane.b32.xlu0 %v5239, 64
    %v5382 = vpop.permute.xlu0 %5381
    %5383 = vrot.lane.b32.xlu0 %v5240, 64
    %v5384 = vpop.permute.xlu0 %5383
    %5385 = vrot.lane.b32.xlu0 %v5241, 64
    %v5386 = vpop.permute.xlu0 %5385
    %5387 = vrot.lane.b32.xlu0 %v5242, 64
    %v5388 = vpop.permute.xlu0 %5387
    %5389 = vrot.lane.b32.xlu0 %v5243, 64
    %v5390 = vpop.permute.xlu0 %5389
    %5391 = vrot.lane.b32.xlu0 %v5244, 64
    %v5392 = vpop.permute.xlu0 %5391
    %5393 = vrot.lane.b32.xlu0 %v5245, 64
    %v5394 = vpop.permute.xlu0 %5393
    %5395 = vrot.lane.b32.xlu0 %v5246, 64
    %v5396 = vpop.permute.xlu0 %5395
    %5397 = vrot.lane.b32.xlu0 %v5247, 64
    %v5398 = vpop.permute.xlu0 %5397
    %5399 = vrot.lane.b32.xlu0 %v5248, 64
    %v5400 = vpop.permute.xlu0 %5399
    %5401 = vrot.lane.b32.xlu0 %v5249, 64
    %v5402 = vpop.permute.xlu0 %5401
    %5403 = vrot.lane.b32.xlu0 %v5250, 64
    %v5404 = vpop.permute.xlu0 %5403
    %5405 = vrot.lane.b32.xlu0 %v5251, 64
    %v5406 = vpop.permute.xlu0 %5405
    %5407 = vrot.lane.b32.xlu0 %v5252, 64
    %v5408 = vpop.permute.xlu0 %5407
    %5409 = vrot.lane.b32.xlu0 %v5253, 64
    %v5410 = vpop.permute.xlu0 %5409
    %5411 = vrot.lane.b32.xlu0 %v5254, 64
    %v5412 = vpop.permute.xlu0 %5411
    %5413 = vrot.lane.b32.xlu0 %v5255, 64
    %v5414 = vpop.permute.xlu0 %5413
    %5415 = vrot.lane.b32.xlu0 %v5256, 64
    %v5416 = vpop.permute.xlu0 %5415
    %5417 = vrot.lane.b32.xlu0 %v5257, 64
    %v5418 = vpop.permute.xlu0 %5417
    %5419 = vrot.lane.b32.xlu0 %v5258, 64
    %v5420 = vpop.permute.xlu0 %5419
    %5421 = vrot.lane.b32.xlu0 %v5259, 64
    %v5422 = vpop.permute.xlu0 %5421
    %5423 = vrot.lane.b32.xlu0 %v5260, 64
    %v5424 = vpop.permute.xlu0 %5423
    %5425 = vrot.lane.b32.xlu0 %v5261, 64
    %v5426 = vpop.permute.xlu0 %5425
    %5427 = vrot.lane.b32.xlu0 %v5262, 64
    %v5428 = vpop.permute.xlu0 %5427
    %5429 = vrot.lane.b32.xlu0 %v5263, 64
    %v5430 = vpop.permute.xlu0 %5429
    %5431 = vrot.lane.b32.xlu0 %v5264, 64
    %v5432 = vpop.permute.xlu0 %5431
    %5433 = vrot.lane.b32.xlu0 %v5265, 64
    %v5434 = vpop.permute.xlu0 %5433
    %5435 = vrot.lane.b32.xlu0 %v5266, 64
    %v5436 = vpop.permute.xlu0 %5435
    %5437 = vrot.lane.b32.xlu0 %v5267, 64
    %v5438 = vpop.permute.xlu0 %5437
    %5439 = vrot.lane.b32.xlu0 %v5268, 64
    %v5440 = vpop.permute.xlu0 %5439
    %5441 = vrot.lane.b32.xlu0 %v5269, 64
    %v5442 = vpop.permute.xlu0 %5441
    %5443 = vrot.lane.b32.xlu0 %v5270, 64
    %v5444 = vpop.permute.xlu0 %5443
    %5445 = vrot.lane.b32.xlu0 %v5271, 64
    %v5446 = vpop.permute.xlu0 %5445
    %5447 = vrot.lane.b32.xlu0 %v5272, 64
    %v5448 = vpop.permute.xlu0 %5447
    %5449 = vrot.lane.b32.xlu0 %v5273, 64
    %v5450 = vpop.permute.xlu0 %5449
    %5451 = vrot.lane.b32.xlu0 %v5274, 64
    %v5452 = vpop.permute.xlu0 %5451
    %5453 = vrot.lane.b32.xlu0 %v5275, 64
    %v5454 = vpop.permute.xlu0 %5453
    %5455 = vrot.lane.b32.xlu0 %v5276, 64
    %v5456 = vpop.permute.xlu0 %5455
    %5457 = vrot.lane.b32.xlu0 %v5277, 64
    %v5458 = vpop.permute.xlu0 %5457
    %5459 = vrot.lane.b32.xlu0 %v5278, 64
    %v5460 = vpop.permute.xlu0 %5459
    %5461 = vrot.lane.b32.xlu0 %v5279, 64
    %v5462 = vpop.permute.xlu0 %5461
    %5463 = vrot.lane.b32.xlu0 %v5280, 64
    %v5464 = vpop.permute.xlu0 %5463
    %5465 = vrot.lane.b32.xlu0 %v5281, 64
    %v5466 = vpop.permute.xlu0 %5465
    %5467 = vrot.lane.b32.xlu0 %v5282, 64
    %v5468 = vpop.permute.xlu0 %5467
    %5469 = vrot.lane.b32.xlu0 %v5283, 64
    %v5470 = vpop.permute.xlu0 %5469
    %5471 = vrot.lane.b32.xlu0 %v5284, 64
    %v5472 = vpop.permute.xlu0 %5471
    %5473 = vrot.lane.b32.xlu0 %v5285, 64
    %v5474 = vpop.permute.xlu0 %5473
    %5475 = vrot.lane.b32.xlu0 %v5286, 64
    %v5476 = vpop.permute.xlu0 %5475
    %5477 = vrot.lane.b32.xlu0 %v5287, 64
    %v5478 = vpop.permute.xlu0 %5477
    %5479 = vrot.lane.b32.xlu0 %v5288, 64
    %v5480 = vpop.permute.xlu0 %5479
    %5545 = vst.msk [vmem:[#allocation3 + $0x4] sm:$0xf] %vm4006, %v5354
    %5546 = vst.msk [vmem:[#allocation3 + $0x10] sm:$0xf] %vm4006, %v5356
    %5547 = vst.msk [vmem:[#allocation3 + $0x1c] sm:$0xf] %vm4006, %v5358
    %5548 = vst.msk [vmem:[#allocation3 + $0x28] sm:$0xf] %vm4006, %v5360
    %5549 = vst.msk [vmem:[#allocation3 + $0x34] sm:$0xf] %vm4006, %v5362
    %5550 = vst.msk [vmem:[#allocation3 + $0x40] sm:$0xf] %vm4006, %v5364
    %5551 = vst.msk [vmem:[#allocation3 + $0x4c] sm:$0xf] %vm4006, %v5366
    %5552 = vst.msk [vmem:[#allocation3 + $0x58] sm:$0xf] %vm4006, %v5368
    %5553 = vst.msk [vmem:[#allocation3 + $0x64] sm:$0xf] %vm4006, %v5370
    %5554 = vst.msk [vmem:[#allocation3 + $0x70] sm:$0xf] %vm4006, %v5372
    %5555 = vst.msk [vmem:[#allocation3 + $0x7c] sm:$0xf] %vm4006, %v5374
    %5556 = vst.msk [vmem:[#allocation3 + $0x88] sm:$0xf] %vm4006, %v5376
    %5557 = vst.msk [vmem:[#allocation3 + $0x94] sm:$0xf] %vm4006, %v5378
    %5558 = vst.msk [vmem:[#allocation3 + $0xa0] sm:$0xf] %vm4006, %v5380
    %5559 = vst.msk [vmem:[#allocation3 + $0xac] sm:$0xf] %vm4006, %v5382
    %5560 = vst.msk [vmem:[#allocation3 + $0xb8] sm:$0xf] %vm4006, %v5384
    %5561 = vst.msk [vmem:[#allocation3 + $0xc4] sm:$0xf] %vm4006, %v5386
    %5562 = vst.msk [vmem:[#allocation3 + $0xd0] sm:$0xf] %vm4006, %v5388
    %5563 = vst.msk [vmem:[#allocation3 + $0xdc] sm:$0xf] %vm4006, %v5390
    %5564 = vst.msk [vmem:[#allocation3 + $0xe8] sm:$0xf] %vm4006, %v5392
    %5565 = vst.msk [vmem:[#allocation3 + $0xf4] sm:$0xf] %vm4006, %v5394
    %5566 = vst.msk [vmem:[#allocation3 + $0x100] sm:$0xf] %vm4006, %v5396
    %5567 = vst.msk [vmem:[#allocation3 + $0x10c] sm:$0xf] %vm4006, %v5398
    %5568 = vst.msk [vmem:[#allocation3 + $0x118] sm:$0xf] %vm4006, %v5400
    %5569 = vst.msk [vmem:[#allocation3 + $0x124] sm:$0xf] %vm4006, %v5402
    %5570 = vst.msk [vmem:[#allocation3 + $0x130] sm:$0xf] %vm4006, %v5404
    %5571 = vst.msk [vmem:[#allocation3 + $0x13c] sm:$0xf] %vm4006, %v5406
    %5572 = vst.msk [vmem:[#allocation3 + $0x148] sm:$0xf] %vm4006, %v5408
    %5573 = vst.msk [vmem:[#allocation3 + $0x154] sm:$0xf] %vm4006, %v5410
    %5574 = vst.msk [vmem:[#allocation3 + $0x160] sm:$0xf] %vm4006, %v5412
    %5575 = vst.msk [vmem:[#allocation3 + $0x16c] sm:$0xf] %vm4006, %v5414
    %5576 = vst.msk [vmem:[#allocation3 + $0x178] sm:$0xf] %vm4006, %v5416
    %5577 = vst.msk [vmem:[#allocation3 + $0x184] sm:$0xf] %vm4006, %v5418
    %5578 = vst.msk [vmem:[#allocation3 + $0x190] sm:$0xf] %vm4006, %v5420
    %5579 = vst.msk [vmem:[#allocation3 + $0x19c] sm:$0xf] %vm4006, %v5422
    %5580 = vst.msk [vmem:[#allocation3 + $0x1a8] sm:$0xf] %vm4006, %v5424
    %5581 = vst.msk [vmem:[#allocation3 + $0x1b4] sm:$0xf] %vm4006, %v5426
    %5582 = vst.msk [vmem:[#allocation3 + $0x1c0] sm:$0xf] %vm4006, %v5428
    %5583 = vst.msk [vmem:[#allocation3 + $0x1cc] sm:$0xf] %vm4006, %v5430
    %5584 = vst.msk [vmem:[#allocation3 + $0x1d8] sm:$0xf] %vm4006, %v5432
    %5585 = vst.msk [vmem:[#allocation3 + $0x1e4] sm:$0xf] %vm4006, %v5434
    %5586 = vst.msk [vmem:[#allocation3 + $0x1f0] sm:$0xf] %vm4006, %v5436
    %5587 = vst.msk [vmem:[#allocation3 + $0x1fc] sm:$0xf] %vm4006, %v5438
    %5588 = vst.msk [vmem:[#allocation3 + $0x208] sm:$0xf] %vm4006, %v5440
    %5589 = vst.msk [vmem:[#allocation3 + $0x214] sm:$0xf] %vm4006, %v5442
    %5590 = vst.msk [vmem:[#allocation3 + $0x220] sm:$0xf] %vm4006, %v5444
    %5591 = vst.msk [vmem:[#allocation3 + $0x22c] sm:$0xf] %vm4006, %v5446
    %5592 = vst.msk [vmem:[#allocation3 + $0x238] sm:$0xf] %vm4006, %v5448
    %5593 = vst.msk [vmem:[#allocation3 + $0x244] sm:$0xf] %vm4006, %v5450
    %5594 = vst.msk [vmem:[#allocation3 + $0x250] sm:$0xf] %vm4006, %v5452
    %5595 = vst.msk [vmem:[#allocation3 + $0x25c] sm:$0xf] %vm4006, %v5454
    %5596 = vst.msk [vmem:[#allocation3 + $0x268] sm:$0xf] %vm4006, %v5456
    %5597 = vst.msk [vmem:[#allocation3 + $0x274] sm:$0xf] %vm4006, %v5458
    %5598 = vst.msk [vmem:[#allocation3 + $0x280] sm:$0xf] %vm4006, %v5460
    %5599 = vst.msk [vmem:[#allocation3 + $0x28c] sm:$0xf] %vm4006, %v5462
    %5600 = vst.msk [vmem:[#allocation3 + $0x298] sm:$0xf] %vm4006, %v5464
    %5601 = vst.msk [vmem:[#allocation3 + $0x2a4] sm:$0xf] %vm4006, %v5466
    %5602 = vst.msk [vmem:[#allocation3 + $0x2b0] sm:$0xf] %vm4006, %v5468
    %5603 = vst.msk [vmem:[#allocation3 + $0x2bc] sm:$0xf] %vm4006, %v5470
    %5604 = vst.msk [vmem:[#allocation3 + $0x2c8] sm:$0xf] %vm4006, %v5472
    %5605 = vst.msk [vmem:[#allocation3 + $0x2d4] sm:$0xf] %vm4006, %v5474
    %5606 = vst.msk [vmem:[#allocation3 + $0x2e0] sm:$0xf] %vm4006, %v5476
    %5607 = vst.msk [vmem:[#allocation3 + $0x2ec] sm:$0xf] %vm4006, %v5478
    %5608 = vst.msk [vmem:[#allocation3 + $0x2f8] sm:$0xf] %vm4006, %v5480
    %v5609 = vld [vmem:[%s5160 + $0x1] sm:$0xff]
    %v5610 = vld [vmem:[%s5160 + $0x9] sm:$0xff]
    %v5611 = vld [vmem:[%s5160 + $0x19] sm:$0xff]
    %v5612 = vld [vmem:[%s5160 + $0x21] sm:$0xff]
    %v5613 = vld [vmem:[%s5160 + $0x31] sm:$0xff]
    %v5614 = vld [vmem:[%s5160 + $0x39] sm:$0xff]
    %v5615 = vld [vmem:[%s5160 + $0x49] sm:$0xff]
    %v5616 = vld [vmem:[%s5160 + $0x51] sm:$0xff]
    %v5617 = vld [vmem:[%s5160 + $0x61] sm:$0xff]
    %v5618 = vld [vmem:[%s5160 + $0x69] sm:$0xff]
    %v5619 = vld [vmem:[%s5160 + $0x79] sm:$0xff]
    %v5620 = vld [vmem:[%s5160 + $0x81] sm:$0xff]
    %v5621 = vld [vmem:[%s5160 + $0x91] sm:$0xff]
    %v5622 = vld [vmem:[%s5160 + $0x99] sm:$0xff]
    %v5623 = vld [vmem:[%s5160 + $0xa9] sm:$0xff]
    %v5624 = vld [vmem:[%s5160 + $0xb1] sm:$0xff]
    %v5625 = vld [vmem:[%s5160 + $0xc1] sm:$0xff]
    %v5626 = vld [vmem:[%s5160 + $0xc9] sm:$0xff]
    %v5627 = vld [vmem:[%s5160 + $0xd9] sm:$0xff]
    %v5628 = vld [vmem:[%s5160 + $0xe1] sm:$0xff]
    %v5629 = vld [vmem:[%s5160 + $0xf1] sm:$0xff]
    %v5630 = vld [vmem:[%s5160 + $0xf9] sm:$0xff]
    %v5631 = vld [vmem:[%s5160 + $0x109] sm:$0xff]
    %v5632 = vld [vmem:[%s5160 + $0x111] sm:$0xff]
    %v5633 = vld [vmem:[%s5160 + $0x121] sm:$0xff]
    %v5634 = vld [vmem:[%s5160 + $0x129] sm:$0xff]
    %v5635 = vld [vmem:[%s5160 + $0x139] sm:$0xff]
    %v5636 = vld [vmem:[%s5160 + $0x141] sm:$0xff]
    %v5637 = vld [vmem:[%s5160 + $0x151] sm:$0xff]
    %v5638 = vld [vmem:[%s5160 + $0x159] sm:$0xff]
    %v5639 = vld [vmem:[%s5160 + $0x169] sm:$0xff]
    %v5640 = vld [vmem:[%s5160 + $0x171] sm:$0xff]
    %v5641 = vld [vmem:[%s5160 + $0x1b1] sm:$0xff]
    %v5642 = vld [vmem:[%s5160 + $0x1b9] sm:$0xff]
    %v5643 = vld [vmem:[%s5160 + $0x1c9] sm:$0xff]
    %v5644 = vld [vmem:[%s5160 + $0x1d1] sm:$0xff]
    %v5645 = vld [vmem:[%s5160 + $0x1e1] sm:$0xff]
    %v5646 = vld [vmem:[%s5160 + $0x1e9] sm:$0xff]
    %v5647 = vld [vmem:[%s5160 + $0x1f9] sm:$0xff]
    %v5648 = vld [vmem:[%s5160 + $0x201] sm:$0xff]
    %v5649 = vld [vmem:[%s5160 + $0x211] sm:$0xff]
    %v5650 = vld [vmem:[%s5160 + $0x219] sm:$0xff]
    %v5651 = vld [vmem:[%s5160 + $0x229] sm:$0xff]
    %v5652 = vld [vmem:[%s5160 + $0x231] sm:$0xff]
    %v5653 = vld [vmem:[%s5160 + $0x241] sm:$0xff]
    %v5654 = vld [vmem:[%s5160 + $0x249] sm:$0xff]
    %v5655 = vld [vmem:[%s5160 + $0x259] sm:$0xff]
    %v5656 = vld [vmem:[%s5160 + $0x261] sm:$0xff]
    %v5657 = vld [vmem:[%s5160 + $0x271] sm:$0xff]
    %v5658 = vld [vmem:[%s5160 + $0x279] sm:$0xff]
    %v5659 = vld [vmem:[%s5160 + $0x289] sm:$0xff]
    %v5660 = vld [vmem:[%s5160 + $0x291] sm:$0xff]
    %v5661 = vld [vmem:[%s5160 + $0x2a1] sm:$0xff]
    %v5662 = vld [vmem:[%s5160 + $0x2a9] sm:$0xff]
    %v5663 = vld [vmem:[%s5160 + $0x2b9] sm:$0xff]
    %v5664 = vld [vmem:[%s5160 + $0x2c1] sm:$0xff]
    %v5665 = vld [vmem:[%s5160 + $0x2d1] sm:$0xff]
    %v5666 = vld [vmem:[%s5160 + $0x2d9] sm:$0xff]
    %v5667 = vld [vmem:[%s5160 + $0x2e9] sm:$0xff]
    %v5668 = vld [vmem:[%s5160 + $0x2f1] sm:$0xff]
    %v5669 = vld [vmem:[%s5160 + $0x301] sm:$0xff]
    %v5670 = vld [vmem:[%s5160 + $0x309] sm:$0xff]
    %v5671 = vld [vmem:[%s5160 + $0x319] sm:$0xff]
    %v5672 = vld [vmem:[%s5160 + $0x321] sm:$0xff]
    %v5673 = vpack.c.bf16 %v5609, %v5609
    %v5674 = vpack.c.bf16 %v5610, %v5610
    %v5675 = vpack.c.bf16 %v5611, %v5611
    %v5676 = vpack.c.bf16 %v5612, %v5612
    %v5677 = vpack.c.bf16 %v5613, %v5613
    %v5678 = vpack.c.bf16 %v5614, %v5614
    %v5679 = vpack.c.bf16 %v5615, %v5615
    %v5680 = vpack.c.bf16 %v5616, %v5616
    %v5681 = vpack.c.bf16 %v5617, %v5617
    %v5682 = vpack.c.bf16 %v5618, %v5618
    %v5683 = vpack.c.bf16 %v5619, %v5619
    %v5684 = vpack.c.bf16 %v5620, %v5620
    %v5685 = vpack.c.bf16 %v5621, %v5621
    %v5686 = vpack.c.bf16 %v5622, %v5622
    %v5687 = vpack.c.bf16 %v5623, %v5623
    %v5688 = vpack.c.bf16 %v5624, %v5624
    %v5689 = vpack.c.bf16 %v5625, %v5625
    %v5690 = vpack.c.bf16 %v5626, %v5626
    %v5691 = vpack.c.bf16 %v5627, %v5627
    %v5692 = vpack.c.bf16 %v5628, %v5628
    %v5693 = vpack.c.bf16 %v5629, %v5629
    %v5694 = vpack.c.bf16 %v5630, %v5630
    %v5695 = vpack.c.bf16 %v5631, %v5631
    %v5696 = vpack.c.bf16 %v5632, %v5632
    %v5697 = vpack.c.bf16 %v5633, %v5633
    %v5698 = vpack.c.bf16 %v5634, %v5634
    %v5699 = vpack.c.bf16 %v5635, %v5635
    %v5700 = vpack.c.bf16 %v5636, %v5636
    %v5701 = vpack.c.bf16 %v5637, %v5637
    %v5702 = vpack.c.bf16 %v5638, %v5638
    %v5703 = vpack.c.bf16 %v5639, %v5639
    %v5704 = vpack.c.bf16 %v5640, %v5640
    %v5705 = vpack.c.bf16 %v5641, %v5641
    %v5706 = vpack.c.bf16 %v5642, %v5642
    %v5707 = vpack.c.bf16 %v5643, %v5643
    %v5708 = vpack.c.bf16 %v5644, %v5644
    %v5709 = vpack.c.bf16 %v5645, %v5645
    %v5710 = vpack.c.bf16 %v5646, %v5646
    %v5711 = vpack.c.bf16 %v5647, %v5647
    %v5712 = vpack.c.bf16 %v5648, %v5648
    %v5713 = vpack.c.bf16 %v5649, %v5649
    %v5714 = vpack.c.bf16 %v5650, %v5650
    %v5715 = vpack.c.bf16 %v5651, %v5651
    %v5716 = vpack.c.bf16 %v5652, %v5652
    %v5717 = vpack.c.bf16 %v5653, %v5653
    %v5718 = vpack.c.bf16 %v5654, %v5654
    %v5719 = vpack.c.bf16 %v5655, %v5655
    %v5720 = vpack.c.bf16 %v5656, %v5656
    %v5721 = vpack.c.bf16 %v5657, %v5657
    %v5722 = vpack.c.bf16 %v5658, %v5658
    %v5723 = vpack.c.bf16 %v5659, %v5659
    %v5724 = vpack.c.bf16 %v5660, %v5660
    %v5725 = vpack.c.bf16 %v5661, %v5661
    %v5726 = vpack.c.bf16 %v5662, %v5662
    %v5727 = vpack.c.bf16 %v5663, %v5663
    %v5728 = vpack.c.bf16 %v5664, %v5664
    %v5729 = vpack.c.bf16 %v5665, %v5665
    %v5730 = vpack.c.bf16 %v5666, %v5666
    %v5731 = vpack.c.bf16 %v5667, %v5667
    %v5732 = vpack.c.bf16 %v5668, %v5668
    %v5733 = vpack.c.bf16 %v5669, %v5669
    %v5734 = vpack.c.bf16 %v5670, %v5670
    %v5735 = vpack.c.bf16 %v5671, %v5671
    %v5736 = vpack.c.bf16 %v5672, %v5672
    %5801 = vrot.lane.b32.xlu0 %v5673, 96
    %v5802 = vpop.permute.xlu0 %5801
    %5803 = vrot.lane.b32.xlu0 %v5674, 96
    %v5804 = vpop.permute.xlu0 %5803
    %5805 = vrot.lane.b32.xlu0 %v5675, 96
    %v5806 = vpop.permute.xlu0 %5805
    %5807 = vrot.lane.b32.xlu0 %v5676, 96
    %v5808 = vpop.permute.xlu0 %5807
    %5809 = vrot.lane.b32.xlu0 %v5677, 96
    %v5810 = vpop.permute.xlu0 %5809
    %5811 = vrot.lane.b32.xlu0 %v5678, 96
    %v5812 = vpop.permute.xlu0 %5811
    %5813 = vrot.lane.b32.xlu0 %v5679, 96
    %v5814 = vpop.permute.xlu0 %5813
    %5815 = vrot.lane.b32.xlu0 %v5680, 96
    %v5816 = vpop.permute.xlu0 %5815
    %5817 = vrot.lane.b32.xlu0 %v5681, 96
    %v5818 = vpop.permute.xlu0 %5817
    %5819 = vrot.lane.b32.xlu0 %v5682, 96
    %v5820 = vpop.permute.xlu0 %5819
    %5821 = vrot.lane.b32.xlu0 %v5683, 96
    %v5822 = vpop.permute.xlu0 %5821
    %5823 = vrot.lane.b32.xlu0 %v5684, 96
    %v5824 = vpop.permute.xlu0 %5823
    %5825 = vrot.lane.b32.xlu0 %v5685, 96
    %v5826 = vpop.permute.xlu0 %5825
    %5827 = vrot.lane.b32.xlu0 %v5686, 96
    %v5828 = vpop.permute.xlu0 %5827
    %5829 = vrot.lane.b32.xlu0 %v5687, 96
    %v5830 = vpop.permute.xlu0 %5829
    %5831 = vrot.lane.b32.xlu0 %v5688, 96
    %v5832 = vpop.permute.xlu0 %5831
    %5833 = vrot.lane.b32.xlu0 %v5689, 96
    %v5834 = vpop.permute.xlu0 %5833
    %5835 = vrot.lane.b32.xlu0 %v5690, 96
    %v5836 = vpop.permute.xlu0 %5835
    %5837 = vrot.lane.b32.xlu0 %v5691, 96
    %v5838 = vpop.permute.xlu0 %5837
    %5839 = vrot.lane.b32.xlu0 %v5692, 96
    %v5840 = vpop.permute.xlu0 %5839
    %5841 = vrot.lane.b32.xlu0 %v5693, 96
    %v5842 = vpop.permute.xlu0 %5841
    %5843 = vrot.lane.b32.xlu0 %v5694, 96
    %v5844 = vpop.permute.xlu0 %5843
    %5845 = vrot.lane.b32.xlu0 %v5695, 96
    %v5846 = vpop.permute.xlu0 %5845
    %5847 = vrot.lane.b32.xlu0 %v5696, 96
    %v5848 = vpop.permute.xlu0 %5847
    %5849 = vrot.lane.b32.xlu0 %v5697, 96
    %v5850 = vpop.permute.xlu0 %5849
    %5851 = vrot.lane.b32.xlu0 %v5698, 96
    %v5852 = vpop.permute.xlu0 %5851
    %5853 = vrot.lane.b32.xlu0 %v5699, 96
    %v5854 = vpop.permute.xlu0 %5853
    %5855 = vrot.lane.b32.xlu0 %v5700, 96
    %v5856 = vpop.permute.xlu0 %5855
    %5857 = vrot.lane.b32.xlu0 %v5701, 96
    %v5858 = vpop.permute.xlu0 %5857
    %5859 = vrot.lane.b32.xlu0 %v5702, 96
    %v5860 = vpop.permute.xlu0 %5859
    %5861 = vrot.lane.b32.xlu0 %v5703, 96
    %v5862 = vpop.permute.xlu0 %5861
    %5863 = vrot.lane.b32.xlu0 %v5704, 96
    %v5864 = vpop.permute.xlu0 %5863
    %5865 = vrot.lane.b32.xlu0 %v5705, 96
    %v5866 = vpop.permute.xlu0 %5865
    %5867 = vrot.lane.b32.xlu0 %v5706, 96
    %v5868 = vpop.permute.xlu0 %5867
    %5869 = vrot.lane.b32.xlu0 %v5707, 96
    %v5870 = vpop.permute.xlu0 %5869
    %5871 = vrot.lane.b32.xlu0 %v5708, 96
    %v5872 = vpop.permute.xlu0 %5871
    %5873 = vrot.lane.b32.xlu0 %v5709, 96
    %v5874 = vpop.permute.xlu0 %5873
    %5875 = vrot.lane.b32.xlu0 %v5710, 96
    %v5876 = vpop.permute.xlu0 %5875
    %5877 = vrot.lane.b32.xlu0 %v5711, 96
    %v5878 = vpop.permute.xlu0 %5877
    %5879 = vrot.lane.b32.xlu0 %v5712, 96
    %v5880 = vpop.permute.xlu0 %5879
    %5881 = vrot.lane.b32.xlu0 %v5713, 96
    %v5882 = vpop.permute.xlu0 %5881
    %5883 = vrot.lane.b32.xlu0 %v5714, 96
    %v5884 = vpop.permute.xlu0 %5883
    %5885 = vrot.lane.b32.xlu0 %v5715, 96
    %v5886 = vpop.permute.xlu0 %5885
    %5887 = vrot.lane.b32.xlu0 %v5716, 96
    %v5888 = vpop.permute.xlu0 %5887
    %5889 = vrot.lane.b32.xlu0 %v5717, 96
    %v5890 = vpop.permute.xlu0 %5889
    %5891 = vrot.lane.b32.xlu0 %v5718, 96
    %v5892 = vpop.permute.xlu0 %5891
    %5893 = vrot.lane.b32.xlu0 %v5719, 96
    %v5894 = vpop.permute.xlu0 %5893
    %5895 = vrot.lane.b32.xlu0 %v5720, 96
    %v5896 = vpop.permute.xlu0 %5895
    %5897 = vrot.lane.b32.xlu0 %v5721, 96
    %v5898 = vpop.permute.xlu0 %5897
    %5899 = vrot.lane.b32.xlu0 %v5722, 96
    %v5900 = vpop.permute.xlu0 %5899
    %5901 = vrot.lane.b32.xlu0 %v5723, 96
    %v5902 = vpop.permute.xlu0 %5901
    %5903 = vrot.lane.b32.xlu0 %v5724, 96
    %v5904 = vpop.permute.xlu0 %5903
    %5905 = vrot.lane.b32.xlu0 %v5725, 96
    %v5906 = vpop.permute.xlu0 %5905
    %5907 = vrot.lane.b32.xlu0 %v5726, 96
    %v5908 = vpop.permute.xlu0 %5907
    %5909 = vrot.lane.b32.xlu0 %v5727, 96
    %v5910 = vpop.permute.xlu0 %5909
    %5911 = vrot.lane.b32.xlu0 %v5728, 96
    %v5912 = vpop.permute.xlu0 %5911
    %5913 = vrot.lane.b32.xlu0 %v5729, 96
    %v5914 = vpop.permute.xlu0 %5913
    %5915 = vrot.lane.b32.xlu0 %v5730, 96
    %v5916 = vpop.permute.xlu0 %5915
    %5917 = vrot.lane.b32.xlu0 %v5731, 96
    %v5918 = vpop.permute.xlu0 %5917
    %5919 = vrot.lane.b32.xlu0 %v5732, 96
    %v5920 = vpop.permute.xlu0 %5919
    %5921 = vrot.lane.b32.xlu0 %v5733, 96
    %v5922 = vpop.permute.xlu0 %5921
    %5923 = vrot.lane.b32.xlu0 %v5734, 96
    %v5924 = vpop.permute.xlu0 %5923
    %5925 = vrot.lane.b32.xlu0 %v5735, 96
    %v5926 = vpop.permute.xlu0 %5925
    %5927 = vrot.lane.b32.xlu0 %v5736, 96
    %v5928 = vpop.permute.xlu0 %5927
    %5993 = vst.msk [vmem:[#allocation3 + $0x4] sm:$0xf] %vm4455, %v5802
    %5994 = vst.msk [vmem:[#allocation3 + $0x10] sm:$0xf] %vm4455, %v5804
    %5995 = vst.msk [vmem:[#allocation3 + $0x1c] sm:$0xf] %vm4455, %v5806
    %5996 = vst.msk [vmem:[#allocation3 + $0x28] sm:$0xf] %vm4455, %v5808
    %5997 = vst.msk [vmem:[#allocation3 + $0x34] sm:$0xf] %vm4455, %v5810
    %5998 = vst.msk [vmem:[#allocation3 + $0x40] sm:$0xf] %vm4455, %v5812
    %5999 = vst.msk [vmem:[#allocation3 + $0x4c] sm:$0xf] %vm4455, %v5814
    %6000 = vst.msk [vmem:[#allocation3 + $0x58] sm:$0xf] %vm4455, %v5816
    %6001 = vst.msk [vmem:[#allocation3 + $0x64] sm:$0xf] %vm4455, %v5818
    %6002 = vst.msk [vmem:[#allocation3 + $0x70] sm:$0xf] %vm4455, %v5820
    %6003 = vst.msk [vmem:[#allocation3 + $0x7c] sm:$0xf] %vm4455, %v5822
    %6004 = vst.msk [vmem:[#allocation3 + $0x88] sm:$0xf] %vm4455, %v5824
    %6005 = vst.msk [vmem:[#allocation3 + $0x94] sm:$0xf] %vm4455, %v5826
    %6006 = vst.msk [vmem:[#allocation3 + $0xa0] sm:$0xf] %vm4455, %v5828
    %6007 = vst.msk [vmem:[#allocation3 + $0xac] sm:$0xf] %vm4455, %v5830
    %6008 = vst.msk [vmem:[#allocation3 + $0xb8] sm:$0xf] %vm4455, %v5832
    %6009 = vst.msk [vmem:[#allocation3 + $0xc4] sm:$0xf] %vm4455, %v5834
    %6010 = vst.msk [vmem:[#allocation3 + $0xd0] sm:$0xf] %vm4455, %v5836
    %6011 = vst.msk [vmem:[#allocation3 + $0xdc] sm:$0xf] %vm4455, %v5838
    %6012 = vst.msk [vmem:[#allocation3 + $0xe8] sm:$0xf] %vm4455, %v5840
    %6013 = vst.msk [vmem:[#allocation3 + $0xf4] sm:$0xf] %vm4455, %v5842
    %6014 = vst.msk [vmem:[#allocation3 + $0x100] sm:$0xf] %vm4455, %v5844
    %6015 = vst.msk [vmem:[#allocation3 + $0x10c] sm:$0xf] %vm4455, %v5846
    %6016 = vst.msk [vmem:[#allocation3 + $0x118] sm:$0xf] %vm4455, %v5848
    %6017 = vst.msk [vmem:[#allocation3 + $0x124] sm:$0xf] %vm4455, %v5850
    %6018 = vst.msk [vmem:[#allocation3 + $0x130] sm:$0xf] %vm4455, %v5852
    %6019 = vst.msk [vmem:[#allocation3 + $0x13c] sm:$0xf] %vm4455, %v5854
    %6020 = vst.msk [vmem:[#allocation3 + $0x148] sm:$0xf] %vm4455, %v5856
    %6021 = vst.msk [vmem:[#allocation3 + $0x154] sm:$0xf] %vm4455, %v5858
    %6022 = vst.msk [vmem:[#allocation3 + $0x160] sm:$0xf] %vm4455, %v5860
    %6023 = vst.msk [vmem:[#allocation3 + $0x16c] sm:$0xf] %vm4455, %v5862
    %6024 = vst.msk [vmem:[#allocation3 + $0x178] sm:$0xf] %vm4455, %v5864
    %6025 = vst.msk [vmem:[#allocation3 + $0x184] sm:$0xf] %vm4455, %v5866
    %6026 = vst.msk [vmem:[#allocation3 + $0x190] sm:$0xf] %vm4455, %v5868
    %6027 = vst.msk [vmem:[#allocation3 + $0x19c] sm:$0xf] %vm4455, %v5870
    %6028 = vst.msk [vmem:[#allocation3 + $0x1a8] sm:$0xf] %vm4455, %v5872
    %6029 = vst.msk [vmem:[#allocation3 + $0x1b4] sm:$0xf] %vm4455, %v5874
    %6030 = vst.msk [vmem:[#allocation3 + $0x1c0] sm:$0xf] %vm4455, %v5876
    %6031 = vst.msk [vmem:[#allocation3 + $0x1cc] sm:$0xf] %vm4455, %v5878
    %6032 = vst.msk [vmem:[#allocation3 + $0x1d8] sm:$0xf] %vm4455, %v5880
    %6033 = vst.msk [vmem:[#allocation3 + $0x1e4] sm:$0xf] %vm4455, %v5882
    %6034 = vst.msk [vmem:[#allocation3 + $0x1f0] sm:$0xf] %vm4455, %v5884
    %6035 = vst.msk [vmem:[#allocation3 + $0x1fc] sm:$0xf] %vm4455, %v5886
    %6036 = vst.msk [vmem:[#allocation3 + $0x208] sm:$0xf] %vm4455, %v5888
    %6037 = vst.msk [vmem:[#allocation3 + $0x214] sm:$0xf] %vm4455, %v5890
    %6038 = vst.msk [vmem:[#allocation3 + $0x220] sm:$0xf] %vm4455, %v5892
    %6039 = vst.msk [vmem:[#allocation3 + $0x22c] sm:$0xf] %vm4455, %v5894
    %6040 = vst.msk [vmem:[#allocation3 + $0x238] sm:$0xf] %vm4455, %v5896
    %6041 = vst.msk [vmem:[#allocation3 + $0x244] sm:$0xf] %vm4455, %v5898
    %6042 = vst.msk [vmem:[#allocation3 + $0x250] sm:$0xf] %vm4455, %v5900
    %6043 = vst.msk [vmem:[#allocation3 + $0x25c] sm:$0xf] %vm4455, %v5902
    %6044 = vst.msk [vmem:[#allocation3 + $0x268] sm:$0xf] %vm4455, %v5904
    %6045 = vst.msk [vmem:[#allocation3 + $0x274] sm:$0xf] %vm4455, %v5906
    %6046 = vst.msk [vmem:[#allocation3 + $0x280] sm:$0xf] %vm4455, %v5908
    %6047 = vst.msk [vmem:[#allocation3 + $0x28c] sm:$0xf] %vm4455, %v5910
    %6048 = vst.msk [vmem:[#allocation3 + $0x298] sm:$0xf] %vm4455, %v5912
    %6049 = vst.msk [vmem:[#allocation3 + $0x2a4] sm:$0xf] %vm4455, %v5914
    %6050 = vst.msk [vmem:[#allocation3 + $0x2b0] sm:$0xf] %vm4455, %v5916
    %6051 = vst.msk [vmem:[#allocation3 + $0x2bc] sm:$0xf] %vm4455, %v5918
    %6052 = vst.msk [vmem:[#allocation3 + $0x2c8] sm:$0xf] %vm4455, %v5920
    %6053 = vst.msk [vmem:[#allocation3 + $0x2d4] sm:$0xf] %vm4455, %v5922
    %6054 = vst.msk [vmem:[#allocation3 + $0x2e0] sm:$0xf] %vm4455, %v5924
    %6055 = vst.msk [vmem:[#allocation3 + $0x2ec] sm:$0xf] %vm4455, %v5926
    %6056 = vst.msk [vmem:[#allocation3 + $0x2f8] sm:$0xf] %vm4455, %v5928
    %v6057 = vld [vmem:[%s5160 + $0x2] sm:$0xff]
    %v6058 = vld [vmem:[%s5160 + $0xa] sm:$0xff]
    %v6059 = vld [vmem:[%s5160 + $0x1a] sm:$0xff]
    %v6060 = vld [vmem:[%s5160 + $0x22] sm:$0xff]
    %v6061 = vld [vmem:[%s5160 + $0x32] sm:$0xff]
    %v6062 = vld [vmem:[%s5160 + $0x3a] sm:$0xff]
    %v6063 = vld [vmem:[%s5160 + $0x4a] sm:$0xff]
    %v6064 = vld [vmem:[%s5160 + $0x52] sm:$0xff]
    %v6065 = vld [vmem:[%s5160 + $0x62] sm:$0xff]
    %v6066 = vld [vmem:[%s5160 + $0x6a] sm:$0xff]
    %v6067 = vld [vmem:[%s5160 + $0x7a] sm:$0xff]
    %v6068 = vld [vmem:[%s5160 + $0x82] sm:$0xff]
    %v6069 = vld [vmem:[%s5160 + $0x92] sm:$0xff]
    %v6070 = vld [vmem:[%s5160 + $0x9a] sm:$0xff]
    %v6071 = vld [vmem:[%s5160 + $0xaa] sm:$0xff]
    %v6072 = vld [vmem:[%s5160 + $0xb2] sm:$0xff]
    %v6073 = vld [vmem:[%s5160 + $0xc2] sm:$0xff]
    %v6074 = vld [vmem:[%s5160 + $0xca] sm:$0xff]
    %v6075 = vld [vmem:[%s5160 + $0xda] sm:$0xff]
    %v6076 = vld [vmem:[%s5160 + $0xe2] sm:$0xff]
    %v6077 = vld [vmem:[%s5160 + $0xf2] sm:$0xff]
    %v6078 = vld [vmem:[%s5160 + $0xfa] sm:$0xff]
    %v6079 = vld [vmem:[%s5160 + $0x10a] sm:$0xff]
    %v6080 = vld [vmem:[%s5160 + $0x112] sm:$0xff]
    %v6081 = vld [vmem:[%s5160 + $0x122] sm:$0xff]
    %v6082 = vld [vmem:[%s5160 + $0x12a] sm:$0xff]
    %v6083 = vld [vmem:[%s5160 + $0x13a] sm:$0xff]
    %v6084 = vld [vmem:[%s5160 + $0x142] sm:$0xff]
    %v6085 = vld [vmem:[%s5160 + $0x152] sm:$0xff]
    %v6086 = vld [vmem:[%s5160 + $0x15a] sm:$0xff]
    %v6087 = vld [vmem:[%s5160 + $0x16a] sm:$0xff]
    %v6088 = vld [vmem:[%s5160 + $0x172] sm:$0xff]
    %v6089 = vld [vmem:[%s5160 + $0x1b2] sm:$0xff]
    %v6090 = vld [vmem:[%s5160 + $0x1ba] sm:$0xff]
    %v6091 = vld [vmem:[%s5160 + $0x1ca] sm:$0xff]
    %v6092 = vld [vmem:[%s5160 + $0x1d2] sm:$0xff]
    %v6093 = vld [vmem:[%s5160 + $0x1e2] sm:$0xff]
    %v6094 = vld [vmem:[%s5160 + $0x1ea] sm:$0xff]
    %v6095 = vld [vmem:[%s5160 + $0x1fa] sm:$0xff]
    %v6096 = vld [vmem:[%s5160 + $0x202] sm:$0xff]
    %v6097 = vld [vmem:[%s5160 + $0x212] sm:$0xff]
    %v6098 = vld [vmem:[%s5160 + $0x21a] sm:$0xff]
    %v6099 = vld [vmem:[%s5160 + $0x22a] sm:$0xff]
    %v6100 = vld [vmem:[%s5160 + $0x232] sm:$0xff]
    %v6101 = vld [vmem:[%s5160 + $0x242] sm:$0xff]
    %v6102 = vld [vmem:[%s5160 + $0x24a] sm:$0xff]
    %v6103 = vld [vmem:[%s5160 + $0x25a] sm:$0xff]
    %v6104 = vld [vmem:[%s5160 + $0x262] sm:$0xff]
    %v6105 = vld [vmem:[%s5160 + $0x272] sm:$0xff]
    %v6106 = vld [vmem:[%s5160 + $0x27a] sm:$0xff]
    %v6107 = vld [vmem:[%s5160 + $0x28a] sm:$0xff]
    %v6108 = vld [vmem:[%s5160 + $0x292] sm:$0xff]
    %v6109 = vld [vmem:[%s5160 + $0x2a2] sm:$0xff]
    %v6110 = vld [vmem:[%s5160 + $0x2aa] sm:$0xff]
    %v6111 = vld [vmem:[%s5160 + $0x2ba] sm:$0xff]
    %v6112 = vld [vmem:[%s5160 + $0x2c2] sm:$0xff]
    %v6113 = vld [vmem:[%s5160 + $0x2d2] sm:$0xff]
    %v6114 = vld [vmem:[%s5160 + $0x2da] sm:$0xff]
    %v6115 = vld [vmem:[%s5160 + $0x2ea] sm:$0xff]
    %v6116 = vld [vmem:[%s5160 + $0x2f2] sm:$0xff]
    %v6117 = vld [vmem:[%s5160 + $0x302] sm:$0xff]
    %v6118 = vld [vmem:[%s5160 + $0x30a] sm:$0xff]
    %v6119 = vld [vmem:[%s5160 + $0x31a] sm:$0xff]
    %v6120 = vld [vmem:[%s5160 + $0x322] sm:$0xff]
    %v6121 = vpack.c.bf16 %v6057, %v6057
    %v6122 = vpack.c.bf16 %v6058, %v6058
    %v6123 = vpack.c.bf16 %v6059, %v6059
    %v6124 = vpack.c.bf16 %v6060, %v6060
    %v6125 = vpack.c.bf16 %v6061, %v6061
    %v6126 = vpack.c.bf16 %v6062, %v6062
    %v6127 = vpack.c.bf16 %v6063, %v6063
    %v6128 = vpack.c.bf16 %v6064, %v6064
    %v6129 = vpack.c.bf16 %v6065, %v6065
    %v6130 = vpack.c.bf16 %v6066, %v6066
    %v6131 = vpack.c.bf16 %v6067, %v6067
    %v6132 = vpack.c.bf16 %v6068, %v6068
    %v6133 = vpack.c.bf16 %v6069, %v6069
    %v6134 = vpack.c.bf16 %v6070, %v6070
    %v6135 = vpack.c.bf16 %v6071, %v6071
    %v6136 = vpack.c.bf16 %v6072, %v6072
    %v6137 = vpack.c.bf16 %v6073, %v6073
    %v6138 = vpack.c.bf16 %v6074, %v6074
    %v6139 = vpack.c.bf16 %v6075, %v6075
    %v6140 = vpack.c.bf16 %v6076, %v6076
    %v6141 = vpack.c.bf16 %v6077, %v6077
    %v6142 = vpack.c.bf16 %v6078, %v6078
    %v6143 = vpack.c.bf16 %v6079, %v6079
    %v6144 = vpack.c.bf16 %v6080, %v6080
    %v6145 = vpack.c.bf16 %v6081, %v6081
    %v6146 = vpack.c.bf16 %v6082, %v6082
    %v6147 = vpack.c.bf16 %v6083, %v6083
    %v6148 = vpack.c.bf16 %v6084, %v6084
    %v6149 = vpack.c.bf16 %v6085, %v6085
    %v6150 = vpack.c.bf16 %v6086, %v6086
    %v6151 = vpack.c.bf16 %v6087, %v6087
    %v6152 = vpack.c.bf16 %v6088, %v6088
    %v6153 = vpack.c.bf16 %v6089, %v6089
    %v6154 = vpack.c.bf16 %v6090, %v6090
    %v6155 = vpack.c.bf16 %v6091, %v6091
    %v6156 = vpack.c.bf16 %v6092, %v6092
    %v6157 = vpack.c.bf16 %v6093, %v6093
    %v6158 = vpack.c.bf16 %v6094, %v6094
    %v6159 = vpack.c.bf16 %v6095, %v6095
    %v6160 = vpack.c.bf16 %v6096, %v6096
    %v6161 = vpack.c.bf16 %v6097, %v6097
    %v6162 = vpack.c.bf16 %v6098, %v6098
    %v6163 = vpack.c.bf16 %v6099, %v6099
    %v6164 = vpack.c.bf16 %v6100, %v6100
    %v6165 = vpack.c.bf16 %v6101, %v6101
    %v6166 = vpack.c.bf16 %v6102, %v6102
    %v6167 = vpack.c.bf16 %v6103, %v6103
    %v6168 = vpack.c.bf16 %v6104, %v6104
    %v6169 = vpack.c.bf16 %v6105, %v6105
    %v6170 = vpack.c.bf16 %v6106, %v6106
    %v6171 = vpack.c.bf16 %v6107, %v6107
    %v6172 = vpack.c.bf16 %v6108, %v6108
    %v6173 = vpack.c.bf16 %v6109, %v6109
    %v6174 = vpack.c.bf16 %v6110, %v6110
    %v6175 = vpack.c.bf16 %v6111, %v6111
    %v6176 = vpack.c.bf16 %v6112, %v6112
    %v6177 = vpack.c.bf16 %v6113, %v6113
    %v6178 = vpack.c.bf16 %v6114, %v6114
    %v6179 = vpack.c.bf16 %v6115, %v6115
    %v6180 = vpack.c.bf16 %v6116, %v6116
    %v6181 = vpack.c.bf16 %v6117, %v6117
    %v6182 = vpack.c.bf16 %v6118, %v6118
    %v6183 = vpack.c.bf16 %v6119, %v6119
    %v6184 = vpack.c.bf16 %v6120, %v6120
    %6185 = vst.msk [vmem:[#allocation3 + $0x8] sm:$0xf] %vm3108, %v6121
    %6186 = vst.msk [vmem:[#allocation3 + $0x14] sm:$0xf] %vm3108, %v6122
    %6187 = vst.msk [vmem:[#allocation3 + $0x20] sm:$0xf] %vm3108, %v6123
    %6188 = vst.msk [vmem:[#allocation3 + $0x2c] sm:$0xf] %vm3108, %v6124
    %6189 = vst.msk [vmem:[#allocation3 + $0x38] sm:$0xf] %vm3108, %v6125
    %6190 = vst.msk [vmem:[#allocation3 + $0x44] sm:$0xf] %vm3108, %v6126
    %6191 = vst.msk [vmem:[#allocation3 + $0x50] sm:$0xf] %vm3108, %v6127
    %6192 = vst.msk [vmem:[#allocation3 + $0x5c] sm:$0xf] %vm3108, %v6128
    %6193 = vst.msk [vmem:[#allocation3 + $0x68] sm:$0xf] %vm3108, %v6129
    %6194 = vst.msk [vmem:[#allocation3 + $0x74] sm:$0xf] %vm3108, %v6130
    %6195 = vst.msk [vmem:[#allocation3 + $0x80] sm:$0xf] %vm3108, %v6131
    %6196 = vst.msk [vmem:[#allocation3 + $0x8c] sm:$0xf] %vm3108, %v6132
    %6197 = vst.msk [vmem:[#allocation3 + $0x98] sm:$0xf] %vm3108, %v6133
    %6198 = vst.msk [vmem:[#allocation3 + $0xa4] sm:$0xf] %vm3108, %v6134
    %6199 = vst.msk [vmem:[#allocation3 + $0xb0] sm:$0xf] %vm3108, %v6135
    %6200 = vst.msk [vmem:[#allocation3 + $0xbc] sm:$0xf] %vm3108, %v6136
    %6201 = vst.msk [vmem:[#allocation3 + $0xc8] sm:$0xf] %vm3108, %v6137
    %6202 = vst.msk [vmem:[#allocation3 + $0xd4] sm:$0xf] %vm3108, %v6138
    %6203 = vst.msk [vmem:[#allocation3 + $0xe0] sm:$0xf] %vm3108, %v6139
    %6204 = vst.msk [vmem:[#allocation3 + $0xec] sm:$0xf] %vm3108, %v6140
    %6205 = vst.msk [vmem:[#allocation3 + $0xf8] sm:$0xf] %vm3108, %v6141
    %6206 = vst.msk [vmem:[#allocation3 + $0x104] sm:$0xf] %vm3108, %v6142
    %6207 = vst.msk [vmem:[#allocation3 + $0x110] sm:$0xf] %vm3108, %v6143
    %6208 = vst.msk [vmem:[#allocation3 + $0x11c] sm:$0xf] %vm3108, %v6144
    %6209 = vst.msk [vmem:[#allocation3 + $0x128] sm:$0xf] %vm3108, %v6145
    %6210 = vst.msk [vmem:[#allocation3 + $0x134] sm:$0xf] %vm3108, %v6146
    %6211 = vst.msk [vmem:[#allocation3 + $0x140] sm:$0xf] %vm3108, %v6147
    %6212 = vst.msk [vmem:[#allocation3 + $0x14c] sm:$0xf] %vm3108, %v6148
    %6213 = vst.msk [vmem:[#allocation3 + $0x158] sm:$0xf] %vm3108, %v6149
    %6214 = vst.msk [vmem:[#allocation3 + $0x164] sm:$0xf] %vm3108, %v6150
    %6215 = vst.msk [vmem:[#allocation3 + $0x170] sm:$0xf] %vm3108, %v6151
    %6216 = vst.msk [vmem:[#allocation3 + $0x17c] sm:$0xf] %vm3108, %v6152
    %6217 = vst.msk [vmem:[#allocation3 + $0x188] sm:$0xf] %vm3108, %v6153
    %6218 = vst.msk [vmem:[#allocation3 + $0x194] sm:$0xf] %vm3108, %v6154
    %6219 = vst.msk [vmem:[#allocation3 + $0x1a0] sm:$0xf] %vm3108, %v6155
    %6220 = vst.msk [vmem:[#allocation3 + $0x1ac] sm:$0xf] %vm3108, %v6156
    %6221 = vst.msk [vmem:[#allocation3 + $0x1b8] sm:$0xf] %vm3108, %v6157
    %6222 = vst.msk [vmem:[#allocation3 + $0x1c4] sm:$0xf] %vm3108, %v6158
    %6223 = vst.msk [vmem:[#allocation3 + $0x1d0] sm:$0xf] %vm3108, %v6159
    %6224 = vst.msk [vmem:[#allocation3 + $0x1dc] sm:$0xf] %vm3108, %v6160
    %6225 = vst.msk [vmem:[#allocation3 + $0x1e8] sm:$0xf] %vm3108, %v6161
    %6226 = vst.msk [vmem:[#allocation3 + $0x1f4] sm:$0xf] %vm3108, %v6162
    %6227 = vst.msk [vmem:[#allocation3 + $0x200] sm:$0xf] %vm3108, %v6163
    %6228 = vst.msk [vmem:[#allocation3 + $0x20c] sm:$0xf] %vm3108, %v6164
    %6229 = vst.msk [vmem:[#allocation3 + $0x218] sm:$0xf] %vm3108, %v6165
    %6230 = vst.msk [vmem:[#allocation3 + $0x224] sm:$0xf] %vm3108, %v6166
    %6231 = vst.msk [vmem:[#allocation3 + $0x230] sm:$0xf] %vm3108, %v6167
    %6232 = vst.msk [vmem:[#allocation3 + $0x23c] sm:$0xf] %vm3108, %v6168
    %6233 = vst.msk [vmem:[#allocation3 + $0x248] sm:$0xf] %vm3108, %v6169
    %6234 = vst.msk [vmem:[#allocation3 + $0x254] sm:$0xf] %vm3108, %v6170
    %6235 = vst.msk [vmem:[#allocation3 + $0x260] sm:$0xf] %vm3108, %v6171
    %6236 = vst.msk [vmem:[#allocation3 + $0x26c] sm:$0xf] %vm3108, %v6172
    %6237 = vst.msk [vmem:[#allocation3 + $0x278] sm:$0xf] %vm3108, %v6173
    %6238 = vst.msk [vmem:[#allocation3 + $0x284] sm:$0xf] %vm3108, %v6174
    %6239 = vst.msk [vmem:[#allocation3 + $0x290] sm:$0xf] %vm3108, %v6175
    %6240 = vst.msk [vmem:[#allocation3 + $0x29c] sm:$0xf] %vm3108, %v6176
    %6241 = vst.msk [vmem:[#allocation3 + $0x2a8] sm:$0xf] %vm3108, %v6177
    %6242 = vst.msk [vmem:[#allocation3 + $0x2b4] sm:$0xf] %vm3108, %v6178
    %6243 = vst.msk [vmem:[#allocation3 + $0x2c0] sm:$0xf] %vm3108, %v6179
    %6244 = vst.msk [vmem:[#allocation3 + $0x2cc] sm:$0xf] %vm3108, %v6180
    %6245 = vst.msk [vmem:[#allocation3 + $0x2d8] sm:$0xf] %vm3108, %v6181
    %6246 = vst.msk [vmem:[#allocation3 + $0x2e4] sm:$0xf] %vm3108, %v6182
    %6247 = vst.msk [vmem:[#allocation3 + $0x2f0] sm:$0xf] %vm3108, %v6183
    %6248 = vst.msk [vmem:[#allocation3 + $0x2fc] sm:$0xf] %vm3108, %v6184
    %v6249 = vld [vmem:[#allocation3] sm:$0xff]
    %v6250 = vld [vmem:[#allocation3 + $0x8] sm:$0xf]
    %v6251 = vld [vmem:[#allocation3 + $0xc] sm:$0xff]
    %v6252 = vld [vmem:[#allocation3 + $0x14] sm:$0xf]
    %v6253 = vld [vmem:[#allocation3 + $0x18] sm:$0xff]
    %v6254 = vld [vmem:[#allocation3 + $0x20] sm:$0xf]
    %v6255 = vld [vmem:[#allocation3 + $0x24] sm:$0xff]
    %v6256 = vld [vmem:[#allocation3 + $0x2c] sm:$0xf]
    %v6257 = vld [vmem:[#allocation3 + $0x30] sm:$0xff]
    %v6258 = vld [vmem:[#allocation3 + $0x38] sm:$0xf]
    %v6259 = vld [vmem:[#allocation3 + $0x3c] sm:$0xff]
    %v6260 = vld [vmem:[#allocation3 + $0x44] sm:$0xf]
    %v6261 = vld [vmem:[#allocation3 + $0x48] sm:$0xff]
    %v6262 = vld [vmem:[#allocation3 + $0x50] sm:$0xf]
    %v6263 = vld [vmem:[#allocation3 + $0x54] sm:$0xff]
    %v6264 = vld [vmem:[#allocation3 + $0x5c] sm:$0xf]
    %v6265 = vld [vmem:[#allocation3 + $0x60] sm:$0xff]
    %v6266 = vld [vmem:[#allocation3 + $0x68] sm:$0xf]
    %v6267 = vld [vmem:[#allocation3 + $0x6c] sm:$0xff]
    %v6268 = vld [vmem:[#allocation3 + $0x74] sm:$0xf]
    %v6269 = vld [vmem:[#allocation3 + $0x78] sm:$0xff]
    %v6270 = vld [vmem:[#allocation3 + $0x80] sm:$0xf]
    %v6271 = vld [vmem:[#allocation3 + $0x84] sm:$0xff]
    %v6272 = vld [vmem:[#allocation3 + $0x8c] sm:$0xf]
    %v6273 = vld [vmem:[#allocation3 + $0x90] sm:$0xff]
    %v6274 = vld [vmem:[#allocation3 + $0x98] sm:$0xf]
    %v6275 = vld [vmem:[#allocation3 + $0x9c] sm:$0xff]
    %v6276 = vld [vmem:[#allocation3 + $0xa4] sm:$0xf]
    %v6277 = vld [vmem:[#allocation3 + $0xa8] sm:$0xff]
    %v6278 = vld [vmem:[#allocation3 + $0xb0] sm:$0xf]
    %v6279 = vld [vmem:[#allocation3 + $0xb4] sm:$0xff]
    %v6280 = vld [vmem:[#allocation3 + $0xbc] sm:$0xf]
    %v6281 = vld [vmem:[#allocation3 + $0xc0] sm:$0xff]
    %v6282 = vld [vmem:[#allocation3 + $0xc8] sm:$0xf]
    %v6283 = vld [vmem:[#allocation3 + $0xcc] sm:$0xff]
    %v6284 = vld [vmem:[#allocation3 + $0xd4] sm:$0xf]
    %v6285 = vld [vmem:[#allocation3 + $0xd8] sm:$0xff]
    %v6286 = vld [vmem:[#allocation3 + $0xe0] sm:$0xf]
    %v6287 = vld [vmem:[#allocation3 + $0xe4] sm:$0xff]
    %v6288 = vld [vmem:[#allocation3 + $0xec] sm:$0xf]
    %v6289 = vld [vmem:[#allocation3 + $0xf0] sm:$0xff]
    %v6290 = vld [vmem:[#allocation3 + $0xf8] sm:$0xf]
    %v6291 = vld [vmem:[#allocation3 + $0xfc] sm:$0xff]
    %v6292 = vld [vmem:[#allocation3 + $0x104] sm:$0xf]
    %v6293 = vld [vmem:[#allocation3 + $0x108] sm:$0xff]
    %v6294 = vld [vmem:[#allocation3 + $0x110] sm:$0xf]
    %v6295 = vld [vmem:[#allocation3 + $0x114] sm:$0xff]
    %v6296 = vld [vmem:[#allocation3 + $0x11c] sm:$0xf]
    %v6297 = vld [vmem:[#allocation3 + $0x120] sm:$0xff]
    %v6298 = vld [vmem:[#allocation3 + $0x128] sm:$0xf]
    %v6299 = vld [vmem:[#allocation3 + $0x12c] sm:$0xff]
    %v6300 = vld [vmem:[#allocation3 + $0x134] sm:$0xf]
    %v6301 = vld [vmem:[#allocation3 + $0x138] sm:$0xff]
    %v6302 = vld [vmem:[#allocation3 + $0x140] sm:$0xf]
    %v6303 = vld [vmem:[#allocation3 + $0x144] sm:$0xff]
    %v6304 = vld [vmem:[#allocation3 + $0x14c] sm:$0xf]
    %v6305 = vld [vmem:[#allocation3 + $0x150] sm:$0xff]
    %v6306 = vld [vmem:[#allocation3 + $0x158] sm:$0xf]
    %v6307 = vld [vmem:[#allocation3 + $0x15c] sm:$0xff]
    %v6308 = vld [vmem:[#allocation3 + $0x164] sm:$0xf]
    %v6309 = vld [vmem:[#allocation3 + $0x168] sm:$0xff]
    %v6310 = vld [vmem:[#allocation3 + $0x170] sm:$0xf]
    %v6311 = vld [vmem:[#allocation3 + $0x174] sm:$0xff]
    %v6312 = vld [vmem:[#allocation3 + $0x17c] sm:$0xf]
    %v6313 = vld [vmem:[#allocation3 + $0x180] sm:$0xff]
    %v6314 = vld [vmem:[#allocation3 + $0x188] sm:$0xf]
    %v6315 = vld [vmem:[#allocation3 + $0x18c] sm:$0xff]
    %v6316 = vld [vmem:[#allocation3 + $0x194] sm:$0xf]
    %v6317 = vld [vmem:[#allocation3 + $0x198] sm:$0xff]
    %v6318 = vld [vmem:[#allocation3 + $0x1a0] sm:$0xf]
    %v6319 = vld [vmem:[#allocation3 + $0x1a4] sm:$0xff]
    %v6320 = vld [vmem:[#allocation3 + $0x1ac] sm:$0xf]
    %v6321 = vld [vmem:[#allocation3 + $0x1b0] sm:$0xff]
    %v6322 = vld [vmem:[#allocation3 + $0x1b8] sm:$0xf]
    %v6323 = vld [vmem:[#allocation3 + $0x1bc] sm:$0xff]
    %v6324 = vld [vmem:[#allocation3 + $0x1c4] sm:$0xf]
    %v6325 = vld [vmem:[#allocation3 + $0x1c8] sm:$0xff]
    %v6326 = vld [vmem:[#allocation3 + $0x1d0] sm:$0xf]
    %v6327 = vld [vmem:[#allocation3 + $0x1d4] sm:$0xff]
    %v6328 = vld [vmem:[#allocation3 + $0x1dc] sm:$0xf]
    %v6329 = vld [vmem:[#allocation3 + $0x1e0] sm:$0xff]
    %v6330 = vld [vmem:[#allocation3 + $0x1e8] sm:$0xf]
    %v6331 = vld [vmem:[#allocation3 + $0x1ec] sm:$0xff]
    %v6332 = vld [vmem:[#allocation3 + $0x1f4] sm:$0xf]
    %v6333 = vld [vmem:[#allocation3 + $0x1f8] sm:$0xff]
    %v6334 = vld [vmem:[#allocation3 + $0x200] sm:$0xf]
    %v6335 = vld [vmem:[#allocation3 + $0x204] sm:$0xff]
    %v6336 = vld [vmem:[#allocation3 + $0x20c] sm:$0xf]
    %v6337 = vld [vmem:[#allocation3 + $0x210] sm:$0xff]
    %v6338 = vld [vmem:[#allocation3 + $0x218] sm:$0xf]
    %v6339 = vld [vmem:[#allocation3 + $0x21c] sm:$0xff]
    %v6340 = vld [vmem:[#allocation3 + $0x224] sm:$0xf]
    %v6341 = vld [vmem:[#allocation3 + $0x228] sm:$0xff]
    %v6342 = vld [vmem:[#allocation3 + $0x230] sm:$0xf]
    %v6343 = vld [vmem:[#allocation3 + $0x234] sm:$0xff]
    %v6344 = vld [vmem:[#allocation3 + $0x23c] sm:$0xf]
    %v6345 = vld [vmem:[#allocation3 + $0x240] sm:$0xff]
    %v6346 = vld [vmem:[#allocation3 + $0x248] sm:$0xf]
    %v6347 = vld [vmem:[#allocation3 + $0x24c] sm:$0xff]
    %v6348 = vld [vmem:[#allocation3 + $0x254] sm:$0xf]
    %v6349 = vld [vmem:[#allocation3 + $0x258] sm:$0xff]
    %v6350 = vld [vmem:[#allocation3 + $0x260] sm:$0xf]
    %v6351 = vld [vmem:[#allocation3 + $0x264] sm:$0xff]
    %v6352 = vld [vmem:[#allocation3 + $0x26c] sm:$0xf]
    %v6353 = vld [vmem:[#allocation3 + $0x270] sm:$0xff]
    %v6354 = vld [vmem:[#allocation3 + $0x278] sm:$0xf]
    %v6355 = vld [vmem:[#allocation3 + $0x27c] sm:$0xff]
    %v6356 = vld [vmem:[#allocation3 + $0x284] sm:$0xf]
    %v6357 = vld [vmem:[#allocation3 + $0x288] sm:$0xff]
    %v6358 = vld [vmem:[#allocation3 + $0x290] sm:$0xf]
    %v6359 = vld [vmem:[#allocation3 + $0x294] sm:$0xff]
    %v6360 = vld [vmem:[#allocation3 + $0x29c] sm:$0xf]
    %v6361 = vld [vmem:[#allocation3 + $0x2a0] sm:$0xff]
    %v6362 = vld [vmem:[#allocation3 + $0x2a8] sm:$0xf]
    %v6363 = vld [vmem:[#allocation3 + $0x2ac] sm:$0xff]
    %v6364 = vld [vmem:[#allocation3 + $0x2b4] sm:$0xf]
    %v6365 = vld [vmem:[#allocation3 + $0x2b8] sm:$0xff]
    %v6366 = vld [vmem:[#allocation3 + $0x2c0] sm:$0xf]
    %v6367 = vld [vmem:[#allocation3 + $0x2c4] sm:$0xff]
    %v6368 = vld [vmem:[#allocation3 + $0x2cc] sm:$0xf]
    %v6369 = vld [vmem:[#allocation3 + $0x2d0] sm:$0xff]
    %v6370 = vld [vmem:[#allocation3 + $0x2d8] sm:$0xf]
    %v6371 = vld [vmem:[#allocation3 + $0x2dc] sm:$0xff]
    %v6372 = vld [vmem:[#allocation3 + $0x2e4] sm:$0xf]
    %v6373 = vld [vmem:[#allocation3 + $0x2e8] sm:$0xff]
    %v6374 = vld [vmem:[#allocation3 + $0x2f0] sm:$0xf]
    %v6375 = vld [vmem:[#allocation3 + $0x2f4] sm:$0xff]
    %v6376 = vld [vmem:[#allocation3 + $0x2fc] sm:$0xf]
    %v6377 = vld [vmem:[%s3] sm:$0xf]
    %v6378 = vld [vmem:[%s3 + $0x4] sm:$0xf]
    %v6379 = vld [vmem:[%s3 + $0x8] sm:$0xf]
    %v6380 = vld [vmem:[%s3 + $0xc] sm:$0xf]
    %v6381 = vld [vmem:[%s3 + $0x10] sm:$0xf]
    %v6382 = vld [vmem:[%s3 + $0x14] sm:$0xf]
    %v6383 = vld [vmem:[%s3 + $0x18] sm:$0xf]
    %v6384 = vld [vmem:[%s3 + $0x1c] sm:$0xf]
    %v6385 = vld [vmem:[%s3 + $0x20] sm:$0xf]
    %v6386 = vld [vmem:[%s3 + $0x24] sm:$0xf]
    %v6387 = vld [vmem:[%s3 + $0x28] sm:$0xf]
    %v6388 = vld [vmem:[%s3 + $0x2c] sm:$0xf]
    %v6389 = vld [vmem:[%s3 + $0x30] sm:$0xf]
    %v6390 = vld [vmem:[%s3 + $0x34] sm:$0xf]
    %v6391 = vld [vmem:[%s3 + $0x38] sm:$0xf]
    %v6392 = vld [vmem:[%s3 + $0x3c] sm:$0xf]
    %v6393 = vld [vmem:[%s3 + $0x40] sm:$0xf]
    %v6394 = vld [vmem:[%s3 + $0x44] sm:$0xf]
    %v6395 = vld [vmem:[%s3 + $0x48] sm:$0xf]
    %v6396 = vld [vmem:[%s3 + $0x4c] sm:$0xf]
    %v6397 = vld [vmem:[%s3 + $0x50] sm:$0xf]
    %v6398 = vld [vmem:[%s3 + $0x54] sm:$0xf]
    %v6399 = vld [vmem:[%s3 + $0x58] sm:$0xf]
    %v6400 = vld [vmem:[%s3 + $0x5c] sm:$0xf]
    %v6401 = vld [vmem:[%s3 + $0x60] sm:$0xf]
    %v6402 = vld [vmem:[%s3 + $0x64] sm:$0xf]
    %v6403 = vld [vmem:[%s3 + $0x68] sm:$0xf]
    %v6404 = vld [vmem:[%s3 + $0x6c] sm:$0xf]
    %v6405 = vld [vmem:[%s3 + $0x70] sm:$0xf]
    %v6406 = vld [vmem:[%s3 + $0x74] sm:$0xf]
    %v6407 = vld [vmem:[%s3 + $0x78] sm:$0xf]
    %v6408 = vld [vmem:[%s3 + $0x7c] sm:$0xf]
    %v6409 = vld [vmem:[%s3 + $0x80] sm:$0xf]
    %v6410 = vld [vmem:[%s3 + $0x84] sm:$0xf]
    %v6411 = vld [vmem:[%s3 + $0x88] sm:$0xf]
    %v6412 = vld [vmem:[%s3 + $0x8c] sm:$0xf]
    %v6413 = vld [vmem:[%s4] sm:$0x1]
    %v6415 = vperm.slane %v6413, 0
    %v6545 = vunpack.c.l.b16 %v6249
    %v6546 = vunpack.c.h.b16 %v6249
    %v6547 = vunpack.c.l.b16 %v6250
    %v6548 = vunpack.c.l.b16 %v6251
    %v6549 = vunpack.c.h.b16 %v6251
    %v6550 = vunpack.c.l.b16 %v6252
    %v6551 = vunpack.c.l.b16 %v6253
    %v6552 = vunpack.c.h.b16 %v6253
    %v6553 = vunpack.c.l.b16 %v6254
    %v6554 = vunpack.c.l.b16 %v6255
    %v6555 = vunpack.c.h.b16 %v6255
    %v6556 = vunpack.c.l.b16 %v6256
    %v6557 = vunpack.c.l.b16 %v6257
    %v6558 = vunpack.c.h.b16 %v6257
    %v6559 = vunpack.c.l.b16 %v6258
    %v6560 = vunpack.c.l.b16 %v6259
    %v6561 = vunpack.c.h.b16 %v6259
    %v6562 = vunpack.c.l.b16 %v6260
    %v6563 = vunpack.c.l.b16 %v6261
    %v6564 = vunpack.c.h.b16 %v6261
    %v6565 = vunpack.c.l.b16 %v6262
    %v6566 = vunpack.c.l.b16 %v6263
    %v6567 = vunpack.c.h.b16 %v6263
    %v6568 = vunpack.c.l.b16 %v6264
    %v6569 = vunpack.c.l.b16 %v6265
    %v6570 = vunpack.c.h.b16 %v6265
    %v6571 = vunpack.c.l.b16 %v6266
    %v6572 = vunpack.c.l.b16 %v6267
    %v6573 = vunpack.c.h.b16 %v6267
    %v6574 = vunpack.c.l.b16 %v6268
    %v6575 = vunpack.c.l.b16 %v6269
    %v6576 = vunpack.c.h.b16 %v6269
    %v6577 = vunpack.c.l.b16 %v6270
    %v6578 = vunpack.c.l.b16 %v6271
    %v6579 = vunpack.c.h.b16 %v6271
    %v6580 = vunpack.c.l.b16 %v6272
    %v6581 = vunpack.c.l.b16 %v6273
    %v6582 = vunpack.c.h.b16 %v6273
    %v6583 = vunpack.c.l.b16 %v6274
    %v6584 = vunpack.c.l.b16 %v6275
    %v6585 = vunpack.c.h.b16 %v6275
    %v6586 = vunpack.c.l.b16 %v6276
    %v6587 = vunpack.c.l.b16 %v6277
    %v6588 = vunpack.c.h.b16 %v6277
    %v6589 = vunpack.c.l.b16 %v6278
    %v6590 = vunpack.c.l.b16 %v6279
    %v6591 = vunpack.c.h.b16 %v6279
    %v6592 = vunpack.c.l.b16 %v6280
    %v6593 = vunpack.c.l.b16 %v6281
    %v6594 = vunpack.c.h.b16 %v6281
    %v6595 = vunpack.c.l.b16 %v6282
    %v6596 = vunpack.c.l.b16 %v6283
    %v6597 = vunpack.c.h.b16 %v6283
    %v6598 = vunpack.c.l.b16 %v6284
    %v6599 = vunpack.c.l.b16 %v6285
    %v6600 = vunpack.c.h.b16 %v6285
    %v6601 = vunpack.c.l.b16 %v6286
    %v6602 = vunpack.c.l.b16 %v6287
    %v6603 = vunpack.c.h.b16 %v6287
    %v6604 = vunpack.c.l.b16 %v6288
    %v6605 = vunpack.c.l.b16 %v6289
    %v6606 = vunpack.c.h.b16 %v6289
    %v6607 = vunpack.c.l.b16 %v6290
    %v6608 = vunpack.c.l.b16 %v6291
    %v6609 = vunpack.c.h.b16 %v6291
    %v6610 = vunpack.c.l.b16 %v6292
    %v6611 = vunpack.c.l.b16 %v6293
    %v6612 = vunpack.c.h.b16 %v6293
    %v6613 = vunpack.c.l.b16 %v6294
    %v6614 = vunpack.c.l.b16 %v6295
    %v6615 = vunpack.c.h.b16 %v6295
    %v6616 = vunpack.c.l.b16 %v6296
    %v6617 = vunpack.c.l.b16 %v6297
    %v6618 = vunpack.c.h.b16 %v6297
    %v6619 = vunpack.c.l.b16 %v6298
    %v6620 = vunpack.c.l.b16 %v6299
    %v6621 = vunpack.c.h.b16 %v6299
    %v6622 = vunpack.c.l.b16 %v6300
    %v6623 = vunpack.c.l.b16 %v6301
    %v6624 = vunpack.c.h.b16 %v6301
    %v6625 = vunpack.c.l.b16 %v6302
    %v6626 = vunpack.c.l.b16 %v6303
    %v6627 = vunpack.c.h.b16 %v6303
    %v6628 = vunpack.c.l.b16 %v6304
    %v6629 = vunpack.c.l.b16 %v6305
    %v6630 = vunpack.c.h.b16 %v6305
    %v6631 = vunpack.c.l.b16 %v6306
    %v6632 = vunpack.c.l.b16 %v6307
    %v6633 = vunpack.c.h.b16 %v6307
    %v6634 = vunpack.c.l.b16 %v6308
    %v6635 = vunpack.c.l.b16 %v6309
    %v6636 = vunpack.c.h.b16 %v6309
    %v6637 = vunpack.c.l.b16 %v6310
    %v6638 = vunpack.c.l.b16 %v6311
    %v6639 = vunpack.c.h.b16 %v6311
    %v6640 = vunpack.c.l.b16 %v6312
    %v6641 = vunpack.c.l.b16 %v6313
    %v6642 = vunpack.c.h.b16 %v6313
    %v6643 = vunpack.c.l.b16 %v6314
    %v6644 = vunpack.c.l.b16 %v6315
    %v6645 = vunpack.c.h.b16 %v6315
    %v6646 = vunpack.c.l.b16 %v6316
    %v6647 = vunpack.c.l.b16 %v6317
    %v6648 = vunpack.c.h.b16 %v6317
    %v6649 = vunpack.c.l.b16 %v6318
    %v6650 = vunpack.c.l.b16 %v6319
    %v6651 = vunpack.c.h.b16 %v6319
    %v6652 = vunpack.c.l.b16 %v6320
    %v6653 = vunpack.c.l.b16 %v6321
    %v6654 = vunpack.c.h.b16 %v6321
    %v6655 = vunpack.c.l.b16 %v6322
    %v6656 = vunpack.c.l.b16 %v6323
    %v6657 = vunpack.c.h.b16 %v6323
    %v6658 = vunpack.c.l.b16 %v6324
    %v6659 = vunpack.c.l.b16 %v6325
    %v6660 = vunpack.c.h.b16 %v6325
    %v6661 = vunpack.c.l.b16 %v6326
    %v6662 = vunpack.c.l.b16 %v6327
    %v6663 = vunpack.c.h.b16 %v6327
    %v6664 = vunpack.c.l.b16 %v6328
    %v6665 = vunpack.c.l.b16 %v6329
    %v6666 = vunpack.c.h.b16 %v6329
    %v6667 = vunpack.c.l.b16 %v6330
    %v6668 = vunpack.c.l.b16 %v6331
    %v6669 = vunpack.c.h.b16 %v6331
    %v6670 = vunpack.c.l.b16 %v6332
    %v6671 = vunpack.c.l.b16 %v6333
    %v6672 = vunpack.c.h.b16 %v6333
    %v6673 = vunpack.c.l.b16 %v6334
    %v6674 = vunpack.c.l.b16 %v6335
    %v6675 = vunpack.c.h.b16 %v6335
    %v6676 = vunpack.c.l.b16 %v6336
    %v6677 = vunpack.c.l.b16 %v6337
    %v6678 = vunpack.c.h.b16 %v6337
    %v6679 = vunpack.c.l.b16 %v6338
    %v6680 = vunpack.c.l.b16 %v6339
    %v6681 = vunpack.c.h.b16 %v6339
    %v6682 = vunpack.c.l.b16 %v6340
    %v6683 = vunpack.c.l.b16 %v6341
    %v6684 = vunpack.c.h.b16 %v6341
    %v6685 = vunpack.c.l.b16 %v6342
    %v6686 = vunpack.c.l.b16 %v6343
    %v6687 = vunpack.c.h.b16 %v6343
    %v6688 = vunpack.c.l.b16 %v6344
    %v6689 = vunpack.c.l.b16 %v6345
    %v6690 = vunpack.c.h.b16 %v6345
    %v6691 = vunpack.c.l.b16 %v6346
    %v6692 = vunpack.c.l.b16 %v6347
    %v6693 = vunpack.c.h.b16 %v6347
    %v6694 = vunpack.c.l.b16 %v6348
    %v6695 = vunpack.c.l.b16 %v6349
    %v6696 = vunpack.c.h.b16 %v6349
    %v6697 = vunpack.c.l.b16 %v6350
    %v6698 = vunpack.c.l.b16 %v6351
    %v6699 = vunpack.c.h.b16 %v6351
    %v6700 = vunpack.c.l.b16 %v6352
    %v6701 = vunpack.c.l.b16 %v6353
    %v6702 = vunpack.c.h.b16 %v6353
    %v6703 = vunpack.c.l.b16 %v6354
    %v6704 = vunpack.c.l.b16 %v6355
    %v6705 = vunpack.c.h.b16 %v6355
    %v6706 = vunpack.c.l.b16 %v6356
    %v6707 = vunpack.c.l.b16 %v6357
    %v6708 = vunpack.c.h.b16 %v6357
    %v6709 = vunpack.c.l.b16 %v6358
    %v6710 = vunpack.c.l.b16 %v6359
    %v6711 = vunpack.c.h.b16 %v6359
    %v6712 = vunpack.c.l.b16 %v6360
    %v6713 = vunpack.c.l.b16 %v6361
    %v6714 = vunpack.c.h.b16 %v6361
    %v6715 = vunpack.c.l.b16 %v6362
    %v6716 = vunpack.c.l.b16 %v6363
    %v6717 = vunpack.c.h.b16 %v6363
    %v6718 = vunpack.c.l.b16 %v6364
    %v6719 = vunpack.c.l.b16 %v6365
    %v6720 = vunpack.c.h.b16 %v6365
    %v6721 = vunpack.c.l.b16 %v6366
    %v6722 = vunpack.c.l.b16 %v6367
    %v6723 = vunpack.c.h.b16 %v6367
    %v6724 = vunpack.c.l.b16 %v6368
    %v6725 = vunpack.c.l.b16 %v6369
    %v6726 = vunpack.c.h.b16 %v6369
    %v6727 = vunpack.c.l.b16 %v6370
    %v6728 = vunpack.c.l.b16 %v6371
    %v6729 = vunpack.c.h.b16 %v6371
    %v6730 = vunpack.c.l.b16 %v6372
    %v6731 = vunpack.c.l.b16 %v6373
    %v6732 = vunpack.c.h.b16 %v6373
    %v6733 = vunpack.c.l.b16 %v6374
    %v6734 = vunpack.c.l.b16 %v6375
    %v6735 = vunpack.c.h.b16 %v6375
    %v6736 = vunpack.c.l.b16 %v6376
    %v6737 = vpack.c.b16 %v6548, %v6545
    %v6738 = vpack.c.b16 %v6549, %v6546
    %v6739 = vpack.c.b16 %v6550, %v6547
    %v6740 = vpack.c.b16 %v6554, %v6551
    %v6741 = vpack.c.b16 %v6555, %v6552
    %v6742 = vpack.c.b16 %v6556, %v6553
    %v6743 = vpack.c.b16 %v6560, %v6557
    %v6744 = vpack.c.b16 %v6561, %v6558
    %v6745 = vpack.c.b16 %v6562, %v6559
    %v6746 = vpack.c.b16 %v6566, %v6563
    %v6747 = vpack.c.b16 %v6567, %v6564
    %v6748 = vpack.c.b16 %v6568, %v6565
    %v6749 = vpack.c.b16 %v6572, %v6569
    %v6750 = vpack.c.b16 %v6573, %v6570
    %v6751 = vpack.c.b16 %v6574, %v6571
    %v6752 = vpack.c.b16 %v6578, %v6575
    %v6753 = vpack.c.b16 %v6579, %v6576
    %v6754 = vpack.c.b16 %v6580, %v6577
    %v6755 = vpack.c.b16 %v6584, %v6581
    %v6756 = vpack.c.b16 %v6585, %v6582
    %v6757 = vpack.c.b16 %v6586, %v6583
    %v6758 = vpack.c.b16 %v6590, %v6587
    %v6759 = vpack.c.b16 %v6591, %v6588
    %v6760 = vpack.c.b16 %v6592, %v6589
    %v6761 = vpack.c.b16 %v6596, %v6593
    %v6762 = vpack.c.b16 %v6597, %v6594
    %v6763 = vpack.c.b16 %v6598, %v6595
    %v6764 = vpack.c.b16 %v6602, %v6599
    %v6765 = vpack.c.b16 %v6603, %v6600
    %v6766 = vpack.c.b16 %v6604, %v6601
    %v6767 = vpack.c.b16 %v6608, %v6605
    %v6768 = vpack.c.b16 %v6609, %v6606
    %v6769 = vpack.c.b16 %v6610, %v6607
    %v6770 = vpack.c.b16 %v6614, %v6611
    %v6771 = vpack.c.b16 %v6615, %v6612
    %v6772 = vpack.c.b16 %v6616, %v6613
    %v6773 = vpack.c.b16 %v6620, %v6617
    %v6774 = vpack.c.b16 %v6621, %v6618
    %v6775 = vpack.c.b16 %v6622, %v6619
    %v6776 = vpack.c.b16 %v6626, %v6623
    %v6777 = vpack.c.b16 %v6627, %v6624
    %v6778 = vpack.c.b16 %v6628, %v6625
    %v6779 = vpack.c.b16 %v6632, %v6629
    %v6780 = vpack.c.b16 %v6633, %v6630
    %v6781 = vpack.c.b16 %v6634, %v6631
    %v6782 = vpack.c.b16 %v6638, %v6635
    %v6783 = vpack.c.b16 %v6639, %v6636
    %v6784 = vpack.c.b16 %v6640, %v6637
    %v6785 = vpack.c.b16 %v6644, %v6641
    %v6786 = vpack.c.b16 %v6645, %v6642
    %v6787 = vpack.c.b16 %v6646, %v6643
    %v6788 = vpack.c.b16 %v6650, %v6647
    %v6789 = vpack.c.b16 %v6651, %v6648
    %v6790 = vpack.c.b16 %v6652, %v6649
    %v6791 = vpack.c.b16 %v6656, %v6653
    %v6792 = vpack.c.b16 %v6657, %v6654
    %v6793 = vpack.c.b16 %v6658, %v6655
    %v6794 = vpack.c.b16 %v6662, %v6659
    %v6795 = vpack.c.b16 %v6663, %v6660
    %v6796 = vpack.c.b16 %v6664, %v6661
    %v6797 = vpack.c.b16 %v6668, %v6665
    %v6798 = vpack.c.b16 %v6669, %v6666
    %v6799 = vpack.c.b16 %v6670, %v6667
    %v6800 = vpack.c.b16 %v6674, %v6671
    %v6801 = vpack.c.b16 %v6675, %v6672
    %v6802 = vpack.c.b16 %v6676, %v6673
    %v6803 = vpack.c.b16 %v6680, %v6677
    %v6804 = vpack.c.b16 %v6681, %v6678
    %v6805 = vpack.c.b16 %v6682, %v6679
    %v6806 = vpack.c.b16 %v6686, %v6683
    %v6807 = vpack.c.b16 %v6687, %v6684
    %v6808 = vpack.c.b16 %v6688, %v6685
    %v6809 = vpack.c.b16 %v6692, %v6689
    %v6810 = vpack.c.b16 %v6693, %v6690
    %v6811 = vpack.c.b16 %v6694, %v6691
    %v6812 = vpack.c.b16 %v6698, %v6695
    %v6813 = vpack.c.b16 %v6699, %v6696
    %v6814 = vpack.c.b16 %v6700, %v6697
    %v6815 = vpack.c.b16 %v6704, %v6701
    %v6816 = vpack.c.b16 %v6705, %v6702
    %v6817 = vpack.c.b16 %v6706, %v6703
    %v6818 = vpack.c.b16 %v6710, %v6707
    %v6819 = vpack.c.b16 %v6711, %v6708
    %v6820 = vpack.c.b16 %v6712, %v6709
    %v6821 = vpack.c.b16 %v6716, %v6713
    %v6822 = vpack.c.b16 %v6717, %v6714
    %v6823 = vpack.c.b16 %v6718, %v6715
    %v6824 = vpack.c.b16 %v6722, %v6719
    %v6825 = vpack.c.b16 %v6723, %v6720
    %v6826 = vpack.c.b16 %v6724, %v6721
    %v6827 = vpack.c.b16 %v6728, %v6725
    %v6828 = vpack.c.b16 %v6729, %v6726
    %v6829 = vpack.c.b16 %v6730, %v6727
    %v6830 = vpack.c.b16 %v6734, %v6731
    %v6831 = vpack.c.b16 %v6735, %v6732
    %v6832 = vpack.c.b16 %v6736, %v6733
    %v6933 = vunpack.c.l.b16 %v6377
    %v6934 = vunpack.c.l.b16 %v6378
    %v6935 = vunpack.c.l.b16 %v6379
    %v6936 = vunpack.c.l.b16 %v6380
    %v6937 = vunpack.c.l.b16 %v6381
    %v6938 = vunpack.c.l.b16 %v6382
    %v6939 = vunpack.c.l.b16 %v6383
    %v6940 = vunpack.c.l.b16 %v6384
    %v6941 = vunpack.c.l.b16 %v6385
    %v6942 = vunpack.c.l.b16 %v6386
    %v6943 = vunpack.c.l.b16 %v6387
    %v6944 = vunpack.c.l.b16 %v6388
    %v6945 = vunpack.c.l.b16 %v6389
    %v6946 = vunpack.c.l.b16 %v6390
    %v6947 = vunpack.c.l.b16 %v6391
    %v6948 = vunpack.c.l.b16 %v6392
    %v6949 = vunpack.c.l.b16 %v6393
    %v6950 = vunpack.c.l.b16 %v6394
    %v6951 = vunpack.c.l.b16 %v6395
    %v6952 = vunpack.c.l.b16 %v6396
    %v6953 = vunpack.c.l.b16 %v6397
    %v6954 = vunpack.c.l.b16 %v6398
    %v6955 = vunpack.c.l.b16 %v6399
    %v6956 = vunpack.c.l.b16 %v6400
    %v6957 = vunpack.c.l.b16 %v6401
    %v6958 = vunpack.c.l.b16 %v6402
    %v6959 = vunpack.c.l.b16 %v6403
    %v6960 = vunpack.c.l.b16 %v6404
    %v6961 = vunpack.c.l.b16 %v6405
    %v6962 = vunpack.c.l.b16 %v6406
    %v6963 = vunpack.c.l.b16 %v6407
    %v6964 = vunpack.c.l.b16 %v6408
    %v6965 = vunpack.c.l.b16 %v6409
    %v6966 = vunpack.c.l.b16 %v6410
    %v6967 = vunpack.c.l.b16 %v6411
    %v6968 = vunpack.c.l.b16 %v6412
    %v6969 = vpack.c.b16 %v6934, %v6933
    %v6970 = vpack.c.b16 %v6936, %v6935
    %v6971 = vpack.c.b16 %v6938, %v6937
    %v6972 = vpack.c.b16 %v6940, %v6939
    %v6973 = vpack.c.b16 %v6942, %v6941
    %v6974 = vpack.c.b16 %v6944, %v6943
    %v6975 = vpack.c.b16 %v6946, %v6945
    %v6976 = vpack.c.b16 %v6948, %v6947
    %v6977 = vpack.c.b16 %v6950, %v6949
    %v6978 = vpack.c.b16 %v6952, %v6951
    %v6979 = vpack.c.b16 %v6954, %v6953
    %v6980 = vpack.c.b16 %v6956, %v6955
    %v6981 = vpack.c.b16 %v6958, %v6957
    %v6982 = vpack.c.b16 %v6960, %v6959
    %v6983 = vpack.c.b16 %v6962, %v6961
    %v6984 = vpack.c.b16 %v6964, %v6963
    %v6985 = vpack.c.b16 %v6966, %v6965
    %v6986 = vpack.c.b16 %v6968, %v6967
    %v7006 = vsel %vm2380, %v6739, 0
    %v7009 = vsel %vm2380, %v6742, 0
    %v7012 = vsel %vm2380, %v6745, 0
    %v7015 = vsel %vm2380, %v6748, 0
    %v7018 = vsel %vm2380, %v6751, 0
    %v7021 = vsel %vm2380, %v6754, 0
    %v7024 = vsel %vm2380, %v6757, 0
    %v7027 = vsel %vm2380, %v6760, 0
    %v7030 = vsel %vm2380, %v6763, 0
    %v7033 = vsel %vm2380, %v6766, 0
    %v7036 = vsel %vm2380, %v6769, 0
    %v7039 = vsel %vm2380, %v6772, 0
    %v7042 = vsel %vm2380, %v6775, 0
    %v7045 = vsel %vm2380, %v6778, 0
    %v7048 = vsel %vm2380, %v6781, 0
    %v7051 = vsel %vm2380, %v6784, 0
    %v7054 = vsel %vm2380, %v6787, 0
    %v7057 = vsel %vm2380, %v6790, 0
    %v7060 = vsel %vm2380, %v6793, 0
    %v7063 = vsel %vm2380, %v6796, 0
    %v7066 = vsel %vm2380, %v6799, 0
    %v7069 = vsel %vm2380, %v6802, 0
    %v7072 = vsel %vm2380, %v6805, 0
    %v7075 = vsel %vm2380, %v6808, 0
    %v7078 = vsel %vm2380, %v6811, 0
    %v7081 = vsel %vm2380, %v6814, 0
    %v7084 = vsel %vm2380, %v6817, 0
    %v7087 = vsel %vm2380, %v6820, 0
    %v7090 = vsel %vm2380, %v6823, 0
    %v7093 = vsel %vm2380, %v6826, 0
    %v7096 = vsel %vm2380, %v6829, 0
    %v7099 = vsel %vm2380, %v6832, 0
    %7101 = vmatpush.bf16.msra.mxu0 %v6976
    %7102 = vmatpush.bf16.msra.mxu0 %v6975
    %7103 = vmatpush.bf16.msra.mxu0 %v6974
    %7104 = vmatpush.bf16.msra.mxu0 %v6973
    %7105 = vmatpush.bf16.msra.mxu0 %v6972
    %7106 = vmatpush.bf16.msra.mxu0 %v6971
    %7107 = vmatpush.bf16.msra.mxu0 %v6970
    %7108 = vmatpush.bf16.msra.mxu0 %v6969
    %7109 = vmatmul.bf16.gmra.mxu0 %v6737
    %v7110 = vpop.f32.mrf.mxu0
    %v7111 = vadd.f32 %v6415, %v7110
    %v7112 = vpop.f32.mrf.mxu0
    %v7113 = vadd.f32 %v6415, %v7112
    %7114 = vmatmul.bf16.gmra.mxu0 %v6740
    %v7115 = vpop.f32.mrf.mxu0
    %v7116 = vadd.f32 %v6415, %v7115
    %v7117 = vpop.f32.mrf.mxu0
    %v7118 = vadd.f32 %v6415, %v7117
    %7119 = vmatmul.bf16.gmra.mxu0 %v6743
    %v7120 = vpop.f32.mrf.mxu0
    %v7121 = vadd.f32 %v6415, %v7120
    %v7122 = vpop.f32.mrf.mxu0
    %v7123 = vadd.f32 %v6415, %v7122
    %7124 = vmatmul.bf16.gmra.mxu0 %v6746
    %v7125 = vpop.f32.mrf.mxu0
    %v7126 = vadd.f32 %v6415, %v7125
    %v7127 = vpop.f32.mrf.mxu0
    %v7128 = vadd.f32 %v6415, %v7127
    %7129 = vmatmul.bf16.gmra.mxu0 %v6749
    %v7130 = vpop.f32.mrf.mxu0
    %v7131 = vadd.f32 %v6415, %v7130
    %v7132 = vpop.f32.mrf.mxu0
    %v7133 = vadd.f32 %v6415, %v7132
    %7134 = vmatmul.bf16.gmra.mxu0 %v6752
    %v7135 = vpop.f32.mrf.mxu0
    %v7136 = vadd.f32 %v6415, %v7135
    %v7137 = vpop.f32.mrf.mxu0
    %v7138 = vadd.f32 %v6415, %v7137
    %7139 = vmatmul.bf16.gmra.mxu0 %v6755
    %v7140 = vpop.f32.mrf.mxu0
    %v7141 = vadd.f32 %v6415, %v7140
    %v7142 = vpop.f32.mrf.mxu0
    %v7143 = vadd.f32 %v6415, %v7142
    %7144 = vmatmul.bf16.gmra.mxu0 %v6758
    %v7145 = vpop.f32.mrf.mxu0
    %v7146 = vadd.f32 %v6415, %v7145
    %v7147 = vpop.f32.mrf.mxu0
    %v7148 = vadd.f32 %v6415, %v7147
    %7149 = vmatmul.bf16.gmra.mxu0 %v6761
    %v7150 = vpop.f32.mrf.mxu0
    %v7151 = vadd.f32 %v6415, %v7150
    %v7152 = vpop.f32.mrf.mxu0
    %v7153 = vadd.f32 %v6415, %v7152
    %7154 = vmatmul.bf16.gmra.mxu0 %v6764
    %v7155 = vpop.f32.mrf.mxu0
    %v7156 = vadd.f32 %v6415, %v7155
    %v7157 = vpop.f32.mrf.mxu0
    %v7158 = vadd.f32 %v6415, %v7157
    %7159 = vmatmul.bf16.gmra.mxu0 %v6767
    %v7160 = vpop.f32.mrf.mxu0
    %v7161 = vadd.f32 %v6415, %v7160
    %v7162 = vpop.f32.mrf.mxu0
    %v7163 = vadd.f32 %v6415, %v7162
    %7164 = vmatmul.bf16.gmra.mxu0 %v6770
    %v7165 = vpop.f32.mrf.mxu0
    %v7166 = vadd.f32 %v6415, %v7165
    %v7167 = vpop.f32.mrf.mxu0
    %v7168 = vadd.f32 %v6415, %v7167
    %7169 = vmatmul.bf16.gmra.mxu0 %v6773
    %v7170 = vpop.f32.mrf.mxu0
    %v7171 = vadd.f32 %v6415, %v7170
    %v7172 = vpop.f32.mrf.mxu0
    %v7173 = vadd.f32 %v6415, %v7172
    %7174 = vmatmul.bf16.gmra.mxu0 %v6776
    %v7175 = vpop.f32.mrf.mxu0
    %v7176 = vadd.f32 %v6415, %v7175
    %v7177 = vpop.f32.mrf.mxu0
    %v7178 = vadd.f32 %v6415, %v7177
    %7179 = vmatmul.bf16.gmra.mxu0 %v6779
    %v7180 = vpop.f32.mrf.mxu0
    %v7181 = vadd.f32 %v6415, %v7180
    %v7182 = vpop.f32.mrf.mxu0
    %v7183 = vadd.f32 %v6415, %v7182
    %7184 = vmatmul.bf16.gmra.mxu0 %v6782
    %v7185 = vpop.f32.mrf.mxu0
    %v7186 = vadd.f32 %v6415, %v7185
    %v7187 = vpop.f32.mrf.mxu0
    %v7188 = vadd.f32 %v6415, %v7187
    %7189 = vmatmul.bf16.gmra.mxu0 %v6785
    %v7190 = vpop.f32.mrf.mxu0
    %v7191 = vadd.f32 %v6415, %v7190
    %v7192 = vpop.f32.mrf.mxu0
    %v7193 = vadd.f32 %v6415, %v7192
    %7194 = vmatmul.bf16.gmra.mxu0 %v6788
    %v7195 = vpop.f32.mrf.mxu0
    %v7196 = vadd.f32 %v6415, %v7195
    %v7197 = vpop.f32.mrf.mxu0
    %v7198 = vadd.f32 %v6415, %v7197
    %7199 = vmatmul.bf16.gmra.mxu0 %v6791
    %v7200 = vpop.f32.mrf.mxu0
    %v7201 = vadd.f32 %v6415, %v7200
    %v7202 = vpop.f32.mrf.mxu0
    %v7203 = vadd.f32 %v6415, %v7202
    %7204 = vmatmul.bf16.gmra.mxu0 %v6794
    %v7205 = vpop.f32.mrf.mxu0
    %v7206 = vadd.f32 %v6415, %v7205
    %v7207 = vpop.f32.mrf.mxu0
    %v7208 = vadd.f32 %v6415, %v7207
    %7209 = vmatmul.bf16.gmra.mxu0 %v6797
    %v7210 = vpop.f32.mrf.mxu0
    %v7211 = vadd.f32 %v6415, %v7210
    %v7212 = vpop.f32.mrf.mxu0
    %v7213 = vadd.f32 %v6415, %v7212
    %7214 = vmatmul.bf16.gmra.mxu0 %v6800
    %v7215 = vpop.f32.mrf.mxu0
    %v7216 = vadd.f32 %v6415, %v7215
    %v7217 = vpop.f32.mrf.mxu0
    %v7218 = vadd.f32 %v6415, %v7217
    %7219 = vmatmul.bf16.gmra.mxu0 %v6803
    %v7220 = vpop.f32.mrf.mxu0
    %v7221 = vadd.f32 %v6415, %v7220
    %v7222 = vpop.f32.mrf.mxu0
    %v7223 = vadd.f32 %v6415, %v7222
    %7224 = vmatmul.bf16.gmra.mxu0 %v6806
    %v7225 = vpop.f32.mrf.mxu0
    %v7226 = vadd.f32 %v6415, %v7225
    %v7227 = vpop.f32.mrf.mxu0
    %v7228 = vadd.f32 %v6415, %v7227
    %7229 = vmatmul.bf16.gmra.mxu0 %v6809
    %v7230 = vpop.f32.mrf.mxu0
    %v7231 = vadd.f32 %v6415, %v7230
    %v7232 = vpop.f32.mrf.mxu0
    %v7233 = vadd.f32 %v6415, %v7232
    %7234 = vmatmul.bf16.gmra.mxu0 %v6812
    %v7235 = vpop.f32.mrf.mxu0
    %v7236 = vadd.f32 %v6415, %v7235
    %v7237 = vpop.f32.mrf.mxu0
    %v7238 = vadd.f32 %v6415, %v7237
    %7239 = vmatmul.bf16.gmra.mxu0 %v6815
    %v7240 = vpop.f32.mrf.mxu0
    %v7241 = vadd.f32 %v6415, %v7240
    %v7242 = vpop.f32.mrf.mxu0
    %v7243 = vadd.f32 %v6415, %v7242
    %7244 = vmatmul.bf16.gmra.mxu0 %v6818
    %v7245 = vpop.f32.mrf.mxu0
    %v7246 = vadd.f32 %v6415, %v7245
    %v7247 = vpop.f32.mrf.mxu0
    %v7248 = vadd.f32 %v6415, %v7247
    %7249 = vmatmul.bf16.gmra.mxu0 %v6821
    %v7250 = vpop.f32.mrf.mxu0
    %v7251 = vadd.f32 %v6415, %v7250
    %v7252 = vpop.f32.mrf.mxu0
    %v7253 = vadd.f32 %v6415, %v7252
    %7254 = vmatmul.bf16.gmra.mxu0 %v6824
    %v7255 = vpop.f32.mrf.mxu0
    %v7256 = vadd.f32 %v6415, %v7255
    %v7257 = vpop.f32.mrf.mxu0
    %v7258 = vadd.f32 %v6415, %v7257
    %7259 = vmatmul.bf16.gmra.mxu0 %v6827
    %v7260 = vpop.f32.mrf.mxu0
    %v7261 = vadd.f32 %v6415, %v7260
    %v7262 = vpop.f32.mrf.mxu0
    %v7263 = vadd.f32 %v6415, %v7262
    %7264 = vmatmul.bf16.gmra.mxu0 %v6830
    %v7265 = vpop.f32.mrf.mxu0
    %v7266 = vadd.f32 %v6415, %v7265
    %v7267 = vpop.f32.mrf.mxu0
    %v7268 = vadd.f32 %v6415, %v7267
    %7269 = vdwg.mxu0
    %7270 = vmatpush.bf16.msra.mxu0 %v6984
    %7271 = vmatpush.bf16.msra.mxu0 %v6983
    %7272 = vmatpush.bf16.msra.mxu0 %v6982
    %7273 = vmatpush.bf16.msra.mxu0 %v6981
    %7274 = vmatpush.bf16.msra.mxu0 %v6980
    %7275 = vmatpush.bf16.msra.mxu0 %v6979
    %7276 = vmatpush.bf16.msra.mxu0 %v6978
    %7277 = vmatpush.bf16.msra.mxu0 %v6977
    %7278 = vmatmul.bf16.gmra.mxu0 %v6738
    %v7279 = vpop.f32.mrf.mxu0
    %v7280 = vadd.f32 %v7111, %v7279
    %v7281 = vpop.f32.mrf.mxu0
    %v7282 = vadd.f32 %v7113, %v7281
    %7283 = vmatmul.bf16.gmra.mxu0 %v6741
    %v7284 = vpop.f32.mrf.mxu0
    %v7285 = vadd.f32 %v7116, %v7284
    %v7286 = vpop.f32.mrf.mxu0
    %v7287 = vadd.f32 %v7118, %v7286
    %7288 = vmatmul.bf16.gmra.mxu0 %v6744
    %v7289 = vpop.f32.mrf.mxu0
    %v7290 = vadd.f32 %v7121, %v7289
    %v7291 = vpop.f32.mrf.mxu0
    %v7292 = vadd.f32 %v7123, %v7291
    %7293 = vmatmul.bf16.gmra.mxu0 %v6747
    %v7294 = vpop.f32.mrf.mxu0
    %v7295 = vadd.f32 %v7126, %v7294
    %v7296 = vpop.f32.mrf.mxu0
    %v7297 = vadd.f32 %v7128, %v7296
    %7298 = vmatmul.bf16.gmra.mxu0 %v6750
    %v7299 = vpop.f32.mrf.mxu0
    %v7300 = vadd.f32 %v7131, %v7299
    %v7301 = vpop.f32.mrf.mxu0
    %v7302 = vadd.f32 %v7133, %v7301
    %7303 = vmatmul.bf16.gmra.mxu0 %v6753
    %v7304 = vpop.f32.mrf.mxu0
    %v7305 = vadd.f32 %v7136, %v7304
    %v7306 = vpop.f32.mrf.mxu0
    %v7307 = vadd.f32 %v7138, %v7306
    %7308 = vmatmul.bf16.gmra.mxu0 %v6756
    %v7309 = vpop.f32.mrf.mxu0
    %v7310 = vadd.f32 %v7141, %v7309
    %v7311 = vpop.f32.mrf.mxu0
    %v7312 = vadd.f32 %v7143, %v7311
    %7313 = vmatmul.bf16.gmra.mxu0 %v6759
    %v7314 = vpop.f32.mrf.mxu0
    %v7315 = vadd.f32 %v7146, %v7314
    %v7316 = vpop.f32.mrf.mxu0
    %v7317 = vadd.f32 %v7148, %v7316
    %7318 = vmatmul.bf16.gmra.mxu0 %v6762
    %v7319 = vpop.f32.mrf.mxu0
    %v7320 = vadd.f32 %v7151, %v7319
    %v7321 = vpop.f32.mrf.mxu0
    %v7322 = vadd.f32 %v7153, %v7321
    %7323 = vmatmul.bf16.gmra.mxu0 %v6765
    %v7324 = vpop.f32.mrf.mxu0
    %v7325 = vadd.f32 %v7156, %v7324
    %v7326 = vpop.f32.mrf.mxu0
    %v7327 = vadd.f32 %v7158, %v7326
    %7328 = vmatmul.bf16.gmra.mxu0 %v6768
    %v7329 = vpop.f32.mrf.mxu0
    %v7330 = vadd.f32 %v7161, %v7329
    %v7331 = vpop.f32.mrf.mxu0
    %v7332 = vadd.f32 %v7163, %v7331
    %7333 = vmatmul.bf16.gmra.mxu0 %v6771
    %v7334 = vpop.f32.mrf.mxu0
    %v7335 = vadd.f32 %v7166, %v7334
    %v7336 = vpop.f32.mrf.mxu0
    %v7337 = vadd.f32 %v7168, %v7336
    %7338 = vmatmul.bf16.gmra.mxu0 %v6774
    %v7339 = vpop.f32.mrf.mxu0
    %v7340 = vadd.f32 %v7171, %v7339
    %v7341 = vpop.f32.mrf.mxu0
    %v7342 = vadd.f32 %v7173, %v7341
    %7343 = vmatmul.bf16.gmra.mxu0 %v6777
    %v7344 = vpop.f32.mrf.mxu0
    %v7345 = vadd.f32 %v7176, %v7344
    %v7346 = vpop.f32.mrf.mxu0
    %v7347 = vadd.f32 %v7178, %v7346
    %7348 = vmatmul.bf16.gmra.mxu0 %v6780
    %v7349 = vpop.f32.mrf.mxu0
    %v7350 = vadd.f32 %v7181, %v7349
    %v7351 = vpop.f32.mrf.mxu0
    %v7352 = vadd.f32 %v7183, %v7351
    %7353 = vmatmul.bf16.gmra.mxu0 %v6783
    %v7354 = vpop.f32.mrf.mxu0
    %v7355 = vadd.f32 %v7186, %v7354
    %v7356 = vpop.f32.mrf.mxu0
    %v7357 = vadd.f32 %v7188, %v7356
    %7358 = vmatmul.bf16.gmra.mxu0 %v6786
    %v7359 = vpop.f32.mrf.mxu0
    %v7360 = vadd.f32 %v7191, %v7359
    %v7361 = vpop.f32.mrf.mxu0
    %v7362 = vadd.f32 %v7193, %v7361
    %7363 = vmatmul.bf16.gmra.mxu0 %v6789
    %v7364 = vpop.f32.mrf.mxu0
    %v7365 = vadd.f32 %v7196, %v7364
    %v7366 = vpop.f32.mrf.mxu0
    %v7367 = vadd.f32 %v7198, %v7366
    %7368 = vmatmul.bf16.gmra.mxu0 %v6792
    %v7369 = vpop.f32.mrf.mxu0
    %v7370 = vadd.f32 %v7201, %v7369
    %v7371 = vpop.f32.mrf.mxu0
    %v7372 = vadd.f32 %v7203, %v7371
    %7373 = vmatmul.bf16.gmra.mxu0 %v6795
    %v7374 = vpop.f32.mrf.mxu0
    %v7375 = vadd.f32 %v7206, %v7374
    %v7376 = vpop.f32.mrf.mxu0
    %v7377 = vadd.f32 %v7208, %v7376
    %7378 = vmatmul.bf16.gmra.mxu0 %v6798
    %v7379 = vpop.f32.mrf.mxu0
    %v7380 = vadd.f32 %v7211, %v7379
    %v7381 = vpop.f32.mrf.mxu0
    %v7382 = vadd.f32 %v7213, %v7381
    %7383 = vmatmul.bf16.gmra.mxu0 %v6801
    %v7384 = vpop.f32.mrf.mxu0
    %v7385 = vadd.f32 %v7216, %v7384
    %v7386 = vpop.f32.mrf.mxu0
    %v7387 = vadd.f32 %v7218, %v7386
    %7388 = vmatmul.bf16.gmra.mxu0 %v6804
    %v7389 = vpop.f32.mrf.mxu0
    %v7390 = vadd.f32 %v7221, %v7389
    %v7391 = vpop.f32.mrf.mxu0
    %v7392 = vadd.f32 %v7223, %v7391
    %7393 = vmatmul.bf16.gmra.mxu0 %v6807
    %v7394 = vpop.f32.mrf.mxu0
    %v7395 = vadd.f32 %v7226, %v7394
    %v7396 = vpop.f32.mrf.mxu0
    %v7397 = vadd.f32 %v7228, %v7396
    %7398 = vmatmul.bf16.gmra.mxu0 %v6810
    %v7399 = vpop.f32.mrf.mxu0
    %v7400 = vadd.f32 %v7231, %v7399
    %v7401 = vpop.f32.mrf.mxu0
    %v7402 = vadd.f32 %v7233, %v7401
    %7403 = vmatmul.bf16.gmra.mxu0 %v6813
    %v7404 = vpop.f32.mrf.mxu0
    %v7405 = vadd.f32 %v7236, %v7404
    %v7406 = vpop.f32.mrf.mxu0
    %v7407 = vadd.f32 %v7238, %v7406
    %7408 = vmatmul.bf16.gmra.mxu0 %v6816
    %v7409 = vpop.f32.mrf.mxu0
    %v7410 = vadd.f32 %v7241, %v7409
    %v7411 = vpop.f32.mrf.mxu0
    %v7412 = vadd.f32 %v7243, %v7411
    %7413 = vmatmul.bf16.gmra.mxu0 %v6819
    %v7414 = vpop.f32.mrf.mxu0
    %v7415 = vadd.f32 %v7246, %v7414
    %v7416 = vpop.f32.mrf.mxu0
    %v7417 = vadd.f32 %v7248, %v7416
    %7418 = vmatmul.bf16.gmra.mxu0 %v6822
    %v7419 = vpop.f32.mrf.mxu0
    %v7420 = vadd.f32 %v7251, %v7419
    %v7421 = vpop.f32.mrf.mxu0
    %v7422 = vadd.f32 %v7253, %v7421
    %7423 = vmatmul.bf16.gmra.mxu0 %v6825
    %v7424 = vpop.f32.mrf.mxu0
    %v7425 = vadd.f32 %v7256, %v7424
    %v7426 = vpop.f32.mrf.mxu0
    %v7427 = vadd.f32 %v7258, %v7426
    %7428 = vmatmul.bf16.gmra.mxu0 %v6828
    %v7429 = vpop.f32.mrf.mxu0
    %v7430 = vadd.f32 %v7261, %v7429
    %v7431 = vpop.f32.mrf.mxu0
    %v7432 = vadd.f32 %v7263, %v7431
    %7433 = vmatmul.bf16.gmra.mxu0 %v6831
    %v7434 = vpop.f32.mrf.mxu0
    %v7435 = vadd.f32 %v7266, %v7434
    %v7436 = vpop.f32.mrf.mxu0
    %v7437 = vadd.f32 %v7268, %v7436
    %7438 = vdwg.mxu0
    %7439 = vmatpush.bf16.msra.mxu0 0
    %7440 = vmatpush.bf16.msra.mxu0 0
    %7441 = vmatpush.bf16.msra.mxu0 0
    %7442 = vmatpush.bf16.msra.mxu0 0
    %7443 = vmatpush.bf16.msra.mxu0 0
    %7444 = vmatpush.bf16.msra.mxu0 0
    %7445 = vmatpush.bf16.msra.mxu0 %v6986
    %7446 = vmatpush.bf16.msra.mxu0 %v6985
    %7447 = vmatmul.bf16.gmra.mxu0 %v7006
    %v7448 = vpop.f32.mrf.mxu0
    %v7449 = vadd.f32 %v7280, %v7448
    %v7450 = vpop.f32.mrf.mxu0
    %v7451 = vadd.f32 %v7282, %v7450
    %7452 = vmatmul.bf16.gmra.mxu0 %v7009
    %v7453 = vpop.f32.mrf.mxu0
    %v7454 = vadd.f32 %v7285, %v7453
    %v7455 = vpop.f32.mrf.mxu0
    %v7456 = vadd.f32 %v7287, %v7455
    %7457 = vmatmul.bf16.gmra.mxu0 %v7012
    %v7458 = vpop.f32.mrf.mxu0
    %v7459 = vadd.f32 %v7290, %v7458
    %v7460 = vpop.f32.mrf.mxu0
    %v7461 = vadd.f32 %v7292, %v7460
    %7462 = vmatmul.bf16.gmra.mxu0 %v7015
    %v7463 = vpop.f32.mrf.mxu0
    %v7464 = vadd.f32 %v7295, %v7463
    %v7465 = vpop.f32.mrf.mxu0
    %v7466 = vadd.f32 %v7297, %v7465
    %7467 = vmatmul.bf16.gmra.mxu0 %v7018
    %v7468 = vpop.f32.mrf.mxu0
    %v7469 = vadd.f32 %v7300, %v7468
    %v7470 = vpop.f32.mrf.mxu0
    %v7471 = vadd.f32 %v7302, %v7470
    %7472 = vmatmul.bf16.gmra.mxu0 %v7021
    %v7473 = vpop.f32.mrf.mxu0
    %v7474 = vadd.f32 %v7305, %v7473
    %v7475 = vpop.f32.mrf.mxu0
    %v7476 = vadd.f32 %v7307, %v7475
    %7477 = vmatmul.bf16.gmra.mxu0 %v7024
    %v7478 = vpop.f32.mrf.mxu0
    %v7479 = vadd.f32 %v7310, %v7478
    %v7480 = vpop.f32.mrf.mxu0
    %v7481 = vadd.f32 %v7312, %v7480
    %7482 = vmatmul.bf16.gmra.mxu0 %v7027
    %v7483 = vpop.f32.mrf.mxu0
    %v7484 = vadd.f32 %v7315, %v7483
    %v7485 = vpop.f32.mrf.mxu0
    %v7486 = vadd.f32 %v7317, %v7485
    %7487 = vmatmul.bf16.gmra.mxu0 %v7030
    %v7488 = vpop.f32.mrf.mxu0
    %v7489 = vadd.f32 %v7320, %v7488
    %v7490 = vpop.f32.mrf.mxu0
    %v7491 = vadd.f32 %v7322, %v7490
    %7492 = vmatmul.bf16.gmra.mxu0 %v7033
    %v7493 = vpop.f32.mrf.mxu0
    %v7494 = vadd.f32 %v7325, %v7493
    %v7495 = vpop.f32.mrf.mxu0
    %v7496 = vadd.f32 %v7327, %v7495
    %7497 = vmatmul.bf16.gmra.mxu0 %v7036
    %v7498 = vpop.f32.mrf.mxu0
    %v7499 = vadd.f32 %v7330, %v7498
    %v7500 = vpop.f32.mrf.mxu0
    %v7501 = vadd.f32 %v7332, %v7500
    %7502 = vmatmul.bf16.gmra.mxu0 %v7039
    %v7503 = vpop.f32.mrf.mxu0
    %v7504 = vadd.f32 %v7335, %v7503
    %v7505 = vpop.f32.mrf.mxu0
    %v7506 = vadd.f32 %v7337, %v7505
    %7507 = vmatmul.bf16.gmra.mxu0 %v7042
    %v7508 = vpop.f32.mrf.mxu0
    %v7509 = vadd.f32 %v7340, %v7508
    %v7510 = vpop.f32.mrf.mxu0
    %v7511 = vadd.f32 %v7342, %v7510
    %7512 = vmatmul.bf16.gmra.mxu0 %v7045
    %v7513 = vpop.f32.mrf.mxu0
    %v7514 = vadd.f32 %v7345, %v7513
    %v7515 = vpop.f32.mrf.mxu0
    %v7516 = vadd.f32 %v7347, %v7515
    %7517 = vmatmul.bf16.gmra.mxu0 %v7048
    %v7518 = vpop.f32.mrf.mxu0
    %v7519 = vadd.f32 %v7350, %v7518
    %v7520 = vpop.f32.mrf.mxu0
    %v7521 = vadd.f32 %v7352, %v7520
    %7522 = vmatmul.bf16.gmra.mxu0 %v7051
    %v7523 = vpop.f32.mrf.mxu0
    %v7524 = vadd.f32 %v7355, %v7523
    %v7525 = vpop.f32.mrf.mxu0
    %v7526 = vadd.f32 %v7357, %v7525
    %7527 = vmatmul.bf16.gmra.mxu0 %v7054
    %v7528 = vpop.f32.mrf.mxu0
    %v7529 = vadd.f32 %v7360, %v7528
    %v7530 = vpop.f32.mrf.mxu0
    %v7531 = vadd.f32 %v7362, %v7530
    %7532 = vmatmul.bf16.gmra.mxu0 %v7057
    %v7533 = vpop.f32.mrf.mxu0
    %v7534 = vadd.f32 %v7365, %v7533
    %v7535 = vpop.f32.mrf.mxu0
    %v7536 = vadd.f32 %v7367, %v7535
    %7537 = vmatmul.bf16.gmra.mxu0 %v7060
    %v7538 = vpop.f32.mrf.mxu0
    %v7539 = vadd.f32 %v7370, %v7538
    %v7540 = vpop.f32.mrf.mxu0
    %v7541 = vadd.f32 %v7372, %v7540
    %7542 = vmatmul.bf16.gmra.mxu0 %v7063
    %v7543 = vpop.f32.mrf.mxu0
    %v7544 = vadd.f32 %v7375, %v7543
    %v7545 = vpop.f32.mrf.mxu0
    %v7546 = vadd.f32 %v7377, %v7545
    %7547 = vmatmul.bf16.gmra.mxu0 %v7066
    %v7548 = vpop.f32.mrf.mxu0
    %v7549 = vadd.f32 %v7380, %v7548
    %v7550 = vpop.f32.mrf.mxu0
    %v7551 = vadd.f32 %v7382, %v7550
    %7552 = vmatmul.bf16.gmra.mxu0 %v7069
    %v7553 = vpop.f32.mrf.mxu0
    %v7554 = vadd.f32 %v7385, %v7553
    %v7555 = vpop.f32.mrf.mxu0
    %v7556 = vadd.f32 %v7387, %v7555
    %7557 = vmatmul.bf16.gmra.mxu0 %v7072
    %v7558 = vpop.f32.mrf.mxu0
    %v7559 = vadd.f32 %v7390, %v7558
    %v7560 = vpop.f32.mrf.mxu0
    %v7561 = vadd.f32 %v7392, %v7560
    %7562 = vmatmul.bf16.gmra.mxu0 %v7075
    %v7563 = vpop.f32.mrf.mxu0
    %v7564 = vadd.f32 %v7395, %v7563
    %v7565 = vpop.f32.mrf.mxu0
    %v7566 = vadd.f32 %v7397, %v7565
    %7567 = vmatmul.bf16.gmra.mxu0 %v7078
    %v7568 = vpop.f32.mrf.mxu0
    %v7569 = vadd.f32 %v7400, %v7568
    %v7570 = vpop.f32.mrf.mxu0
    %v7571 = vadd.f32 %v7402, %v7570
    %7572 = vmatmul.bf16.gmra.mxu0 %v7081
    %v7573 = vpop.f32.mrf.mxu0
    %v7574 = vadd.f32 %v7405, %v7573
    %v7575 = vpop.f32.mrf.mxu0
    %v7576 = vadd.f32 %v7407, %v7575
    %7577 = vmatmul.bf16.gmra.mxu0 %v7084
    %v7578 = vpop.f32.mrf.mxu0
    %v7579 = vadd.f32 %v7410, %v7578
    %v7580 = vpop.f32.mrf.mxu0
    %v7581 = vadd.f32 %v7412, %v7580
    %7582 = vmatmul.bf16.gmra.mxu0 %v7087
    %v7583 = vpop.f32.mrf.mxu0
    %v7584 = vadd.f32 %v7415, %v7583
    %v7585 = vpop.f32.mrf.mxu0
    %v7586 = vadd.f32 %v7417, %v7585
    %7587 = vmatmul.bf16.gmra.mxu0 %v7090
    %v7588 = vpop.f32.mrf.mxu0
    %v7589 = vadd.f32 %v7420, %v7588
    %v7590 = vpop.f32.mrf.mxu0
    %v7591 = vadd.f32 %v7422, %v7590
    %7592 = vmatmul.bf16.gmra.mxu0 %v7093
    %v7593 = vpop.f32.mrf.mxu0
    %v7594 = vadd.f32 %v7425, %v7593
    %v7595 = vpop.f32.mrf.mxu0
    %v7596 = vadd.f32 %v7427, %v7595
    %7597 = vmatmul.bf16.gmra.mxu0 %v7096
    %v7598 = vpop.f32.mrf.mxu0
    %v7599 = vadd.f32 %v7430, %v7598
    %v7600 = vpop.f32.mrf.mxu0
    %v7601 = vadd.f32 %v7432, %v7600
    %7602 = vmatmul.bf16.gmra.mxu0 %v7099
    %v7603 = vpop.f32.mrf.mxu0
    %v7604 = vadd.f32 %v7435, %v7603
    %v7605 = vpop.f32.mrf.mxu0
    %v7606 = vadd.f32 %v7437, %v7605
    %7607 = vdwg.mxu0
    %v7608 = vmax.f32 %v7449, 0.0
    %v7609 = vmax.f32 %v7451, 0.0
    %v7610 = vmax.f32 %v7454, 0.0
    %v7611 = vmax.f32 %v7456, 0.0
    %v7612 = vmax.f32 %v7459, 0.0
    %v7613 = vmax.f32 %v7461, 0.0
    %v7614 = vmax.f32 %v7464, 0.0
    %v7615 = vmax.f32 %v7466, 0.0
    %v7616 = vmax.f32 %v7469, 0.0
    %v7617 = vmax.f32 %v7471, 0.0
    %v7618 = vmax.f32 %v7474, 0.0
    %v7619 = vmax.f32 %v7476, 0.0
    %v7620 = vmax.f32 %v7479, 0.0
    %v7621 = vmax.f32 %v7481, 0.0
    %v7622 = vmax.f32 %v7484, 0.0
    %v7623 = vmax.f32 %v7486, 0.0
    %v7624 = vmax.f32 %v7489, 0.0
    %v7625 = vmax.f32 %v7491, 0.0
    %v7626 = vmax.f32 %v7494, 0.0
    %v7627 = vmax.f32 %v7496, 0.0
    %v7628 = vmax.f32 %v7499, 0.0
    %v7629 = vmax.f32 %v7501, 0.0
    %v7630 = vmax.f32 %v7504, 0.0
    %v7631 = vmax.f32 %v7506, 0.0
    %v7632 = vmax.f32 %v7509, 0.0
    %v7633 = vmax.f32 %v7511, 0.0
    %v7634 = vmax.f32 %v7514, 0.0
    %v7635 = vmax.f32 %v7516, 0.0
    %v7636 = vmax.f32 %v7519, 0.0
    %v7637 = vmax.f32 %v7521, 0.0
    %v7638 = vmax.f32 %v7524, 0.0
    %v7639 = vmax.f32 %v7526, 0.0
    %v7640 = vmax.f32 %v7529, 0.0
    %v7641 = vmax.f32 %v7531, 0.0
    %v7642 = vmax.f32 %v7534, 0.0
    %v7643 = vmax.f32 %v7536, 0.0
    %v7644 = vmax.f32 %v7539, 0.0
    %v7645 = vmax.f32 %v7541, 0.0
    %v7646 = vmax.f32 %v7544, 0.0
    %v7647 = vmax.f32 %v7546, 0.0
    %v7648 = vmax.f32 %v7549, 0.0
    %v7649 = vmax.f32 %v7551, 0.0
    %v7650 = vmax.f32 %v7554, 0.0
    %v7651 = vmax.f32 %v7556, 0.0
    %v7652 = vmax.f32 %v7559, 0.0
    %v7653 = vmax.f32 %v7561, 0.0
    %v7654 = vmax.f32 %v7564, 0.0
    %v7655 = vmax.f32 %v7566, 0.0
    %v7656 = vmax.f32 %v7569, 0.0
    %v7657 = vmax.f32 %v7571, 0.0
    %v7658 = vmax.f32 %v7574, 0.0
    %v7659 = vmax.f32 %v7576, 0.0
    %v7660 = vmax.f32 %v7579, 0.0
    %v7661 = vmax.f32 %v7581, 0.0
    %v7662 = vmax.f32 %v7584, 0.0
    %v7663 = vmax.f32 %v7586, 0.0
    %v7664 = vmax.f32 %v7589, 0.0
    %v7665 = vmax.f32 %v7591, 0.0
    %v7666 = vmax.f32 %v7594, 0.0
    %v7667 = vmax.f32 %v7596, 0.0
    %v7668 = vmax.f32 %v7599, 0.0
    %v7669 = vmax.f32 %v7601, 0.0
    %v7670 = vmax.f32 %v7604, 0.0
    %v7671 = vmax.f32 %v7606, 0.0
    %v7672 = vmax.f32 %v7608, %v7610
    %v7673 = vmax.f32 %v7609, %v7611
    %v7674 = vmax.f32 %v7612, %v7614
    %v7675 = vmax.f32 %v7613, %v7615
    %v7676 = vmax.f32 %v7616, %v7618
    %v7677 = vmax.f32 %v7617, %v7619
    %v7678 = vmax.f32 %v7620, %v7622
    %v7679 = vmax.f32 %v7621, %v7623
    %v7680 = vmax.f32 %v7624, %v7626
    %v7681 = vmax.f32 %v7625, %v7627
    %v7682 = vmax.f32 %v7628, %v7630
    %v7683 = vmax.f32 %v7629, %v7631
    %v7684 = vmax.f32 %v7632, %v7634
    %v7685 = vmax.f32 %v7633, %v7635
    %v7686 = vmax.f32 %v7636, %v7638
    %v7687 = vmax.f32 %v7637, %v7639
    %v7688 = vmax.f32 %v7640, %v7642
    %v7689 = vmax.f32 %v7641, %v7643
    %v7690 = vmax.f32 %v7644, %v7646
    %v7691 = vmax.f32 %v7645, %v7647
    %v7692 = vmax.f32 %v7648, %v7650
    %v7693 = vmax.f32 %v7649, %v7651
    %v7694 = vmax.f32 %v7652, %v7654
    %v7695 = vmax.f32 %v7653, %v7655
    %v7696 = vmax.f32 %v7656, %v7658
    %v7697 = vmax.f32 %v7657, %v7659
    %v7698 = vmax.f32 %v7660, %v7662
    %v7699 = vmax.f32 %v7661, %v7663
    %v7700 = vmax.f32 %v7664, %v7666
    %v7701 = vmax.f32 %v7665, %v7667
    %v7702 = vmax.f32 %v7668, %v7670
    %v7703 = vmax.f32 %v7669, %v7671
    %vm7704 = vcmask 523264
    %7705 = vst.msk [vmem:[#allocation7] sm:$0xff] %vm7704, %v7672
    %7706 = vst.msk [vmem:[#allocation7 + $0x8] sm:$0xff] %vm7704, %v7673
    %7707 = vst.msk [vmem:[#allocation7 + $0x10] sm:$0xff] %vm7704, %v7674
    %7708 = vst.msk [vmem:[#allocation7 + $0x18] sm:$0xff] %vm7704, %v7675
    %7709 = vst.msk [vmem:[#allocation7 + $0x20] sm:$0xff] %vm7704, %v7676
    %7710 = vst.msk [vmem:[#allocation7 + $0x28] sm:$0xff] %vm7704, %v7677
    %7711 = vst.msk [vmem:[#allocation7 + $0x30] sm:$0xff] %vm7704, %v7678
    %7712 = vst.msk [vmem:[#allocation7 + $0x38] sm:$0xff] %vm7704, %v7679
    %7713 = vst.msk [vmem:[#allocation7 + $0x40] sm:$0xff] %vm7704, %v7680
    %7714 = vst.msk [vmem:[#allocation7 + $0x48] sm:$0xff] %vm7704, %v7681
    %7715 = vst.msk [vmem:[#allocation7 + $0x50] sm:$0xff] %vm7704, %v7682
    %7716 = vst.msk [vmem:[#allocation7 + $0x58] sm:$0xff] %vm7704, %v7683
    %7717 = vst.msk [vmem:[#allocation7 + $0x60] sm:$0xff] %vm7704, %v7684
    %7718 = vst.msk [vmem:[#allocation7 + $0x68] sm:$0xff] %vm7704, %v7685
    %7719 = vst.msk [vmem:[#allocation7 + $0x70] sm:$0xff] %vm7704, %v7686
    %7720 = vst.msk [vmem:[#allocation7 + $0x78] sm:$0xff] %vm7704, %v7687
    %7721 = vst.msk [vmem:[#allocation7 + $0x80] sm:$0xff] %vm7704, %v7688
    %7722 = vst.msk [vmem:[#allocation7 + $0x88] sm:$0xff] %vm7704, %v7689
    %7723 = vst.msk [vmem:[#allocation7 + $0x90] sm:$0xff] %vm7704, %v7690
    %7724 = vst.msk [vmem:[#allocation7 + $0x98] sm:$0xff] %vm7704, %v7691
    %7725 = vst.msk [vmem:[#allocation7 + $0xa0] sm:$0xff] %vm7704, %v7692
    %7726 = vst.msk [vmem:[#allocation7 + $0xa8] sm:$0xff] %vm7704, %v7693
    %7727 = vst.msk [vmem:[#allocation7 + $0xb0] sm:$0xff] %vm7704, %v7694
    %7728 = vst.msk [vmem:[#allocation7 + $0xb8] sm:$0xff] %vm7704, %v7695
    %7729 = vst.msk [vmem:[#allocation7 + $0xc0] sm:$0xff] %vm7704, %v7696
    %7730 = vst.msk [vmem:[#allocation7 + $0xc8] sm:$0xff] %vm7704, %v7697
    %7731 = vst.msk [vmem:[#allocation7 + $0xd0] sm:$0xff] %vm7704, %v7698
    %7732 = vst.msk [vmem:[#allocation7 + $0xd8] sm:$0xff] %vm7704, %v7699
    %7733 = vst.msk [vmem:[#allocation7 + $0xe0] sm:$0xff] %vm7704, %v7700
    %7734 = vst.msk [vmem:[#allocation7 + $0xe8] sm:$0xff] %vm7704, %v7701
    %7735 = vst.msk [vmem:[#allocation7 + $0xf0] sm:$0xff] %vm7704, %v7702
    %7736 = vst.msk [vmem:[#allocation7 + $0xf8] sm:$0xff] %vm7704, %v7703
    %v7737 = vld [vmem:[#allocation7] ss:$2 sm:$0xff]
    %s7738 = scalar_lea.vmem [#allocation7], 16
    %v7739 = vld [vmem:[%s7738] ss:$2 sm:$0xff]
    %s7740 = scalar_lea.vmem [#allocation7], 32
    %v7741 = vld [vmem:[%s7740] ss:$2 sm:$0xff]
    %s7742 = scalar_lea.vmem [#allocation7], 48
    %v7743 = vld [vmem:[%s7742] ss:$2 sm:$0xff]
    %s7744 = scalar_lea.vmem [#allocation7], 64
    %v7745 = vld [vmem:[%s7744] ss:$2 sm:$0xff]
    %s7746 = scalar_lea.vmem [#allocation7], 80
    %v7747 = vld [vmem:[%s7746] ss:$2 sm:$0xff]
    %s7748 = scalar_lea.vmem [#allocation7], 96
    %v7749 = vld [vmem:[%s7748] ss:$2 sm:$0xff]
    %s7750 = scalar_lea.vmem [#allocation7], 112
    %v7751 = vld [vmem:[%s7750] ss:$2 sm:$0xff]
    %s7752 = scalar_lea.vmem [#allocation7], 128
    %v7753 = vld [vmem:[%s7752] ss:$2 sm:$0xff]
    %s7754 = scalar_lea.vmem [#allocation7], 144
    %v7755 = vld [vmem:[%s7754] ss:$2 sm:$0xff]
    %s7756 = scalar_lea.vmem [#allocation7], 160
    %v7757 = vld [vmem:[%s7756] ss:$2 sm:$0xff]
    %s7758 = scalar_lea.vmem [#allocation7], 176
    %v7759 = vld [vmem:[%s7758] ss:$2 sm:$0xff]
    %s7760 = scalar_lea.vmem [#allocation7], 192
    %v7761 = vld [vmem:[%s7760] ss:$2 sm:$0xff]
    %s7762 = scalar_lea.vmem [#allocation7], 208
    %v7763 = vld [vmem:[%s7762] ss:$2 sm:$0xff]
    %s7764 = scalar_lea.vmem [#allocation7], 224
    %v7765 = vld [vmem:[%s7764] ss:$2 sm:$0xff]
    %s7766 = scalar_lea.vmem [#allocation7], 240
    %v7767 = vld [vmem:[%s7766] ss:$2 sm:$0xff]
    %s7768 = scalar_lea.vmem [#allocation7], 1
    %v7769 = vld [vmem:[%s7768] ss:$2 sm:$0xff]
    %s7770 = scalar_lea.vmem [#allocation7], 17
    %v7771 = vld [vmem:[%s7770] ss:$2 sm:$0xff]
    %s7772 = scalar_lea.vmem [#allocation7], 33
    %v7773 = vld [vmem:[%s7772] ss:$2 sm:$0xff]
    %s7774 = scalar_lea.vmem [#allocation7], 49
    %v7775 = vld [vmem:[%s7774] ss:$2 sm:$0xff]
    %s7776 = scalar_lea.vmem [#allocation7], 65
    %v7777 = vld [vmem:[%s7776] ss:$2 sm:$0xff]
    %s7778 = scalar_lea.vmem [#allocation7], 81
    %v7779 = vld [vmem:[%s7778] ss:$2 sm:$0xff]
    %s7780 = scalar_lea.vmem [#allocation7], 97
    %v7781 = vld [vmem:[%s7780] ss:$2 sm:$0xff]
    %s7782 = scalar_lea.vmem [#allocation7], 113
    %v7783 = vld [vmem:[%s7782] ss:$2 sm:$0xff]
    %s7784 = scalar_lea.vmem [#allocation7], 129
    %v7785 = vld [vmem:[%s7784] ss:$2 sm:$0xff]
    %s7786 = scalar_lea.vmem [#allocation7], 145
    %v7787 = vld [vmem:[%s7786] ss:$2 sm:$0xff]
    %s7788 = scalar_lea.vmem [#allocation7], 161
    %v7789 = vld [vmem:[%s7788] ss:$2 sm:$0xff]
    %s7790 = scalar_lea.vmem [#allocation7], 177
    %v7791 = vld [vmem:[%s7790] ss:$2 sm:$0xff]
    %s7792 = scalar_lea.vmem [#allocation7], 193
    %v7793 = vld [vmem:[%s7792] ss:$2 sm:$0xff]
    %s7794 = scalar_lea.vmem [#allocation7], 209
    %v7795 = vld [vmem:[%s7794] ss:$2 sm:$0xff]
    %s7796 = scalar_lea.vmem [#allocation7], 225
    %v7797 = vld [vmem:[%s7796] ss:$2 sm:$0xff]
    %s7798 = scalar_lea.vmem [#allocation7], 241
    %v7799 = vld [vmem:[%s7798] ss:$2 sm:$0xff]
    %v7800 = vmax.f32 %v7737, %v7769
    %v7801 = vmax.f32 %v7739, %v7771
    %v7802 = vmax.f32 %v7741, %v7773
    %v7803 = vmax.f32 %v7743, %v7775
    %v7804 = vmax.f32 %v7745, %v7777
    %v7805 = vmax.f32 %v7747, %v7779
    %v7806 = vmax.f32 %v7749, %v7781
    %v7807 = vmax.f32 %v7751, %v7783
    %v7808 = vmax.f32 %v7753, %v7785
    %v7809 = vmax.f32 %v7755, %v7787
    %v7810 = vmax.f32 %v7757, %v7789
    %v7811 = vmax.f32 %v7759, %v7791
    %v7812 = vmax.f32 %v7761, %v7793
    %v7813 = vmax.f32 %v7763, %v7795
    %v7814 = vmax.f32 %v7765, %v7797
    %v7815 = vmax.f32 %v7767, %v7799
    %7816 = vst.msk [vmem:[#allocation4] sm:$0xff] %vm7704, 0.0
    %vm7817 = vcmask 517120
    %7818 = vst.msk [vmem:[#allocation4 + $0x8] sm:$0x3] %vm7817, 0.0
    %7819 = vst.msk [vmem:[#allocation4 + $0xa0] sm:$0xff] %vm7704, 0.0
    %7820 = vst.msk [vmem:[#allocation4 + $0xa8] sm:$0x3] %vm7817, 0.0
    %s7821 = scalar_lea.vmem [#allocation4], 144
    %7822 = vst.msk [vmem:[%s7821] sm:$0xff] %vm7704, 0.0
    %7823 = vst.msk [vmem:[%s7821 + $0x8] sm:$0x3] %vm7817, 0.0
    %7824 = vst.msk [vmem:[%s7821 + $0xa0] sm:$0xff] %vm7704, 0.0
    %7825 = vst.msk [vmem:[%s7821 + $0xa8] sm:$0x3] %vm7817, 0.0
    %vm7826 = vcmask 516096
    %7827 = vst.msk [vmem:[#allocation4] sm:$0x1] %vm7826, 0.0
    %7828 = vst.msk [vmem:[#allocation4 + $0x10] sm:$0x1] %vm7826, 0.0
    %7829 = vst.msk [vmem:[#allocation4 + $0x20] sm:$0x1] %vm7826, 0.0
    %7830 = vst.msk [vmem:[#allocation4 + $0x30] sm:$0x1] %vm7826, 0.0
    %7831 = vst.msk [vmem:[#allocation4 + $0x40] sm:$0x1] %vm7826, 0.0
    %7832 = vst.msk [vmem:[#allocation4 + $0x50] sm:$0x1] %vm7826, 0.0
    %7833 = vst.msk [vmem:[#allocation4 + $0x60] sm:$0x1] %vm7826, 0.0
    %7834 = vst.msk [vmem:[#allocation4 + $0x70] sm:$0x1] %vm7826, 0.0
    %7835 = vst.msk [vmem:[#allocation4 + $0x80] sm:$0x1] %vm7826, 0.0
    %7836 = vst.msk [vmem:[#allocation4 + $0x90] sm:$0x1] %vm7826, 0.0
    %7837 = vst.msk [vmem:[#allocation4 + $0xa0] sm:$0x1] %vm7826, 0.0
    %7838 = vst.msk [vmem:[#allocation4 + $0xb0] sm:$0x1] %vm7826, 0.0
    %7839 = vst.msk [vmem:[#allocation4 + $0xc0] sm:$0x1] %vm7826, 0.0
    %7840 = vst.msk [vmem:[#allocation4 + $0xd0] sm:$0x1] %vm7826, 0.0
    %7841 = vst.msk [vmem:[#allocation4 + $0xe0] sm:$0x1] %vm7826, 0.0
    %7842 = vst.msk [vmem:[#allocation4 + $0xf0] sm:$0x1] %vm7826, 0.0
    %7843 = vst.msk [vmem:[#allocation4 + $0x100] sm:$0x1] %vm7826, 0.0
    %7844 = vst.msk [vmem:[#allocation4 + $0x110] sm:$0x1] %vm7826, 0.0
    %7845 = vst.msk [vmem:[#allocation4 + $0x120] sm:$0x1] %vm7826, 0.0
    %7846 = vst.msk [vmem:[#allocation4 + $0x130] sm:$0x1] %vm7826, 0.0
    %7847 = vst.msk [vmem:[#allocation4 + $0x9] sm:$0x1] %vm7826, 0.0
    %7848 = vst.msk [vmem:[#allocation4 + $0x19] sm:$0x1] %vm7826, 0.0
    %7849 = vst.msk [vmem:[#allocation4 + $0x29] sm:$0x1] %vm7826, 0.0
    %7850 = vst.msk [vmem:[#allocation4 + $0x39] sm:$0x1] %vm7826, 0.0
    %7851 = vst.msk [vmem:[#allocation4 + $0x49] sm:$0x1] %vm7826, 0.0
    %7852 = vst.msk [vmem:[#allocation4 + $0x59] sm:$0x1] %vm7826, 0.0
    %7853 = vst.msk [vmem:[#allocation4 + $0x69] sm:$0x1] %vm7826, 0.0
    %7854 = vst.msk [vmem:[#allocation4 + $0x79] sm:$0x1] %vm7826, 0.0
    %7855 = vst.msk [vmem:[#allocation4 + $0x89] sm:$0x1] %vm7826, 0.0
    %7856 = vst.msk [vmem:[#allocation4 + $0x99] sm:$0x1] %vm7826, 0.0
    %7857 = vst.msk [vmem:[#allocation4 + $0xa9] sm:$0x1] %vm7826, 0.0
    %7858 = vst.msk [vmem:[#allocation4 + $0xb9] sm:$0x1] %vm7826, 0.0
    %7859 = vst.msk [vmem:[#allocation4 + $0xc9] sm:$0x1] %vm7826, 0.0
    %7860 = vst.msk [vmem:[#allocation4 + $0xd9] sm:$0x1] %vm7826, 0.0
    %7861 = vst.msk [vmem:[#allocation4 + $0xe9] sm:$0x1] %vm7826, 0.0
    %7862 = vst.msk [vmem:[#allocation4 + $0xf9] sm:$0x1] %vm7826, 0.0
    %7863 = vst.msk [vmem:[#allocation4 + $0x109] sm:$0x1] %vm7826, 0.0
    %7864 = vst.msk [vmem:[#allocation4 + $0x119] sm:$0x1] %vm7826, 0.0
    %7865 = vst.msk [vmem:[#allocation4 + $0x129] sm:$0x1] %vm7826, 0.0
    %7866 = vst.msk [vmem:[#allocation4 + $0x139] sm:$0x1] %vm7826, 0.0
    %s7867 = scalar_lea.vmem [#allocation4], 16
    %7868 = vst.msk [vmem:[%s7867 + $0x1] sm:$0xff] %vm7704, %v7800
    %7869 = vst.msk [vmem:[%s7867 + $0x11] sm:$0xff] %vm7704, %v7801
    %7870 = vst.msk [vmem:[%s7867 + $0x21] sm:$0xff] %vm7704, %v7802
    %7871 = vst.msk [vmem:[%s7867 + $0x31] sm:$0xff] %vm7704, %v7803
    %7872 = vst.msk [vmem:[%s7867 + $0x41] sm:$0xff] %vm7704, %v7804
    %7873 = vst.msk [vmem:[%s7867 + $0x51] sm:$0xff] %vm7704, %v7805
    %7874 = vst.msk [vmem:[%s7867 + $0x61] sm:$0xff] %vm7704, %v7806
    %7875 = vst.msk [vmem:[%s7867 + $0x71] sm:$0xff] %vm7704, %v7807
    %7876 = vst.msk [vmem:[%s7867 + $0xa1] sm:$0xff] %vm7704, %v7808
    %7877 = vst.msk [vmem:[%s7867 + $0xb1] sm:$0xff] %vm7704, %v7809
    %7878 = vst.msk [vmem:[%s7867 + $0xc1] sm:$0xff] %vm7704, %v7810
    %7879 = vst.msk [vmem:[%s7867 + $0xd1] sm:$0xff] %vm7704, %v7811
    %7880 = vst.msk [vmem:[%s7867 + $0xe1] sm:$0xff] %vm7704, %v7812
    %7881 = vst.msk [vmem:[%s7867 + $0xf1] sm:$0xff] %vm7704, %v7813
    %7882 = vst.msk [vmem:[%s7867 + $0x101] sm:$0xff] %vm7704, %v7814
    %7883 = vst.msk [vmem:[%s7867 + $0x111] sm:$0xff] %vm7704, %v7815
    %v7884 = vld [vmem:[#allocation4] sm:$0xff]
    %v7885 = vld [vmem:[#allocation4 + $0x10] sm:$0xff]
    %v7886 = vld [vmem:[#allocation4 + $0x20] sm:$0xff]
    %v7887 = vld [vmem:[#allocation4 + $0x30] sm:$0xff]
    %v7888 = vld [vmem:[#allocation4 + $0x40] sm:$0xff]
    %v7889 = vld [vmem:[#allocation4 + $0x50] sm:$0xff]
    %v7890 = vld [vmem:[#allocation4 + $0x60] sm:$0xff]
    %v7891 = vld [vmem:[#allocation4 + $0x70] sm:$0xff]
    %v7892 = vld [vmem:[#allocation4 + $0xa0] sm:$0xff]
    %v7893 = vld [vmem:[#allocation4 + $0xb0] sm:$0xff]
    %v7894 = vld [vmem:[#allocation4 + $0xc0] sm:$0xff]
    %v7895 = vld [vmem:[#allocation4 + $0xd0] sm:$0xff]
    %v7896 = vld [vmem:[#allocation4 + $0xe0] sm:$0xff]
    %v7897 = vld [vmem:[#allocation4 + $0xf0] sm:$0xff]
    %v7898 = vld [vmem:[#allocation4 + $0x100] sm:$0xff]
    %v7899 = vld [vmem:[#allocation4 + $0x110] sm:$0xff]
    %v7900 = vpack.c.bf16 %v7884, %v7884
    %v7901 = vpack.c.bf16 %v7885, %v7885
    %v7902 = vpack.c.bf16 %v7886, %v7886
    %v7903 = vpack.c.bf16 %v7887, %v7887
    %v7904 = vpack.c.bf16 %v7888, %v7888
    %v7905 = vpack.c.bf16 %v7889, %v7889
    %v7906 = vpack.c.bf16 %v7890, %v7890
    %v7907 = vpack.c.bf16 %v7891, %v7891
    %v7908 = vpack.c.bf16 %v7892, %v7892
    %v7909 = vpack.c.bf16 %v7893, %v7893
    %v7910 = vpack.c.bf16 %v7894, %v7894
    %v7911 = vpack.c.bf16 %v7895, %v7895
    %v7912 = vpack.c.bf16 %v7896, %v7896
    %v7913 = vpack.c.bf16 %v7897, %v7897
    %v7914 = vpack.c.bf16 %v7898, %v7898
    %v7915 = vpack.c.bf16 %v7899, %v7899
    %vm7916 = vcmask 519168
    %7917 = vst.msk [vmem:[#allocation5] sm:$0xf] %vm7916, %v7900
    %7918 = vst.msk [vmem:[#allocation5 + $0x14] sm:$0xf] %vm7916, %v7901
    %7919 = vst.msk [vmem:[#allocation5 + $0x28] sm:$0xf] %vm7916, %v7902
    %7920 = vst.msk [vmem:[#allocation5 + $0x3c] sm:$0xf] %vm7916, %v7903
    %7921 = vst.msk [vmem:[#allocation5 + $0x50] sm:$0xf] %vm7916, %v7904
    %7922 = vst.msk [vmem:[#allocation5 + $0x64] sm:$0xf] %vm7916, %v7905
    %7923 = vst.msk [vmem:[#allocation5 + $0x78] sm:$0xf] %vm7916, %v7906
    %7924 = vst.msk [vmem:[#allocation5 + $0x8c] sm:$0xf] %vm7916, %v7907
    %7925 = vst.msk [vmem:[#allocation5 + $0xa0] sm:$0xf] %vm7916, %v7908
    %7926 = vst.msk [vmem:[#allocation5 + $0xb4] sm:$0xf] %vm7916, %v7909
    %7927 = vst.msk [vmem:[#allocation5 + $0xc8] sm:$0xf] %vm7916, %v7910
    %7928 = vst.msk [vmem:[#allocation5 + $0xdc] sm:$0xf] %vm7916, %v7911
    %7929 = vst.msk [vmem:[#allocation5 + $0xf0] sm:$0xf] %vm7916, %v7912
    %7930 = vst.msk [vmem:[#allocation5 + $0x104] sm:$0xf] %vm7916, %v7913
    %7931 = vst.msk [vmem:[#allocation5 + $0x118] sm:$0xf] %vm7916, %v7914
    %7932 = vst.msk [vmem:[#allocation5 + $0x12c] sm:$0xf] %vm7916, %v7915
    %v7933 = vld [vmem:[#allocation4 + $0x1] sm:$0xff]
    %v7934 = vld [vmem:[#allocation4 + $0x11] sm:$0xff]
    %v7935 = vld [vmem:[#allocation4 + $0x21] sm:$0xff]
    %v7936 = vld [vmem:[#allocation4 + $0x31] sm:$0xff]
    %v7937 = vld [vmem:[#allocation4 + $0x41] sm:$0xff]
    %v7938 = vld [vmem:[#allocation4 + $0x51] sm:$0xff]
    %v7939 = vld [vmem:[#allocation4 + $0x61] sm:$0xff]
    %v7940 = vld [vmem:[#allocation4 + $0x71] sm:$0xff]
    %v7941 = vld [vmem:[#allocation4 + $0xa1] sm:$0xff]
    %v7942 = vld [vmem:[#allocation4 + $0xb1] sm:$0xff]
    %v7943 = vld [vmem:[#allocation4 + $0xc1] sm:$0xff]
    %v7944 = vld [vmem:[#allocation4 + $0xd1] sm:$0xff]
    %v7945 = vld [vmem:[#allocation4 + $0xe1] sm:$0xff]
    %v7946 = vld [vmem:[#allocation4 + $0xf1] sm:$0xff]
    %v7947 = vld [vmem:[#allocation4 + $0x101] sm:$0xff]
    %v7948 = vld [vmem:[#allocation4 + $0x111] sm:$0xff]
    %v7949 = vpack.c.bf16 %v7933, %v7933
    %v7950 = vpack.c.bf16 %v7934, %v7934
    %v7951 = vpack.c.bf16 %v7935, %v7935
    %v7952 = vpack.c.bf16 %v7936, %v7936
    %v7953 = vpack.c.bf16 %v7937, %v7937
    %v7954 = vpack.c.bf16 %v7938, %v7938
    %v7955 = vpack.c.bf16 %v7939, %v7939
    %v7956 = vpack.c.bf16 %v7940, %v7940
    %v7957 = vpack.c.bf16 %v7941, %v7941
    %v7958 = vpack.c.bf16 %v7942, %v7942
    %v7959 = vpack.c.bf16 %v7943, %v7943
    %v7960 = vpack.c.bf16 %v7944, %v7944
    %v7961 = vpack.c.bf16 %v7945, %v7945
    %v7962 = vpack.c.bf16 %v7946, %v7946
    %v7963 = vpack.c.bf16 %v7947, %v7947
    %v7964 = vpack.c.bf16 %v7948, %v7948
    %7981 = vrot.lane.b32.xlu0 %v7949, 64
    %v7982 = vpop.permute.xlu0 %7981
    %7983 = vrot.lane.b32.xlu0 %v7950, 64
    %v7984 = vpop.permute.xlu0 %7983
    %7985 = vrot.lane.b32.xlu0 %v7951, 64
    %v7986 = vpop.permute.xlu0 %7985
    %7987 = vrot.lane.b32.xlu0 %v7952, 64
    %v7988 = vpop.permute.xlu0 %7987
    %7989 = vrot.lane.b32.xlu0 %v7953, 64
    %v7990 = vpop.permute.xlu0 %7989
    %7991 = vrot.lane.b32.xlu0 %v7954, 64
    %v7992 = vpop.permute.xlu0 %7991
    %7993 = vrot.lane.b32.xlu0 %v7955, 64
    %v7994 = vpop.permute.xlu0 %7993
    %7995 = vrot.lane.b32.xlu0 %v7956, 64
    %v7996 = vpop.permute.xlu0 %7995
    %7997 = vrot.lane.b32.xlu0 %v7957, 64
    %v7998 = vpop.permute.xlu0 %7997
    %7999 = vrot.lane.b32.xlu0 %v7958, 64
    %v8000 = vpop.permute.xlu0 %7999
    %8001 = vrot.lane.b32.xlu0 %v7959, 64
    %v8002 = vpop.permute.xlu0 %8001
    %8003 = vrot.lane.b32.xlu0 %v7960, 64
    %v8004 = vpop.permute.xlu0 %8003
    %8005 = vrot.lane.b32.xlu0 %v7961, 64
    %v8006 = vpop.permute.xlu0 %8005
    %8007 = vrot.lane.b32.xlu0 %v7962, 64
    %v8008 = vpop.permute.xlu0 %8007
    %8009 = vrot.lane.b32.xlu0 %v7963, 64
    %v8010 = vpop.permute.xlu0 %8009
    %8011 = vrot.lane.b32.xlu0 %v7964, 64
    %v8012 = vpop.permute.xlu0 %8011
    %vm8029 = vcmask 1043968
    %8030 = vst.msk [vmem:[#allocation5] sm:$0xf] %vm8029, %v7982
    %8031 = vst.msk [vmem:[#allocation5 + $0x14] sm:$0xf] %vm8029, %v7984
    %8032 = vst.msk [vmem:[#allocation5 + $0x28] sm:$0xf] %vm8029, %v7986
    %8033 = vst.msk [vmem:[#allocation5 + $0x3c] sm:$0xf] %vm8029, %v7988
    %8034 = vst.msk [vmem:[#allocation5 + $0x50] sm:$0xf] %vm8029, %v7990
    %8035 = vst.msk [vmem:[#allocation5 + $0x64] sm:$0xf] %vm8029, %v7992
    %8036 = vst.msk [vmem:[#allocation5 + $0x78] sm:$0xf] %vm8029, %v7994
    %8037 = vst.msk [vmem:[#allocation5 + $0x8c] sm:$0xf] %vm8029, %v7996
    %8038 = vst.msk [vmem:[#allocation5 + $0xa0] sm:$0xf] %vm8029, %v7998
    %8039 = vst.msk [vmem:[#allocation5 + $0xb4] sm:$0xf] %vm8029, %v8000
    %8040 = vst.msk [vmem:[#allocation5 + $0xc8] sm:$0xf] %vm8029, %v8002
    %8041 = vst.msk [vmem:[#allocation5 + $0xdc] sm:$0xf] %vm8029, %v8004
    %8042 = vst.msk [vmem:[#allocation5 + $0xf0] sm:$0xf] %vm8029, %v8006
    %8043 = vst.msk [vmem:[#allocation5 + $0x104] sm:$0xf] %vm8029, %v8008
    %8044 = vst.msk [vmem:[#allocation5 + $0x118] sm:$0xf] %vm8029, %v8010
    %8045 = vst.msk [vmem:[#allocation5 + $0x12c] sm:$0xf] %vm8029, %v8012
    %v8046 = vld [vmem:[#allocation4 + $0x2] sm:$0xff]
    %v8047 = vld [vmem:[#allocation4 + $0x12] sm:$0xff]
    %v8048 = vld [vmem:[#allocation4 + $0x22] sm:$0xff]
    %v8049 = vld [vmem:[#allocation4 + $0x32] sm:$0xff]
    %v8050 = vld [vmem:[#allocation4 + $0x42] sm:$0xff]
    %v8051 = vld [vmem:[#allocation4 + $0x52] sm:$0xff]
    %v8052 = vld [vmem:[#allocation4 + $0x62] sm:$0xff]
    %v8053 = vld [vmem:[#allocation4 + $0x72] sm:$0xff]
    %v8054 = vld [vmem:[#allocation4 + $0xa2] sm:$0xff]
    %v8055 = vld [vmem:[#allocation4 + $0xb2] sm:$0xff]
    %v8056 = vld [vmem:[#allocation4 + $0xc2] sm:$0xff]
    %v8057 = vld [vmem:[#allocation4 + $0xd2] sm:$0xff]
    %v8058 = vld [vmem:[#allocation4 + $0xe2] sm:$0xff]
    %v8059 = vld [vmem:[#allocation4 + $0xf2] sm:$0xff]
    %v8060 = vld [vmem:[#allocation4 + $0x102] sm:$0xff]
    %v8061 = vld [vmem:[#allocation4 + $0x112] sm:$0xff]
    %v8062 = vpack.c.bf16 %v8046, %v8046
    %v8063 = vpack.c.bf16 %v8047, %v8047
    %v8064 = vpack.c.bf16 %v8048, %v8048
    %v8065 = vpack.c.bf16 %v8049, %v8049
    %v8066 = vpack.c.bf16 %v8050, %v8050
    %v8067 = vpack.c.bf16 %v8051, %v8051
    %v8068 = vpack.c.bf16 %v8052, %v8052
    %v8069 = vpack.c.bf16 %v8053, %v8053
    %v8070 = vpack.c.bf16 %v8054, %v8054
    %v8071 = vpack.c.bf16 %v8055, %v8055
    %v8072 = vpack.c.bf16 %v8056, %v8056
    %v8073 = vpack.c.bf16 %v8057, %v8057
    %v8074 = vpack.c.bf16 %v8058, %v8058
    %v8075 = vpack.c.bf16 %v8059, %v8059
    %v8076 = vpack.c.bf16 %v8060, %v8060
    %v8077 = vpack.c.bf16 %v8061, %v8061
    %8078 = vst.msk [vmem:[#allocation5 + $0x4] sm:$0xf] %vm7916, %v8062
    %8079 = vst.msk [vmem:[#allocation5 + $0x18] sm:$0xf] %vm7916, %v8063
    %8080 = vst.msk [vmem:[#allocation5 + $0x2c] sm:$0xf] %vm7916, %v8064
    %8081 = vst.msk [vmem:[#allocation5 + $0x40] sm:$0xf] %vm7916, %v8065
    %8082 = vst.msk [vmem:[#allocation5 + $0x54] sm:$0xf] %vm7916, %v8066
    %8083 = vst.msk [vmem:[#allocation5 + $0x68] sm:$0xf] %vm7916, %v8067
    %8084 = vst.msk [vmem:[#allocation5 + $0x7c] sm:$0xf] %vm7916, %v8068
    %8085 = vst.msk [vmem:[#allocation5 + $0x90] sm:$0xf] %vm7916, %v8069
    %8086 = vst.msk [vmem:[#allocation5 + $0xa4] sm:$0xf] %vm7916, %v8070
    %8087 = vst.msk [vmem:[#allocation5 + $0xb8] sm:$0xf] %vm7916, %v8071
    %8088 = vst.msk [vmem:[#allocation5 + $0xcc] sm:$0xf] %vm7916, %v8072
    %8089 = vst.msk [vmem:[#allocation5 + $0xe0] sm:$0xf] %vm7916, %v8073
    %8090 = vst.msk [vmem:[#allocation5 + $0xf4] sm:$0xf] %vm7916, %v8074
    %8091 = vst.msk [vmem:[#allocation5 + $0x108] sm:$0xf] %vm7916, %v8075
    %8092 = vst.msk [vmem:[#allocation5 + $0x11c] sm:$0xf] %vm7916, %v8076
    %8093 = vst.msk [vmem:[#allocation5 + $0x130] sm:$0xf] %vm7916, %v8077
    %v8094 = vld [vmem:[%s7867] sm:$0xff]
    %v8095 = vld [vmem:[%s7867 + $0x10] sm:$0xff]
    %v8096 = vld [vmem:[%s7867 + $0x20] sm:$0xff]
    %v8097 = vld [vmem:[%s7867 + $0x30] sm:$0xff]
    %v8098 = vld [vmem:[%s7867 + $0x40] sm:$0xff]
    %v8099 = vld [vmem:[%s7867 + $0x50] sm:$0xff]
    %v8100 = vld [vmem:[%s7867 + $0x60] sm:$0xff]
    %v8101 = vld [vmem:[%s7867 + $0x70] sm:$0xff]
    %v8102 = vld [vmem:[%s7867 + $0xa0] sm:$0xff]
    %v8103 = vld [vmem:[%s7867 + $0xb0] sm:$0xff]
    %v8104 = vld [vmem:[%s7867 + $0xc0] sm:$0xff]
    %v8105 = vld [vmem:[%s7867 + $0xd0] sm:$0xff]
    %v8106 = vld [vmem:[%s7867 + $0xe0] sm:$0xff]
    %v8107 = vld [vmem:[%s7867 + $0xf0] sm:$0xff]
    %v8108 = vld [vmem:[%s7867 + $0x100] sm:$0xff]
    %v8109 = vld [vmem:[%s7867 + $0x110] sm:$0xff]
    %v8110 = vpack.c.bf16 %v8094, %v8094
    %v8111 = vpack.c.bf16 %v8095, %v8095
    %v8112 = vpack.c.bf16 %v8096, %v8096
    %v8113 = vpack.c.bf16 %v8097, %v8097
    %v8114 = vpack.c.bf16 %v8098, %v8098
    %v8115 = vpack.c.bf16 %v8099, %v8099
    %v8116 = vpack.c.bf16 %v8100, %v8100
    %v8117 = vpack.c.bf16 %v8101, %v8101
    %v8118 = vpack.c.bf16 %v8102, %v8102
    %v8119 = vpack.c.bf16 %v8103, %v8103
    %v8120 = vpack.c.bf16 %v8104, %v8104
    %v8121 = vpack.c.bf16 %v8105, %v8105
    %v8122 = vpack.c.bf16 %v8106, %v8106
    %v8123 = vpack.c.bf16 %v8107, %v8107
    %v8124 = vpack.c.bf16 %v8108, %v8108
    %v8125 = vpack.c.bf16 %v8109, %v8109
    %8142 = vrot.lane.b32.xlu0 %v8110, 64
    %v8143 = vpop.permute.xlu0 %8142
    %8144 = vrot.lane.b32.xlu0 %v8111, 64
    %v8145 = vpop.permute.xlu0 %8144
    %8146 = vrot.lane.b32.xlu0 %v8112, 64
    %v8147 = vpop.permute.xlu0 %8146
    %8148 = vrot.lane.b32.xlu0 %v8113, 64
    %v8149 = vpop.permute.xlu0 %8148
    %8150 = vrot.lane.b32.xlu0 %v8114, 64
    %v8151 = vpop.permute.xlu0 %8150
    %8152 = vrot.lane.b32.xlu0 %v8115, 64
    %v8153 = vpop.permute.xlu0 %8152
    %8154 = vrot.lane.b32.xlu0 %v8116, 64
    %v8155 = vpop.permute.xlu0 %8154
    %8156 = vrot.lane.b32.xlu0 %v8117, 64
    %v8157 = vpop.permute.xlu0 %8156
    %8158 = vrot.lane.b32.xlu0 %v8118, 64
    %v8159 = vpop.permute.xlu0 %8158
    %8160 = vrot.lane.b32.xlu0 %v8119, 64
    %v8161 = vpop.permute.xlu0 %8160
    %8162 = vrot.lane.b32.xlu0 %v8120, 64
    %v8163 = vpop.permute.xlu0 %8162
    %8164 = vrot.lane.b32.xlu0 %v8121, 64
    %v8165 = vpop.permute.xlu0 %8164
    %8166 = vrot.lane.b32.xlu0 %v8122, 64
    %v8167 = vpop.permute.xlu0 %8166
    %8168 = vrot.lane.b32.xlu0 %v8123, 64
    %v8169 = vpop.permute.xlu0 %8168
    %8170 = vrot.lane.b32.xlu0 %v8124, 64
    %v8171 = vpop.permute.xlu0 %8170
    %8172 = vrot.lane.b32.xlu0 %v8125, 64
    %v8173 = vpop.permute.xlu0 %8172
    %8190 = vst.msk [vmem:[#allocation5 + $0x4] sm:$0xf] %vm8029, %v8143
    %8191 = vst.msk [vmem:[#allocation5 + $0x18] sm:$0xf] %vm8029, %v8145
    %8192 = vst.msk [vmem:[#allocation5 + $0x2c] sm:$0xf] %vm8029, %v8147
    %8193 = vst.msk [vmem:[#allocation5 + $0x40] sm:$0xf] %vm8029, %v8149
    %8194 = vst.msk [vmem:[#allocation5 + $0x54] sm:$0xf] %vm8029, %v8151
    %8195 = vst.msk [vmem:[#allocation5 + $0x68] sm:$0xf] %vm8029, %v8153
    %8196 = vst.msk [vmem:[#allocation5 + $0x7c] sm:$0xf] %vm8029, %v8155
    %8197 = vst.msk [vmem:[#allocation5 + $0x90] sm:$0xf] %vm8029, %v8157
    %8198 = vst.msk [vmem:[#allocation5 + $0xa4] sm:$0xf] %vm8029, %v8159
    %8199 = vst.msk [vmem:[#allocation5 + $0xb8] sm:$0xf] %vm8029, %v8161
    %8200 = vst.msk [vmem:[#allocation5 + $0xcc] sm:$0xf] %vm8029, %v8163
    %8201 = vst.msk [vmem:[#allocation5 + $0xe0] sm:$0xf] %vm8029, %v8165
    %8202 = vst.msk [vmem:[#allocation5 + $0xf4] sm:$0xf] %vm8029, %v8167
    %8203 = vst.msk [vmem:[#allocation5 + $0x108] sm:$0xf] %vm8029, %v8169
    %8204 = vst.msk [vmem:[#allocation5 + $0x11c] sm:$0xf] %vm8029, %v8171
    %8205 = vst.msk [vmem:[#allocation5 + $0x130] sm:$0xf] %vm8029, %v8173
    %v8206 = vld [vmem:[%s7867 + $0x1] sm:$0xff]
    %v8207 = vld [vmem:[%s7867 + $0x11] sm:$0xff]
    %v8208 = vld [vmem:[%s7867 + $0x21] sm:$0xff]
    %v8209 = vld [vmem:[%s7867 + $0x31] sm:$0xff]
    %v8210 = vld [vmem:[%s7867 + $0x41] sm:$0xff]
    %v8211 = vld [vmem:[%s7867 + $0x51] sm:$0xff]
    %v8212 = vld [vmem:[%s7867 + $0x61] sm:$0xff]
    %v8213 = vld [vmem:[%s7867 + $0x71] sm:$0xff]
    %v8214 = vld [vmem:[%s7867 + $0xa1] sm:$0xff]
    %v8215 = vld [vmem:[%s7867 + $0xb1] sm:$0xff]
    %v8216 = vld [vmem:[%s7867 + $0xc1] sm:$0xff]
    %v8217 = vld [vmem:[%s7867 + $0xd1] sm:$0xff]
    %v8218 = vld [vmem:[%s7867 + $0xe1] sm:$0xff]
    %v8219 = vld [vmem:[%s7867 + $0xf1] sm:$0xff]
    %v8220 = vld [vmem:[%s7867 + $0x101] sm:$0xff]
    %v8221 = vld [vmem:[%s7867 + $0x111] sm:$0xff]
    %v8222 = vpack.c.bf16 %v8206, %v8206
    %v8223 = vpack.c.bf16 %v8207, %v8207
    %v8224 = vpack.c.bf16 %v8208, %v8208
    %v8225 = vpack.c.bf16 %v8209, %v8209
    %v8226 = vpack.c.bf16 %v8210, %v8210
    %v8227 = vpack.c.bf16 %v8211, %v8211
    %v8228 = vpack.c.bf16 %v8212, %v8212
    %v8229 = vpack.c.bf16 %v8213, %v8213
    %v8230 = vpack.c.bf16 %v8214, %v8214
    %v8231 = vpack.c.bf16 %v8215, %v8215
    %v8232 = vpack.c.bf16 %v8216, %v8216
    %v8233 = vpack.c.bf16 %v8217, %v8217
    %v8234 = vpack.c.bf16 %v8218, %v8218
    %v8235 = vpack.c.bf16 %v8219, %v8219
    %v8236 = vpack.c.bf16 %v8220, %v8220
    %v8237 = vpack.c.bf16 %v8221, %v8221
    %8238 = vst.msk [vmem:[#allocation5 + $0x8] sm:$0xf] %vm7916, %v8222
    %8239 = vst.msk [vmem:[#allocation5 + $0x1c] sm:$0xf] %vm7916, %v8223
    %8240 = vst.msk [vmem:[#allocation5 + $0x30] sm:$0xf] %vm7916, %v8224
    %8241 = vst.msk [vmem:[#allocation5 + $0x44] sm:$0xf] %vm7916, %v8225
    %8242 = vst.msk [vmem:[#allocation5 + $0x58] sm:$0xf] %vm7916, %v8226
    %8243 = vst.msk [vmem:[#allocation5 + $0x6c] sm:$0xf] %vm7916, %v8227
    %8244 = vst.msk [vmem:[#allocation5 + $0x80] sm:$0xf] %vm7916, %v8228
    %8245 = vst.msk [vmem:[#allocation5 + $0x94] sm:$0xf] %vm7916, %v8229
    %8246 = vst.msk [vmem:[#allocation5 + $0xa8] sm:$0xf] %vm7916, %v8230
    %8247 = vst.msk [vmem:[#allocation5 + $0xbc] sm:$0xf] %vm7916, %v8231
    %8248 = vst.msk [vmem:[#allocation5 + $0xd0] sm:$0xf] %vm7916, %v8232
    %8249 = vst.msk [vmem:[#allocation5 + $0xe4] sm:$0xf] %vm7916, %v8233
    %8250 = vst.msk [vmem:[#allocation5 + $0xf8] sm:$0xf] %vm7916, %v8234
    %8251 = vst.msk [vmem:[#allocation5 + $0x10c] sm:$0xf] %vm7916, %v8235
    %8252 = vst.msk [vmem:[#allocation5 + $0x120] sm:$0xf] %vm7916, %v8236
    %8253 = vst.msk [vmem:[#allocation5 + $0x134] sm:$0xf] %vm7916, %v8237
    %v8254 = vld [vmem:[%s7867 + $0x2] sm:$0xff]
    %v8255 = vld [vmem:[%s7867 + $0x12] sm:$0xff]
    %v8256 = vld [vmem:[%s7867 + $0x22] sm:$0xff]
    %v8257 = vld [vmem:[%s7867 + $0x32] sm:$0xff]
    %v8258 = vld [vmem:[%s7867 + $0x42] sm:$0xff]
    %v8259 = vld [vmem:[%s7867 + $0x52] sm:$0xff]
    %v8260 = vld [vmem:[%s7867 + $0x62] sm:$0xff]
    %v8261 = vld [vmem:[%s7867 + $0x72] sm:$0xff]
    %v8262 = vld [vmem:[%s7867 + $0xa2] sm:$0xff]
    %v8263 = vld [vmem:[%s7867 + $0xb2] sm:$0xff]
    %v8264 = vld [vmem:[%s7867 + $0xc2] sm:$0xff]
    %v8265 = vld [vmem:[%s7867 + $0xd2] sm:$0xff]
    %v8266 = vld [vmem:[%s7867 + $0xe2] sm:$0xff]
    %v8267 = vld [vmem:[%s7867 + $0xf2] sm:$0xff]
    %v8268 = vld [vmem:[%s7867 + $0x102] sm:$0xff]
    %v8269 = vld [vmem:[%s7867 + $0x112] sm:$0xff]
    %v8270 = vpack.c.bf16 %v8254, %v8254
    %v8271 = vpack.c.bf16 %v8255, %v8255
    %v8272 = vpack.c.bf16 %v8256, %v8256
    %v8273 = vpack.c.bf16 %v8257, %v8257
    %v8274 = vpack.c.bf16 %v8258, %v8258
    %v8275 = vpack.c.bf16 %v8259, %v8259
    %v8276 = vpack.c.bf16 %v8260, %v8260
    %v8277 = vpack.c.bf16 %v8261, %v8261
    %v8278 = vpack.c.bf16 %v8262, %v8262
    %v8279 = vpack.c.bf16 %v8263, %v8263
    %v8280 = vpack.c.bf16 %v8264, %v8264
    %v8281 = vpack.c.bf16 %v8265, %v8265
    %v8282 = vpack.c.bf16 %v8266, %v8266
    %v8283 = vpack.c.bf16 %v8267, %v8267
    %v8284 = vpack.c.bf16 %v8268, %v8268
    %v8285 = vpack.c.bf16 %v8269, %v8269
    %8302 = vrot.lane.b32.xlu0 %v8270, 64
    %v8303 = vpop.permute.xlu0 %8302
    %8304 = vrot.lane.b32.xlu0 %v8271, 64
    %v8305 = vpop.permute.xlu0 %8304
    %8306 = vrot.lane.b32.xlu0 %v8272, 64
    %v8307 = vpop.permute.xlu0 %8306
    %8308 = vrot.lane.b32.xlu0 %v8273, 64
    %v8309 = vpop.permute.xlu0 %8308
    %8310 = vrot.lane.b32.xlu0 %v8274, 64
    %v8311 = vpop.permute.xlu0 %8310
    %8312 = vrot.lane.b32.xlu0 %v8275, 64
    %v8313 = vpop.permute.xlu0 %8312
    %8314 = vrot.lane.b32.xlu0 %v8276, 64
    %v8315 = vpop.permute.xlu0 %8314
    %8316 = vrot.lane.b32.xlu0 %v8277, 64
    %v8317 = vpop.permute.xlu0 %8316
    %8318 = vrot.lane.b32.xlu0 %v8278, 64
    %v8319 = vpop.permute.xlu0 %8318
    %8320 = vrot.lane.b32.xlu0 %v8279, 64
    %v8321 = vpop.permute.xlu0 %8320
    %8322 = vrot.lane.b32.xlu0 %v8280, 64
    %v8323 = vpop.permute.xlu0 %8322
    %8324 = vrot.lane.b32.xlu0 %v8281, 64
    %v8325 = vpop.permute.xlu0 %8324
    %8326 = vrot.lane.b32.xlu0 %v8282, 64
    %v8327 = vpop.permute.xlu0 %8326
    %8328 = vrot.lane.b32.xlu0 %v8283, 64
    %v8329 = vpop.permute.xlu0 %8328
    %8330 = vrot.lane.b32.xlu0 %v8284, 64
    %v8331 = vpop.permute.xlu0 %8330
    %8332 = vrot.lane.b32.xlu0 %v8285, 64
    %v8333 = vpop.permute.xlu0 %8332
    %8350 = vst.msk [vmem:[#allocation5 + $0x8] sm:$0xf] %vm8029, %v8303
    %8351 = vst.msk [vmem:[#allocation5 + $0x1c] sm:$0xf] %vm8029, %v8305
    %8352 = vst.msk [vmem:[#allocation5 + $0x30] sm:$0xf] %vm8029, %v8307
    %8353 = vst.msk [vmem:[#allocation5 + $0x44] sm:$0xf] %vm8029, %v8309
    %8354 = vst.msk [vmem:[#allocation5 + $0x58] sm:$0xf] %vm8029, %v8311
    %8355 = vst.msk [vmem:[#allocation5 + $0x6c] sm:$0xf] %vm8029, %v8313
    %8356 = vst.msk [vmem:[#allocation5 + $0x80] sm:$0xf] %vm8029, %v8315
    %8357 = vst.msk [vmem:[#allocation5 + $0x94] sm:$0xf] %vm8029, %v8317
    %8358 = vst.msk [vmem:[#allocation5 + $0xa8] sm:$0xf] %vm8029, %v8319
    %8359 = vst.msk [vmem:[#allocation5 + $0xbc] sm:$0xf] %vm8029, %v8321
    %8360 = vst.msk [vmem:[#allocation5 + $0xd0] sm:$0xf] %vm8029, %v8323
    %8361 = vst.msk [vmem:[#allocation5 + $0xe4] sm:$0xf] %vm8029, %v8325
    %8362 = vst.msk [vmem:[#allocation5 + $0xf8] sm:$0xf] %vm8029, %v8327
    %8363 = vst.msk [vmem:[#allocation5 + $0x10c] sm:$0xf] %vm8029, %v8329
    %8364 = vst.msk [vmem:[#allocation5 + $0x120] sm:$0xf] %vm8029, %v8331
    %8365 = vst.msk [vmem:[#allocation5 + $0x134] sm:$0xf] %vm8029, %v8333
    %s8366 = scalar_lea.vmem [#allocation4], 32
    %v8367 = vld [vmem:[%s8366] sm:$0xff]
    %v8368 = vld [vmem:[%s8366 + $0x10] sm:$0xff]
    %v8369 = vld [vmem:[%s8366 + $0x20] sm:$0xff]
    %v8370 = vld [vmem:[%s8366 + $0x30] sm:$0xff]
    %v8371 = vld [vmem:[%s8366 + $0x40] sm:$0xff]
    %v8372 = vld [vmem:[%s8366 + $0x50] sm:$0xff]
    %v8373 = vld [vmem:[%s8366 + $0x60] sm:$0xff]
    %v8374 = vld [vmem:[%s8366 + $0x70] sm:$0xff]
    %v8375 = vld [vmem:[%s8366 + $0xa0] sm:$0xff]
    %v8376 = vld [vmem:[%s8366 + $0xb0] sm:$0xff]
    %v8377 = vld [vmem:[%s8366 + $0xc0] sm:$0xff]
    %v8378 = vld [vmem:[%s8366 + $0xd0] sm:$0xff]
    %v8379 = vld [vmem:[%s8366 + $0xe0] sm:$0xff]
    %v8380 = vld [vmem:[%s8366 + $0xf0] sm:$0xff]
    %v8381 = vld [vmem:[%s8366 + $0x100] sm:$0xff]
    %v8382 = vld [vmem:[%s8366 + $0x110] sm:$0xff]
    %v8383 = vpack.c.bf16 %v8367, %v8367
    %v8384 = vpack.c.bf16 %v8368, %v8368
    %v8385 = vpack.c.bf16 %v8369, %v8369
    %v8386 = vpack.c.bf16 %v8370, %v8370
    %v8387 = vpack.c.bf16 %v8371, %v8371
    %v8388 = vpack.c.bf16 %v8372, %v8372
    %v8389 = vpack.c.bf16 %v8373, %v8373
    %v8390 = vpack.c.bf16 %v8374, %v8374
    %v8391 = vpack.c.bf16 %v8375, %v8375
    %v8392 = vpack.c.bf16 %v8376, %v8376
    %v8393 = vpack.c.bf16 %v8377, %v8377
    %v8394 = vpack.c.bf16 %v8378, %v8378
    %v8395 = vpack.c.bf16 %v8379, %v8379
    %v8396 = vpack.c.bf16 %v8380, %v8380
    %v8397 = vpack.c.bf16 %v8381, %v8381
    %v8398 = vpack.c.bf16 %v8382, %v8382
    %8399 = vst.msk [vmem:[#allocation5 + $0xc] sm:$0xf] %vm7916, %v8383
    %8400 = vst.msk [vmem:[#allocation5 + $0x20] sm:$0xf] %vm7916, %v8384
    %8401 = vst.msk [vmem:[#allocation5 + $0x34] sm:$0xf] %vm7916, %v8385
    %8402 = vst.msk [vmem:[#allocation5 + $0x48] sm:$0xf] %vm7916, %v8386
    %8403 = vst.msk [vmem:[#allocation5 + $0x5c] sm:$0xf] %vm7916, %v8387
    %8404 = vst.msk [vmem:[#allocation5 + $0x70] sm:$0xf] %vm7916, %v8388
    %8405 = vst.msk [vmem:[#allocation5 + $0x84] sm:$0xf] %vm7916, %v8389
    %8406 = vst.msk [vmem:[#allocation5 + $0x98] sm:$0xf] %vm7916, %v8390
    %8407 = vst.msk [vmem:[#allocation5 + $0xac] sm:$0xf] %vm7916, %v8391
    %8408 = vst.msk [vmem:[#allocation5 + $0xc0] sm:$0xf] %vm7916, %v8392
    %8409 = vst.msk [vmem:[#allocation5 + $0xd4] sm:$0xf] %vm7916, %v8393
    %8410 = vst.msk [vmem:[#allocation5 + $0xe8] sm:$0xf] %vm7916, %v8394
    %8411 = vst.msk [vmem:[#allocation5 + $0xfc] sm:$0xf] %vm7916, %v8395
    %8412 = vst.msk [vmem:[#allocation5 + $0x110] sm:$0xf] %vm7916, %v8396
    %8413 = vst.msk [vmem:[#allocation5 + $0x124] sm:$0xf] %vm7916, %v8397
    %8414 = vst.msk [vmem:[#allocation5 + $0x138] sm:$0xf] %vm7916, %v8398
    %v8415 = vld [vmem:[%s8366 + $0x1] sm:$0xff]
    %v8416 = vld [vmem:[%s8366 + $0x11] sm:$0xff]
    %v8417 = vld [vmem:[%s8366 + $0x21] sm:$0xff]
    %v8418 = vld [vmem:[%s8366 + $0x31] sm:$0xff]
    %v8419 = vld [vmem:[%s8366 + $0x41] sm:$0xff]
    %v8420 = vld [vmem:[%s8366 + $0x51] sm:$0xff]
    %v8421 = vld [vmem:[%s8366 + $0x61] sm:$0xff]
    %v8422 = vld [vmem:[%s8366 + $0x71] sm:$0xff]
    %v8423 = vld [vmem:[%s8366 + $0xa1] sm:$0xff]
    %v8424 = vld [vmem:[%s8366 + $0xb1] sm:$0xff]
    %v8425 = vld [vmem:[%s8366 + $0xc1] sm:$0xff]
    %v8426 = vld [vmem:[%s8366 + $0xd1] sm:$0xff]
    %v8427 = vld [vmem:[%s8366 + $0xe1] sm:$0xff]
    %v8428 = vld [vmem:[%s8366 + $0xf1] sm:$0xff]
    %v8429 = vld [vmem:[%s8366 + $0x101] sm:$0xff]
    %v8430 = vld [vmem:[%s8366 + $0x111] sm:$0xff]
    %v8431 = vpack.c.bf16 %v8415, %v8415
    %v8432 = vpack.c.bf16 %v8416, %v8416
    %v8433 = vpack.c.bf16 %v8417, %v8417
    %v8434 = vpack.c.bf16 %v8418, %v8418
    %v8435 = vpack.c.bf16 %v8419, %v8419
    %v8436 = vpack.c.bf16 %v8420, %v8420
    %v8437 = vpack.c.bf16 %v8421, %v8421
    %v8438 = vpack.c.bf16 %v8422, %v8422
    %v8439 = vpack.c.bf16 %v8423, %v8423
    %v8440 = vpack.c.bf16 %v8424, %v8424
    %v8441 = vpack.c.bf16 %v8425, %v8425
    %v8442 = vpack.c.bf16 %v8426, %v8426
    %v8443 = vpack.c.bf16 %v8427, %v8427
    %v8444 = vpack.c.bf16 %v8428, %v8428
    %v8445 = vpack.c.bf16 %v8429, %v8429
    %v8446 = vpack.c.bf16 %v8430, %v8430
    %8463 = vrot.lane.b32.xlu0 %v8431, 64
    %v8464 = vpop.permute.xlu0 %8463
    %8465 = vrot.lane.b32.xlu0 %v8432, 64
    %v8466 = vpop.permute.xlu0 %8465
    %8467 = vrot.lane.b32.xlu0 %v8433, 64
    %v8468 = vpop.permute.xlu0 %8467
    %8469 = vrot.lane.b32.xlu0 %v8434, 64
    %v8470 = vpop.permute.xlu0 %8469
    %8471 = vrot.lane.b32.xlu0 %v8435, 64
    %v8472 = vpop.permute.xlu0 %8471
    %8473 = vrot.lane.b32.xlu0 %v8436, 64
    %v8474 = vpop.permute.xlu0 %8473
    %8475 = vrot.lane.b32.xlu0 %v8437, 64
    %v8476 = vpop.permute.xlu0 %8475
    %8477 = vrot.lane.b32.xlu0 %v8438, 64
    %v8478 = vpop.permute.xlu0 %8477
    %8479 = vrot.lane.b32.xlu0 %v8439, 64
    %v8480 = vpop.permute.xlu0 %8479
    %8481 = vrot.lane.b32.xlu0 %v8440, 64
    %v8482 = vpop.permute.xlu0 %8481
    %8483 = vrot.lane.b32.xlu0 %v8441, 64
    %v8484 = vpop.permute.xlu0 %8483
    %8485 = vrot.lane.b32.xlu0 %v8442, 64
    %v8486 = vpop.permute.xlu0 %8485
    %8487 = vrot.lane.b32.xlu0 %v8443, 64
    %v8488 = vpop.permute.xlu0 %8487
    %8489 = vrot.lane.b32.xlu0 %v8444, 64
    %v8490 = vpop.permute.xlu0 %8489
    %8491 = vrot.lane.b32.xlu0 %v8445, 64
    %v8492 = vpop.permute.xlu0 %8491
    %8493 = vrot.lane.b32.xlu0 %v8446, 64
    %v8494 = vpop.permute.xlu0 %8493
    %8511 = vst.msk [vmem:[#allocation5 + $0xc] sm:$0xf] %vm8029, %v8464
    %8512 = vst.msk [vmem:[#allocation5 + $0x20] sm:$0xf] %vm8029, %v8466
    %8513 = vst.msk [vmem:[#allocation5 + $0x34] sm:$0xf] %vm8029, %v8468
    %8514 = vst.msk [vmem:[#allocation5 + $0x48] sm:$0xf] %vm8029, %v8470
    %8515 = vst.msk [vmem:[#allocation5 + $0x5c] sm:$0xf] %vm8029, %v8472
    %8516 = vst.msk [vmem:[#allocation5 + $0x70] sm:$0xf] %vm8029, %v8474
    %8517 = vst.msk [vmem:[#allocation5 + $0x84] sm:$0xf] %vm8029, %v8476
    %8518 = vst.msk [vmem:[#allocation5 + $0x98] sm:$0xf] %vm8029, %v8478
    %8519 = vst.msk [vmem:[#allocation5 + $0xac] sm:$0xf] %vm8029, %v8480
    %8520 = vst.msk [vmem:[#allocation5 + $0xc0] sm:$0xf] %vm8029, %v8482
    %8521 = vst.msk [vmem:[#allocation5 + $0xd4] sm:$0xf] %vm8029, %v8484
    %8522 = vst.msk [vmem:[#allocation5 + $0xe8] sm:$0xf] %vm8029, %v8486
    %8523 = vst.msk [vmem:[#allocation5 + $0xfc] sm:$0xf] %vm8029, %v8488
    %8524 = vst.msk [vmem:[#allocation5 + $0x110] sm:$0xf] %vm8029, %v8490
    %8525 = vst.msk [vmem:[#allocation5 + $0x124] sm:$0xf] %vm8029, %v8492
    %8526 = vst.msk [vmem:[#allocation5 + $0x138] sm:$0xf] %vm8029, %v8494
    %v8527 = vld [vmem:[%s8366 + $0x2] sm:$0xff]
    %v8528 = vld [vmem:[%s8366 + $0x12] sm:$0xff]
    %v8529 = vld [vmem:[%s8366 + $0x22] sm:$0xff]
    %v8530 = vld [vmem:[%s8366 + $0x32] sm:$0xff]
    %v8531 = vld [vmem:[%s8366 + $0x42] sm:$0xff]
    %v8532 = vld [vmem:[%s8366 + $0x52] sm:$0xff]
    %v8533 = vld [vmem:[%s8366 + $0x62] sm:$0xff]
    %v8534 = vld [vmem:[%s8366 + $0x72] sm:$0xff]
    %v8535 = vld [vmem:[%s8366 + $0xa2] sm:$0xff]
    %v8536 = vld [vmem:[%s8366 + $0xb2] sm:$0xff]
    %v8537 = vld [vmem:[%s8366 + $0xc2] sm:$0xff]
    %v8538 = vld [vmem:[%s8366 + $0xd2] sm:$0xff]
    %v8539 = vld [vmem:[%s8366 + $0xe2] sm:$0xff]
    %v8540 = vld [vmem:[%s8366 + $0xf2] sm:$0xff]
    %v8541 = vld [vmem:[%s8366 + $0x102] sm:$0xff]
    %v8542 = vld [vmem:[%s8366 + $0x112] sm:$0xff]
    %v8543 = vpack.c.bf16 %v8527, %v8527
    %v8544 = vpack.c.bf16 %v8528, %v8528
    %v8545 = vpack.c.bf16 %v8529, %v8529
    %v8546 = vpack.c.bf16 %v8530, %v8530
    %v8547 = vpack.c.bf16 %v8531, %v8531
    %v8548 = vpack.c.bf16 %v8532, %v8532
    %v8549 = vpack.c.bf16 %v8533, %v8533
    %v8550 = vpack.c.bf16 %v8534, %v8534
    %v8551 = vpack.c.bf16 %v8535, %v8535
    %v8552 = vpack.c.bf16 %v8536, %v8536
    %v8553 = vpack.c.bf16 %v8537, %v8537
    %v8554 = vpack.c.bf16 %v8538, %v8538
    %v8555 = vpack.c.bf16 %v8539, %v8539
    %v8556 = vpack.c.bf16 %v8540, %v8540
    %v8557 = vpack.c.bf16 %v8541, %v8541
    %v8558 = vpack.c.bf16 %v8542, %v8542
    %8559 = vst.msk [vmem:[#allocation5 + $0x10] sm:$0xf] %vm7916, %v8543
    %8560 = vst.msk [vmem:[#allocation5 + $0x24] sm:$0xf] %vm7916, %v8544
    %8561 = vst.msk [vmem:[#allocation5 + $0x38] sm:$0xf] %vm7916, %v8545
    %8562 = vst.msk [vmem:[#allocation5 + $0x4c] sm:$0xf] %vm7916, %v8546
    %8563 = vst.msk [vmem:[#allocation5 + $0x60] sm:$0xf] %vm7916, %v8547
    %8564 = vst.msk [vmem:[#allocation5 + $0x74] sm:$0xf] %vm7916, %v8548
    %8565 = vst.msk [vmem:[#allocation5 + $0x88] sm:$0xf] %vm7916, %v8549
    %8566 = vst.msk [vmem:[#allocation5 + $0x9c] sm:$0xf] %vm7916, %v8550
    %8567 = vst.msk [vmem:[#allocation5 + $0xb0] sm:$0xf] %vm7916, %v8551
    %8568 = vst.msk [vmem:[#allocation5 + $0xc4] sm:$0xf] %vm7916, %v8552
    %8569 = vst.msk [vmem:[#allocation5 + $0xd8] sm:$0xf] %vm7916, %v8553
    %8570 = vst.msk [vmem:[#allocation5 + $0xec] sm:$0xf] %vm7916, %v8554
    %8571 = vst.msk [vmem:[#allocation5 + $0x100] sm:$0xf] %vm7916, %v8555
    %8572 = vst.msk [vmem:[#allocation5 + $0x114] sm:$0xf] %vm7916, %v8556
    %8573 = vst.msk [vmem:[#allocation5 + $0x128] sm:$0xf] %vm7916, %v8557
    %8574 = vst.msk [vmem:[#allocation5 + $0x13c] sm:$0xf] %vm7916, %v8558
    %v8575 = vld [vmem:[#allocation5] sm:$0xff]
    %v8576 = vld [vmem:[#allocation5 + $0x8] sm:$0xff]
    %v8577 = vld [vmem:[#allocation5 + $0x10] sm:$0xf]
    %v8578 = vld [vmem:[#allocation5 + $0x14] sm:$0xff]
    %v8579 = vld [vmem:[#allocation5 + $0x1c] sm:$0xff]
    %v8580 = vld [vmem:[#allocation5 + $0x24] sm:$0xf]
    %v8581 = vld [vmem:[#allocation5 + $0x28] sm:$0xff]
    %v8582 = vld [vmem:[#allocation5 + $0x30] sm:$0xff]
    %v8583 = vld [vmem:[#allocation5 + $0x38] sm:$0xf]
    %v8584 = vld [vmem:[#allocation5 + $0x3c] sm:$0xff]
    %v8585 = vld [vmem:[#allocation5 + $0x44] sm:$0xff]
    %v8586 = vld [vmem:[#allocation5 + $0x4c] sm:$0xf]
    %v8587 = vld [vmem:[#allocation5 + $0x50] sm:$0xff]
    %v8588 = vld [vmem:[#allocation5 + $0x58] sm:$0xff]
    %v8589 = vld [vmem:[#allocation5 + $0x60] sm:$0xf]
    %v8590 = vld [vmem:[#allocation5 + $0x64] sm:$0xff]
    %v8591 = vld [vmem:[#allocation5 + $0x6c] sm:$0xff]
    %v8592 = vld [vmem:[#allocation5 + $0x74] sm:$0xf]
    %v8593 = vld [vmem:[#allocation5 + $0x78] sm:$0xff]
    %v8594 = vld [vmem:[#allocation5 + $0x80] sm:$0xff]
    %v8595 = vld [vmem:[#allocation5 + $0x88] sm:$0xf]
    %v8596 = vld [vmem:[#allocation5 + $0x8c] sm:$0xff]
    %v8597 = vld [vmem:[#allocation5 + $0x94] sm:$0xff]
    %v8598 = vld [vmem:[#allocation5 + $0x9c] sm:$0xf]
    %v8599 = vld [vmem:[#allocation5 + $0xa0] sm:$0xff]
    %v8600 = vld [vmem:[#allocation5 + $0xa8] sm:$0xff]
    %v8601 = vld [vmem:[#allocation5 + $0xb0] sm:$0xf]
    %v8602 = vld [vmem:[#allocation5 + $0xb4] sm:$0xff]
    %v8603 = vld [vmem:[#allocation5 + $0xbc] sm:$0xff]
    %v8604 = vld [vmem:[#allocation5 + $0xc4] sm:$0xf]
    %v8605 = vld [vmem:[#allocation5 + $0xc8] sm:$0xff]
    %v8606 = vld [vmem:[#allocation5 + $0xd0] sm:$0xff]
    %v8607 = vld [vmem:[#allocation5 + $0xd8] sm:$0xf]
    %v8608 = vld [vmem:[#allocation5 + $0xdc] sm:$0xff]
    %v8609 = vld [vmem:[#allocation5 + $0xe4] sm:$0xff]
    %v8610 = vld [vmem:[#allocation5 + $0xec] sm:$0xf]
    %v8611 = vld [vmem:[#allocation5 + $0xf0] sm:$0xff]
    %v8612 = vld [vmem:[#allocation5 + $0xf8] sm:$0xff]
    %v8613 = vld [vmem:[#allocation5 + $0x100] sm:$0xf]
    %v8614 = vld [vmem:[#allocation5 + $0x104] sm:$0xff]
    %v8615 = vld [vmem:[#allocation5 + $0x10c] sm:$0xff]
    %v8616 = vld [vmem:[#allocation5 + $0x114] sm:$0xf]
    %v8617 = vld [vmem:[#allocation5 + $0x118] sm:$0xff]
    %v8618 = vld [vmem:[#allocation5 + $0x120] sm:$0xff]
    %v8619 = vld [vmem:[#allocation5 + $0x128] sm:$0xf]
    %v8620 = vld [vmem:[#allocation5 + $0x12c] sm:$0xff]
    %v8621 = vld [vmem:[#allocation5 + $0x134] sm:$0xff]
    %v8622 = vld [vmem:[#allocation5 + $0x13c] sm:$0xf]
    %v8623 = vld [vmem:[%s5] sm:$0xf]
    %v8624 = vld [vmem:[%s5 + $0x4] sm:$0xf]
    %v8625 = vld [vmem:[%s5 + $0x8] sm:$0xf]
    %v8626 = vld [vmem:[%s5 + $0xc] sm:$0xf]
    %v8627 = vld [vmem:[%s5 + $0x10] sm:$0xf]
    %v8628 = vld [vmem:[%s5 + $0x14] sm:$0xf]
    %v8629 = vld [vmem:[%s5 + $0x18] sm:$0xf]
    %v8630 = vld [vmem:[%s5 + $0x1c] sm:$0xf]
    %v8631 = vld [vmem:[%s5 + $0x20] sm:$0xf]
    %v8632 = vld [vmem:[%s5 + $0x24] sm:$0xf]
    %v8633 = vld [vmem:[%s5 + $0x28] sm:$0xf]
    %v8634 = vld [vmem:[%s5 + $0x2c] sm:$0xf]
    %v8635 = vld [vmem:[%s5 + $0x30] sm:$0xf]
    %v8636 = vld [vmem:[%s5 + $0x34] sm:$0xf]
    %v8637 = vld [vmem:[%s5 + $0x38] sm:$0xf]
    %v8638 = vld [vmem:[%s5 + $0x3c] sm:$0xf]
    %v8639 = vld [vmem:[%s5 + $0x40] sm:$0xf]
    %v8640 = vld [vmem:[%s5 + $0x44] sm:$0xf]
    %v8641 = vld [vmem:[%s5 + $0x48] sm:$0xf]
    %v8642 = vld [vmem:[%s5 + $0x4c] sm:$0xf]
    %v8643 = vld [vmem:[%s5 + $0x50] sm:$0xf]
    %v8644 = vld [vmem:[%s5 + $0x54] sm:$0xf]
    %v8645 = vld [vmem:[%s5 + $0x58] sm:$0xf]
    %v8646 = vld [vmem:[%s5 + $0x5c] sm:$0xf]
    %v8647 = vld [vmem:[%s5 + $0x60] sm:$0xf]
    %v8648 = vld [vmem:[%s5 + $0x64] sm:$0xf]
    %v8649 = vld [vmem:[%s5 + $0x68] sm:$0xf]
    %v8650 = vld [vmem:[%s5 + $0x6c] sm:$0xf]
    %v8651 = vld [vmem:[%s5 + $0x70] sm:$0xf]
    %v8652 = vld [vmem:[%s5 + $0x74] sm:$0xf]
    %v8653 = vld [vmem:[%s5 + $0x78] sm:$0xf]
    %v8654 = vld [vmem:[%s5 + $0x7c] sm:$0xf]
    %v8655 = vld [vmem:[%s5 + $0x80] sm:$0xf]
    %v8656 = vld [vmem:[%s5 + $0x84] sm:$0xf]
    %v8657 = vld [vmem:[%s5 + $0x88] sm:$0xf]
    %v8658 = vld [vmem:[%s5 + $0x8c] sm:$0xf]
    %v8659 = vld [vmem:[%s5 + $0x90] sm:$0xf]
    %v8660 = vld [vmem:[%s5 + $0x94] sm:$0xf]
    %v8661 = vld [vmem:[%s5 + $0x98] sm:$0xf]
    %v8662 = vld [vmem:[%s5 + $0x9c] sm:$0xf]
    %v8663 = vld [vmem:[%s5 + $0xa0] sm:$0xf]
    %v8664 = vld [vmem:[%s5 + $0xa4] sm:$0xf]
    %v8665 = vld [vmem:[%s5 + $0xa8] sm:$0xf]
    %v8666 = vld [vmem:[%s5 + $0xac] sm:$0xf]
    %v8667 = vld [vmem:[%s5 + $0xb0] sm:$0xf]
    %v8668 = vld [vmem:[%s5 + $0xb4] sm:$0xf]
    %v8669 = vld [vmem:[%s5 + $0xb8] sm:$0xf]
    %v8670 = vld [vmem:[%s5 + $0xbc] sm:$0xf]
    %v8671 = vld [vmem:[%s5 + $0xc0] sm:$0xf]
    %v8672 = vld [vmem:[%s5 + $0xc4] sm:$0xf]
    %v8673 = vld [vmem:[%s5 + $0xc8] sm:$0xf]
    %v8674 = vld [vmem:[%s5 + $0xcc] sm:$0xf]
    %v8675 = vld [vmem:[%s5 + $0xd0] sm:$0xf]
    %v8676 = vld [vmem:[%s5 + $0xd4] sm:$0xf]
    %v8677 = vld [vmem:[%s5 + $0xd8] sm:$0xf]
    %v8678 = vld [vmem:[%s5 + $0xdc] sm:$0xf]
    %v8679 = vld [vmem:[%s5 + $0xe0] sm:$0xf]
    %v8680 = vld [vmem:[%s5 + $0xe4] sm:$0xf]
    %v8681 = vld [vmem:[%s5 + $0xe8] sm:$0xf]
    %v8682 = vld [vmem:[%s5 + $0xec] sm:$0xf]
    %v8683 = vld [vmem:[%s5 + $0xf0] sm:$0xf]
    %v8684 = vld [vmem:[%s5 + $0xf4] sm:$0xf]
    %v8685 = vld [vmem:[%s5 + $0xf8] sm:$0xf]
    %v8686 = vld [vmem:[%s5 + $0xfc] sm:$0xf]
    %v8687 = vld [vmem:[%s5 + $0x100] sm:$0xf]
    %v8688 = vld [vmem:[%s5 + $0x104] sm:$0xf]
    %v8689 = vld [vmem:[%s5 + $0x108] sm:$0xf]
    %v8690 = vld [vmem:[%s5 + $0x10c] sm:$0xf]
    %v8691 = vld [vmem:[%s5 + $0x110] sm:$0xf]
    %v8692 = vld [vmem:[%s5 + $0x114] sm:$0xf]
    %v8693 = vld [vmem:[%s5 + $0x118] sm:$0xf]
    %v8694 = vld [vmem:[%s5 + $0x11c] sm:$0xf]
    %v8695 = vld [vmem:[%s6] sm:$0x1]
    %v8697 = vperm.slane %v8695, 0
    %v8747 = vunpack.c.l.b16 %v8575
    %v8748 = vunpack.c.h.b16 %v8575
    %v8749 = vunpack.c.l.b16 %v8576
    %v8750 = vunpack.c.h.b16 %v8576
    %v8751 = vunpack.c.l.b16 %v8577
    %v8752 = vunpack.c.l.b16 %v8578
    %v8753 = vunpack.c.h.b16 %v8578
    %v8754 = vunpack.c.l.b16 %v8579
    %v8755 = vunpack.c.h.b16 %v8579
    %v8756 = vunpack.c.l.b16 %v8580
    %v8757 = vunpack.c.l.b16 %v8581
    %v8758 = vunpack.c.h.b16 %v8581
    %v8759 = vunpack.c.l.b16 %v8582
    %v8760 = vunpack.c.h.b16 %v8582
    %v8761 = vunpack.c.l.b16 %v8583
    %v8762 = vunpack.c.l.b16 %v8584
    %v8763 = vunpack.c.h.b16 %v8584
    %v8764 = vunpack.c.l.b16 %v8585
    %v8765 = vunpack.c.h.b16 %v8585
    %v8766 = vunpack.c.l.b16 %v8586
    %v8767 = vunpack.c.l.b16 %v8587
    %v8768 = vunpack.c.h.b16 %v8587
    %v8769 = vunpack.c.l.b16 %v8588
    %v8770 = vunpack.c.h.b16 %v8588
    %v8771 = vunpack.c.l.b16 %v8589
    %v8772 = vunpack.c.l.b16 %v8590
    %v8773 = vunpack.c.h.b16 %v8590
    %v8774 = vunpack.c.l.b16 %v8591
    %v8775 = vunpack.c.h.b16 %v8591
    %v8776 = vunpack.c.l.b16 %v8592
    %v8777 = vunpack.c.l.b16 %v8593
    %v8778 = vunpack.c.h.b16 %v8593
    %v8779 = vunpack.c.l.b16 %v8594
    %v8780 = vunpack.c.h.b16 %v8594
    %v8781 = vunpack.c.l.b16 %v8595
    %v8782 = vunpack.c.l.b16 %v8596
    %v8783 = vunpack.c.h.b16 %v8596
    %v8784 = vunpack.c.l.b16 %v8597
    %v8785 = vunpack.c.h.b16 %v8597
    %v8786 = vunpack.c.l.b16 %v8598
    %v8787 = vunpack.c.l.b16 %v8599
    %v8788 = vunpack.c.h.b16 %v8599
    %v8789 = vunpack.c.l.b16 %v8600
    %v8790 = vunpack.c.h.b16 %v8600
    %v8791 = vunpack.c.l.b16 %v8601
    %v8792 = vunpack.c.l.b16 %v8602
    %v8793 = vunpack.c.h.b16 %v8602
    %v8794 = vunpack.c.l.b16 %v8603
    %v8795 = vunpack.c.h.b16 %v8603
    %v8796 = vunpack.c.l.b16 %v8604
    %v8797 = vunpack.c.l.b16 %v8605
    %v8798 = vunpack.c.h.b16 %v8605
    %v8799 = vunpack.c.l.b16 %v8606
    %v8800 = vunpack.c.h.b16 %v8606
    %v8801 = vunpack.c.l.b16 %v8607
    %v8802 = vunpack.c.l.b16 %v8608
    %v8803 = vunpack.c.h.b16 %v8608
    %v8804 = vunpack.c.l.b16 %v8609
    %v8805 = vunpack.c.h.b16 %v8609
    %v8806 = vunpack.c.l.b16 %v8610
    %v8807 = vunpack.c.l.b16 %v8611
    %v8808 = vunpack.c.h.b16 %v8611
    %v8809 = vunpack.c.l.b16 %v8612
    %v8810 = vunpack.c.h.b16 %v8612
    %v8811 = vunpack.c.l.b16 %v8613
    %v8812 = vunpack.c.l.b16 %v8614
    %v8813 = vunpack.c.h.b16 %v8614
    %v8814 = vunpack.c.l.b16 %v8615
    %v8815 = vunpack.c.h.b16 %v8615
    %v8816 = vunpack.c.l.b16 %v8616
    %v8817 = vunpack.c.l.b16 %v8617
    %v8818 = vunpack.c.h.b16 %v8617
    %v8819 = vunpack.c.l.b16 %v8618
    %v8820 = vunpack.c.h.b16 %v8618
    %v8821 = vunpack.c.l.b16 %v8619
    %v8822 = vunpack.c.l.b16 %v8620
    %v8823 = vunpack.c.h.b16 %v8620
    %v8824 = vunpack.c.l.b16 %v8621
    %v8825 = vunpack.c.h.b16 %v8621
    %v8826 = vunpack.c.l.b16 %v8622
    %v8827 = vpack.c.b16 %v8752, %v8747
    %v8828 = vpack.c.b16 %v8753, %v8748
    %v8829 = vpack.c.b16 %v8754, %v8749
    %v8830 = vpack.c.b16 %v8755, %v8750
    %v8831 = vpack.c.b16 %v8756, %v8751
    %v8832 = vpack.c.b16 %v8762, %v8757
    %v8833 = vpack.c.b16 %v8763, %v8758
    %v8834 = vpack.c.b16 %v8764, %v8759
    %v8835 = vpack.c.b16 %v8765, %v8760
    %v8836 = vpack.c.b16 %v8766, %v8761
    %v8837 = vpack.c.b16 %v8772, %v8767
    %v8838 = vpack.c.b16 %v8773, %v8768
    %v8839 = vpack.c.b16 %v8774, %v8769
    %v8840 = vpack.c.b16 %v8775, %v8770
    %v8841 = vpack.c.b16 %v8776, %v8771
    %v8842 = vpack.c.b16 %v8782, %v8777
    %v8843 = vpack.c.b16 %v8783, %v8778
    %v8844 = vpack.c.b16 %v8784, %v8779
    %v8845 = vpack.c.b16 %v8785, %v8780
    %v8846 = vpack.c.b16 %v8786, %v8781
    %v8847 = vpack.c.b16 %v8792, %v8787
    %v8848 = vpack.c.b16 %v8793, %v8788
    %v8849 = vpack.c.b16 %v8794, %v8789
    %v8850 = vpack.c.b16 %v8795, %v8790
    %v8851 = vpack.c.b16 %v8796, %v8791
    %v8852 = vpack.c.b16 %v8802, %v8797
    %v8853 = vpack.c.b16 %v8803, %v8798
    %v8854 = vpack.c.b16 %v8804, %v8799
    %v8855 = vpack.c.b16 %v8805, %v8800
    %v8856 = vpack.c.b16 %v8806, %v8801
    %v8857 = vpack.c.b16 %v8812, %v8807
    %v8858 = vpack.c.b16 %v8813, %v8808
    %v8859 = vpack.c.b16 %v8814, %v8809
    %v8860 = vpack.c.b16 %v8815, %v8810
    %v8861 = vpack.c.b16 %v8816, %v8811
    %v8862 = vpack.c.b16 %v8822, %v8817
    %v8863 = vpack.c.b16 %v8823, %v8818
    %v8864 = vpack.c.b16 %v8824, %v8819
    %v8865 = vpack.c.b16 %v8825, %v8820
    %v8866 = vpack.c.b16 %v8826, %v8821
    %v8971 = vunpack.c.l.b16 %v8623
    %v8972 = vunpack.c.l.b16 %v8624
    %v8973 = vunpack.c.l.b16 %v8625
    %v8974 = vunpack.c.l.b16 %v8626
    %v8975 = vunpack.c.l.b16 %v8627
    %v8976 = vunpack.c.l.b16 %v8628
    %v8977 = vunpack.c.l.b16 %v8629
    %v8978 = vunpack.c.l.b16 %v8630
    %v8979 = vunpack.c.l.b16 %v8631
    %v8980 = vunpack.c.l.b16 %v8632
    %v8981 = vunpack.c.l.b16 %v8633
    %v8982 = vunpack.c.l.b16 %v8634
    %v8983 = vunpack.c.l.b16 %v8635
    %v8984 = vunpack.c.l.b16 %v8636
    %v8985 = vunpack.c.l.b16 %v8637
    %v8986 = vunpack.c.l.b16 %v8638
    %v8987 = vunpack.c.l.b16 %v8639
    %v8988 = vunpack.c.l.b16 %v8640
    %v8989 = vunpack.c.l.b16 %v8641
    %v8990 = vunpack.c.l.b16 %v8642
    %v8991 = vunpack.c.l.b16 %v8643
    %v8992 = vunpack.c.l.b16 %v8644
    %v8993 = vunpack.c.l.b16 %v8645
    %v8994 = vunpack.c.l.b16 %v8646
    %v8995 = vunpack.c.l.b16 %v8647
    %v8996 = vunpack.c.l.b16 %v8648
    %v8997 = vunpack.c.l.b16 %v8649
    %v8998 = vunpack.c.l.b16 %v8650
    %v8999 = vunpack.c.l.b16 %v8651
    %v9000 = vunpack.c.l.b16 %v8652
    %v9001 = vunpack.c.l.b16 %v8653
    %v9002 = vunpack.c.l.b16 %v8654
    %v9003 = vunpack.c.l.b16 %v8655
    %v9004 = vunpack.c.l.b16 %v8656
    %v9005 = vunpack.c.l.b16 %v8657
    %v9006 = vunpack.c.l.b16 %v8658
    %v9007 = vunpack.c.l.b16 %v8659
    %v9008 = vunpack.c.l.b16 %v8660
    %v9009 = vunpack.c.l.b16 %v8661
    %v9010 = vunpack.c.l.b16 %v8662
    %v9011 = vunpack.c.l.b16 %v8663
    %v9012 = vunpack.c.l.b16 %v8664
    %v9013 = vunpack.c.l.b16 %v8665
    %v9014 = vunpack.c.l.b16 %v8666
    %v9015 = vunpack.c.l.b16 %v8667
    %v9016 = vunpack.c.l.b16 %v8668
    %v9017 = vunpack.c.l.b16 %v8669
    %v9018 = vunpack.c.l.b16 %v8670
    %v9019 = vunpack.c.l.b16 %v8671
    %v9020 = vunpack.c.l.b16 %v8672
    %v9021 = vunpack.c.l.b16 %v8673
    %v9022 = vunpack.c.l.b16 %v8674
    %v9023 = vunpack.c.l.b16 %v8675
    %v9024 = vunpack.c.l.b16 %v8676
    %v9025 = vunpack.c.l.b16 %v8677
    %v9026 = vunpack.c.l.b16 %v8678
    %v9027 = vunpack.c.l.b16 %v8679
    %v9028 = vunpack.c.l.b16 %v8680
    %v9029 = vunpack.c.l.b16 %v8681
    %v9030 = vunpack.c.l.b16 %v8682
    %v9031 = vunpack.c.l.b16 %v8683
    %v9032 = vunpack.c.l.b16 %v8684
    %v9033 = vunpack.c.l.b16 %v8685
    %v9034 = vunpack.c.l.b16 %v8686
    %v9035 = vunpack.c.l.b16 %v8687
    %v9036 = vunpack.c.l.b16 %v8688
    %v9037 = vunpack.c.l.b16 %v8689
    %v9038 = vunpack.c.l.b16 %v8690
    %v9039 = vunpack.c.l.b16 %v8691
    %v9040 = vunpack.c.l.b16 %v8692
    %v9041 = vunpack.c.l.b16 %v8693
    %v9042 = vunpack.c.l.b16 %v8694
    %v9043 = vpack.c.b16 %v8972, %v8971
    %v9044 = vpack.c.b16 %v8974, %v8973
    %v9045 = vpack.c.b16 %v8976, %v8975
    %v9046 = vpack.c.b16 %v8978, %v8977
    %v9047 = vpack.c.b16 %v8980, %v8979
    %v9048 = vpack.c.b16 %v8982, %v8981
    %v9049 = vpack.c.b16 %v8984, %v8983
    %v9050 = vpack.c.b16 %v8986, %v8985
    %v9051 = vpack.c.b16 %v8988, %v8987
    %v9052 = vpack.c.b16 %v8990, %v8989
    %v9053 = vpack.c.b16 %v8992, %v8991
    %v9054 = vpack.c.b16 %v8994, %v8993
    %v9055 = vpack.c.b16 %v8996, %v8995
    %v9056 = vpack.c.b16 %v8998, %v8997
    %v9057 = vpack.c.b16 %v9000, %v8999
    %v9058 = vpack.c.b16 %v9002, %v9001
    %v9059 = vpack.c.b16 %v9004, %v9003
    %v9060 = vpack.c.b16 %v9006, %v9005
    %v9061 = vpack.c.b16 %v9008, %v9007
    %v9062 = vpack.c.b16 %v9010, %v9009
    %v9063 = vpack.c.b16 %v9012, %v9011
    %v9064 = vpack.c.b16 %v9014, %v9013
    %v9065 = vpack.c.b16 %v9016, %v9015
    %v9066 = vpack.c.b16 %v9018, %v9017
    %v9067 = vpack.c.b16 %v9020, %v9019
    %v9068 = vpack.c.b16 %v9022, %v9021
    %v9069 = vpack.c.b16 %v9024, %v9023
    %v9070 = vpack.c.b16 %v9026, %v9025
    %v9071 = vpack.c.b16 %v9028, %v9027
    %v9072 = vpack.c.b16 %v9030, %v9029
    %v9073 = vpack.c.b16 %v9032, %v9031
    %v9074 = vpack.c.b16 %v9034, %v9033
    %v9075 = vpack.c.b16 %v9036, %v9035
    %v9076 = vpack.c.b16 %v9038, %v9037
    %v9077 = vpack.c.b16 %v9040, %v9039
    %v9078 = vpack.c.b16 %v9042, %v9041
    %v9116 = vsel %vm7704, %v8831, 0
    %v9119 = vsel %vm7704, %v8836, 0
    %v9122 = vsel %vm7704, %v8841, 0
    %v9125 = vsel %vm7704, %v8846, 0
    %v9128 = vsel %vm7704, %v8851, 0
    %v9131 = vsel %vm7704, %v8856, 0
    %v9134 = vsel %vm7704, %v8861, 0
    %v9137 = vsel %vm7704, %v8866, 0
    %9139 = vmatpush.bf16.msra.mxu0 %v9050
    %9140 = vmatpush.bf16.msra.mxu0 %v9049
    %9141 = vmatpush.bf16.msra.mxu0 %v9048
    %9142 = vmatpush.bf16.msra.mxu0 %v9047
    %9143 = vmatpush.bf16.msra.mxu0 %v9046
    %9144 = vmatpush.bf16.msra.mxu0 %v9045
    %9145 = vmatpush.bf16.msra.mxu0 %v9044
    %9146 = vmatpush.bf16.msra.mxu0 %v9043
    %9147 = vmatmul.bf16.gmra.mxu0 %v8827
    %v9148 = vpop.f32.mrf.mxu0
    %v9149 = vadd.f32 %v8697, %v9148
    %v9150 = vpop.f32.mrf.mxu0
    %v9151 = vadd.f32 %v8697, %v9150
    %9152 = vmatmul.bf16.gmra.mxu0 %v8832
    %v9153 = vpop.f32.mrf.mxu0
    %v9154 = vadd.f32 %v8697, %v9153
    %v9155 = vpop.f32.mrf.mxu0
    %v9156 = vadd.f32 %v8697, %v9155
    %9157 = vmatmul.bf16.gmra.mxu0 %v8837
    %v9158 = vpop.f32.mrf.mxu0
    %v9159 = vadd.f32 %v8697, %v9158
    %v9160 = vpop.f32.mrf.mxu0
    %v9161 = vadd.f32 %v8697, %v9160
    %9162 = vmatmul.bf16.gmra.mxu0 %v8842
    %v9163 = vpop.f32.mrf.mxu0
    %v9164 = vadd.f32 %v8697, %v9163
    %v9165 = vpop.f32.mrf.mxu0
    %v9166 = vadd.f32 %v8697, %v9165
    %9167 = vmatmul.bf16.gmra.mxu0 %v8847
    %v9168 = vpop.f32.mrf.mxu0
    %v9169 = vadd.f32 %v8697, %v9168
    %v9170 = vpop.f32.mrf.mxu0
    %v9171 = vadd.f32 %v8697, %v9170
    %9172 = vmatmul.bf16.gmra.mxu0 %v8852
    %v9173 = vpop.f32.mrf.mxu0
    %v9174 = vadd.f32 %v8697, %v9173
    %v9175 = vpop.f32.mrf.mxu0
    %v9176 = vadd.f32 %v8697, %v9175
    %9177 = vmatmul.bf16.gmra.mxu0 %v8857
    %v9178 = vpop.f32.mrf.mxu0
    %v9179 = vadd.f32 %v8697, %v9178
    %v9180 = vpop.f32.mrf.mxu0
    %v9181 = vadd.f32 %v8697, %v9180
    %9182 = vmatmul.bf16.gmra.mxu0 %v8862
    %v9183 = vpop.f32.mrf.mxu0
    %v9184 = vadd.f32 %v8697, %v9183
    %v9185 = vpop.f32.mrf.mxu0
    %v9186 = vadd.f32 %v8697, %v9185
    %9187 = vdwg.mxu0
    %9188 = vmatpush.bf16.msra.mxu0 %v9058
    %9189 = vmatpush.bf16.msra.mxu0 %v9057
    %9190 = vmatpush.bf16.msra.mxu0 %v9056
    %9191 = vmatpush.bf16.msra.mxu0 %v9055
    %9192 = vmatpush.bf16.msra.mxu0 %v9054
    %9193 = vmatpush.bf16.msra.mxu0 %v9053
    %9194 = vmatpush.bf16.msra.mxu0 %v9052
    %9195 = vmatpush.bf16.msra.mxu0 %v9051
    %9196 = vmatmul.bf16.gmra.mxu0 %v8828
    %v9197 = vpop.f32.mrf.mxu0
    %v9198 = vadd.f32 %v9149, %v9197
    %v9199 = vpop.f32.mrf.mxu0
    %v9200 = vadd.f32 %v9151, %v9199
    %9201 = vmatmul.bf16.gmra.mxu0 %v8833
    %v9202 = vpop.f32.mrf.mxu0
    %v9203 = vadd.f32 %v9154, %v9202
    %v9204 = vpop.f32.mrf.mxu0
    %v9205 = vadd.f32 %v9156, %v9204
    %9206 = vmatmul.bf16.gmra.mxu0 %v8838
    %v9207 = vpop.f32.mrf.mxu0
    %v9208 = vadd.f32 %v9159, %v9207
    %v9209 = vpop.f32.mrf.mxu0
    %v9210 = vadd.f32 %v9161, %v9209
    %9211 = vmatmul.bf16.gmra.mxu0 %v8843
    %v9212 = vpop.f32.mrf.mxu0
    %v9213 = vadd.f32 %v9164, %v9212
    %v9214 = vpop.f32.mrf.mxu0
    %v9215 = vadd.f32 %v9166, %v9214
    %9216 = vmatmul.bf16.gmra.mxu0 %v8848
    %v9217 = vpop.f32.mrf.mxu0
    %v9218 = vadd.f32 %v9169, %v9217
    %v9219 = vpop.f32.mrf.mxu0
    %v9220 = vadd.f32 %v9171, %v9219
    %9221 = vmatmul.bf16.gmra.mxu0 %v8853
    %v9222 = vpop.f32.mrf.mxu0
    %v9223 = vadd.f32 %v9174, %v9222
    %v9224 = vpop.f32.mrf.mxu0
    %v9225 = vadd.f32 %v9176, %v9224
    %9226 = vmatmul.bf16.gmra.mxu0 %v8858
    %v9227 = vpop.f32.mrf.mxu0
    %v9228 = vadd.f32 %v9179, %v9227
    %v9229 = vpop.f32.mrf.mxu0
    %v9230 = vadd.f32 %v9181, %v9229
    %9231 = vmatmul.bf16.gmra.mxu0 %v8863
    %v9232 = vpop.f32.mrf.mxu0
    %v9233 = vadd.f32 %v9184, %v9232
    %v9234 = vpop.f32.mrf.mxu0
    %v9235 = vadd.f32 %v9186, %v9234
    %9236 = vdwg.mxu0
    %9237 = vmatpush.bf16.msra.mxu0 %v9066
    %9238 = vmatpush.bf16.msra.mxu0 %v9065
    %9239 = vmatpush.bf16.msra.mxu0 %v9064
    %9240 = vmatpush.bf16.msra.mxu0 %v9063
    %9241 = vmatpush.bf16.msra.mxu0 %v9062
    %9242 = vmatpush.bf16.msra.mxu0 %v9061
    %9243 = vmatpush.bf16.msra.mxu0 %v9060
    %9244 = vmatpush.bf16.msra.mxu0 %v9059
    %9245 = vmatmul.bf16.gmra.mxu0 %v8829
    %v9246 = vpop.f32.mrf.mxu0
    %v9247 = vadd.f32 %v9198, %v9246
    %v9248 = vpop.f32.mrf.mxu0
    %v9249 = vadd.f32 %v9200, %v9248
    %9250 = vmatmul.bf16.gmra.mxu0 %v8834
    %v9251 = vpop.f32.mrf.mxu0
    %v9252 = vadd.f32 %v9203, %v9251
    %v9253 = vpop.f32.mrf.mxu0
    %v9254 = vadd.f32 %v9205, %v9253
    %9255 = vmatmul.bf16.gmra.mxu0 %v8839
    %v9256 = vpop.f32.mrf.mxu0
    %v9257 = vadd.f32 %v9208, %v9256
    %v9258 = vpop.f32.mrf.mxu0
    %v9259 = vadd.f32 %v9210, %v9258
    %9260 = vmatmul.bf16.gmra.mxu0 %v8844
    %v9261 = vpop.f32.mrf.mxu0
    %v9262 = vadd.f32 %v9213, %v9261
    %v9263 = vpop.f32.mrf.mxu0
    %v9264 = vadd.f32 %v9215, %v9263
    %9265 = vmatmul.bf16.gmra.mxu0 %v8849
    %v9266 = vpop.f32.mrf.mxu0
    %v9267 = vadd.f32 %v9218, %v9266
    %v9268 = vpop.f32.mrf.mxu0
    %v9269 = vadd.f32 %v9220, %v9268
    %9270 = vmatmul.bf16.gmra.mxu0 %v8854
    %v9271 = vpop.f32.mrf.mxu0
    %v9272 = vadd.f32 %v9223, %v9271
    %v9273 = vpop.f32.mrf.mxu0
    %v9274 = vadd.f32 %v9225, %v9273
    %9275 = vmatmul.bf16.gmra.mxu0 %v8859
    %v9276 = vpop.f32.mrf.mxu0
    %v9277 = vadd.f32 %v9228, %v9276
    %v9278 = vpop.f32.mrf.mxu0
    %v9279 = vadd.f32 %v9230, %v9278
    %9280 = vmatmul.bf16.gmra.mxu0 %v8864
    %v9281 = vpop.f32.mrf.mxu0
    %v9282 = vadd.f32 %v9233, %v9281
    %v9283 = vpop.f32.mrf.mxu0
    %v9284 = vadd.f32 %v9235, %v9283
    %9285 = vdwg.mxu0
    %9286 = vmatpush.bf16.msra.mxu0 %v9074
    %9287 = vmatpush.bf16.msra.mxu0 %v9073
    %9288 = vmatpush.bf16.msra.mxu0 %v9072
    %9289 = vmatpush.bf16.msra.mxu0 %v9071
    %9290 = vmatpush.bf16.msra.mxu0 %v9070
    %9291 = vmatpush.bf16.msra.mxu0 %v9069
    %9292 = vmatpush.bf16.msra.mxu0 %v9068
    %9293 = vmatpush.bf16.msra.mxu0 %v9067
    %9294 = vmatmul.bf16.gmra.mxu0 %v8830
    %v9295 = vpop.f32.mrf.mxu0
    %v9296 = vadd.f32 %v9247, %v9295
    %v9297 = vpop.f32.mrf.mxu0
    %v9298 = vadd.f32 %v9249, %v9297
    %9299 = vmatmul.bf16.gmra.mxu0 %v8835
    %v9300 = vpop.f32.mrf.mxu0
    %v9301 = vadd.f32 %v9252, %v9300
    %v9302 = vpop.f32.mrf.mxu0
    %v9303 = vadd.f32 %v9254, %v9302
    %9304 = vmatmul.bf16.gmra.mxu0 %v8840
    %v9305 = vpop.f32.mrf.mxu0
    %v9306 = vadd.f32 %v9257, %v9305
    %v9307 = vpop.f32.mrf.mxu0
    %v9308 = vadd.f32 %v9259, %v9307
    %9309 = vmatmul.bf16.gmra.mxu0 %v8845
    %v9310 = vpop.f32.mrf.mxu0
    %v9311 = vadd.f32 %v9262, %v9310
    %v9312 = vpop.f32.mrf.mxu0
    %v9313 = vadd.f32 %v9264, %v9312
    %9314 = vmatmul.bf16.gmra.mxu0 %v8850
    %v9315 = vpop.f32.mrf.mxu0
    %v9316 = vadd.f32 %v9267, %v9315
    %v9317 = vpop.f32.mrf.mxu0
    %v9318 = vadd.f32 %v9269, %v9317
    %9319 = vmatmul.bf16.gmra.mxu0 %v8855
    %v9320 = vpop.f32.mrf.mxu0
    %v9321 = vadd.f32 %v9272, %v9320
    %v9322 = vpop.f32.mrf.mxu0
    %v9323 = vadd.f32 %v9274, %v9322
    %9324 = vmatmul.bf16.gmra.mxu0 %v8860
    %v9325 = vpop.f32.mrf.mxu0
    %v9326 = vadd.f32 %v9277, %v9325
    %v9327 = vpop.f32.mrf.mxu0
    %v9328 = vadd.f32 %v9279, %v9327
    %9329 = vmatmul.bf16.gmra.mxu0 %v8865
    %v9330 = vpop.f32.mrf.mxu0
    %v9331 = vadd.f32 %v9282, %v9330
    %v9332 = vpop.f32.mrf.mxu0
    %v9333 = vadd.f32 %v9284, %v9332
    %9334 = vdwg.mxu0
    %9335 = vmatpush.bf16.msra.mxu0 0
    %9336 = vmatpush.bf16.msra.mxu0 0
    %9337 = vmatpush.bf16.msra.mxu0 0
    %9338 = vmatpush.bf16.msra.mxu0 0
    %9339 = vmatpush.bf16.msra.mxu0 %v9078
    %9340 = vmatpush.bf16.msra.mxu0 %v9077
    %9341 = vmatpush.bf16.msra.mxu0 %v9076
    %9342 = vmatpush.bf16.msra.mxu0 %v9075
    %9343 = vmatmul.bf16.gmra.mxu0 %v9116
    %v9344 = vpop.f32.mrf.mxu0
    %v9345 = vadd.f32 %v9296, %v9344
    %v9346 = vpop.f32.mrf.mxu0
    %v9347 = vadd.f32 %v9298, %v9346
    %9348 = vmatmul.bf16.gmra.mxu0 %v9119
    %v9349 = vpop.f32.mrf.mxu0
    %v9350 = vadd.f32 %v9301, %v9349
    %v9351 = vpop.f32.mrf.mxu0
    %v9352 = vadd.f32 %v9303, %v9351
    %9353 = vmatmul.bf16.gmra.mxu0 %v9122
    %v9354 = vpop.f32.mrf.mxu0
    %v9355 = vadd.f32 %v9306, %v9354
    %v9356 = vpop.f32.mrf.mxu0
    %v9357 = vadd.f32 %v9308, %v9356
    %9358 = vmatmul.bf16.gmra.mxu0 %v9125
    %v9359 = vpop.f32.mrf.mxu0
    %v9360 = vadd.f32 %v9311, %v9359
    %v9361 = vpop.f32.mrf.mxu0
    %v9362 = vadd.f32 %v9313, %v9361
    %9363 = vmatmul.bf16.gmra.mxu0 %v9128
    %v9364 = vpop.f32.mrf.mxu0
    %v9365 = vadd.f32 %v9316, %v9364
    %v9366 = vpop.f32.mrf.mxu0
    %v9367 = vadd.f32 %v9318, %v9366
    %9368 = vmatmul.bf16.gmra.mxu0 %v9131
    %v9369 = vpop.f32.mrf.mxu0
    %v9370 = vadd.f32 %v9321, %v9369
    %v9371 = vpop.f32.mrf.mxu0
    %v9372 = vadd.f32 %v9323, %v9371
    %9373 = vmatmul.bf16.gmra.mxu0 %v9134
    %v9374 = vpop.f32.mrf.mxu0
    %v9375 = vadd.f32 %v9326, %v9374
    %v9376 = vpop.f32.mrf.mxu0
    %v9377 = vadd.f32 %v9328, %v9376
    %9378 = vmatmul.bf16.gmra.mxu0 %v9137
    %v9379 = vpop.f32.mrf.mxu0
    %v9380 = vadd.f32 %v9331, %v9379
    %v9381 = vpop.f32.mrf.mxu0
    %v9382 = vadd.f32 %v9333, %v9381
    %9383 = vdwg.mxu0
    %v9384 = vmax.f32 %v9345, 0.0
    %v9385 = vmax.f32 %v9347, 0.0
    %v9386 = vmax.f32 %v9350, 0.0
    %v9387 = vmax.f32 %v9352, 0.0
    %v9388 = vmax.f32 %v9355, 0.0
    %v9389 = vmax.f32 %v9357, 0.0
    %v9390 = vmax.f32 %v9360, 0.0
    %v9391 = vmax.f32 %v9362, 0.0
    %v9392 = vmax.f32 %v9365, 0.0
    %v9393 = vmax.f32 %v9367, 0.0
    %v9394 = vmax.f32 %v9370, 0.0
    %v9395 = vmax.f32 %v9372, 0.0
    %v9396 = vmax.f32 %v9375, 0.0
    %v9397 = vmax.f32 %v9377, 0.0
    %v9398 = vmax.f32 %v9380, 0.0
    %v9399 = vmax.f32 %v9382, 0.0
    %v9400 = vmax.f32 %v9384, %v9385
    %v9401 = vmax.f32 %v9386, %v9387
    %v9402 = vmax.f32 %v9388, %v9389
    %v9403 = vmax.f32 %v9390, %v9391
    %v9404 = vmax.f32 %v9392, %v9393
    %v9405 = vmax.f32 %v9394, %v9395
    %v9406 = vmax.f32 %v9396, %v9397
    %v9407 = vmax.f32 %v9398, %v9399
    %9408 = vst.msk [vmem:[#allocation8] sm:$0xff] %vm7704, %v9400
    %9409 = vst.msk [vmem:[#allocation8 + $0x8] sm:$0xff] %vm7704, %v9401
    %9410 = vst.msk [vmem:[#allocation8 + $0x10] sm:$0xff] %vm7704, %v9402
    %9411 = vst.msk [vmem:[#allocation8 + $0x18] sm:$0xff] %vm7704, %v9403
    %9412 = vst.msk [vmem:[#allocation8 + $0x20] sm:$0xff] %vm7704, %v9404
    %9413 = vst.msk [vmem:[#allocation8 + $0x28] sm:$0xff] %vm7704, %v9405
    %9414 = vst.msk [vmem:[#allocation8 + $0x30] sm:$0xff] %vm7704, %v9406
    %9415 = vst.msk [vmem:[#allocation8 + $0x38] sm:$0xff] %vm7704, %v9407
    %v9416 = vld [vmem:[#allocation8] ss:$2 sm:$0xff]
    %s9417 = scalar_lea.vmem [#allocation8], 16
    %v9418 = vld [vmem:[%s9417] ss:$2 sm:$0xff]
    %s9419 = scalar_lea.vmem [#allocation8], 32
    %v9420 = vld [vmem:[%s9419] ss:$2 sm:$0xff]
    %s9421 = scalar_lea.vmem [#allocation8], 48
    %v9422 = vld [vmem:[%s9421] ss:$2 sm:$0xff]
    %s9423 = scalar_lea.vmem [#allocation8], 1
    %v9424 = vld [vmem:[%s9423] ss:$2 sm:$0xff]
    %s9425 = scalar_lea.vmem [#allocation8], 17
    %v9426 = vld [vmem:[%s9425] ss:$2 sm:$0xff]
    %s9427 = scalar_lea.vmem [#allocation8], 33
    %v9428 = vld [vmem:[%s9427] ss:$2 sm:$0xff]
    %s9429 = scalar_lea.vmem [#allocation8], 49
    %v9430 = vld [vmem:[%s9429] ss:$2 sm:$0xff]
    %v9431 = vmax.f32 %v9416, %v9424
    %v9432 = vmax.f32 %v9418, %v9426
    %v9433 = vmax.f32 %v9420, %v9428
    %v9434 = vmax.f32 %v9422, %v9430
    %9435 = vst.msk [vmem:[#allocation9] sm:$0xff] %vm7704, %v9431
    %9436 = vst.msk [vmem:[#allocation9 + $0x8] sm:$0xff] %vm7704, %v9432
    %9437 = vst.msk [vmem:[#allocation9 + $0x10] sm:$0xff] %vm7704, %v9433
    %9438 = vst.msk [vmem:[#allocation9 + $0x18] sm:$0xff] %vm7704, %v9434
    %v9439 = vld [vmem:[#allocation9] ss:$16 sm:$0x3]
    %v9440 = vpack.c.bf16 %v9439, %v9439
    %9441 = vst.msk [vmem:[#allocation10] sm:$0x1] %vm7826, %v9440
    %s9442 = scalar_lea.vmem [#allocation9], 1
    %v9443 = vld [vmem:[%s9442] ss:$16 sm:$0x3]
    %v9444 = vpack.c.bf16 %v9443, %v9443
    %v9446 = vrot.slane %v9444, 3
    %vm9447 = vcmask 1040384
    %v9450 = vsel %vm9447, %v9444, %v9446
    %9452 = vrot.lane.b32.xlu0 %v9450, 64
    %v9453 = vpop.permute.xlu0 %9452
    %vm9455 = vcmask 1040896
    %9456 = vst.msk [vmem:[#allocation10] sm:$0x1] %vm9455, %v9453
    %s9457 = scalar_lea.vmem [#allocation9], 2
    %v9458 = vld [vmem:[%s9457] ss:$16 sm:$0x3]
    %v9459 = vpack.c.bf16 %v9458, %v9458
    %9460 = vst.msk [vmem:[#allocation10 + $0x1] sm:$0x1] %vm7826, %v9459
    %s9461 = scalar_lea.vmem [#allocation9], 3
    %v9462 = vld [vmem:[%s9461] ss:$16 sm:$0x3]
    %v9463 = vpack.c.bf16 %v9462, %v9462
    %v9465 = vrot.slane %v9463, 3
    %v9468 = vsel %vm9447, %v9463, %v9465
    %9470 = vrot.lane.b32.xlu0 %v9468, 64
    %v9471 = vpop.permute.xlu0 %9470
    %9473 = vst.msk [vmem:[#allocation10 + $0x1] sm:$0x1] %vm9455, %v9471
    %s9474 = scalar_lea.vmem [#allocation9], 4
    %v9475 = vld [vmem:[%s9474] ss:$16 sm:$0x3]
    %v9476 = vpack.c.bf16 %v9475, %v9475
    %9477 = vst.msk [vmem:[#allocation10 + $0x2] sm:$0x1] %vm7826, %v9476
    %s9478 = scalar_lea.vmem [#allocation9], 5
    %v9479 = vld [vmem:[%s9478] ss:$16 sm:$0x3]
    %v9480 = vpack.c.bf16 %v9479, %v9479
    %v9482 = vrot.slane %v9480, 3
    %v9485 = vsel %vm9447, %v9480, %v9482
    %9487 = vrot.lane.b32.xlu0 %v9485, 64
    %v9488 = vpop.permute.xlu0 %9487
    %9490 = vst.msk [vmem:[#allocation10 + $0x2] sm:$0x1] %vm9455, %v9488
    %s9491 = scalar_lea.vmem [#allocation9], 6
    %v9492 = vld [vmem:[%s9491] ss:$16 sm:$0x3]
    %v9493 = vpack.c.bf16 %v9492, %v9492
    %9494 = vst.msk [vmem:[#allocation10 + $0x3] sm:$0x1] %vm7826, %v9493
    %s9495 = scalar_lea.vmem [#allocation9], 7
    %v9496 = vld [vmem:[%s9495] ss:$16 sm:$0x3]
    %v9497 = vpack.c.bf16 %v9496, %v9496
    %v9499 = vrot.slane %v9497, 3
    %v9502 = vsel %vm9447, %v9497, %v9499
    %9504 = vrot.lane.b32.xlu0 %v9502, 64
    %v9505 = vpop.permute.xlu0 %9504
    %9507 = vst.msk [vmem:[#allocation10 + $0x3] sm:$0x1] %vm9455, %v9505
    %s9508 = scalar_lea.vmem [#allocation9], 8
    %v9509 = vld [vmem:[%s9508] ss:$16 sm:$0x3]
    %v9510 = vpack.c.bf16 %v9509, %v9509
    %9511 = vst.msk [vmem:[#allocation10 + $0x4] sm:$0x1] %vm7826, %v9510
    %s9512 = scalar_lea.vmem [#allocation9], 9
    %v9513 = vld [vmem:[%s9512] ss:$16 sm:$0x3]
    %v9514 = vpack.c.bf16 %v9513, %v9513
    %v9516 = vrot.slane %v9514, 3
    %v9519 = vsel %vm9447, %v9514, %v9516
    %9521 = vrot.lane.b32.xlu0 %v9519, 64
    %v9522 = vpop.permute.xlu0 %9521
    %9524 = vst.msk [vmem:[#allocation10 + $0x4] sm:$0x1] %vm9455, %v9522
    %s9525 = scalar_lea.vmem [#allocation9], 10
    %v9526 = vld [vmem:[%s9525] ss:$16 sm:$0x3]
    %v9527 = vpack.c.bf16 %v9526, %v9526
    %9528 = vst.msk [vmem:[#allocation10 + $0x5] sm:$0x1] %vm7826, %v9527
    %s9529 = scalar_lea.vmem [#allocation9], 11
    %v9530 = vld [vmem:[%s9529] ss:$16 sm:$0x3]
    %v9531 = vpack.c.bf16 %v9530, %v9530
    %v9533 = vrot.slane %v9531, 3
    %v9536 = vsel %vm9447, %v9531, %v9533
    %9538 = vrot.lane.b32.xlu0 %v9536, 64
    %v9539 = vpop.permute.xlu0 %9538
    %9541 = vst.msk [vmem:[#allocation10 + $0x5] sm:$0x1] %vm9455, %v9539
    %s9542 = scalar_lea.vmem [#allocation9], 12
    %v9543 = vld [vmem:[%s9542] ss:$16 sm:$0x3]
    %v9544 = vpack.c.bf16 %v9543, %v9543
    %9545 = vst.msk [vmem:[#allocation10 + $0x6] sm:$0x1] %vm7826, %v9544
    %s9546 = scalar_lea.vmem [#allocation9], 13
    %v9547 = vld [vmem:[%s9546] ss:$16 sm:$0x3]
    %v9548 = vpack.c.bf16 %v9547, %v9547
    %v9550 = vrot.slane %v9548, 3
    %v9553 = vsel %vm9447, %v9548, %v9550
    %9555 = vrot.lane.b32.xlu0 %v9553, 64
    %v9556 = vpop.permute.xlu0 %9555
    %9558 = vst.msk [vmem:[#allocation10 + $0x6] sm:$0x1] %vm9455, %v9556
    %s9559 = scalar_lea.vmem [#allocation9], 14
    %v9560 = vld [vmem:[%s9559] ss:$16 sm:$0x3]
    %v9561 = vpack.c.bf16 %v9560, %v9560
    %9562 = vst.msk [vmem:[#allocation10 + $0x7] sm:$0x1] %vm7826, %v9561
    %s9563 = scalar_lea.vmem [#allocation9], 15
    %v9564 = vld [vmem:[%s9563] ss:$16 sm:$0x3]
    %v9565 = vpack.c.bf16 %v9564, %v9564
    %v9567 = vrot.slane %v9565, 3
    %v9570 = vsel %vm9447, %v9565, %v9567
    %9572 = vrot.lane.b32.xlu0 %v9570, 64
    %v9573 = vpop.permute.xlu0 %9572
    %9575 = vst.msk [vmem:[#allocation10 + $0x7] sm:$0x1] %vm9455, %v9573
    %v9576 = vld [vmem:[#allocation10] sm:$0xff]
    %v9577 = vld [vmem:[%s7] sm:$0xff]
    %v9578 = vld [vmem:[%s7 + $0x8] sm:$0xff]
    %v9579 = vld [vmem:[%s7 + $0x10] sm:$0xff]
    %v9580 = vld [vmem:[%s7 + $0x18] sm:$0xff]
    %v9581 = vld [vmem:[%s7 + $0x20] sm:$0xff]
    %v9582 = vld [vmem:[%s7 + $0x28] sm:$0xff]
    %v9583 = vld [vmem:[%s7 + $0x30] sm:$0xff]
    %v9584 = vld [vmem:[%s7 + $0x38] sm:$0xff]
    %v9585 = vld [vmem:[%s7 + $0x40] sm:$0xff]
    %v9586 = vld [vmem:[%s7 + $0x48] sm:$0xff]
    %v9587 = vld [vmem:[%s7 + $0x50] sm:$0xff]
    %v9588 = vld [vmem:[%s7 + $0x58] sm:$0xff]
    %v9589 = vld [vmem:[%s7 + $0x60] sm:$0xff]
    %v9590 = vld [vmem:[%s7 + $0x68] sm:$0xff]
    %v9591 = vld [vmem:[%s7 + $0x70] sm:$0xff]
    %v9592 = vld [vmem:[%s7 + $0x78] sm:$0xff]
    %v9593 = vld [vmem:[%s7 + $0x80] sm:$0xff]
    %v9594 = vld [vmem:[%s7 + $0x88] sm:$0xff]
    %v9595 = vld [vmem:[%s7 + $0x90] sm:$0xff]
    %v9596 = vld [vmem:[%s7 + $0x98] sm:$0xff]
    %v9597 = vld [vmem:[%s7 + $0xa0] sm:$0xff]
    %v9598 = vld [vmem:[%s7 + $0xa8] sm:$0xff]
    %v9599 = vld [vmem:[%s7 + $0xb0] sm:$0xff]
    %v9600 = vld [vmem:[%s7 + $0xb8] sm:$0xff]
    %v9601 = vld [vmem:[%s7 + $0xc0] sm:$0xff]
    %v9602 = vld [vmem:[%s7 + $0xc8] sm:$0xff]
    %v9603 = vld [vmem:[%s7 + $0xd0] sm:$0xff]
    %v9604 = vld [vmem:[%s7 + $0xd8] sm:$0xff]
    %v9605 = vld [vmem:[%s7 + $0xe0] sm:$0xff]
    %v9606 = vld [vmem:[%s7 + $0xe8] sm:$0xff]
    %v9607 = vld [vmem:[%s7 + $0xf0] sm:$0xff]
    %v9608 = vld [vmem:[%s7 + $0xf8] sm:$0xff]
    %v9609 = vld [vmem:[%s7 + $0x100] sm:$0xff]
    %v9610 = vld [vmem:[%s7 + $0x108] sm:$0xff]
    %v9611 = vld [vmem:[%s7 + $0x110] sm:$0xff]
    %v9612 = vld [vmem:[%s7 + $0x118] sm:$0xff]
    %v9613 = vld [vmem:[%s7 + $0x120] sm:$0xff]
    %v9614 = vld [vmem:[%s7 + $0x128] sm:$0xff]
    %v9615 = vld [vmem:[%s7 + $0x130] sm:$0xff]
    %v9616 = vld [vmem:[%s7 + $0x138] sm:$0xff]
    %v9617 = vld [vmem:[%s7 + $0x140] sm:$0xff]
    %v9618 = vld [vmem:[%s7 + $0x148] sm:$0xff]
    %v9619 = vld [vmem:[%s7 + $0x150] sm:$0xff]
    %v9620 = vld [vmem:[%s7 + $0x158] sm:$0xff]
    %v9621 = vld [vmem:[%s7 + $0x160] sm:$0xff]
    %v9622 = vld [vmem:[%s7 + $0x168] sm:$0xff]
    %v9623 = vld [vmem:[%s7 + $0x170] sm:$0xff]
    %v9624 = vld [vmem:[%s7 + $0x178] sm:$0xff]
    %v9625 = vld [vmem:[%s7 + $0x180] sm:$0xff]
    %v9626 = vld [vmem:[%s7 + $0x188] sm:$0xff]
    %v9627 = vld [vmem:[%s7 + $0x190] sm:$0xff]
    %v9628 = vld [vmem:[%s7 + $0x198] sm:$0xff]
    %v9629 = vld [vmem:[%s7 + $0x1a0] sm:$0xff]
    %v9630 = vld [vmem:[%s7 + $0x1a8] sm:$0xff]
    %v9631 = vld [vmem:[%s7 + $0x1b0] sm:$0xff]
    %v9632 = vld [vmem:[%s7 + $0x1b8] sm:$0xff]
    %v9633 = vld [vmem:[%s7 + $0x1c0] sm:$0xff]
    %v9634 = vld [vmem:[%s7 + $0x1c8] sm:$0xff]
    %v9635 = vld [vmem:[%s7 + $0x1d0] sm:$0xff]
    %v9636 = vld [vmem:[%s7 + $0x1d8] sm:$0xff]
    %v9637 = vld [vmem:[%s7 + $0x1e0] sm:$0xff]
    %v9638 = vld [vmem:[%s7 + $0x1e8] sm:$0xff]
    %v9639 = vld [vmem:[%s7 + $0x1f0] sm:$0xff]
    %v9640 = vld [vmem:[%s7 + $0x1f8] sm:$0xff]
    %v9641 = vld [vmem:[%s7 + $0x200] sm:$0xff]
    %v9642 = vld [vmem:[%s7 + $0x208] sm:$0xff]
    %v9643 = vld [vmem:[%s7 + $0x210] sm:$0xff]
    %v9644 = vld [vmem:[%s7 + $0x218] sm:$0xff]
    %v9645 = vld [vmem:[%s7 + $0x220] sm:$0xff]
    %v9646 = vld [vmem:[%s7 + $0x228] sm:$0xff]
    %v9647 = vld [vmem:[%s7 + $0x230] sm:$0xff]
    %v9648 = vld [vmem:[%s7 + $0x238] sm:$0xff]
    %v9649 = vld [vmem:[%s7 + $0x240] sm:$0xff]
    %v9650 = vld [vmem:[%s7 + $0x248] sm:$0xff]
    %v9651 = vld [vmem:[%s7 + $0x250] sm:$0xff]
    %v9652 = vld [vmem:[%s7 + $0x258] sm:$0xff]
    %v9653 = vld [vmem:[%s7 + $0x260] sm:$0xff]
    %v9654 = vld [vmem:[%s7 + $0x268] sm:$0xff]
    %v9655 = vld [vmem:[%s7 + $0x270] sm:$0xff]
    %v9656 = vld [vmem:[%s7 + $0x278] sm:$0xff]
    %v9657 = vld [vmem:[%s7 + $0x280] sm:$0xff]
    %v9658 = vld [vmem:[%s7 + $0x288] sm:$0xff]
    %v9659 = vld [vmem:[%s7 + $0x290] sm:$0xff]
    %v9660 = vld [vmem:[%s7 + $0x298] sm:$0xff]
    %v9661 = vld [vmem:[%s7 + $0x2a0] sm:$0xff]
    %v9662 = vld [vmem:[%s7 + $0x2a8] sm:$0xff]
    %v9663 = vld [vmem:[%s7 + $0x2b0] sm:$0xff]
    %v9664 = vld [vmem:[%s7 + $0x2b8] sm:$0xff]
    %v9665 = vld [vmem:[%s7 + $0x2c0] sm:$0xff]
    %v9666 = vld [vmem:[%s7 + $0x2c8] sm:$0xff]
    %v9667 = vld [vmem:[%s7 + $0x2d0] sm:$0xff]
    %v9668 = vld [vmem:[%s7 + $0x2d8] sm:$0xff]
    %v9669 = vld [vmem:[%s7 + $0x2e0] sm:$0xff]
    %v9670 = vld [vmem:[%s7 + $0x2e8] sm:$0xff]
    %v9671 = vld [vmem:[%s7 + $0x2f0] sm:$0xff]
    %v9672 = vld [vmem:[%s7 + $0x2f8] sm:$0xff]
    %v9673 = vld [vmem:[%s7 + $0x300] sm:$0xff]
    %v9674 = vld [vmem:[%s7 + $0x308] sm:$0xff]
    %v9675 = vld [vmem:[%s7 + $0x310] sm:$0xff]
    %v9676 = vld [vmem:[%s7 + $0x318] sm:$0xff]
    %v9677 = vld [vmem:[%s7 + $0x320] sm:$0xff]
    %v9678 = vld [vmem:[%s7 + $0x328] sm:$0xff]
    %v9679 = vld [vmem:[%s7 + $0x330] sm:$0xff]
    %v9680 = vld [vmem:[%s7 + $0x338] sm:$0xff]
    %v9681 = vld [vmem:[%s7 + $0x340] sm:$0xff]
    %v9682 = vld [vmem:[%s7 + $0x348] sm:$0xff]
    %v9683 = vld [vmem:[%s7 + $0x350] sm:$0xff]
    %v9684 = vld [vmem:[%s7 + $0x358] sm:$0xff]
    %v9685 = vld [vmem:[%s7 + $0x360] sm:$0xff]
    %v9686 = vld [vmem:[%s7 + $0x368] sm:$0xff]
    %v9687 = vld [vmem:[%s7 + $0x370] sm:$0xff]
    %v9688 = vld [vmem:[%s7 + $0x378] sm:$0xff]
    %v9689 = vld [vmem:[%s7 + $0x380] sm:$0xff]
    %v9690 = vld [vmem:[%s7 + $0x388] sm:$0xff]
    %v9691 = vld [vmem:[%s7 + $0x390] sm:$0xff]
    %v9692 = vld [vmem:[%s7 + $0x398] sm:$0xff]
    %v9693 = vld [vmem:[%s7 + $0x3a0] sm:$0xff]
    %v9694 = vld [vmem:[%s7 + $0x3a8] sm:$0xff]
    %v9695 = vld [vmem:[%s7 + $0x3b0] sm:$0xff]
    %v9696 = vld [vmem:[%s7 + $0x3b8] sm:$0xff]
    %v9697 = vld [vmem:[%s7 + $0x3c0] sm:$0xff]
    %v9698 = vld [vmem:[%s7 + $0x3c8] sm:$0xff]
    %v9699 = vld [vmem:[%s7 + $0x3d0] sm:$0xff]
    %v9700 = vld [vmem:[%s7 + $0x3d8] sm:$0xff]
    %v9701 = vld [vmem:[%s7 + $0x3e0] sm:$0xff]
    %v9702 = vld [vmem:[%s7 + $0x3e8] sm:$0xff]
    %v9703 = vld [vmem:[%s7 + $0x3f0] sm:$0xff]
    %v9704 = vld [vmem:[%s7 + $0x3f8] sm:$0xff]
    %v9705 = vld [vmem:[%s7 + $0x400] sm:$0xff]
    %v9706 = vld [vmem:[%s7 + $0x408] sm:$0xff]
    %v9707 = vld [vmem:[%s7 + $0x410] sm:$0xff]
    %v9708 = vld [vmem:[%s7 + $0x418] sm:$0xff]
    %v9709 = vld [vmem:[%s7 + $0x420] sm:$0xff]
    %v9710 = vld [vmem:[%s7 + $0x428] sm:$0xff]
    %v9711 = vld [vmem:[%s7 + $0x430] sm:$0xff]
    %v9712 = vld [vmem:[%s7 + $0x438] sm:$0xff]
    %v9713 = vld [vmem:[%s7 + $0x440] sm:$0xff]
    %v9714 = vld [vmem:[%s7 + $0x448] sm:$0xff]
    %v9715 = vld [vmem:[%s7 + $0x450] sm:$0xff]
    %v9716 = vld [vmem:[%s7 + $0x458] sm:$0xff]
    %v9717 = vld [vmem:[%s7 + $0x460] sm:$0xff]
    %v9718 = vld [vmem:[%s7 + $0x468] sm:$0xff]
    %v9719 = vld [vmem:[%s7 + $0x470] sm:$0xff]
    %v9720 = vld [vmem:[%s7 + $0x478] sm:$0xff]
    %v9721 = vld [vmem:[%s7 + $0x480] sm:$0xff]
    %v9722 = vld [vmem:[%s7 + $0x488] sm:$0xff]
    %v9723 = vld [vmem:[%s7 + $0x490] sm:$0xff]
    %v9724 = vld [vmem:[%s7 + $0x498] sm:$0xff]
    %v9725 = vld [vmem:[%s7 + $0x4a0] sm:$0xff]
    %v9726 = vld [vmem:[%s7 + $0x4a8] sm:$0xff]
    %v9727 = vld [vmem:[%s7 + $0x4b0] sm:$0xff]
    %v9728 = vld [vmem:[%s7 + $0x4b8] sm:$0xff]
    %v9729 = vld [vmem:[%s7 + $0x4c0] sm:$0xff]
    %v9730 = vld [vmem:[%s7 + $0x4c8] sm:$0xff]
    %v9731 = vld [vmem:[%s7 + $0x4d0] sm:$0xff]
    %v9732 = vld [vmem:[%s7 + $0x4d8] sm:$0xff]
    %v9733 = vld [vmem:[%s7 + $0x4e0] sm:$0xff]
    %v9734 = vld [vmem:[%s7 + $0x4e8] sm:$0xff]
    %v9735 = vld [vmem:[%s7 + $0x4f0] sm:$0xff]
    %v9736 = vld [vmem:[%s7 + $0x4f8] sm:$0xff]
    %v9737 = vld [vmem:[%s7 + $0x500] sm:$0xff]
    %v9738 = vld [vmem:[%s7 + $0x508] sm:$0xff]
    %v9739 = vld [vmem:[%s7 + $0x510] sm:$0xff]
    %v9740 = vld [vmem:[%s7 + $0x518] sm:$0xff]
    %v9741 = vld [vmem:[%s7 + $0x520] sm:$0xff]
    %v9742 = vld [vmem:[%s7 + $0x528] sm:$0xff]
    %v9743 = vld [vmem:[%s7 + $0x530] sm:$0xff]
    %v9744 = vld [vmem:[%s7 + $0x538] sm:$0xff]
    %v9745 = vld [vmem:[%s7 + $0x540] sm:$0xff]
    %v9746 = vld [vmem:[%s7 + $0x548] sm:$0xff]
    %v9747 = vld [vmem:[%s7 + $0x550] sm:$0xff]
    %v9748 = vld [vmem:[%s7 + $0x558] sm:$0xff]
    %v9749 = vld [vmem:[%s7 + $0x560] sm:$0xff]
    %v9750 = vld [vmem:[%s7 + $0x568] sm:$0xff]
    %v9751 = vld [vmem:[%s7 + $0x570] sm:$0xff]
    %v9752 = vld [vmem:[%s7 + $0x578] sm:$0xff]
    %v9753 = vld [vmem:[%s7 + $0x580] sm:$0xff]
    %v9754 = vld [vmem:[%s7 + $0x588] sm:$0xff]
    %v9755 = vld [vmem:[%s7 + $0x590] sm:$0xff]
    %v9756 = vld [vmem:[%s7 + $0x598] sm:$0xff]
    %v9757 = vld [vmem:[%s7 + $0x5a0] sm:$0xff]
    %v9758 = vld [vmem:[%s7 + $0x5a8] sm:$0xff]
    %v9759 = vld [vmem:[%s7 + $0x5b0] sm:$0xff]
    %v9760 = vld [vmem:[%s7 + $0x5b8] sm:$0xff]
    %v9761 = vld [vmem:[%s7 + $0x5c0] sm:$0xff]
    %v9762 = vld [vmem:[%s7 + $0x5c8] sm:$0xff]
    %v9763 = vld [vmem:[%s7 + $0x5d0] sm:$0xff]
    %v9764 = vld [vmem:[%s7 + $0x5d8] sm:$0xff]
    %v9765 = vld [vmem:[%s7 + $0x5e0] sm:$0xff]
    %v9766 = vld [vmem:[%s7 + $0x5e8] sm:$0xff]
    %v9767 = vld [vmem:[%s7 + $0x5f0] sm:$0xff]
    %v9768 = vld [vmem:[%s7 + $0x5f8] sm:$0xff]
    %v9769 = vld [vmem:[%s7 + $0x600] sm:$0xff]
    %v9770 = vld [vmem:[%s7 + $0x608] sm:$0xff]
    %v9771 = vld [vmem:[%s7 + $0x610] sm:$0xff]
    %v9772 = vld [vmem:[%s7 + $0x618] sm:$0xff]
    %v9773 = vld [vmem:[%s7 + $0x620] sm:$0xff]
    %v9774 = vld [vmem:[%s7 + $0x628] sm:$0xff]
    %v9775 = vld [vmem:[%s7 + $0x630] sm:$0xff]
    %v9776 = vld [vmem:[%s7 + $0x638] sm:$0xff]
    %v9777 = vld [vmem:[%s7 + $0x640] sm:$0xff]
    %v9778 = vld [vmem:[%s7 + $0x648] sm:$0xff]
    %v9779 = vld [vmem:[%s7 + $0x650] sm:$0xff]
    %v9780 = vld [vmem:[%s7 + $0x658] sm:$0xff]
    %v9781 = vld [vmem:[%s7 + $0x660] sm:$0xff]
    %v9782 = vld [vmem:[%s7 + $0x668] sm:$0xff]
    %v9783 = vld [vmem:[%s7 + $0x670] sm:$0xff]
    %v9784 = vld [vmem:[%s7 + $0x678] sm:$0xff]
    %v9785 = vld [vmem:[%s7 + $0x680] sm:$0xff]
    %v9786 = vld [vmem:[%s7 + $0x688] sm:$0xff]
    %v9787 = vld [vmem:[%s7 + $0x690] sm:$0xff]
    %v9788 = vld [vmem:[%s7 + $0x698] sm:$0xff]
    %v9789 = vld [vmem:[%s7 + $0x6a0] sm:$0xff]
    %v9790 = vld [vmem:[%s7 + $0x6a8] sm:$0xff]
    %v9791 = vld [vmem:[%s7 + $0x6b0] sm:$0xff]
    %v9792 = vld [vmem:[%s7 + $0x6b8] sm:$0xff]
    %v9793 = vld [vmem:[%s7 + $0x6c0] sm:$0xff]
    %v9794 = vld [vmem:[%s7 + $0x6c8] sm:$0xff]
    %v9795 = vld [vmem:[%s7 + $0x6d0] sm:$0xff]
    %v9796 = vld [vmem:[%s7 + $0x6d8] sm:$0xff]
    %v9797 = vld [vmem:[%s7 + $0x6e0] sm:$0xff]
    %v9798 = vld [vmem:[%s7 + $0x6e8] sm:$0xff]
    %v9799 = vld [vmem:[%s7 + $0x6f0] sm:$0xff]
    %v9800 = vld [vmem:[%s7 + $0x6f8] sm:$0xff]
    %v9801 = vld [vmem:[%s7 + $0x700] sm:$0xff]
    %v9802 = vld [vmem:[%s7 + $0x708] sm:$0xff]
    %v9803 = vld [vmem:[%s7 + $0x710] sm:$0xff]
    %v9804 = vld [vmem:[%s7 + $0x718] sm:$0xff]
    %v9805 = vld [vmem:[%s7 + $0x720] sm:$0xff]
    %v9806 = vld [vmem:[%s7 + $0x728] sm:$0xff]
    %v9807 = vld [vmem:[%s7 + $0x730] sm:$0xff]
    %v9808 = vld [vmem:[%s7 + $0x738] sm:$0xff]
    %v9809 = vld [vmem:[%s7 + $0x740] sm:$0xff]
    %v9810 = vld [vmem:[%s7 + $0x748] sm:$0xff]
    %v9811 = vld [vmem:[%s7 + $0x750] sm:$0xff]
    %v9812 = vld [vmem:[%s7 + $0x758] sm:$0xff]
    %v9813 = vld [vmem:[%s7 + $0x760] sm:$0xff]
    %v9814 = vld [vmem:[%s7 + $0x768] sm:$0xff]
    %v9815 = vld [vmem:[%s7 + $0x770] sm:$0xff]
    %v9816 = vld [vmem:[%s7 + $0x778] sm:$0xff]
    %v9817 = vld [vmem:[%s7 + $0x780] sm:$0xff]
    %v9818 = vld [vmem:[%s7 + $0x788] sm:$0xff]
    %v9819 = vld [vmem:[%s7 + $0x790] sm:$0xff]
    %v9820 = vld [vmem:[%s7 + $0x798] sm:$0xff]
    %v9821 = vld [vmem:[%s7 + $0x7a0] sm:$0xff]
    %v9822 = vld [vmem:[%s7 + $0x7a8] sm:$0xff]
    %v9823 = vld [vmem:[%s7 + $0x7b0] sm:$0xff]
    %v9824 = vld [vmem:[%s7 + $0x7b8] sm:$0xff]
    %v9825 = vld [vmem:[%s7 + $0x7c0] sm:$0xff]
    %v9826 = vld [vmem:[%s7 + $0x7c8] sm:$0xff]
    %v9827 = vld [vmem:[%s7 + $0x7d0] sm:$0xff]
    %v9828 = vld [vmem:[%s7 + $0x7d8] sm:$0xff]
    %v9829 = vld [vmem:[%s7 + $0x7e0] sm:$0xff]
    %v9830 = vld [vmem:[%s7 + $0x7e8] sm:$0xff]
    %v9831 = vld [vmem:[%s7 + $0x7f0] sm:$0xff]
    %v9832 = vld [vmem:[%s7 + $0x7f8] sm:$0xff]
    %v9833 = vld [vmem:[%s8] sm:$0xf]
    %v9835 = vperm.slane %v9833, 0
    %v9836 = vperm.slane %v9833, 1
    %v9837 = vperm.slane %v9833, 2
    %v9838 = vperm.slane %v9833, 3
    %9844 = vst [vmem:[#allocation1] ss:$9 sm:$0xff] %v9576
    %v9845 = vld [vmem:[#allocation1] sm:$0xff]
    %v9846 = vld [vmem:[#allocation1 + $0x9] sm:$0xff]
    %v9847 = vld [vmem:[#allocation1 + $0x12] sm:$0xff]
    %v9848 = vld [vmem:[#allocation1 + $0x1b] sm:$0xff]
    %v9849 = vld [vmem:[#allocation1 + $0x24] sm:$0xff]
    %v9850 = vld [vmem:[#allocation1 + $0x2d] sm:$0xff]
    %v9851 = vld [vmem:[#allocation1 + $0x36] sm:$0xff]
    %v9852 = vld [vmem:[#allocation1 + $0x3f] sm:$0xff]
    %v10117 = vunpack.c.l.b16 %v9577
    %v10118 = vunpack.c.h.b16 %v9577
    %v10119 = vunpack.c.l.b16 %v9578
    %v10120 = vunpack.c.h.b16 %v9578
    %v10121 = vunpack.c.l.b16 %v9579
    %v10122 = vunpack.c.h.b16 %v9579
    %v10123 = vunpack.c.l.b16 %v9580
    %v10124 = vunpack.c.h.b16 %v9580
    %v10125 = vunpack.c.l.b16 %v9581
    %v10126 = vunpack.c.h.b16 %v9581
    %v10127 = vunpack.c.l.b16 %v9582
    %v10128 = vunpack.c.h.b16 %v9582
    %v10129 = vunpack.c.l.b16 %v9583
    %v10130 = vunpack.c.h.b16 %v9583
    %v10131 = vunpack.c.l.b16 %v9584
    %v10132 = vunpack.c.h.b16 %v9584
    %v10133 = vunpack.c.l.b16 %v9585
    %v10134 = vunpack.c.h.b16 %v9585
    %v10135 = vunpack.c.l.b16 %v9586
    %v10136 = vunpack.c.h.b16 %v9586
    %v10137 = vunpack.c.l.b16 %v9587
    %v10138 = vunpack.c.h.b16 %v9587
    %v10139 = vunpack.c.l.b16 %v9588
    %v10140 = vunpack.c.h.b16 %v9588
    %v10141 = vunpack.c.l.b16 %v9589
    %v10142 = vunpack.c.h.b16 %v9589
    %v10143 = vunpack.c.l.b16 %v9590
    %v10144 = vunpack.c.h.b16 %v9590
    %v10145 = vunpack.c.l.b16 %v9591
    %v10146 = vunpack.c.h.b16 %v9591
    %v10147 = vunpack.c.l.b16 %v9592
    %v10148 = vunpack.c.h.b16 %v9592
    %v10149 = vunpack.c.l.b16 %v9593
    %v10150 = vunpack.c.h.b16 %v9593
    %v10151 = vunpack.c.l.b16 %v9594
    %v10152 = vunpack.c.h.b16 %v9594
    %v10153 = vunpack.c.l.b16 %v9595
    %v10154 = vunpack.c.h.b16 %v9595
    %v10155 = vunpack.c.l.b16 %v9596
    %v10156 = vunpack.c.h.b16 %v9596
    %v10157 = vunpack.c.l.b16 %v9597
    %v10158 = vunpack.c.h.b16 %v9597
    %v10159 = vunpack.c.l.b16 %v9598
    %v10160 = vunpack.c.h.b16 %v9598
    %v10161 = vunpack.c.l.b16 %v9599
    %v10162 = vunpack.c.h.b16 %v9599
    %v10163 = vunpack.c.l.b16 %v9600
    %v10164 = vunpack.c.h.b16 %v9600
    %v10165 = vunpack.c.l.b16 %v9601
    %v10166 = vunpack.c.h.b16 %v9601
    %v10167 = vunpack.c.l.b16 %v9602
    %v10168 = vunpack.c.h.b16 %v9602
    %v10169 = vunpack.c.l.b16 %v9603
    %v10170 = vunpack.c.h.b16 %v9603
    %v10171 = vunpack.c.l.b16 %v9604
    %v10172 = vunpack.c.h.b16 %v9604
    %v10173 = vunpack.c.l.b16 %v9605
    %v10174 = vunpack.c.h.b16 %v9605
    %v10175 = vunpack.c.l.b16 %v9606
    %v10176 = vunpack.c.h.b16 %v9606
    %v10177 = vunpack.c.l.b16 %v9607
    %v10178 = vunpack.c.h.b16 %v9607
    %v10179 = vunpack.c.l.b16 %v9608
    %v10180 = vunpack.c.h.b16 %v9608
    %v10181 = vunpack.c.l.b16 %v9609
    %v10182 = vunpack.c.h.b16 %v9609
    %v10183 = vunpack.c.l.b16 %v9610
    %v10184 = vunpack.c.h.b16 %v9610
    %v10185 = vunpack.c.l.b16 %v9611
    %v10186 = vunpack.c.h.b16 %v9611
    %v10187 = vunpack.c.l.b16 %v9612
    %v10188 = vunpack.c.h.b16 %v9612
    %v10189 = vunpack.c.l.b16 %v9613
    %v10190 = vunpack.c.h.b16 %v9613
    %v10191 = vunpack.c.l.b16 %v9614
    %v10192 = vunpack.c.h.b16 %v9614
    %v10193 = vunpack.c.l.b16 %v9615
    %v10194 = vunpack.c.h.b16 %v9615
    %v10195 = vunpack.c.l.b16 %v9616
    %v10196 = vunpack.c.h.b16 %v9616
    %v10197 = vunpack.c.l.b16 %v9617
    %v10198 = vunpack.c.h.b16 %v9617
    %v10199 = vunpack.c.l.b16 %v9618
    %v10200 = vunpack.c.h.b16 %v9618
    %v10201 = vunpack.c.l.b16 %v9619
    %v10202 = vunpack.c.h.b16 %v9619
    %v10203 = vunpack.c.l.b16 %v9620
    %v10204 = vunpack.c.h.b16 %v9620
    %v10205 = vunpack.c.l.b16 %v9621
    %v10206 = vunpack.c.h.b16 %v9621
    %v10207 = vunpack.c.l.b16 %v9622
    %v10208 = vunpack.c.h.b16 %v9622
    %v10209 = vunpack.c.l.b16 %v9623
    %v10210 = vunpack.c.h.b16 %v9623
    %v10211 = vunpack.c.l.b16 %v9624
    %v10212 = vunpack.c.h.b16 %v9624
    %v10213 = vunpack.c.l.b16 %v9625
    %v10214 = vunpack.c.h.b16 %v9625
    %v10215 = vunpack.c.l.b16 %v9626
    %v10216 = vunpack.c.h.b16 %v9626
    %v10217 = vunpack.c.l.b16 %v9627
    %v10218 = vunpack.c.h.b16 %v9627
    %v10219 = vunpack.c.l.b16 %v9628
    %v10220 = vunpack.c.h.b16 %v9628
    %v10221 = vunpack.c.l.b16 %v9629
    %v10222 = vunpack.c.h.b16 %v9629
    %v10223 = vunpack.c.l.b16 %v9630
    %v10224 = vunpack.c.h.b16 %v9630
    %v10225 = vunpack.c.l.b16 %v9631
    %v10226 = vunpack.c.h.b16 %v9631
    %v10227 = vunpack.c.l.b16 %v9632
    %v10228 = vunpack.c.h.b16 %v9632
    %v10229 = vunpack.c.l.b16 %v9633
    %v10230 = vunpack.c.h.b16 %v9633
    %v10231 = vunpack.c.l.b16 %v9634
    %v10232 = vunpack.c.h.b16 %v9634
    %v10233 = vunpack.c.l.b16 %v9635
    %v10234 = vunpack.c.h.b16 %v9635
    %v10235 = vunpack.c.l.b16 %v9636
    %v10236 = vunpack.c.h.b16 %v9636
    %v10237 = vunpack.c.l.b16 %v9637
    %v10238 = vunpack.c.h.b16 %v9637
    %v10239 = vunpack.c.l.b16 %v9638
    %v10240 = vunpack.c.h.b16 %v9638
    %v10241 = vunpack.c.l.b16 %v9639
    %v10242 = vunpack.c.h.b16 %v9639
    %v10243 = vunpack.c.l.b16 %v9640
    %v10244 = vunpack.c.h.b16 %v9640
    %v10245 = vunpack.c.l.b16 %v9641
    %v10246 = vunpack.c.h.b16 %v9641
    %v10247 = vunpack.c.l.b16 %v9642
    %v10248 = vunpack.c.h.b16 %v9642
    %v10249 = vunpack.c.l.b16 %v9643
    %v10250 = vunpack.c.h.b16 %v9643
    %v10251 = vunpack.c.l.b16 %v9644
    %v10252 = vunpack.c.h.b16 %v9644
    %v10253 = vunpack.c.l.b16 %v9645
    %v10254 = vunpack.c.h.b16 %v9645
    %v10255 = vunpack.c.l.b16 %v9646
    %v10256 = vunpack.c.h.b16 %v9646
    %v10257 = vunpack.c.l.b16 %v9647
    %v10258 = vunpack.c.h.b16 %v9647
    %v10259 = vunpack.c.l.b16 %v9648
    %v10260 = vunpack.c.h.b16 %v9648
    %v10261 = vunpack.c.l.b16 %v9649
    %v10262 = vunpack.c.h.b16 %v9649
    %v10263 = vunpack.c.l.b16 %v9650
    %v10264 = vunpack.c.h.b16 %v9650
    %v10265 = vunpack.c.l.b16 %v9651
    %v10266 = vunpack.c.h.b16 %v9651
    %v10267 = vunpack.c.l.b16 %v9652
    %v10268 = vunpack.c.h.b16 %v9652
    %v10269 = vunpack.c.l.b16 %v9653
    %v10270 = vunpack.c.h.b16 %v9653
    %v10271 = vunpack.c.l.b16 %v9654
    %v10272 = vunpack.c.h.b16 %v9654
    %v10273 = vunpack.c.l.b16 %v9655
    %v10274 = vunpack.c.h.b16 %v9655
    %v10275 = vunpack.c.l.b16 %v9656
    %v10276 = vunpack.c.h.b16 %v9656
    %v10277 = vunpack.c.l.b16 %v9657
    %v10278 = vunpack.c.h.b16 %v9657
    %v10279 = vunpack.c.l.b16 %v9658
    %v10280 = vunpack.c.h.b16 %v9658
    %v10281 = vunpack.c.l.b16 %v9659
    %v10282 = vunpack.c.h.b16 %v9659
    %v10283 = vunpack.c.l.b16 %v9660
    %v10284 = vunpack.c.h.b16 %v9660
    %v10285 = vunpack.c.l.b16 %v9661
    %v10286 = vunpack.c.h.b16 %v9661
    %v10287 = vunpack.c.l.b16 %v9662
    %v10288 = vunpack.c.h.b16 %v9662
    %v10289 = vunpack.c.l.b16 %v9663
    %v10290 = vunpack.c.h.b16 %v9663
    %v10291 = vunpack.c.l.b16 %v9664
    %v10292 = vunpack.c.h.b16 %v9664
    %v10293 = vunpack.c.l.b16 %v9665
    %v10294 = vunpack.c.h.b16 %v9665
    %v10295 = vunpack.c.l.b16 %v9666
    %v10296 = vunpack.c.h.b16 %v9666
    %v10297 = vunpack.c.l.b16 %v9667
    %v10298 = vunpack.c.h.b16 %v9667
    %v10299 = vunpack.c.l.b16 %v9668
    %v10300 = vunpack.c.h.b16 %v9668
    %v10301 = vunpack.c.l.b16 %v9669
    %v10302 = vunpack.c.h.b16 %v9669
    %v10303 = vunpack.c.l.b16 %v9670
    %v10304 = vunpack.c.h.b16 %v9670
    %v10305 = vunpack.c.l.b16 %v9671
    %v10306 = vunpack.c.h.b16 %v9671
    %v10307 = vunpack.c.l.b16 %v9672
    %v10308 = vunpack.c.h.b16 %v9672
    %v10309 = vunpack.c.l.b16 %v9673
    %v10310 = vunpack.c.h.b16 %v9673
    %v10311 = vunpack.c.l.b16 %v9674
    %v10312 = vunpack.c.h.b16 %v9674
    %v10313 = vunpack.c.l.b16 %v9675
    %v10314 = vunpack.c.h.b16 %v9675
    %v10315 = vunpack.c.l.b16 %v9676
    %v10316 = vunpack.c.h.b16 %v9676
    %v10317 = vunpack.c.l.b16 %v9677
    %v10318 = vunpack.c.h.b16 %v9677
    %v10319 = vunpack.c.l.b16 %v9678
    %v10320 = vunpack.c.h.b16 %v9678
    %v10321 = vunpack.c.l.b16 %v9679
    %v10322 = vunpack.c.h.b16 %v9679
    %v10323 = vunpack.c.l.b16 %v9680
    %v10324 = vunpack.c.h.b16 %v9680
    %v10325 = vunpack.c.l.b16 %v9681
    %v10326 = vunpack.c.h.b16 %v9681
    %v10327 = vunpack.c.l.b16 %v9682
    %v10328 = vunpack.c.h.b16 %v9682
    %v10329 = vunpack.c.l.b16 %v9683
    %v10330 = vunpack.c.h.b16 %v9683
    %v10331 = vunpack.c.l.b16 %v9684
    %v10332 = vunpack.c.h.b16 %v9684
    %v10333 = vunpack.c.l.b16 %v9685
    %v10334 = vunpack.c.h.b16 %v9685
    %v10335 = vunpack.c.l.b16 %v9686
    %v10336 = vunpack.c.h.b16 %v9686
    %v10337 = vunpack.c.l.b16 %v9687
    %v10338 = vunpack.c.h.b16 %v9687
    %v10339 = vunpack.c.l.b16 %v9688
    %v10340 = vunpack.c.h.b16 %v9688
    %v10341 = vunpack.c.l.b16 %v9689
    %v10342 = vunpack.c.h.b16 %v9689
    %v10343 = vunpack.c.l.b16 %v9690
    %v10344 = vunpack.c.h.b16 %v9690
    %v10345 = vunpack.c.l.b16 %v9691
    %v10346 = vunpack.c.h.b16 %v9691
    %v10347 = vunpack.c.l.b16 %v9692
    %v10348 = vunpack.c.h.b16 %v9692
    %v10349 = vunpack.c.l.b16 %v9693
    %v10350 = vunpack.c.h.b16 %v9693
    %v10351 = vunpack.c.l.b16 %v9694
    %v10352 = vunpack.c.h.b16 %v9694
    %v10353 = vunpack.c.l.b16 %v9695
    %v10354 = vunpack.c.h.b16 %v9695
    %v10355 = vunpack.c.l.b16 %v9696
    %v10356 = vunpack.c.h.b16 %v9696
    %v10357 = vunpack.c.l.b16 %v9697
    %v10358 = vunpack.c.h.b16 %v9697
    %v10359 = vunpack.c.l.b16 %v9698
    %v10360 = vunpack.c.h.b16 %v9698
    %v10361 = vunpack.c.l.b16 %v9699
    %v10362 = vunpack.c.h.b16 %v9699
    %v10363 = vunpack.c.l.b16 %v9700
    %v10364 = vunpack.c.h.b16 %v9700
    %v10365 = vunpack.c.l.b16 %v9701
    %v10366 = vunpack.c.h.b16 %v9701
    %v10367 = vunpack.c.l.b16 %v9702
    %v10368 = vunpack.c.h.b16 %v9702
    %v10369 = vunpack.c.l.b16 %v9703
    %v10370 = vunpack.c.h.b16 %v9703
    %v10371 = vunpack.c.l.b16 %v9704
    %v10372 = vunpack.c.h.b16 %v9704
    %v10373 = vunpack.c.l.b16 %v9705
    %v10374 = vunpack.c.h.b16 %v9705
    %v10375 = vunpack.c.l.b16 %v9706
    %v10376 = vunpack.c.h.b16 %v9706
    %v10377 = vunpack.c.l.b16 %v9707
    %v10378 = vunpack.c.h.b16 %v9707
    %v10379 = vunpack.c.l.b16 %v9708
    %v10380 = vunpack.c.h.b16 %v9708
    %v10381 = vunpack.c.l.b16 %v9709
    %v10382 = vunpack.c.h.b16 %v9709
    %v10383 = vunpack.c.l.b16 %v9710
    %v10384 = vunpack.c.h.b16 %v9710
    %v10385 = vunpack.c.l.b16 %v9711
    %v10386 = vunpack.c.h.b16 %v9711
    %v10387 = vunpack.c.l.b16 %v9712
    %v10388 = vunpack.c.h.b16 %v9712
    %v10389 = vunpack.c.l.b16 %v9713
    %v10390 = vunpack.c.h.b16 %v9713
    %v10391 = vunpack.c.l.b16 %v9714
    %v10392 = vunpack.c.h.b16 %v9714
    %v10393 = vunpack.c.l.b16 %v9715
    %v10394 = vunpack.c.h.b16 %v9715
    %v10395 = vunpack.c.l.b16 %v9716
    %v10396 = vunpack.c.h.b16 %v9716
    %v10397 = vunpack.c.l.b16 %v9717
    %v10398 = vunpack.c.h.b16 %v9717
    %v10399 = vunpack.c.l.b16 %v9718
    %v10400 = vunpack.c.h.b16 %v9718
    %v10401 = vunpack.c.l.b16 %v9719
    %v10402 = vunpack.c.h.b16 %v9719
    %v10403 = vunpack.c.l.b16 %v9720
    %v10404 = vunpack.c.h.b16 %v9720
    %v10405 = vunpack.c.l.b16 %v9721
    %v10406 = vunpack.c.h.b16 %v9721
    %v10407 = vunpack.c.l.b16 %v9722
    %v10408 = vunpack.c.h.b16 %v9722
    %v10409 = vunpack.c.l.b16 %v9723
    %v10410 = vunpack.c.h.b16 %v9723
    %v10411 = vunpack.c.l.b16 %v9724
    %v10412 = vunpack.c.h.b16 %v9724
    %v10413 = vunpack.c.l.b16 %v9725
    %v10414 = vunpack.c.h.b16 %v9725
    %v10415 = vunpack.c.l.b16 %v9726
    %v10416 = vunpack.c.h.b16 %v9726
    %v10417 = vunpack.c.l.b16 %v9727
    %v10418 = vunpack.c.h.b16 %v9727
    %v10419 = vunpack.c.l.b16 %v9728
    %v10420 = vunpack.c.h.b16 %v9728
    %v10421 = vunpack.c.l.b16 %v9729
    %v10422 = vunpack.c.h.b16 %v9729
    %v10423 = vunpack.c.l.b16 %v9730
    %v10424 = vunpack.c.h.b16 %v9730
    %v10425 = vunpack.c.l.b16 %v9731
    %v10426 = vunpack.c.h.b16 %v9731
    %v10427 = vunpack.c.l.b16 %v9732
    %v10428 = vunpack.c.h.b16 %v9732
    %v10429 = vunpack.c.l.b16 %v9733
    %v10430 = vunpack.c.h.b16 %v9733
    %v10431 = vunpack.c.l.b16 %v9734
    %v10432 = vunpack.c.h.b16 %v9734
    %v10433 = vunpack.c.l.b16 %v9735
    %v10434 = vunpack.c.h.b16 %v9735
    %v10435 = vunpack.c.l.b16 %v9736
    %v10436 = vunpack.c.h.b16 %v9736
    %v10437 = vunpack.c.l.b16 %v9737
    %v10438 = vunpack.c.h.b16 %v9737
    %v10439 = vunpack.c.l.b16 %v9738
    %v10440 = vunpack.c.h.b16 %v9738
    %v10441 = vunpack.c.l.b16 %v9739
    %v10442 = vunpack.c.h.b16 %v9739
    %v10443 = vunpack.c.l.b16 %v9740
    %v10444 = vunpack.c.h.b16 %v9740
    %v10445 = vunpack.c.l.b16 %v9741
    %v10446 = vunpack.c.h.b16 %v9741
    %v10447 = vunpack.c.l.b16 %v9742
    %v10448 = vunpack.c.h.b16 %v9742
    %v10449 = vunpack.c.l.b16 %v9743
    %v10450 = vunpack.c.h.b16 %v9743
    %v10451 = vunpack.c.l.b16 %v9744
    %v10452 = vunpack.c.h.b16 %v9744
    %v10453 = vunpack.c.l.b16 %v9745
    %v10454 = vunpack.c.h.b16 %v9745
    %v10455 = vunpack.c.l.b16 %v9746
    %v10456 = vunpack.c.h.b16 %v9746
    %v10457 = vunpack.c.l.b16 %v9747
    %v10458 = vunpack.c.h.b16 %v9747
    %v10459 = vunpack.c.l.b16 %v9748
    %v10460 = vunpack.c.h.b16 %v9748
    %v10461 = vunpack.c.l.b16 %v9749
    %v10462 = vunpack.c.h.b16 %v9749
    %v10463 = vunpack.c.l.b16 %v9750
    %v10464 = vunpack.c.h.b16 %v9750
    %v10465 = vunpack.c.l.b16 %v9751
    %v10466 = vunpack.c.h.b16 %v9751
    %v10467 = vunpack.c.l.b16 %v9752
    %v10468 = vunpack.c.h.b16 %v9752
    %v10469 = vunpack.c.l.b16 %v9753
    %v10470 = vunpack.c.h.b16 %v9753
    %v10471 = vunpack.c.l.b16 %v9754
    %v10472 = vunpack.c.h.b16 %v9754
    %v10473 = vunpack.c.l.b16 %v9755
    %v10474 = vunpack.c.h.b16 %v9755
    %v10475 = vunpack.c.l.b16 %v9756
    %v10476 = vunpack.c.h.b16 %v9756
    %v10477 = vunpack.c.l.b16 %v9757
    %v10478 = vunpack.c.h.b16 %v9757
    %v10479 = vunpack.c.l.b16 %v9758
    %v10480 = vunpack.c.h.b16 %v9758
    %v10481 = vunpack.c.l.b16 %v9759
    %v10482 = vunpack.c.h.b16 %v9759
    %v10483 = vunpack.c.l.b16 %v9760
    %v10484 = vunpack.c.h.b16 %v9760
    %v10485 = vunpack.c.l.b16 %v9761
    %v10486 = vunpack.c.h.b16 %v9761
    %v10487 = vunpack.c.l.b16 %v9762
    %v10488 = vunpack.c.h.b16 %v9762
    %v10489 = vunpack.c.l.b16 %v9763
    %v10490 = vunpack.c.h.b16 %v9763
    %v10491 = vunpack.c.l.b16 %v9764
    %v10492 = vunpack.c.h.b16 %v9764
    %v10493 = vunpack.c.l.b16 %v9765
    %v10494 = vunpack.c.h.b16 %v9765
    %v10495 = vunpack.c.l.b16 %v9766
    %v10496 = vunpack.c.h.b16 %v9766
    %v10497 = vunpack.c.l.b16 %v9767
    %v10498 = vunpack.c.h.b16 %v9767
    %v10499 = vunpack.c.l.b16 %v9768
    %v10500 = vunpack.c.h.b16 %v9768
    %v10501 = vunpack.c.l.b16 %v9769
    %v10502 = vunpack.c.h.b16 %v9769
    %v10503 = vunpack.c.l.b16 %v9770
    %v10504 = vunpack.c.h.b16 %v9770
    %v10505 = vunpack.c.l.b16 %v9771
    %v10506 = vunpack.c.h.b16 %v9771
    %v10507 = vunpack.c.l.b16 %v9772
    %v10508 = vunpack.c.h.b16 %v9772
    %v10509 = vunpack.c.l.b16 %v9773
    %v10510 = vunpack.c.h.b16 %v9773
    %v10511 = vunpack.c.l.b16 %v9774
    %v10512 = vunpack.c.h.b16 %v9774
    %v10513 = vunpack.c.l.b16 %v9775
    %v10514 = vunpack.c.h.b16 %v9775
    %v10515 = vunpack.c.l.b16 %v9776
    %v10516 = vunpack.c.h.b16 %v9776
    %v10517 = vunpack.c.l.b16 %v9777
    %v10518 = vunpack.c.h.b16 %v9777
    %v10519 = vunpack.c.l.b16 %v9778
    %v10520 = vunpack.c.h.b16 %v9778
    %v10521 = vunpack.c.l.b16 %v9779
    %v10522 = vunpack.c.h.b16 %v9779
    %v10523 = vunpack.c.l.b16 %v9780
    %v10524 = vunpack.c.h.b16 %v9780
    %v10525 = vunpack.c.l.b16 %v9781
    %v10526 = vunpack.c.h.b16 %v9781
    %v10527 = vunpack.c.l.b16 %v9782
    %v10528 = vunpack.c.h.b16 %v9782
    %v10529 = vunpack.c.l.b16 %v9783
    %v10530 = vunpack.c.h.b16 %v9783
    %v10531 = vunpack.c.l.b16 %v9784
    %v10532 = vunpack.c.h.b16 %v9784
    %v10533 = vunpack.c.l.b16 %v9785
    %v10534 = vunpack.c.h.b16 %v9785
    %v10535 = vunpack.c.l.b16 %v9786
    %v10536 = vunpack.c.h.b16 %v9786
    %v10537 = vunpack.c.l.b16 %v9787
    %v10538 = vunpack.c.h.b16 %v9787
    %v10539 = vunpack.c.l.b16 %v9788
    %v10540 = vunpack.c.h.b16 %v9788
    %v10541 = vunpack.c.l.b16 %v9789
    %v10542 = vunpack.c.h.b16 %v9789
    %v10543 = vunpack.c.l.b16 %v9790
    %v10544 = vunpack.c.h.b16 %v9790
    %v10545 = vunpack.c.l.b16 %v9791
    %v10546 = vunpack.c.h.b16 %v9791
    %v10547 = vunpack.c.l.b16 %v9792
    %v10548 = vunpack.c.h.b16 %v9792
    %v10549 = vunpack.c.l.b16 %v9793
    %v10550 = vunpack.c.h.b16 %v9793
    %v10551 = vunpack.c.l.b16 %v9794
    %v10552 = vunpack.c.h.b16 %v9794
    %v10553 = vunpack.c.l.b16 %v9795
    %v10554 = vunpack.c.h.b16 %v9795
    %v10555 = vunpack.c.l.b16 %v9796
    %v10556 = vunpack.c.h.b16 %v9796
    %v10557 = vunpack.c.l.b16 %v9797
    %v10558 = vunpack.c.h.b16 %v9797
    %v10559 = vunpack.c.l.b16 %v9798
    %v10560 = vunpack.c.h.b16 %v9798
    %v10561 = vunpack.c.l.b16 %v9799
    %v10562 = vunpack.c.h.b16 %v9799
    %v10563 = vunpack.c.l.b16 %v9800
    %v10564 = vunpack.c.h.b16 %v9800
    %v10565 = vunpack.c.l.b16 %v9801
    %v10566 = vunpack.c.h.b16 %v9801
    %v10567 = vunpack.c.l.b16 %v9802
    %v10568 = vunpack.c.h.b16 %v9802
    %v10569 = vunpack.c.l.b16 %v9803
    %v10570 = vunpack.c.h.b16 %v9803
    %v10571 = vunpack.c.l.b16 %v9804
    %v10572 = vunpack.c.h.b16 %v9804
    %v10573 = vunpack.c.l.b16 %v9805
    %v10574 = vunpack.c.h.b16 %v9805
    %v10575 = vunpack.c.l.b16 %v9806
    %v10576 = vunpack.c.h.b16 %v9806
    %v10577 = vunpack.c.l.b16 %v9807
    %v10578 = vunpack.c.h.b16 %v9807
    %v10579 = vunpack.c.l.b16 %v9808
    %v10580 = vunpack.c.h.b16 %v9808
    %v10581 = vunpack.c.l.b16 %v9809
    %v10582 = vunpack.c.h.b16 %v9809
    %v10583 = vunpack.c.l.b16 %v9810
    %v10584 = vunpack.c.h.b16 %v9810
    %v10585 = vunpack.c.l.b16 %v9811
    %v10586 = vunpack.c.h.b16 %v9811
    %v10587 = vunpack.c.l.b16 %v9812
    %v10588 = vunpack.c.h.b16 %v9812
    %v10589 = vunpack.c.l.b16 %v9813
    %v10590 = vunpack.c.h.b16 %v9813
    %v10591 = vunpack.c.l.b16 %v9814
    %v10592 = vunpack.c.h.b16 %v9814
    %v10593 = vunpack.c.l.b16 %v9815
    %v10594 = vunpack.c.h.b16 %v9815
    %v10595 = vunpack.c.l.b16 %v9816
    %v10596 = vunpack.c.h.b16 %v9816
    %v10597 = vunpack.c.l.b16 %v9817
    %v10598 = vunpack.c.h.b16 %v9817
    %v10599 = vunpack.c.l.b16 %v9818
    %v10600 = vunpack.c.h.b16 %v9818
    %v10601 = vunpack.c.l.b16 %v9819
    %v10602 = vunpack.c.h.b16 %v9819
    %v10603 = vunpack.c.l.b16 %v9820
    %v10604 = vunpack.c.h.b16 %v9820
    %v10605 = vunpack.c.l.b16 %v9821
    %v10606 = vunpack.c.h.b16 %v9821
    %v10607 = vunpack.c.l.b16 %v9822
    %v10608 = vunpack.c.h.b16 %v9822
    %v10609 = vunpack.c.l.b16 %v9823
    %v10610 = vunpack.c.h.b16 %v9823
    %v10611 = vunpack.c.l.b16 %v9824
    %v10612 = vunpack.c.h.b16 %v9824
    %v10613 = vunpack.c.l.b16 %v9825
    %v10614 = vunpack.c.h.b16 %v9825
    %v10615 = vunpack.c.l.b16 %v9826
    %v10616 = vunpack.c.h.b16 %v9826
    %v10617 = vunpack.c.l.b16 %v9827
    %v10618 = vunpack.c.h.b16 %v9827
    %v10619 = vunpack.c.l.b16 %v9828
    %v10620 = vunpack.c.h.b16 %v9828
    %v10621 = vunpack.c.l.b16 %v9829
    %v10622 = vunpack.c.h.b16 %v9829
    %v10623 = vunpack.c.l.b16 %v9830
    %v10624 = vunpack.c.h.b16 %v9830
    %v10625 = vunpack.c.l.b16 %v9831
    %v10626 = vunpack.c.h.b16 %v9831
    %v10627 = vunpack.c.l.b16 %v9832
    %v10628 = vunpack.c.h.b16 %v9832
    %v10629 = vpack.c.b16 %v10121, %v10117
    %v10630 = vpack.c.b16 %v10122, %v10118
    %v10631 = vpack.c.b16 %v10123, %v10119
    %v10632 = vpack.c.b16 %v10124, %v10120
    %v10633 = vpack.c.b16 %v10129, %v10125
    %v10634 = vpack.c.b16 %v10130, %v10126
    %v10635 = vpack.c.b16 %v10131, %v10127
    %v10636 = vpack.c.b16 %v10132, %v10128
    %v10637 = vpack.c.b16 %v10137, %v10133
    %v10638 = vpack.c.b16 %v10138, %v10134
    %v10639 = vpack.c.b16 %v10139, %v10135
    %v10640 = vpack.c.b16 %v10140, %v10136
    %v10641 = vpack.c.b16 %v10145, %v10141
    %v10642 = vpack.c.b16 %v10146, %v10142
    %v10643 = vpack.c.b16 %v10147, %v10143
    %v10644 = vpack.c.b16 %v10148, %v10144
    %v10645 = vpack.c.b16 %v10153, %v10149
    %v10646 = vpack.c.b16 %v10154, %v10150
    %v10647 = vpack.c.b16 %v10155, %v10151
    %v10648 = vpack.c.b16 %v10156, %v10152
    %v10649 = vpack.c.b16 %v10161, %v10157
    %v10650 = vpack.c.b16 %v10162, %v10158
    %v10651 = vpack.c.b16 %v10163, %v10159
    %v10652 = vpack.c.b16 %v10164, %v10160
    %v10653 = vpack.c.b16 %v10169, %v10165
    %v10654 = vpack.c.b16 %v10170, %v10166
    %v10655 = vpack.c.b16 %v10171, %v10167
    %v10656 = vpack.c.b16 %v10172, %v10168
    %v10657 = vpack.c.b16 %v10177, %v10173
    %v10658 = vpack.c.b16 %v10178, %v10174
    %v10659 = vpack.c.b16 %v10179, %v10175
    %v10660 = vpack.c.b16 %v10180, %v10176
    %v10661 = vpack.c.b16 %v10185, %v10181
    %v10662 = vpack.c.b16 %v10186, %v10182
    %v10663 = vpack.c.b16 %v10187, %v10183
    %v10664 = vpack.c.b16 %v10188, %v10184
    %v10665 = vpack.c.b16 %v10193, %v10189
    %v10666 = vpack.c.b16 %v10194, %v10190
    %v10667 = vpack.c.b16 %v10195, %v10191
    %v10668 = vpack.c.b16 %v10196, %v10192
    %v10669 = vpack.c.b16 %v10201, %v10197
    %v10670 = vpack.c.b16 %v10202, %v10198
    %v10671 = vpack.c.b16 %v10203, %v10199
    %v10672 = vpack.c.b16 %v10204, %v10200
    %v10673 = vpack.c.b16 %v10209, %v10205
    %v10674 = vpack.c.b16 %v10210, %v10206
    %v10675 = vpack.c.b16 %v10211, %v10207
    %v10676 = vpack.c.b16 %v10212, %v10208
    %v10677 = vpack.c.b16 %v10217, %v10213
    %v10678 = vpack.c.b16 %v10218, %v10214
    %v10679 = vpack.c.b16 %v10219, %v10215
    %v10680 = vpack.c.b16 %v10220, %v10216
    %v10681 = vpack.c.b16 %v10225, %v10221
    %v10682 = vpack.c.b16 %v10226, %v10222
    %v10683 = vpack.c.b16 %v10227, %v10223
    %v10684 = vpack.c.b16 %v10228, %v10224
    %v10685 = vpack.c.b16 %v10233, %v10229
    %v10686 = vpack.c.b16 %v10234, %v10230
    %v10687 = vpack.c.b16 %v10235, %v10231
    %v10688 = vpack.c.b16 %v10236, %v10232
    %v10689 = vpack.c.b16 %v10241, %v10237
    %v10690 = vpack.c.b16 %v10242, %v10238
    %v10691 = vpack.c.b16 %v10243, %v10239
    %v10692 = vpack.c.b16 %v10244, %v10240
    %v10693 = vpack.c.b16 %v10249, %v10245
    %v10694 = vpack.c.b16 %v10250, %v10246
    %v10695 = vpack.c.b16 %v10251, %v10247
    %v10696 = vpack.c.b16 %v10252, %v10248
    %v10697 = vpack.c.b16 %v10257, %v10253
    %v10698 = vpack.c.b16 %v10258, %v10254
    %v10699 = vpack.c.b16 %v10259, %v10255
    %v10700 = vpack.c.b16 %v10260, %v10256
    %v10701 = vpack.c.b16 %v10265, %v10261
    %v10702 = vpack.c.b16 %v10266, %v10262
    %v10703 = vpack.c.b16 %v10267, %v10263
    %v10704 = vpack.c.b16 %v10268, %v10264
    %v10705 = vpack.c.b16 %v10273, %v10269
    %v10706 = vpack.c.b16 %v10274, %v10270
    %v10707 = vpack.c.b16 %v10275, %v10271
    %v10708 = vpack.c.b16 %v10276, %v10272
    %v10709 = vpack.c.b16 %v10281, %v10277
    %v10710 = vpack.c.b16 %v10282, %v10278
    %v10711 = vpack.c.b16 %v10283, %v10279
    %v10712 = vpack.c.b16 %v10284, %v10280
    %v10713 = vpack.c.b16 %v10289, %v10285
    %v10714 = vpack.c.b16 %v10290, %v10286
    %v10715 = vpack.c.b16 %v10291, %v10287
    %v10716 = vpack.c.b16 %v10292, %v10288
    %v10717 = vpack.c.b16 %v10297, %v10293
    %v10718 = vpack.c.b16 %v10298, %v10294
    %v10719 = vpack.c.b16 %v10299, %v10295
    %v10720 = vpack.c.b16 %v10300, %v10296
    %v10721 = vpack.c.b16 %v10305, %v10301
    %v10722 = vpack.c.b16 %v10306, %v10302
    %v10723 = vpack.c.b16 %v10307, %v10303
    %v10724 = vpack.c.b16 %v10308, %v10304
    %v10725 = vpack.c.b16 %v10313, %v10309
    %v10726 = vpack.c.b16 %v10314, %v10310
    %v10727 = vpack.c.b16 %v10315, %v10311
    %v10728 = vpack.c.b16 %v10316, %v10312
    %v10729 = vpack.c.b16 %v10321, %v10317
    %v10730 = vpack.c.b16 %v10322, %v10318
    %v10731 = vpack.c.b16 %v10323, %v10319
    %v10732 = vpack.c.b16 %v10324, %v10320
    %v10733 = vpack.c.b16 %v10329, %v10325
    %v10734 = vpack.c.b16 %v10330, %v10326
    %v10735 = vpack.c.b16 %v10331, %v10327
    %v10736 = vpack.c.b16 %v10332, %v10328
    %v10737 = vpack.c.b16 %v10337, %v10333
    %v10738 = vpack.c.b16 %v10338, %v10334
    %v10739 = vpack.c.b16 %v10339, %v10335
    %v10740 = vpack.c.b16 %v10340, %v10336
    %v10741 = vpack.c.b16 %v10345, %v10341
    %v10742 = vpack.c.b16 %v10346, %v10342
    %v10743 = vpack.c.b16 %v10347, %v10343
    %v10744 = vpack.c.b16 %v10348, %v10344
    %v10745 = vpack.c.b16 %v10353, %v10349
    %v10746 = vpack.c.b16 %v10354, %v10350
    %v10747 = vpack.c.b16 %v10355, %v10351
    %v10748 = vpack.c.b16 %v10356, %v10352
    %v10749 = vpack.c.b16 %v10361, %v10357
    %v10750 = vpack.c.b16 %v10362, %v10358
    %v10751 = vpack.c.b16 %v10363, %v10359
    %v10752 = vpack.c.b16 %v10364, %v10360
    %v10753 = vpack.c.b16 %v10369, %v10365
    %v10754 = vpack.c.b16 %v10370, %v10366
    %v10755 = vpack.c.b16 %v10371, %v10367
    %v10756 = vpack.c.b16 %v10372, %v10368
    %v10757 = vpack.c.b16 %v10377, %v10373
    %v10758 = vpack.c.b16 %v10378, %v10374
    %v10759 = vpack.c.b16 %v10379, %v10375
    %v10760 = vpack.c.b16 %v10380, %v10376
    %v10761 = vpack.c.b16 %v10385, %v10381
    %v10762 = vpack.c.b16 %v10386, %v10382
    %v10763 = vpack.c.b16 %v10387, %v10383
    %v10764 = vpack.c.b16 %v10388, %v10384
    %v10765 = vpack.c.b16 %v10393, %v10389
    %v10766 = vpack.c.b16 %v10394, %v10390
    %v10767 = vpack.c.b16 %v10395, %v10391
    %v10768 = vpack.c.b16 %v10396, %v10392
    %v10769 = vpack.c.b16 %v10401, %v10397
    %v10770 = vpack.c.b16 %v10402, %v10398
    %v10771 = vpack.c.b16 %v10403, %v10399
    %v10772 = vpack.c.b16 %v10404, %v10400
    %v10773 = vpack.c.b16 %v10409, %v10405
    %v10774 = vpack.c.b16 %v10410, %v10406
    %v10775 = vpack.c.b16 %v10411, %v10407
    %v10776 = vpack.c.b16 %v10412, %v10408
    %v10777 = vpack.c.b16 %v10417, %v10413
    %v10778 = vpack.c.b16 %v10418, %v10414
    %v10779 = vpack.c.b16 %v10419, %v10415
    %v10780 = vpack.c.b16 %v10420, %v10416
    %v10781 = vpack.c.b16 %v10425, %v10421
    %v10782 = vpack.c.b16 %v10426, %v10422
    %v10783 = vpack.c.b16 %v10427, %v10423
    %v10784 = vpack.c.b16 %v10428, %v10424
    %v10785 = vpack.c.b16 %v10433, %v10429
    %v10786 = vpack.c.b16 %v10434, %v10430
    %v10787 = vpack.c.b16 %v10435, %v10431
    %v10788 = vpack.c.b16 %v10436, %v10432
    %v10789 = vpack.c.b16 %v10441, %v10437
    %v10790 = vpack.c.b16 %v10442, %v10438
    %v10791 = vpack.c.b16 %v10443, %v10439
    %v10792 = vpack.c.b16 %v10444, %v10440
    %v10793 = vpack.c.b16 %v10449, %v10445
    %v10794 = vpack.c.b16 %v10450, %v10446
    %v10795 = vpack.c.b16 %v10451, %v10447
    %v10796 = vpack.c.b16 %v10452, %v10448
    %v10797 = vpack.c.b16 %v10457, %v10453
    %v10798 = vpack.c.b16 %v10458, %v10454
    %v10799 = vpack.c.b16 %v10459, %v10455
    %v10800 = vpack.c.b16 %v10460, %v10456
    %v10801 = vpack.c.b16 %v10465, %v10461
    %v10802 = vpack.c.b16 %v10466, %v10462
    %v10803 = vpack.c.b16 %v10467, %v10463
    %v10804 = vpack.c.b16 %v10468, %v10464
    %v10805 = vpack.c.b16 %v10473, %v10469
    %v10806 = vpack.c.b16 %v10474, %v10470
    %v10807 = vpack.c.b16 %v10475, %v10471
    %v10808 = vpack.c.b16 %v10476, %v10472
    %v10809 = vpack.c.b16 %v10481, %v10477
    %v10810 = vpack.c.b16 %v10482, %v10478
    %v10811 = vpack.c.b16 %v10483, %v10479
    %v10812 = vpack.c.b16 %v10484, %v10480
    %v10813 = vpack.c.b16 %v10489, %v10485
    %v10814 = vpack.c.b16 %v10490, %v10486
    %v10815 = vpack.c.b16 %v10491, %v10487
    %v10816 = vpack.c.b16 %v10492, %v10488
    %v10817 = vpack.c.b16 %v10497, %v10493
    %v10818 = vpack.c.b16 %v10498, %v10494
    %v10819 = vpack.c.b16 %v10499, %v10495
    %v10820 = vpack.c.b16 %v10500, %v10496
    %v10821 = vpack.c.b16 %v10505, %v10501
    %v10822 = vpack.c.b16 %v10506, %v10502
    %v10823 = vpack.c.b16 %v10507, %v10503
    %v10824 = vpack.c.b16 %v10508, %v10504
    %v10825 = vpack.c.b16 %v10513, %v10509
    %v10826 = vpack.c.b16 %v10514, %v10510
    %v10827 = vpack.c.b16 %v10515, %v10511
    %v10828 = vpack.c.b16 %v10516, %v10512
    %v10829 = vpack.c.b16 %v10521, %v10517
    %v10830 = vpack.c.b16 %v10522, %v10518
    %v10831 = vpack.c.b16 %v10523, %v10519
    %v10832 = vpack.c.b16 %v10524, %v10520
    %v10833 = vpack.c.b16 %v10529, %v10525
    %v10834 = vpack.c.b16 %v10530, %v10526
    %v10835 = vpack.c.b16 %v10531, %v10527
    %v10836 = vpack.c.b16 %v10532, %v10528
    %v10837 = vpack.c.b16 %v10537, %v10533
    %v10838 = vpack.c.b16 %v10538, %v10534
    %v10839 = vpack.c.b16 %v10539, %v10535
    %v10840 = vpack.c.b16 %v10540, %v10536
    %v10841 = vpack.c.b16 %v10545, %v10541
    %v10842 = vpack.c.b16 %v10546, %v10542
    %v10843 = vpack.c.b16 %v10547, %v10543
    %v10844 = vpack.c.b16 %v10548, %v10544
    %v10845 = vpack.c.b16 %v10553, %v10549
    %v10846 = vpack.c.b16 %v10554, %v10550
    %v10847 = vpack.c.b16 %v10555, %v10551
    %v10848 = vpack.c.b16 %v10556, %v10552
    %v10849 = vpack.c.b16 %v10561, %v10557
    %v10850 = vpack.c.b16 %v10562, %v10558
    %v10851 = vpack.c.b16 %v10563, %v10559
    %v10852 = vpack.c.b16 %v10564, %v10560
    %v10853 = vpack.c.b16 %v10569, %v10565
    %v10854 = vpack.c.b16 %v10570, %v10566
    %v10855 = vpack.c.b16 %v10571, %v10567
    %v10856 = vpack.c.b16 %v10572, %v10568
    %v10857 = vpack.c.b16 %v10577, %v10573
    %v10858 = vpack.c.b16 %v10578, %v10574
    %v10859 = vpack.c.b16 %v10579, %v10575
    %v10860 = vpack.c.b16 %v10580, %v10576
    %v10861 = vpack.c.b16 %v10585, %v10581
    %v10862 = vpack.c.b16 %v10586, %v10582
    %v10863 = vpack.c.b16 %v10587, %v10583
    %v10864 = vpack.c.b16 %v10588, %v10584
    %v10865 = vpack.c.b16 %v10593, %v10589
    %v10866 = vpack.c.b16 %v10594, %v10590
    %v10867 = vpack.c.b16 %v10595, %v10591
    %v10868 = vpack.c.b16 %v10596, %v10592
    %v10869 = vpack.c.b16 %v10601, %v10597
    %v10870 = vpack.c.b16 %v10602, %v10598
    %v10871 = vpack.c.b16 %v10603, %v10599
    %v10872 = vpack.c.b16 %v10604, %v10600
    %v10873 = vpack.c.b16 %v10609, %v10605
    %v10874 = vpack.c.b16 %v10610, %v10606
    %v10875 = vpack.c.b16 %v10611, %v10607
    %v10876 = vpack.c.b16 %v10612, %v10608
    %v10877 = vpack.c.b16 %v10617, %v10613
    %v10878 = vpack.c.b16 %v10618, %v10614
    %v10879 = vpack.c.b16 %v10619, %v10615
    %v10880 = vpack.c.b16 %v10620, %v10616
    %v10881 = vpack.c.b16 %v10625, %v10621
    %v10882 = vpack.c.b16 %v10626, %v10622
    %v10883 = vpack.c.b16 %v10627, %v10623
    %v10884 = vpack.c.b16 %v10628, %v10624
    %11141 = vmatpush.bf16.msra.mxu0 %v10657
    %11142 = vmatpush.bf16.msra.mxu0 %v10653
    %11143 = vmatpush.bf16.msra.mxu0 %v10649
    %11144 = vmatpush.bf16.msra.mxu0 %v10645
    %11145 = vmatpush.bf16.msra.mxu0 %v10641
    %11146 = vmatpush.bf16.msra.mxu0 %v10637
    %11147 = vmatpush.bf16.msra.mxu0 %v10633
    %11148 = vmatpush.bf16.msra.mxu0 %v10629
    %11149 = vmatmul.bf16.gmra.mxu0 %v9845
    %v11150 = vpop.f32.mrf.mxu0
    %v11151 = vadd.f32 %v9835, %v11150
    %v11152 = vpop.f32.mrf.mxu0
    %11153 = vdwg.mxu0
    %11154 = vmatpush.bf16.msra.mxu0 %v10689
    %11155 = vmatpush.bf16.msra.mxu0 %v10685
    %11156 = vmatpush.bf16.msra.mxu0 %v10681
    %11157 = vmatpush.bf16.msra.mxu0 %v10677
    %11158 = vmatpush.bf16.msra.mxu0 %v10673
    %11159 = vmatpush.bf16.msra.mxu0 %v10669
    %11160 = vmatpush.bf16.msra.mxu0 %v10665
    %11161 = vmatpush.bf16.msra.mxu0 %v10661
    %11162 = vmatmul.bf16.gmra.mxu0 %v9846
    %v11163 = vpop.f32.mrf.mxu0
    %v11164 = vadd.f32 %v11151, %v11163
    %v11165 = vpop.f32.mrf.mxu0
    %11166 = vdwg.mxu0
    %11167 = vmatpush.bf16.msra.mxu0 %v10721
    %11168 = vmatpush.bf16.msra.mxu0 %v10717
    %11169 = vmatpush.bf16.msra.mxu0 %v10713
    %11170 = vmatpush.bf16.msra.mxu0 %v10709
    %11171 = vmatpush.bf16.msra.mxu0 %v10705
    %11172 = vmatpush.bf16.msra.mxu0 %v10701
    %11173 = vmatpush.bf16.msra.mxu0 %v10697
    %11174 = vmatpush.bf16.msra.mxu0 %v10693
    %11175 = vmatmul.bf16.gmra.mxu0 %v9847
    %v11176 = vpop.f32.mrf.mxu0
    %v11177 = vadd.f32 %v11164, %v11176
    %v11178 = vpop.f32.mrf.mxu0
    %11179 = vdwg.mxu0
    %11180 = vmatpush.bf16.msra.mxu0 %v10753
    %11181 = vmatpush.bf16.msra.mxu0 %v10749
    %11182 = vmatpush.bf16.msra.mxu0 %v10745
    %11183 = vmatpush.bf16.msra.mxu0 %v10741
    %11184 = vmatpush.bf16.msra.mxu0 %v10737
    %11185 = vmatpush.bf16.msra.mxu0 %v10733
    %11186 = vmatpush.bf16.msra.mxu0 %v10729
    %11187 = vmatpush.bf16.msra.mxu0 %v10725
    %11188 = vmatmul.bf16.gmra.mxu0 %v9848
    %v11189 = vpop.f32.mrf.mxu0
    %v11190 = vadd.f32 %v11177, %v11189
    %v11191 = vpop.f32.mrf.mxu0
    %11192 = vdwg.mxu0
    %11193 = vmatpush.bf16.msra.mxu0 %v10785
    %11194 = vmatpush.bf16.msra.mxu0 %v10781
    %11195 = vmatpush.bf16.msra.mxu0 %v10777
    %11196 = vmatpush.bf16.msra.mxu0 %v10773
    %11197 = vmatpush.bf16.msra.mxu0 %v10769
    %11198 = vmatpush.bf16.msra.mxu0 %v10765
    %11199 = vmatpush.bf16.msra.mxu0 %v10761
    %11200 = vmatpush.bf16.msra.mxu0 %v10757
    %11201 = vmatmul.bf16.gmra.mxu0 %v9849
    %v11202 = vpop.f32.mrf.mxu0
    %v11203 = vadd.f32 %v11190, %v11202
    %v11204 = vpop.f32.mrf.mxu0
    %11205 = vdwg.mxu0
    %11206 = vmatpush.bf16.msra.mxu0 %v10817
    %11207 = vmatpush.bf16.msra.mxu0 %v10813
    %11208 = vmatpush.bf16.msra.mxu0 %v10809
    %11209 = vmatpush.bf16.msra.mxu0 %v10805
    %11210 = vmatpush.bf16.msra.mxu0 %v10801
    %11211 = vmatpush.bf16.msra.mxu0 %v10797
    %11212 = vmatpush.bf16.msra.mxu0 %v10793
    %11213 = vmatpush.bf16.msra.mxu0 %v10789
    %11214 = vmatmul.bf16.gmra.mxu0 %v9850
    %v11215 = vpop.f32.mrf.mxu0
    %v11216 = vadd.f32 %v11203, %v11215
    %v11217 = vpop.f32.mrf.mxu0
    %11218 = vdwg.mxu0
    %11219 = vmatpush.bf16.msra.mxu0 %v10849
    %11220 = vmatpush.bf16.msra.mxu0 %v10845
    %11221 = vmatpush.bf16.msra.mxu0 %v10841
    %11222 = vmatpush.bf16.msra.mxu0 %v10837
    %11223 = vmatpush.bf16.msra.mxu0 %v10833
    %11224 = vmatpush.bf16.msra.mxu0 %v10829
    %11225 = vmatpush.bf16.msra.mxu0 %v10825
    %11226 = vmatpush.bf16.msra.mxu0 %v10821
    %11227 = vmatmul.bf16.gmra.mxu0 %v9851
    %v11228 = vpop.f32.mrf.mxu0
    %v11229 = vadd.f32 %v11216, %v11228
    %v11230 = vpop.f32.mrf.mxu0
    %11231 = vdwg.mxu0
    %11232 = vmatpush.bf16.msra.mxu0 %v10881
    %11233 = vmatpush.bf16.msra.mxu0 %v10877
    %11234 = vmatpush.bf16.msra.mxu0 %v10873
    %11235 = vmatpush.bf16.msra.mxu0 %v10869
    %11236 = vmatpush.bf16.msra.mxu0 %v10865
    %11237 = vmatpush.bf16.msra.mxu0 %v10861
    %11238 = vmatpush.bf16.msra.mxu0 %v10857
    %11239 = vmatpush.bf16.msra.mxu0 %v10853
    %11240 = vmatmul.bf16.gmra.mxu0 %v9852
    %v11241 = vpop.f32.mrf.mxu0
    %v11242 = vadd.f32 %v11229, %v11241
    %v11243 = vpop.f32.mrf.mxu0
    %11244 = vdwg.mxu0
    %11245 = vmatpush.bf16.msra.mxu0 %v10658
    %11246 = vmatpush.bf16.msra.mxu0 %v10654
    %11247 = vmatpush.bf16.msra.mxu0 %v10650
    %11248 = vmatpush.bf16.msra.mxu0 %v10646
    %11249 = vmatpush.bf16.msra.mxu0 %v10642
    %11250 = vmatpush.bf16.msra.mxu0 %v10638
    %11251 = vmatpush.bf16.msra.mxu0 %v10634
    %11252 = vmatpush.bf16.msra.mxu0 %v10630
    %11253 = vmatmul.bf16.gmra.mxu0 %v9845
    %v11254 = vpop.f32.mrf.mxu0
    %v11255 = vadd.f32 %v9836, %v11254
    %v11256 = vpop.f32.mrf.mxu0
    %11257 = vdwg.mxu0
    %11258 = vmatpush.bf16.msra.mxu0 %v10690
    %11259 = vmatpush.bf16.msra.mxu0 %v10686
    %11260 = vmatpush.bf16.msra.mxu0 %v10682
    %11261 = vmatpush.bf16.msra.mxu0 %v10678
    %11262 = vmatpush.bf16.msra.mxu0 %v10674
    %11263 = vmatpush.bf16.msra.mxu0 %v10670
    %11264 = vmatpush.bf16.msra.mxu0 %v10666
    %11265 = vmatpush.bf16.msra.mxu0 %v10662
    %11266 = vmatmul.bf16.gmra.mxu0 %v9846
    %v11267 = vpop.f32.mrf.mxu0
    %v11268 = vadd.f32 %v11255, %v11267
    %v11269 = vpop.f32.mrf.mxu0
    %11270 = vdwg.mxu0
    %11271 = vmatpush.bf16.msra.mxu0 %v10722
    %11272 = vmatpush.bf16.msra.mxu0 %v10718
    %11273 = vmatpush.bf16.msra.mxu0 %v10714
    %11274 = vmatpush.bf16.msra.mxu0 %v10710
    %11275 = vmatpush.bf16.msra.mxu0 %v10706
    %11276 = vmatpush.bf16.msra.mxu0 %v10702
    %11277 = vmatpush.bf16.msra.mxu0 %v10698
    %11278 = vmatpush.bf16.msra.mxu0 %v10694
    %11279 = vmatmul.bf16.gmra.mxu0 %v9847
    %v11280 = vpop.f32.mrf.mxu0
    %v11281 = vadd.f32 %v11268, %v11280
    %v11282 = vpop.f32.mrf.mxu0
    %11283 = vdwg.mxu0
    %11284 = vmatpush.bf16.msra.mxu0 %v10754
    %11285 = vmatpush.bf16.msra.mxu0 %v10750
    %11286 = vmatpush.bf16.msra.mxu0 %v10746
    %11287 = vmatpush.bf16.msra.mxu0 %v10742
    %11288 = vmatpush.bf16.msra.mxu0 %v10738
    %11289 = vmatpush.bf16.msra.mxu0 %v10734
    %11290 = vmatpush.bf16.msra.mxu0 %v10730
    %11291 = vmatpush.bf16.msra.mxu0 %v10726
    %11292 = vmatmul.bf16.gmra.mxu0 %v9848
    %v11293 = vpop.f32.mrf.mxu0
    %v11294 = vadd.f32 %v11281, %v11293
    %v11295 = vpop.f32.mrf.mxu0
    %11296 = vdwg.mxu0
    %11297 = vmatpush.bf16.msra.mxu0 %v10786
    %11298 = vmatpush.bf16.msra.mxu0 %v10782
    %11299 = vmatpush.bf16.msra.mxu0 %v10778
    %11300 = vmatpush.bf16.msra.mxu0 %v10774
    %11301 = vmatpush.bf16.msra.mxu0 %v10770
    %11302 = vmatpush.bf16.msra.mxu0 %v10766
    %11303 = vmatpush.bf16.msra.mxu0 %v10762
    %11304 = vmatpush.bf16.msra.mxu0 %v10758
    %11305 = vmatmul.bf16.gmra.mxu0 %v9849
    %v11306 = vpop.f32.mrf.mxu0
    %v11307 = vadd.f32 %v11294, %v11306
    %v11308 = vpop.f32.mrf.mxu0
    %11309 = vdwg.mxu0
    %11310 = vmatpush.bf16.msra.mxu0 %v10818
    %11311 = vmatpush.bf16.msra.mxu0 %v10814
    %11312 = vmatpush.bf16.msra.mxu0 %v10810
    %11313 = vmatpush.bf16.msra.mxu0 %v10806
    %11314 = vmatpush.bf16.msra.mxu0 %v10802
    %11315 = vmatpush.bf16.msra.mxu0 %v10798
    %11316 = vmatpush.bf16.msra.mxu0 %v10794
    %11317 = vmatpush.bf16.msra.mxu0 %v10790
    %11318 = vmatmul.bf16.gmra.mxu0 %v9850
    %v11319 = vpop.f32.mrf.mxu0
    %v11320 = vadd.f32 %v11307, %v11319
    %v11321 = vpop.f32.mrf.mxu0
    %11322 = vdwg.mxu0
    %11323 = vmatpush.bf16.msra.mxu0 %v10850
    %11324 = vmatpush.bf16.msra.mxu0 %v10846
    %11325 = vmatpush.bf16.msra.mxu0 %v10842
    %11326 = vmatpush.bf16.msra.mxu0 %v10838
    %11327 = vmatpush.bf16.msra.mxu0 %v10834
    %11328 = vmatpush.bf16.msra.mxu0 %v10830
    %11329 = vmatpush.bf16.msra.mxu0 %v10826
    %11330 = vmatpush.bf16.msra.mxu0 %v10822
    %11331 = vmatmul.bf16.gmra.mxu0 %v9851
    %v11332 = vpop.f32.mrf.mxu0
    %v11333 = vadd.f32 %v11320, %v11332
    %v11334 = vpop.f32.mrf.mxu0
    %11335 = vdwg.mxu0
    %11336 = vmatpush.bf16.msra.mxu0 %v10882
    %11337 = vmatpush.bf16.msra.mxu0 %v10878
    %11338 = vmatpush.bf16.msra.mxu0 %v10874
    %11339 = vmatpush.bf16.msra.mxu0 %v10870
    %11340 = vmatpush.bf16.msra.mxu0 %v10866
    %11341 = vmatpush.bf16.msra.mxu0 %v10862
    %11342 = vmatpush.bf16.msra.mxu0 %v10858
    %11343 = vmatpush.bf16.msra.mxu0 %v10854
    %11344 = vmatmul.bf16.gmra.mxu0 %v9852
    %v11345 = vpop.f32.mrf.mxu0
    %v11346 = vadd.f32 %v11333, %v11345
    %v11347 = vpop.f32.mrf.mxu0
    %11348 = vdwg.mxu0
    %11349 = vmatpush.bf16.msra.mxu0 %v10659
    %11350 = vmatpush.bf16.msra.mxu0 %v10655
    %11351 = vmatpush.bf16.msra.mxu0 %v10651
    %11352 = vmatpush.bf16.msra.mxu0 %v10647
    %11353 = vmatpush.bf16.msra.mxu0 %v10643
    %11354 = vmatpush.bf16.msra.mxu0 %v10639
    %11355 = vmatpush.bf16.msra.mxu0 %v10635
    %11356 = vmatpush.bf16.msra.mxu0 %v10631
    %11357 = vmatmul.bf16.gmra.mxu0 %v9845
    %v11358 = vpop.f32.mrf.mxu0
    %v11359 = vadd.f32 %v9837, %v11358
    %v11360 = vpop.f32.mrf.mxu0
    %11361 = vdwg.mxu0
    %11362 = vmatpush.bf16.msra.mxu0 %v10691
    %11363 = vmatpush.bf16.msra.mxu0 %v10687
    %11364 = vmatpush.bf16.msra.mxu0 %v10683
    %11365 = vmatpush.bf16.msra.mxu0 %v10679
    %11366 = vmatpush.bf16.msra.mxu0 %v10675
    %11367 = vmatpush.bf16.msra.mxu0 %v10671
    %11368 = vmatpush.bf16.msra.mxu0 %v10667
    %11369 = vmatpush.bf16.msra.mxu0 %v10663
    %11370 = vmatmul.bf16.gmra.mxu0 %v9846
    %v11371 = vpop.f32.mrf.mxu0
    %v11372 = vadd.f32 %v11359, %v11371
    %v11373 = vpop.f32.mrf.mxu0
    %11374 = vdwg.mxu0
    %11375 = vmatpush.bf16.msra.mxu0 %v10723
    %11376 = vmatpush.bf16.msra.mxu0 %v10719
    %11377 = vmatpush.bf16.msra.mxu0 %v10715
    %11378 = vmatpush.bf16.msra.mxu0 %v10711
    %11379 = vmatpush.bf16.msra.mxu0 %v10707
    %11380 = vmatpush.bf16.msra.mxu0 %v10703
    %11381 = vmatpush.bf16.msra.mxu0 %v10699
    %11382 = vmatpush.bf16.msra.mxu0 %v10695
    %11383 = vmatmul.bf16.gmra.mxu0 %v9847
    %v11384 = vpop.f32.mrf.mxu0
    %v11385 = vadd.f32 %v11372, %v11384
    %v11386 = vpop.f32.mrf.mxu0
    %11387 = vdwg.mxu0
    %11388 = vmatpush.bf16.msra.mxu0 %v10755
    %11389 = vmatpush.bf16.msra.mxu0 %v10751
    %11390 = vmatpush.bf16.msra.mxu0 %v10747
    %11391 = vmatpush.bf16.msra.mxu0 %v10743
    %11392 = vmatpush.bf16.msra.mxu0 %v10739
    %11393 = vmatpush.bf16.msra.mxu0 %v10735
    %11394 = vmatpush.bf16.msra.mxu0 %v10731
    %11395 = vmatpush.bf16.msra.mxu0 %v10727
    %11396 = vmatmul.bf16.gmra.mxu0 %v9848
    %v11397 = vpop.f32.mrf.mxu0
    %v11398 = vadd.f32 %v11385, %v11397
    %v11399 = vpop.f32.mrf.mxu0
    %11400 = vdwg.mxu0
    %11401 = vmatpush.bf16.msra.mxu0 %v10787
    %11402 = vmatpush.bf16.msra.mxu0 %v10783
    %11403 = vmatpush.bf16.msra.mxu0 %v10779
    %11404 = vmatpush.bf16.msra.mxu0 %v10775
    %11405 = vmatpush.bf16.msra.mxu0 %v10771
    %11406 = vmatpush.bf16.msra.mxu0 %v10767
    %11407 = vmatpush.bf16.msra.mxu0 %v10763
    %11408 = vmatpush.bf16.msra.mxu0 %v10759
    %11409 = vmatmul.bf16.gmra.mxu0 %v9849
    %v11410 = vpop.f32.mrf.mxu0
    %v11411 = vadd.f32 %v11398, %v11410
    %v11412 = vpop.f32.mrf.mxu0
    %11413 = vdwg.mxu0
    %11414 = vmatpush.bf16.msra.mxu0 %v10819
    %11415 = vmatpush.bf16.msra.mxu0 %v10815
    %11416 = vmatpush.bf16.msra.mxu0 %v10811
    %11417 = vmatpush.bf16.msra.mxu0 %v10807
    %11418 = vmatpush.bf16.msra.mxu0 %v10803
    %11419 = vmatpush.bf16.msra.mxu0 %v10799
    %11420 = vmatpush.bf16.msra.mxu0 %v10795
    %11421 = vmatpush.bf16.msra.mxu0 %v10791
    %11422 = vmatmul.bf16.gmra.mxu0 %v9850
    %v11423 = vpop.f32.mrf.mxu0
    %v11424 = vadd.f32 %v11411, %v11423
    %v11425 = vpop.f32.mrf.mxu0
    %11426 = vdwg.mxu0
    %11427 = vmatpush.bf16.msra.mxu0 %v10851
    %11428 = vmatpush.bf16.msra.mxu0 %v10847
    %11429 = vmatpush.bf16.msra.mxu0 %v10843
    %11430 = vmatpush.bf16.msra.mxu0 %v10839
    %11431 = vmatpush.bf16.msra.mxu0 %v10835
    %11432 = vmatpush.bf16.msra.mxu0 %v10831
    %11433 = vmatpush.bf16.msra.mxu0 %v10827
    %11434 = vmatpush.bf16.msra.mxu0 %v10823
    %11435 = vmatmul.bf16.gmra.mxu0 %v9851
    %v11436 = vpop.f32.mrf.mxu0
    %v11437 = vadd.f32 %v11424, %v11436
    %v11438 = vpop.f32.mrf.mxu0
    %11439 = vdwg.mxu0
    %11440 = vmatpush.bf16.msra.mxu0 %v10883
    %11441 = vmatpush.bf16.msra.mxu0 %v10879
    %11442 = vmatpush.bf16.msra.mxu0 %v10875
    %11443 = vmatpush.bf16.msra.mxu0 %v10871
    %11444 = vmatpush.bf16.msra.mxu0 %v10867
    %11445 = vmatpush.bf16.msra.mxu0 %v10863
    %11446 = vmatpush.bf16.msra.mxu0 %v10859
    %11447 = vmatpush.bf16.msra.mxu0 %v10855
    %11448 = vmatmul.bf16.gmra.mxu0 %v9852
    %v11449 = vpop.f32.mrf.mxu0
    %v11450 = vadd.f32 %v11437, %v11449
    %v11451 = vpop.f32.mrf.mxu0
    %11452 = vdwg.mxu0
    %11453 = vmatpush.bf16.msra.mxu0 %v10660
    %11454 = vmatpush.bf16.msra.mxu0 %v10656
    %11455 = vmatpush.bf16.msra.mxu0 %v10652
    %11456 = vmatpush.bf16.msra.mxu0 %v10648
    %11457 = vmatpush.bf16.msra.mxu0 %v10644
    %11458 = vmatpush.bf16.msra.mxu0 %v10640
    %11459 = vmatpush.bf16.msra.mxu0 %v10636
    %11460 = vmatpush.bf16.msra.mxu0 %v10632
    %11461 = vmatmul.bf16.gmra.mxu0 %v9845
    %v11462 = vpop.f32.mrf.mxu0
    %v11463 = vadd.f32 %v9838, %v11462
    %v11464 = vpop.f32.mrf.mxu0
    %11465 = vdwg.mxu0
    %11466 = vmatpush.bf16.msra.mxu0 %v10692
    %11467 = vmatpush.bf16.msra.mxu0 %v10688
    %11468 = vmatpush.bf16.msra.mxu0 %v10684
    %11469 = vmatpush.bf16.msra.mxu0 %v10680
    %11470 = vmatpush.bf16.msra.mxu0 %v10676
    %11471 = vmatpush.bf16.msra.mxu0 %v10672
    %11472 = vmatpush.bf16.msra.mxu0 %v10668
    %11473 = vmatpush.bf16.msra.mxu0 %v10664
    %11474 = vmatmul.bf16.gmra.mxu0 %v9846
    %v11475 = vpop.f32.mrf.mxu0
    %v11476 = vadd.f32 %v11463, %v11475
    %v11477 = vpop.f32.mrf.mxu0
    %11478 = vdwg.mxu0
    %11479 = vmatpush.bf16.msra.mxu0 %v10724
    %11480 = vmatpush.bf16.msra.mxu0 %v10720
    %11481 = vmatpush.bf16.msra.mxu0 %v10716
    %11482 = vmatpush.bf16.msra.mxu0 %v10712
    %11483 = vmatpush.bf16.msra.mxu0 %v10708
    %11484 = vmatpush.bf16.msra.mxu0 %v10704
    %11485 = vmatpush.bf16.msra.mxu0 %v10700
    %11486 = vmatpush.bf16.msra.mxu0 %v10696
    %11487 = vmatmul.bf16.gmra.mxu0 %v9847
    %v11488 = vpop.f32.mrf.mxu0
    %v11489 = vadd.f32 %v11476, %v11488
    %v11490 = vpop.f32.mrf.mxu0
    %11491 = vdwg.mxu0
    %11492 = vmatpush.bf16.msra.mxu0 %v10756
    %11493 = vmatpush.bf16.msra.mxu0 %v10752
    %11494 = vmatpush.bf16.msra.mxu0 %v10748
    %11495 = vmatpush.bf16.msra.mxu0 %v10744
    %11496 = vmatpush.bf16.msra.mxu0 %v10740
    %11497 = vmatpush.bf16.msra.mxu0 %v10736
    %11498 = vmatpush.bf16.msra.mxu0 %v10732
    %11499 = vmatpush.bf16.msra.mxu0 %v10728
    %11500 = vmatmul.bf16.gmra.mxu0 %v9848
    %v11501 = vpop.f32.mrf.mxu0
    %v11502 = vadd.f32 %v11489, %v11501
    %v11503 = vpop.f32.mrf.mxu0
    %11504 = vdwg.mxu0
    %11505 = vmatpush.bf16.msra.mxu0 %v10788
    %11506 = vmatpush.bf16.msra.mxu0 %v10784
    %11507 = vmatpush.bf16.msra.mxu0 %v10780
    %11508 = vmatpush.bf16.msra.mxu0 %v10776
    %11509 = vmatpush.bf16.msra.mxu0 %v10772
    %11510 = vmatpush.bf16.msra.mxu0 %v10768
    %11511 = vmatpush.bf16.msra.mxu0 %v10764
    %11512 = vmatpush.bf16.msra.mxu0 %v10760
    %11513 = vmatmul.bf16.gmra.mxu0 %v9849
    %v11514 = vpop.f32.mrf.mxu0
    %v11515 = vadd.f32 %v11502, %v11514
    %v11516 = vpop.f32.mrf.mxu0
    %11517 = vdwg.mxu0
    %11518 = vmatpush.bf16.msra.mxu0 %v10820
    %11519 = vmatpush.bf16.msra.mxu0 %v10816
    %11520 = vmatpush.bf16.msra.mxu0 %v10812
    %11521 = vmatpush.bf16.msra.mxu0 %v10808
    %11522 = vmatpush.bf16.msra.mxu0 %v10804
    %11523 = vmatpush.bf16.msra.mxu0 %v10800
    %11524 = vmatpush.bf16.msra.mxu0 %v10796
    %11525 = vmatpush.bf16.msra.mxu0 %v10792
    %11526 = vmatmul.bf16.gmra.mxu0 %v9850
    %v11527 = vpop.f32.mrf.mxu0
    %v11528 = vadd.f32 %v11515, %v11527
    %v11529 = vpop.f32.mrf.mxu0
    %11530 = vdwg.mxu0
    %11531 = vmatpush.bf16.msra.mxu0 %v10852
    %11532 = vmatpush.bf16.msra.mxu0 %v10848
    %11533 = vmatpush.bf16.msra.mxu0 %v10844
    %11534 = vmatpush.bf16.msra.mxu0 %v10840
    %11535 = vmatpush.bf16.msra.mxu0 %v10836
    %11536 = vmatpush.bf16.msra.mxu0 %v10832
    %11537 = vmatpush.bf16.msra.mxu0 %v10828
    %11538 = vmatpush.bf16.msra.mxu0 %v10824
    %11539 = vmatmul.bf16.gmra.mxu0 %v9851
    %v11540 = vpop.f32.mrf.mxu0
    %v11541 = vadd.f32 %v11528, %v11540
    %v11542 = vpop.f32.mrf.mxu0
    %11543 = vdwg.mxu0
    %11544 = vmatpush.bf16.msra.mxu0 %v10884
    %11545 = vmatpush.bf16.msra.mxu0 %v10880
    %11546 = vmatpush.bf16.msra.mxu0 %v10876
    %11547 = vmatpush.bf16.msra.mxu0 %v10872
    %11548 = vmatpush.bf16.msra.mxu0 %v10868
    %11549 = vmatpush.bf16.msra.mxu0 %v10864
    %11550 = vmatpush.bf16.msra.mxu0 %v10860
    %11551 = vmatpush.bf16.msra.mxu0 %v10856
    %11552 = vmatmul.bf16.gmra.mxu0 %v9852
    %v11553 = vpop.f32.mrf.mxu0
    %v11554 = vadd.f32 %v11541, %v11553
    %v11555 = vpop.f32.mrf.mxu0
    %11556 = vdwg.mxu0
    %v11557 = vmax.f32 %v11242, 0.0
    %v11558 = vmax.f32 %v11346, 0.0
    %v11559 = vmax.f32 %v11450, 0.0
    %v11560 = vmax.f32 %v11554, 0.0
    %v11561 = vpack.c.bf16 %v11557, %v11557
    %v11562 = vpack.c.bf16 %v11558, %v11558
    %v11563 = vpack.c.bf16 %v11559, %v11559
    %v11564 = vpack.c.bf16 %v11560, %v11560
    %v11565 = vld [vmem:[%s9] sm:$0xf]
    %v11566 = vld [vmem:[%s9 + $0x4] sm:$0xf]
    %v11567 = vld [vmem:[%s9 + $0x8] sm:$0xf]
    %v11568 = vld [vmem:[%s9 + $0xc] sm:$0xf]
    %v11569 = vld [vmem:[%s9 + $0x10] sm:$0xf]
    %v11570 = vld [vmem:[%s9 + $0x14] sm:$0xf]
    %v11571 = vld [vmem:[%s9 + $0x18] sm:$0xf]
    %v11572 = vld [vmem:[%s9 + $0x1c] sm:$0xf]
    %v11573 = vld [vmem:[%s9 + $0x20] sm:$0xf]
    %v11574 = vld [vmem:[%s9 + $0x24] sm:$0xf]
    %v11575 = vld [vmem:[%s9 + $0x28] sm:$0xf]
    %v11576 = vld [vmem:[%s9 + $0x2c] sm:$0xf]
    %v11577 = vld [vmem:[%s9 + $0x30] sm:$0xf]
    %v11578 = vld [vmem:[%s9 + $0x34] sm:$0xf]
    %v11579 = vld [vmem:[%s9 + $0x38] sm:$0xf]
    %v11580 = vld [vmem:[%s9 + $0x3c] sm:$0xf]
    %v11581 = vld [vmem:[%s9 + $0x40] sm:$0xf]
    %v11582 = vld [vmem:[%s9 + $0x44] sm:$0xf]
    %v11583 = vld [vmem:[%s9 + $0x48] sm:$0xf]
    %v11584 = vld [vmem:[%s9 + $0x4c] sm:$0xf]
    %v11585 = vld [vmem:[%s9 + $0x50] sm:$0xf]
    %v11586 = vld [vmem:[%s9 + $0x54] sm:$0xf]
    %v11587 = vld [vmem:[%s9 + $0x58] sm:$0xf]
    %v11588 = vld [vmem:[%s9 + $0x5c] sm:$0xf]
    %v11589 = vld [vmem:[%s9 + $0x60] sm:$0xf]
    %v11590 = vld [vmem:[%s9 + $0x64] sm:$0xf]
    %v11591 = vld [vmem:[%s9 + $0x68] sm:$0xf]
    %v11592 = vld [vmem:[%s9 + $0x6c] sm:$0xf]
    %v11593 = vld [vmem:[%s9 + $0x70] sm:$0xf]
    %v11594 = vld [vmem:[%s9 + $0x74] sm:$0xf]
    %v11595 = vld [vmem:[%s9 + $0x78] sm:$0xf]
    %v11596 = vld [vmem:[%s9 + $0x7c] sm:$0xf]
    %v11597 = vld [vmem:[%s9 + $0x80] sm:$0xf]
    %v11598 = vld [vmem:[%s9 + $0x84] sm:$0xf]
    %v11599 = vld [vmem:[%s9 + $0x88] sm:$0xf]
    %v11600 = vld [vmem:[%s9 + $0x8c] sm:$0xf]
    %v11601 = vld [vmem:[%s9 + $0x90] sm:$0xf]
    %v11602 = vld [vmem:[%s9 + $0x94] sm:$0xf]
    %v11603 = vld [vmem:[%s9 + $0x98] sm:$0xf]
    %v11604 = vld [vmem:[%s9 + $0x9c] sm:$0xf]
    %v11605 = vld [vmem:[%s9 + $0xa0] sm:$0xf]
    %v11606 = vld [vmem:[%s9 + $0xa4] sm:$0xf]
    %v11607 = vld [vmem:[%s9 + $0xa8] sm:$0xf]
    %v11608 = vld [vmem:[%s9 + $0xac] sm:$0xf]
    %v11609 = vld [vmem:[%s9 + $0xb0] sm:$0xf]
    %v11610 = vld [vmem:[%s9 + $0xb4] sm:$0xf]
    %v11611 = vld [vmem:[%s9 + $0xb8] sm:$0xf]
    %v11612 = vld [vmem:[%s9 + $0xbc] sm:$0xf]
    %v11613 = vld [vmem:[%s9 + $0xc0] sm:$0xf]
    %v11614 = vld [vmem:[%s9 + $0xc4] sm:$0xf]
    %v11615 = vld [vmem:[%s9 + $0xc8] sm:$0xf]
    %v11616 = vld [vmem:[%s9 + $0xcc] sm:$0xf]
    %v11617 = vld [vmem:[%s9 + $0xd0] sm:$0xf]
    %v11618 = vld [vmem:[%s9 + $0xd4] sm:$0xf]
    %v11619 = vld [vmem:[%s9 + $0xd8] sm:$0xf]
    %v11620 = vld [vmem:[%s9 + $0xdc] sm:$0xf]
    %v11621 = vld [vmem:[%s9 + $0xe0] sm:$0xf]
    %v11622 = vld [vmem:[%s9 + $0xe4] sm:$0xf]
    %v11623 = vld [vmem:[%s9 + $0xe8] sm:$0xf]
    %v11624 = vld [vmem:[%s9 + $0xec] sm:$0xf]
    %v11625 = vld [vmem:[%s9 + $0xf0] sm:$0xf]
    %v11626 = vld [vmem:[%s9 + $0xf4] sm:$0xf]
    %v11627 = vld [vmem:[%s9 + $0xf8] sm:$0xf]
    %v11628 = vld [vmem:[%s9 + $0xfc] sm:$0xf]
    %v11629 = vld [vmem:[%s10] sm:$0x1]
    %v11631 = vperm.slane %v11629, 0
    %v11697 = vunpack.c.l.b16 %v11565
    %v11698 = vunpack.c.l.b16 %v11566
    %v11699 = vunpack.c.l.b16 %v11567
    %v11700 = vunpack.c.l.b16 %v11568
    %v11701 = vunpack.c.l.b16 %v11569
    %v11702 = vunpack.c.l.b16 %v11570
    %v11703 = vunpack.c.l.b16 %v11571
    %v11704 = vunpack.c.l.b16 %v11572
    %v11705 = vunpack.c.l.b16 %v11573
    %v11706 = vunpack.c.l.b16 %v11574
    %v11707 = vunpack.c.l.b16 %v11575
    %v11708 = vunpack.c.l.b16 %v11576
    %v11709 = vunpack.c.l.b16 %v11577
    %v11710 = vunpack.c.l.b16 %v11578
    %v11711 = vunpack.c.l.b16 %v11579
    %v11712 = vunpack.c.l.b16 %v11580
    %v11713 = vunpack.c.l.b16 %v11581
    %v11714 = vunpack.c.l.b16 %v11582
    %v11715 = vunpack.c.l.b16 %v11583
    %v11716 = vunpack.c.l.b16 %v11584
    %v11717 = vunpack.c.l.b16 %v11585
    %v11718 = vunpack.c.l.b16 %v11586
    %v11719 = vunpack.c.l.b16 %v11587
    %v11720 = vunpack.c.l.b16 %v11588
    %v11721 = vunpack.c.l.b16 %v11589
    %v11722 = vunpack.c.l.b16 %v11590
    %v11723 = vunpack.c.l.b16 %v11591
    %v11724 = vunpack.c.l.b16 %v11592
    %v11725 = vunpack.c.l.b16 %v11593
    %v11726 = vunpack.c.l.b16 %v11594
    %v11727 = vunpack.c.l.b16 %v11595
    %v11728 = vunpack.c.l.b16 %v11596
    %v11729 = vunpack.c.l.b16 %v11597
    %v11730 = vunpack.c.l.b16 %v11598
    %v11731 = vunpack.c.l.b16 %v11599
    %v11732 = vunpack.c.l.b16 %v11600
    %v11733 = vunpack.c.l.b16 %v11601
    %v11734 = vunpack.c.l.b16 %v11602
    %v11735 = vunpack.c.l.b16 %v11603
    %v11736 = vunpack.c.l.b16 %v11604
    %v11737 = vunpack.c.l.b16 %v11605
    %v11738 = vunpack.c.l.b16 %v11606
    %v11739 = vunpack.c.l.b16 %v11607
    %v11740 = vunpack.c.l.b16 %v11608
    %v11741 = vunpack.c.l.b16 %v11609
    %v11742 = vunpack.c.l.b16 %v11610
    %v11743 = vunpack.c.l.b16 %v11611
    %v11744 = vunpack.c.l.b16 %v11612
    %v11745 = vunpack.c.l.b16 %v11613
    %v11746 = vunpack.c.l.b16 %v11614
    %v11747 = vunpack.c.l.b16 %v11615
    %v11748 = vunpack.c.l.b16 %v11616
    %v11749 = vunpack.c.l.b16 %v11617
    %v11750 = vunpack.c.l.b16 %v11618
    %v11751 = vunpack.c.l.b16 %v11619
    %v11752 = vunpack.c.l.b16 %v11620
    %v11753 = vunpack.c.l.b16 %v11621
    %v11754 = vunpack.c.l.b16 %v11622
    %v11755 = vunpack.c.l.b16 %v11623
    %v11756 = vunpack.c.l.b16 %v11624
    %v11757 = vunpack.c.l.b16 %v11625
    %v11758 = vunpack.c.l.b16 %v11626
    %v11759 = vunpack.c.l.b16 %v11627
    %v11760 = vunpack.c.l.b16 %v11628
    %v11761 = vpack.c.b16 %v11698, %v11697
    %v11762 = vpack.c.b16 %v11700, %v11699
    %v11763 = vpack.c.b16 %v11702, %v11701
    %v11764 = vpack.c.b16 %v11704, %v11703
    %v11765 = vpack.c.b16 %v11706, %v11705
    %v11766 = vpack.c.b16 %v11708, %v11707
    %v11767 = vpack.c.b16 %v11710, %v11709
    %v11768 = vpack.c.b16 %v11712, %v11711
    %v11769 = vpack.c.b16 %v11714, %v11713
    %v11770 = vpack.c.b16 %v11716, %v11715
    %v11771 = vpack.c.b16 %v11718, %v11717
    %v11772 = vpack.c.b16 %v11720, %v11719
    %v11773 = vpack.c.b16 %v11722, %v11721
    %v11774 = vpack.c.b16 %v11724, %v11723
    %v11775 = vpack.c.b16 %v11726, %v11725
    %v11776 = vpack.c.b16 %v11728, %v11727
    %v11777 = vpack.c.b16 %v11730, %v11729
    %v11778 = vpack.c.b16 %v11732, %v11731
    %v11779 = vpack.c.b16 %v11734, %v11733
    %v11780 = vpack.c.b16 %v11736, %v11735
    %v11781 = vpack.c.b16 %v11738, %v11737
    %v11782 = vpack.c.b16 %v11740, %v11739
    %v11783 = vpack.c.b16 %v11742, %v11741
    %v11784 = vpack.c.b16 %v11744, %v11743
    %v11785 = vpack.c.b16 %v11746, %v11745
    %v11786 = vpack.c.b16 %v11748, %v11747
    %v11787 = vpack.c.b16 %v11750, %v11749
    %v11788 = vpack.c.b16 %v11752, %v11751
    %v11789 = vpack.c.b16 %v11754, %v11753
    %v11790 = vpack.c.b16 %v11756, %v11755
    %v11791 = vpack.c.b16 %v11758, %v11757
    %v11792 = vpack.c.b16 %v11760, %v11759
    %11825 = vmatpush.bf16.msra.mxu0 %v11768
    %11826 = vmatpush.bf16.msra.mxu0 %v11767
    %11827 = vmatpush.bf16.msra.mxu0 %v11766
    %11828 = vmatpush.bf16.msra.mxu0 %v11765
    %11829 = vmatpush.bf16.msra.mxu0 %v11764
    %11830 = vmatpush.bf16.msra.mxu0 %v11763
    %11831 = vmatpush.bf16.msra.mxu0 %v11762
    %11832 = vmatpush.bf16.msra.mxu0 %v11761
    %11833 = vmatmul.bf16.gmra.mxu0 %v11561
    %v11834 = vpop.f32.mrf.mxu0
    %v11835 = vadd.f32 %v11631, %v11834
    %v11836 = vpop.f32.mrf.mxu0
    %11837 = vdwg.mxu0
    %11838 = vmatpush.bf16.msra.mxu0 %v11776
    %11839 = vmatpush.bf16.msra.mxu0 %v11775
    %11840 = vmatpush.bf16.msra.mxu0 %v11774
    %11841 = vmatpush.bf16.msra.mxu0 %v11773
    %11842 = vmatpush.bf16.msra.mxu0 %v11772
    %11843 = vmatpush.bf16.msra.mxu0 %v11771
    %11844 = vmatpush.bf16.msra.mxu0 %v11770
    %11845 = vmatpush.bf16.msra.mxu0 %v11769
    %11846 = vmatmul.bf16.gmra.mxu0 %v11562
    %v11847 = vpop.f32.mrf.mxu0
    %v11848 = vadd.f32 %v11835, %v11847
    %v11849 = vpop.f32.mrf.mxu0
    %11850 = vdwg.mxu0
    %11851 = vmatpush.bf16.msra.mxu0 %v11784
    %11852 = vmatpush.bf16.msra.mxu0 %v11783
    %11853 = vmatpush.bf16.msra.mxu0 %v11782
    %11854 = vmatpush.bf16.msra.mxu0 %v11781
    %11855 = vmatpush.bf16.msra.mxu0 %v11780
    %11856 = vmatpush.bf16.msra.mxu0 %v11779
    %11857 = vmatpush.bf16.msra.mxu0 %v11778
    %11858 = vmatpush.bf16.msra.mxu0 %v11777
    %11859 = vmatmul.bf16.gmra.mxu0 %v11563
    %v11860 = vpop.f32.mrf.mxu0
    %v11861 = vadd.f32 %v11848, %v11860
    %v11862 = vpop.f32.mrf.mxu0
    %11863 = vdwg.mxu0
    %11864 = vmatpush.bf16.msra.mxu0 %v11792
    %11865 = vmatpush.bf16.msra.mxu0 %v11791
    %11866 = vmatpush.bf16.msra.mxu0 %v11790
    %11867 = vmatpush.bf16.msra.mxu0 %v11789
    %11868 = vmatpush.bf16.msra.mxu0 %v11788
    %11869 = vmatpush.bf16.msra.mxu0 %v11787
    %11870 = vmatpush.bf16.msra.mxu0 %v11786
    %11871 = vmatpush.bf16.msra.mxu0 %v11785
    %11872 = vmatmul.bf16.gmra.mxu0 %v11564
    %v11873 = vpop.f32.mrf.mxu0
    %v11874 = vadd.f32 %v11861, %v11873
    %v11875 = vpop.f32.mrf.mxu0
    %11876 = vdwg.mxu0
    %11877 = vst [vmem:[#allocation11] sm:$0x3] %v11874
    // Predicated region
    $region46: #{enhanced_scaling_cnn_forward.1} parent=1 // pred_check
      _
    $region47: #{enhanced_scaling_cnn_forward.1} parent=1 // pred_check_branch
      %11879 = sbr.rel (0) target = $region49
    $region48: #{enhanced_scaling_cnn_forward.1} parent=1 // pred_region
      %11881 = vsyncadd [#allocation12], 0
      %s11883 = sshll.u32 [#allocation11], 4
      %s11884 = int_to_ptr.vmem [resolvable:$true] %s11883
      %s11885 = sshll.u32 %s11, 4
      %s11886 = int_to_ptr.hbm [resolvable:$true] %s11885
      %11888 = dma.vmem_to_hbm [thread:$0]  %s11884, 32, %s11886, [#allocation12]
    $region49: #{enhanced_scaling_cnn_forward.1} parent=1 // pred_fallthru
      _
    // Predicated region
    $region50: #{enhanced_scaling_cnn_forward.1} parent=1 // pred_check
      _
    $region51: #{enhanced_scaling_cnn_forward.1} parent=1 // pred_check_branch
      %11890 = sbr.rel (0) target = $region53
    $region52: #{enhanced_scaling_cnn_forward.1} parent=1 // pred_region
      %11892 = dma.done [#allocation12], 32
    $region53: #{enhanced_scaling_cnn_forward.1} parent=1 // pred_fallthru
      _
    %11893 = vsyncpa [#allocation12], 1

</llo_original>
